<compile_context>
chip_gen: v7x
topology: tpu7x:2x2x1
jax: 0.10.0
libtpu: 0.0.40
codegen_flags: <defaults>
</compile_context>

<pallas_src>
import functools

import jax
import jax.numpy as jnp
from jax.experimental import pallas as pl
from jax.experimental.pallas import tpu as pltpu


def _round_up(x, m):
    return (x + m - 1) // m * m


# ----------------------------------------------------------------------------
# Kernel 1: fused conv matmul + (BN-folded) bias + LeakyReLU + 2x2 max-pool.
#
# The patch matrix `a` has its rows grouped by pool-window position:
#   row = q * Mp + (n*Hp + ph)*Wp + pw,  q = 2*dr + dc in {0..3}
# so the 2x2 max pool is a 4-way elementwise max of contiguous, sublane-aligned
# row blocks and the kernel emits the pooled (Mp, tn) tile directly.
# ----------------------------------------------------------------------------
def _conv_pool_kernel(a_ref, w_ref, b_ref, o_ref, *, slope, mp):
    acc = jnp.dot(a_ref[...], w_ref[...], preferred_element_type=jnp.float32)
    acc = acc + b_ref[...]                               # f32 epilogue (v5e-safe)
    acc = jnp.where(acc >= 0.0, acc, acc * slope)        # LeakyReLU(0.1)
    pooled = jnp.maximum(
        jnp.maximum(acc[0 * mp:1 * mp], acc[1 * mp:2 * mp]),
        jnp.maximum(acc[2 * mp:3 * mp], acc[3 * mp:4 * mp]))
    o_ref[...] = pooled.astype(o_ref.dtype)


def _cout_tile(cout):
    # Lane-dense (>=128) output tiles; keep 2 parallel blocks for Cout >= 256 so
    # both v7x TensorCores get work. Small channel counts fall back to full-N.
    if cout % 256 == 0:
        return cout // 2
    if cout % 128 == 0:
        return 128
    return cout


def im2col_pool_grouped(x):
    """(N,H,W,C) NHWC -> (4*Mp_pad, 9*C) patch matrix, 3x3 'same', tap order
    (dh, dw, c). Rows grouped by 2x2-pool window position; each group padded to
    a multiple of 8 rows so in-kernel slices/stores stay sublane-aligned."""
    n, h, w, c = x.shape
    hp, wp = h // 2, w // 2
    mp = n * hp * wp
    mp_pad = _round_up(mp, 8)
    xp = jnp.pad(x, ((0, 0), (1, 1), (1, 1), (0, 0)))
    cols = [xp[:, dh:dh + h, dw:dw + w, :] for dh in range(3) for dw in range(3)]
    patches = jnp.concatenate(cols, axis=-1)              # (N, H, W, 9C)
    patches = patches.reshape(n, hp, 2, wp, 2, 9 * c)
    patches = patches.transpose(2, 4, 0, 1, 3, 5)          # (2, 2, N, Hp, Wp, 9C)
    patches = patches.reshape(4, mp, 9 * c)
    if mp_pad != mp:
        patches = jnp.pad(patches, ((0, 0), (0, mp_pad - mp), (0, 0)))
    return patches.reshape(4 * mp_pad, 9 * c)


def conv_bn_lrelu_pool(x, w, conv_b, gamma, beta, mean, var,
                       *, slope=0.1, eps=1e-5):
    """3x3 same conv + BatchNorm(eval) + LeakyReLU(0.1) + MaxPool2d(2)."""
    n, h, ww, cin = x.shape
    hp, wp = h // 2, ww // 2
    cout = w.shape[-1]
    k = 9 * cin
    mp = n * hp * wp
    mp_pad = _round_up(mp, 8)

    # Fold BatchNorm (running stats) into the matmul: scale -> weight columns,
    # shift -> bias, so the kernel epilogue is just add + LeakyReLU.
    scale = gamma / jnp.sqrt(var + eps)
    wmat = (w.reshape(k, cout) * scale[None, :]).astype(jnp.bfloat16)
    bias = (beta + (conv_b - mean) * scale).reshape(1, cout).astype(jnp.float32)

    # TODO(synk): patch extraction still runs in XLA (one small HBM round trip);
    # fully in-kernel im2col would need shifted-window index_maps.
    a = im2col_pool_grouped(x).astype(jnp.bfloat16)        # (4*mp_pad, k)

    tn = _cout_tile(cout)
    y = pl.pallas_call(
        functools.partial(_conv_pool_kernel, slope=slope, mp=mp_pad),
        out_shape=jax.ShapeDtypeStruct((mp_pad, cout), jnp.float32),
        grid_spec=pltpu.PrefetchScalarGridSpec(
            num_scalar_prefetch=0,
            grid=(cout // tn,),
            in_specs=[
                pl.BlockSpec((4 * mp_pad, k), lambda j: (0, 0)),
                pl.BlockSpec((k, tn), lambda j: (0, j)),
                pl.BlockSpec((1, tn), lambda j: (0, j)),
            ],
            out_specs=pl.BlockSpec((mp_pad, tn), lambda j: (0, j)),
        ),
        # Per-step working set is ~1-3 MiB (well under the default scoped VMEM
        # limit on v5e/v6e/v7x), so no vmem_limit_bytes override is needed.
        compiler_params=pltpu.CompilerParams(
            dimension_semantics=("parallel",)),
    )(a, wmat, bias)
    return y[:mp].reshape(n, hp, wp, cout)


# ----------------------------------------------------------------------------
# Kernel 2: fused classifier head (fc1 -> Dropout(identity) -> fc2), one launch.
# ----------------------------------------------------------------------------
def _head_kernel(x_ref, w1_ref, b1_ref, w2_ref, b2_ref, o_ref):
    h = jnp.dot(x_ref[...], w1_ref[...], preferred_element_type=jnp.float32)
    h = h + b1_ref[...]                                   # fc1 (no activation)
    # nn.Dropout(0.5) -> identity in inference mode.
    o = jnp.dot(h.astype(jnp.bfloat16), w2_ref[...],
                preferred_element_type=jnp.float32)
    o_ref[...] = (o + b2_ref[...]).astype(o_ref.dtype)


def head_fc(feat, w1, b1, w2, b2):
    n, d = feat.shape
    dh = w1.shape[1]
    nc = w2.shape[1]
    return pl.pallas_call(
        _head_kernel,
        out_shape=jax.ShapeDtypeStruct((n, nc), jnp.float32),
        grid_spec=pltpu.PrefetchScalarGridSpec(
            num_scalar_prefetch=0,
            grid=(1,),
            in_specs=[
                pl.BlockSpec((n, d), lambda i: (0, 0)),
                pl.BlockSpec((d, dh), lambda i: (0, 0)),
                pl.BlockSpec((1, dh), lambda i: (0, 0)),
                pl.BlockSpec((dh, nc), lambda i: (0, 0)),
                pl.BlockSpec((1, nc), lambda i: (0, 0)),
            ],
            out_specs=pl.BlockSpec((n, nc), lambda i: (0, 0)),
        ),
        compiler_params=pltpu.CompilerParams(
            dimension_semantics=("arbitrary",)),
    )(feat.astype(jnp.bfloat16), w1.astype(jnp.bfloat16),
      b1.reshape(1, dh).astype(jnp.float32),
      w2.astype(jnp.bfloat16),
      b2.reshape(1, nc).astype(jnp.float32))


# ----------------------------------------------------------------------------
# Model
# ----------------------------------------------------------------------------
def init_params(key, in_channels, num_classes):
    params = {}
    chans = [in_channels, 64, 128, 256, 512]
    keys = jax.random.split(key, 12)
    ki = 0
    for l in range(4):
        cin, cout = chans[l], chans[l + 1]
        fan_in = 9 * cin
        params[f"conv{l}_w"] = (jax.random.normal(keys[ki], (3, 3, cin, cout),
                                                  jnp.float32)
                                / jnp.sqrt(float(fan_in)))
        ki += 1
        params[f"conv{l}_b"] = 0.01 * jax.random.normal(keys[ki], (cout,),
                                                        jnp.float32)
        ki += 1
        params[f"bn{l}_gamma"] = jnp.ones((cout,), jnp.float32)
        params[f"bn{l}_beta"] = jnp.zeros((cout,), jnp.float32)
        params[f"bn{l}_mean"] = jnp.zeros((cout,), jnp.float32)
        params[f"bn{l}_var"] = jnp.ones((cout,), jnp.float32)
    params["fc1_w"] = jax.random.normal(keys[ki], (512, 256),
                                        jnp.float32) / jnp.sqrt(512.0)
    ki += 1
    params["fc1_b"] = jnp.zeros((256,), jnp.float32)
    params["fc2_w"] = jax.random.normal(keys[ki], (256, num_classes),
                                        jnp.float32) / jnp.sqrt(256.0)
    ki += 1
    params["fc2_b"] = jnp.zeros((num_classes,), jnp.float32)
    return params


def cnn_forward(params, x_nchw):
    # PyTorch feeds NCHW; use NHWC on-TPU.
    x = jnp.transpose(x_nchw, (0, 2, 3, 1)).astype(jnp.float32)
    for l in range(4):
        x = conv_bn_lrelu_pool(
            x, params[f"conv{l}_w"], params[f"conv{l}_b"],
            params[f"bn{l}_gamma"], params[f"bn{l}_beta"],
            params[f"bn{l}_mean"], params[f"bn{l}_var"])
        # nn.Dropout(0.3) -> identity at inference.
    n, hp, wp, c = x.shape
    # AdaptiveAvgPool2d(1) + flatten. For 16x16 inputs the spatial size is
    # already 1x1 here, so this is just a (free) reshape.
    feat = x.reshape(n, c) if (hp == 1 and wp == 1) else jnp.mean(x, axis=(1, 2))
    # fc1 -> Dropout(identity) -> fc2 fused into one tiny Pallas kernel.
    return head_fc(feat, params["fc1_w"], params["fc1_b"],
                   params["fc2_w"], params["fc2_b"])


if __name__ == "__main__":
    in_channels, num_classes = 3, 10
    batch, spatial = 2, 16  # 16 -> 8 -> 4 -> 2 -> 1 after the four MaxPool2d(2)

    x = jax.random.normal(jax.random.PRNGKey(0),
                          (batch, in_channels, spatial, spatial), jnp.float32)
    params = init_params(jax.random.PRNGKey(42), in_channels, num_classes)

    fwd = jax.jit(cnn_forward)
    out = jax.block_until_ready(fwd(params, x))
    assert out.shape == (batch, num_classes), out.shape
    assert bool(jnp.all(jnp.isfinite(out)))
    print("KERNEL_OK")
</pallas_src>

<mosaic_0001>
module attributes {stable_mosaic.version = 11 : i64} {
  func.func @_conv_pool_kernel(%arg0: i32, %arg1: memref<512x27xbf16, #tpu.memory_space<vmem>>, %arg2: memref<27x64xbf16, #tpu.memory_space<vmem>>, %arg3: memref<1x64xf32, #tpu.memory_space<vmem>>, %arg4: memref<128x64xf32, #tpu.memory_space<vmem>>) attributes {dimension_semantics = [#tpu.dimension_semantics<parallel>], iteration_bounds = array<i64: 1>, scalar_prefetch = 0 : i64, scratch_operands = 0 : i64, tpu.core_type = #tpu.core_type<tc>, window_params = [{pipeline_mode = #tpu.pipeline_mode<synchronous>, transform_indices = @transform_0, window_bounds = array<i64: 512, 27>}, {transform_indices = @transform_1, window_bounds = array<i64: 27, 64>}, {transform_indices = @transform_2, window_bounds = array<i64: 1, 64>}, {transform_indices = @transform_3, window_bounds = array<i64: 128, 64>}]} {
    %c0 = arith.constant 0 : index
    %c0_0 = arith.constant 0 : index
    %0 = vector.load %arg1[%c0, %c0_0] : memref<512x27xbf16, #tpu.memory_space<vmem>>, vector<512x27xbf16>
    %c0_1 = arith.constant 0 : index
    %c0_2 = arith.constant 0 : index
    %1 = vector.load %arg2[%c0_1, %c0_2] : memref<27x64xbf16, #tpu.memory_space<vmem>>, vector<27x64xbf16>
    %cst = arith.constant dense<0.000000e+00> : vector<512x64xf32>
    %2 = tpu.matmul %0, %1, %cst {dimension_numbers = #tpu.dot_dimension_numbers<[1], [0], [0], [1], [0, 0, 1, 1], [], []>} : vector<512x27xbf16>, vector<27x64xbf16>, vector<512x64xf32> -> vector<512x64xf32>
    %c0_3 = arith.constant 0 : index
    %c0_4 = arith.constant 0 : index
    %3 = vector.load %arg3[%c0_3, %c0_4] : memref<1x64xf32, #tpu.memory_space<vmem>>, vector<1x64xf32>
    %4 = vector.broadcast %3 : vector<1x64xf32> to vector<512x64xf32>
    %5 = arith.addf %2, %4 : vector<512x64xf32>
    %cst_5 = arith.constant 0.000000e+00 : f32
    %6 = vector.broadcast %cst_5 : f32 to vector<512x64xf32>
    %7 = arith.cmpf oge, %5, %6 : vector<512x64xf32>
    %cst_6 = arith.constant 1.000000e-01 : f32
    %8 = vector.broadcast %cst_6 : f32 to vector<512x64xf32>
    %9 = arith.mulf %5, %8 : vector<512x64xf32>
    %10 = arith.select %7, %5, %9 : vector<512x64xi1>, vector<512x64xf32>
    %11 = vector.extract_strided_slice %10 {offsets = [0, 0], sizes = [128, 64], strides = [1, 1]} : vector<512x64xf32> to vector<128x64xf32>
    %12 = vector.extract_strided_slice %10 {offsets = [128, 0], sizes = [128, 64], strides = [1, 1]} : vector<512x64xf32> to vector<128x64xf32>
    %13 = arith.maximumf %11, %12 : vector<128x64xf32>
    %14 = vector.extract_strided_slice %10 {offsets = [256, 0], sizes = [128, 64], strides = [1, 1]} : vector<512x64xf32> to vector<128x64xf32>
    %15 = vector.extract_strided_slice %10 {offsets = [384, 0], sizes = [128, 64], strides = [1, 1]} : vector<512x64xf32> to vector<128x64xf32>
    %16 = arith.maximumf %14, %15 : vector<128x64xf32>
    %17 = arith.maximumf %13, %16 : vector<128x64xf32>
    %c0_7 = arith.constant 0 : index
    %c0_8 = arith.constant 0 : index
    %18 = vector.load %arg4[%c0_7, %c0_8] : memref<128x64xf32, #tpu.memory_space<vmem>>, vector<128x64xf32>
    tpu.vector_store %arg4[%c0_7, %c0_8], %17 {strides = array<i32>} : memref<128x64xf32, #tpu.memory_space<vmem>>, vector<128x64xf32>,
    return
  }
  func.func @transform_0(%arg0: i32) -> (i32, i32) {
    %c0_i32 = arith.constant 0 : i32
    %c0_i32_0 = arith.constant 0 : i32
    %c0_i32_1 = arith.constant 0 : i32
    return %c0_i32, %c0_i32_0 : i32, i32
  }
  func.func @transform_1(%arg0: i32) -> (i32, i32) {
    %c0_i32 = arith.constant 0 : i32
    %c0_i32_0 = arith.constant 0 : i32
    return %c0_i32, %arg0 : i32, i32
  }
  func.func @transform_2(%arg0: i32) -> (i32, i32) {
    %c0_i32 = arith.constant 0 : i32
    %c0_i32_0 = arith.constant 0 : i32
    return %c0_i32, %arg0 : i32, i32
  }
  func.func @transform_3(%arg0: i32) -> (i32, i32) {
    %c0_i32 = arith.constant 0 : i32
    %c0_i32_0 = arith.constant 0 : i32
    return %c0_i32, %arg0 : i32, i32
  }
}

module attributes {stable_mosaic.version = 11 : i64} {
  func.func @_conv_pool_kernel(%arg0: i32, %arg1: memref<128x576xbf16, #tpu.memory_space<vmem>>, %arg2: memref<576x128xbf16, #tpu.memory_space<vmem>>, %arg3: memref<1x128xf32, #tpu.memory_space<vmem>>, %arg4: memref<32x128xf32, #tpu.memory_space<vmem>>) attributes {dimension_semantics = [#tpu.dimension_semantics<parallel>], iteration_bounds = array<i64: 1>, scalar_prefetch = 0 : i64, scratch_operands = 0 : i64, tpu.core_type = #tpu.core_type<tc>, window_params = [{pipeline_mode = #tpu.pipeline_mode<synchronous>, transform_indices = @transform_0, window_bounds = array<i64: 128, 576>}, {transform_indices = @transform_1, window_bounds = array<i64: 576, 128>}, {transform_indices = @transform_2, window_bounds = array<i64: 1, 128>}, {transform_indices = @transform_3, window_bounds = array<i64: 32, 128>}]} {
    %c0 = arith.constant 0 : index
    %c0_0 = arith.constant 0 : index
    %0 = vector.load %arg1[%c0, %c0_0] : memref<128x576xbf16, #tpu.memory_space<vmem>>, vector<128x576xbf16>
    %c0_1 = arith.constant 0 : index
    %c0_2 = arith.constant 0 : index
    %1 = vector.load %arg2[%c0_1, %c0_2] : memref<576x128xbf16, #tpu.memory_space<vmem>>, vector<576x128xbf16>
    %cst = arith.constant dense<0.000000e+00> : vector<128x128xf32>
    %2 = tpu.matmul %0, %1, %cst {dimension_numbers = #tpu.dot_dimension_numbers<[1], [0], [0], [1], [0, 0, 1, 1], [], []>} : vector<128x576xbf16>, vector<576x128xbf16>, vector<128x128xf32> -> vector<128x128xf32>
    %c0_3 = arith.constant 0 : index
    %c0_4 = arith.constant 0 : index
    %3 = vector.load %arg3[%c0_3, %c0_4] : memref<1x128xf32, #tpu.memory_space<vmem>>, vector<1x128xf32>
    %4 = vector.broadcast %3 : vector<1x128xf32> to vector<128x128xf32>
    %5 = arith.addf %2, %4 : vector<128x128xf32>
    %cst_5 = arith.constant 0.000000e+00 : f32
    %6 = vector.broadcast %cst_5 : f32 to vector<128x128xf32>
    %7 = arith.cmpf oge, %5, %6 : vector<128x128xf32>
    %cst_6 = arith.constant 1.000000e-01 : f32
    %8 = vector.broadcast %cst_6 : f32 to vector<128x128xf32>
    %9 = arith.mulf %5, %8 : vector<128x128xf32>
    %10 = arith.select %7, %5, %9 : vector<128x128xi1>, vector<128x128xf32>
    %11 = vector.extract_strided_slice %10 {offsets = [0, 0], sizes = [32, 128], strides = [1, 1]} : vector<128x128xf32> to vector<32x128xf32>
    %12 = vector.extract_strided_slice %10 {offsets = [32, 0], sizes = [32, 128], strides = [1, 1]} : vector<128x128xf32> to vector<32x128xf32>
    %13 = arith.maximumf %11, %12 : vector<32x128xf32>
    %14 = vector.extract_strided_slice %10 {offsets = [64, 0], sizes = [32, 128], strides = [1, 1]} : vector<128x128xf32> to vector<32x128xf32>
    %15 = vector.extract_strided_slice %10 {offsets = [96, 0], sizes = [32, 128], strides = [1, 1]} : vector<128x128xf32> to vector<32x128xf32>
    %16 = arith.maximumf %14, %15 : vector<32x128xf32>
    %17 = arith.maximumf %13, %16 : vector<32x128xf32>
    %c0_7 = arith.constant 0 : index
    %c0_8 = arith.constant 0 : index
    %18 = vector.load %arg4[%c0_7, %c0_8] : memref<32x128xf32, #tpu.memory_space<vmem>>, vector<32x128xf32>
    tpu.vector_store %arg4[%c0_7, %c0_8], %17 {strides = array<i32>} : memref<32x128xf32, #tpu.memory_space<vmem>>, vector<32x128xf32>,
    return
  }
  func.func @transform_0(%arg0: i32) -> (i32, i32) {
    %c0_i32 = arith.constant 0 : i32
    %c0_i32_0 = arith.constant 0 : i32
    %c0_i32_1 = arith.constant 0 : i32
    return %c0_i32, %c0_i32_0 : i32, i32
  }
  func.func @transform_1(%arg0: i32) -> (i32, i32) {
    %c0_i32 = arith.constant 0 : i32
    %c0_i32_0 = arith.constant 0 : i32
    return %c0_i32, %arg0 : i32, i32
  }
  func.func @transform_2(%arg0: i32) -> (i32, i32) {
    %c0_i32 = arith.constant 0 : i32
    %c0_i32_0 = arith.constant 0 : i32
    return %c0_i32, %arg0 : i32, i32
  }
  func.func @transform_3(%arg0: i32) -> (i32, i32) {
    %c0_i32 = arith.constant 0 : i32
    %c0_i32_0 = arith.constant 0 : i32
    return %c0_i32, %arg0 : i32, i32
  }
}

module attributes {stable_mosaic.version = 11 : i64} {
  func.func @_conv_pool_kernel(%arg0: i32, %arg1: memref<32x1152xbf16, #tpu.memory_space<vmem>>, %arg2: memref<1152x128xbf16, #tpu.memory_space<vmem>>, %arg3: memref<1x128xf32, #tpu.memory_space<vmem>>, %arg4: memref<8x128xf32, #tpu.memory_space<vmem>>) attributes {dimension_semantics = [#tpu.dimension_semantics<parallel>], iteration_bounds = array<i64: 2>, scalar_prefetch = 0 : i64, scratch_operands = 0 : i64, tpu.core_type = #tpu.core_type<tc>, window_params = [{pipeline_mode = #tpu.pipeline_mode<synchronous>, transform_indices = @transform_0, window_bounds = array<i64: 32, 1152>}, {transform_indices = @transform_1, window_bounds = array<i64: 1152, 128>}, {transform_indices = @transform_2, window_bounds = array<i64: 1, 128>}, {transform_indices = @transform_3, window_bounds = array<i64: 8, 128>}]} {
    %c0 = arith.constant 0 : index
    %c0_0 = arith.constant 0 : index
    %0 = vector.load %arg1[%c0, %c0_0] : memref<32x1152xbf16, #tpu.memory_space<vmem>>, vector<32x1152xbf16>
    %c0_1 = arith.constant 0 : index
    %c0_2 = arith.constant 0 : index
    %1 = vector.load %arg2[%c0_1, %c0_2] : memref<1152x128xbf16, #tpu.memory_space<vmem>>, vector<1152x128xbf16>
    %cst = arith.constant dense<0.000000e+00> : vector<32x128xf32>
    %2 = tpu.matmul %0, %1, %cst {dimension_numbers = #tpu.dot_dimension_numbers<[1], [0], [0], [1], [0, 0, 1, 1], [], []>} : vector<32x1152xbf16>, vector<1152x128xbf16>, vector<32x128xf32> -> vector<32x128xf32>
    %c0_3 = arith.constant 0 : index
    %c0_4 = arith.constant 0 : index
    %3 = vector.load %arg3[%c0_3, %c0_4] : memref<1x128xf32, #tpu.memory_space<vmem>>, vector<1x128xf32>
    %4 = vector.broadcast %3 : vector<1x128xf32> to vector<32x128xf32>
    %5 = arith.addf %2, %4 : vector<32x128xf32>
    %cst_5 = arith.constant 0.000000e+00 : f32
    %6 = vector.broadcast %cst_5 : f32 to vector<32x128xf32>
    %7 = arith.cmpf oge, %5, %6 : vector<32x128xf32>
    %cst_6 = arith.constant 1.000000e-01 : f32
    %8 = vector.broadcast %cst_6 : f32 to vector<32x128xf32>
    %9 = arith.mulf %5, %8 : vector<32x128xf32>
    %10 = arith.select %7, %5, %9 : vector<32x128xi1>, vector<32x128xf32>
    %11 = vector.extract_strided_slice %10 {offsets = [0, 0], sizes = [8, 128], strides = [1, 1]} : vector<32x128xf32> to vector<8x128xf32>
    %12 = vector.extract_strided_slice %10 {offsets = [8, 0], sizes = [8, 128], strides = [1, 1]} : vector<32x128xf32> to vector<8x128xf32>
    %13 = arith.maximumf %11, %12 : vector<8x128xf32>
    %14 = vector.extract_strided_slice %10 {offsets = [16, 0], sizes = [8, 128], strides = [1, 1]} : vector<32x128xf32> to vector<8x128xf32>
    %15 = vector.extract_strided_slice %10 {offsets = [24, 0], sizes = [8, 128], strides = [1, 1]} : vector<32x128xf32> to vector<8x128xf32>
    %16 = arith.maximumf %14, %15 : vector<8x128xf32>
    %17 = arith.maximumf %13, %16 : vector<8x128xf32>
    %c0_7 = arith.constant 0 : index
    %c0_8 = arith.constant 0 : index
    %18 = vector.load %arg4[%c0_7, %c0_8] : memref<8x128xf32, #tpu.memory_space<vmem>>, vector<8x128xf32>
    tpu.vector_store %arg4[%c0_7, %c0_8], %17 {strides = array<i32>} : memref<8x128xf32, #tpu.memory_space<vmem>>, vector<8x128xf32>,
    return
  }
  func.func @transform_0(%arg0: i32) -> (i32, i32) {
    %c0_i32 = arith.constant 0 : i32
    %c0_i32_0 = arith.constant 0 : i32
    %c0_i32_1 = arith.constant 0 : i32
    return %c0_i32, %c0_i32_0 : i32, i32
  }
  func.func @transform_1(%arg0: i32) -> (i32, i32) {
    %c0_i32 = arith.constant 0 : i32
    %c0_i32_0 = arith.constant 0 : i32
    return %c0_i32, %arg0 : i32, i32
  }
  func.func @transform_2(%arg0: i32) -> (i32, i32) {
    %c0_i32 = arith.constant 0 : i32
    %c0_i32_0 = arith.constant 0 : i32
    return %c0_i32, %arg0 : i32, i32
  }
  func.func @transform_3(%arg0: i32) -> (i32, i32) {
    %c0_i32 = arith.constant 0 : i32
    %c0_i32_0 = arith.constant 0 : i32
    return %c0_i32, %arg0 : i32, i32
  }
}

module attributes {stable_mosaic.version = 11 : i64} {
  func.func @_conv_pool_kernel(%arg0: i32, %arg1: memref<32x2304xbf16, #tpu.memory_space<vmem>>, %arg2: memref<2304x256xbf16, #tpu.memory_space<vmem>>, %arg3: memref<1x256xf32, #tpu.memory_space<vmem>>, %arg4: memref<8x256xf32, #tpu.memory_space<vmem>>) attributes {dimension_semantics = [#tpu.dimension_semantics<parallel>], iteration_bounds = array<i64: 2>, scalar_prefetch = 0 : i64, scratch_operands = 0 : i64, tpu.core_type = #tpu.core_type<tc>, window_params = [{pipeline_mode = #tpu.pipeline_mode<synchronous>, transform_indices = @transform_0, window_bounds = array<i64: 32, 2304>}, {transform_indices = @transform_1, window_bounds = array<i64: 2304, 256>}, {transform_indices = @transform_2, window_bounds = array<i64: 1, 256>}, {transform_indices = @transform_3, window_bounds = array<i64: 8, 256>}]} {
    %c0 = arith.constant 0 : index
    %c0_0 = arith.constant 0 : index
    %0 = vector.load %arg1[%c0, %c0_0] : memref<32x2304xbf16, #tpu.memory_space<vmem>>, vector<32x2304xbf16>
    %c0_1 = arith.constant 0 : index
    %c0_2 = arith.constant 0 : index
    %1 = vector.load %arg2[%c0_1, %c0_2] : memref<2304x256xbf16, #tpu.memory_space<vmem>>, vector<2304x256xbf16>
    %cst = arith.constant dense<0.000000e+00> : vector<32x256xf32>
    %2 = tpu.matmul %0, %1, %cst {dimension_numbers = #tpu.dot_dimension_numbers<[1], [0], [0], [1], [0, 0, 1, 1], [], []>} : vector<32x2304xbf16>, vector<2304x256xbf16>, vector<32x256xf32> -> vector<32x256xf32>
    %c0_3 = arith.constant 0 : index
    %c0_4 = arith.constant 0 : index
    %3 = vector.load %arg3[%c0_3, %c0_4] : memref<1x256xf32, #tpu.memory_space<vmem>>, vector<1x256xf32>
    %4 = vector.broadcast %3 : vector<1x256xf32> to vector<32x256xf32>
    %5 = arith.addf %2, %4 : vector<32x256xf32>
    %cst_5 = arith.constant 0.000000e+00 : f32
    %6 = vector.broadcast %cst_5 : f32 to vector<32x256xf32>
    %7 = arith.cmpf oge, %5, %6 : vector<32x256xf32>
    %cst_6 = arith.constant 1.000000e-01 : f32
    %8 = vector.broadcast %cst_6 : f32 to vector<32x256xf32>
    %9 = arith.mulf %5, %8 : vector<32x256xf32>
    %10 = arith.select %7, %5, %9 : vector<32x256xi1>, vector<32x256xf32>
    %11 = vector.extract_strided_slice %10 {offsets = [0, 0], sizes = [8, 256], strides = [1, 1]} : vector<32x256xf32> to vector<8x256xf32>
    %12 = vector.extract_strided_slice %10 {offsets = [8, 0], sizes = [8, 256], strides = [1, 1]} : vector<32x256xf32> to vector<8x256xf32>
    %13 = arith.maximumf %11, %12 : vector<8x256xf32>
    %14 = vector.extract_strided_slice %10 {offsets = [16, 0], sizes = [8, 256], strides = [1, 1]} : vector<32x256xf32> to vector<8x256xf32>
    %15 = vector.extract_strided_slice %10 {offsets = [24, 0], sizes = [8, 256], strides = [1, 1]} : vector<32x256xf32> to vector<8x256xf32>
    %16 = arith.maximumf %14, %15 : vector<8x256xf32>
    %17 = arith.maximumf %13, %16 : vector<8x256xf32>
    %c0_7 = arith.constant 0 : index
    %c0_8 = arith.constant 0 : index
    %18 = vector.load %arg4[%c0_7, %c0_8] : memref<8x256xf32, #tpu.memory_space<vmem>>, vector<8x256xf32>
    tpu.vector_store %arg4[%c0_7, %c0_8], %17 {strides = array<i32>} : memref<8x256xf32, #tpu.memory_space<vmem>>, vector<8x256xf32>,
    return
  }
  func.func @transform_0(%arg0: i32) -> (i32, i32) {
    %c0_i32 = arith.constant 0 : i32
    %c0_i32_0 = arith.constant 0 : i32
    %c0_i32_1 = arith.constant 0 : i32
    return %c0_i32, %c0_i32_0 : i32, i32
  }
  func.func @transform_1(%arg0: i32) -> (i32, i32) {
    %c0_i32 = arith.constant 0 : i32
    %c0_i32_0 = arith.constant 0 : i32
    return %c0_i32, %arg0 : i32, i32
  }
  func.func @transform_2(%arg0: i32) -> (i32, i32) {
    %c0_i32 = arith.constant 0 : i32
    %c0_i32_0 = arith.constant 0 : i32
    return %c0_i32, %arg0 : i32, i32
  }
  func.func @transform_3(%arg0: i32) -> (i32, i32) {
    %c0_i32 = arith.constant 0 : i32
    %c0_i32_0 = arith.constant 0 : i32
    return %c0_i32, %arg0 : i32, i32
  }
}

module attributes {stable_mosaic.version = 11 : i64} {
  func.func @_head_kernel(%arg0: i32, %arg1: memref<2x512xbf16, #tpu.memory_space<vmem>>, %arg2: memref<512x256xbf16, #tpu.memory_space<vmem>>, %arg3: memref<1x256xf32, #tpu.memory_space<vmem>>, %arg4: memref<256x10xbf16, #tpu.memory_space<vmem>>, %arg5: memref<1x10xf32, #tpu.memory_space<vmem>>, %arg6: memref<2x10xf32, #tpu.memory_space<vmem>>) attributes {dimension_semantics = [#tpu.dimension_semantics<arbitrary>], iteration_bounds = array<i64: 1>, scalar_prefetch = 0 : i64, scratch_operands = 0 : i64, tpu.core_type = #tpu.core_type<tc>, window_params = [{pipeline_mode = #tpu.pipeline_mode<synchronous>, transform_indices = @transform_0, window_bounds = array<i64: 2, 512>}, {pipeline_mode = #tpu.pipeline_mode<synchronous>, transform_indices = @transform_1, window_bounds = array<i64: 512, 256>}, {pipeline_mode = #tpu.pipeline_mode<synchronous>, transform_indices = @transform_2, window_bounds = array<i64: 1, 256>}, {pipeline_mode = #tpu.pipeline_mode<synchronous>, transform_indices = @transform_3, window_bounds = array<i64: 256, 10>}, {pipeline_mode = #tpu.pipeline_mode<synchronous>, transform_indices = @transform_4, window_bounds = array<i64: 1, 10>}, {pipeline_mode = #tpu.pipeline_mode<synchronous>, transform_indices = @transform_5, window_bounds = array<i64: 2, 10>}]} {
    %c0 = arith.constant 0 : index
    %c0_0 = arith.constant 0 : index
    %0 = vector.load %arg1[%c0, %c0_0] : memref<2x512xbf16, #tpu.memory_space<vmem>>, vector<2x512xbf16>
    %c0_1 = arith.constant 0 : index
    %c0_2 = arith.constant 0 : index
    %1 = vector.load %arg2[%c0_1, %c0_2] : memref<512x256xbf16, #tpu.memory_space<vmem>>, vector<512x256xbf16>
    %cst = arith.constant dense<0.000000e+00> : vector<2x256xf32>
    %2 = tpu.matmul %0, %1, %cst {dimension_numbers = #tpu.dot_dimension_numbers<[1], [0], [0], [1], [0, 0, 1, 1], [], []>} : vector<2x512xbf16>, vector<512x256xbf16>, vector<2x256xf32> -> vector<2x256xf32>
    %c0_3 = arith.constant 0 : index
    %c0_4 = arith.constant 0 : index
    %3 = vector.load %arg3[%c0_3, %c0_4] : memref<1x256xf32, #tpu.memory_space<vmem>>, vector<1x256xf32>
    %4 = vector.broadcast %3 : vector<1x256xf32> to vector<2x256xf32>
    %5 = arith.addf %2, %4 : vector<2x256xf32>
    %6 = arith.truncf %5 : vector<2x256xf32> to vector<2x256xbf16>
    %c0_5 = arith.constant 0 : index
    %c0_6 = arith.constant 0 : index
    %7 = vector.load %arg4[%c0_5, %c0_6] : memref<256x10xbf16, #tpu.memory_space<vmem>>, vector<256x10xbf16>
    %cst_7 = arith.constant dense<0.000000e+00> : vector<2x10xf32>
    %8 = tpu.matmul %6, %7, %cst_7 {dimension_numbers = #tpu.dot_dimension_numbers<[1], [0], [0], [1], [0, 0, 1, 1], [], []>} : vector<2x256xbf16>, vector<256x10xbf16>, vector<2x10xf32> -> vector<2x10xf32>
    %c0_8 = arith.constant 0 : index
    %c0_9 = arith.constant 0 : index
    %9 = vector.load %arg5[%c0_8, %c0_9] : memref<1x10xf32, #tpu.memory_space<vmem>>, vector<1x10xf32>
    %10 = vector.broadcast %9 : vector<1x10xf32> to vector<2x10xf32>
    %11 = arith.addf %8, %10 : vector<2x10xf32>
    %c0_10 = arith.constant 0 : index
    %c0_11 = arith.constant 0 : index
    %12 = vector.load %arg6[%c0_10, %c0_11] : memref<2x10xf32, #tpu.memory_space<vmem>>, vector<2x10xf32>
    tpu.vector_store %arg6[%c0_10, %c0_11], %11 {strides = array<i32>} : memref<2x10xf32, #tpu.memory_space<vmem>>, vector<2x10xf32>,
    return
  }
  func.func @transform_0(%arg0: i32) -> (i32, i32) {
    %c0_i32 = arith.constant 0 : i32
    %c0_i32_0 = arith.constant 0 : i32
    %c0_i32_1 = arith.constant 0 : i32
    return %c0_i32, %c0_i32_0 : i32, i32
  }
  func.func @transform_1(%arg0: i32) -> (i32, i32) {
    %c0_i32 = arith.constant 0 : i32
    %c0_i32_0 = arith.constant 0 : i32
    %c0_i32_1 = arith.constant 0 : i32
    return %c0_i32, %c0_i32_0 : i32, i32
  }
  func.func @transform_2(%arg0: i32) -> (i32, i32) {
    %c0_i32 = arith.constant 0 : i32
    %c0_i32_0 = arith.constant 0 : i32
    %c0_i32_1 = arith.constant 0 : i32
    return %c0_i32, %c0_i32_0 : i32, i32
  }
  func.func @transform_3(%arg0: i32) -> (i32, i32) {
    %c0_i32 = arith.constant 0 : i32
    %c0_i32_0 = arith.constant 0 : i32
    %c0_i32_1 = arith.constant 0 : i32
    return %c0_i32, %c0_i32_0 : i32, i32
  }
  func.func @transform_4(%arg0: i32) -> (i32, i32) {
    %c0_i32 = arith.constant 0 : i32
    %c0_i32_0 = arith.constant 0 : i32
    %c0_i32_1 = arith.constant 0 : i32
    return %c0_i32, %c0_i32_0 : i32, i32
  }
  func.func @transform_5(%arg0: i32) -> (i32, i32) {
    %c0_i32 = arith.constant 0 : i32
    %c0_i32_0 = arith.constant 0 : i32
    %c0_i32_1 = arith.constant 0 : i32
    return %c0_i32, %c0_i32_0 : i32, i32
  }
}

</mosaic_0001>

<llo_original>
// kernel: cnn_forward.5
$region0: #{cnn_forward.5}
  #allocation0 [shape = 'u32[]', space=smem, size = 0x4, offset = 0x4, fixed_abs, tag = 'smem constant byte address 0x4 - core index']
  #allocation1 [shape = 'u32[144,128]{1,0:T(1,128)}', space=vmem, size = 0x12000, scoped, tag = 'internal scratch']
  %s0 = inlined_call_operand.vmem [shape: bf16[512,27], index: 0, kind: input, shape index: {}]
  %s1 = inlined_call_operand.vmem [shape: bf16[27,64], index: 1, kind: input, shape index: {}]
  %s2 = inlined_call_operand.vmem [shape: f32[1,64], index: 2, kind: input, shape index: {}]
  %s3 = inlined_call_operand.vmem [shape: f32[128,64], index: 3, kind: output, shape index: {}]
  %s4 = sld [smem:[#allocation0]]
  $region22: #{cnn_forward.5} parent=0
    _
  %s6 = ssub.s32 1, %s4
  %s7 = scalar_select 0, %s6, %s4
  // Predicated region
  $region2: #{cnn_forward.5} parent=0 // pred_check
    _
  $region3: #{cnn_forward.5} parent=0 // pred_check_branch
    %9 = sbr.rel (0) target = $region5
  $region4: #{cnn_forward.5} parent=0 // pred_region
    _
  $region5: #{cnn_forward.5} parent=0 // pred_fallthru
    _
  // Predicated region
  $region6: #{cnn_forward.5} parent=0 // pred_check
    _
  $region7: #{cnn_forward.5} parent=0 // pred_check_branch
    %11 = sbr.rel (0) target = $region9
  $region8: #{cnn_forward.5} parent=0 // pred_region
    _
  $region9: #{cnn_forward.5} parent=0 // pred_fallthru
    _
  // Predicated region
  $region10: #{cnn_forward.5} parent=0 // pred_check
    _
  $region11: #{cnn_forward.5} parent=0 // pred_check_branch
    %13 = sbr.rel (0) target = $region13
  $region12: #{cnn_forward.5} parent=0 // pred_region
    _
  $region13: #{cnn_forward.5} parent=0 // pred_fallthru
    _
  %v15 = vld [vmem:[%s0] sm:$0xf]
  %v16 = vld [vmem:[%s0 + $0x4] sm:$0xf]
  %v17 = vld [vmem:[%s0 + $0x8] sm:$0xf]
  %v18 = vld [vmem:[%s0 + $0xc] sm:$0xf]
  %v19 = vld [vmem:[%s0 + $0x10] sm:$0xf]
  %v20 = vld [vmem:[%s0 + $0x14] sm:$0xf]
  %v21 = vld [vmem:[%s0 + $0x18] sm:$0xf]
  %v22 = vld [vmem:[%s0 + $0x1c] sm:$0xf]
  %v23 = vld [vmem:[%s0 + $0x20] sm:$0xf]
  %v24 = vld [vmem:[%s0 + $0x24] sm:$0xf]
  %v25 = vld [vmem:[%s0 + $0x28] sm:$0xf]
  %v26 = vld [vmem:[%s0 + $0x2c] sm:$0xf]
  %v27 = vld [vmem:[%s0 + $0x30] sm:$0xf]
  %v28 = vld [vmem:[%s0 + $0x34] sm:$0xf]
  %v29 = vld [vmem:[%s0 + $0x38] sm:$0xf]
  %v30 = vld [vmem:[%s0 + $0x3c] sm:$0xf]
  %v31 = vld [vmem:[%s0 + $0x40] sm:$0xf]
  %v32 = vld [vmem:[%s0 + $0x44] sm:$0xf]
  %v33 = vld [vmem:[%s0 + $0x48] sm:$0xf]
  %v34 = vld [vmem:[%s0 + $0x4c] sm:$0xf]
  %v35 = vld [vmem:[%s0 + $0x50] sm:$0xf]
  %v36 = vld [vmem:[%s0 + $0x54] sm:$0xf]
  %v37 = vld [vmem:[%s0 + $0x58] sm:$0xf]
  %v38 = vld [vmem:[%s0 + $0x5c] sm:$0xf]
  %v39 = vld [vmem:[%s0 + $0x60] sm:$0xf]
  %v40 = vld [vmem:[%s0 + $0x64] sm:$0xf]
  %v41 = vld [vmem:[%s0 + $0x68] sm:$0xf]
  %v42 = vld [vmem:[%s0 + $0x6c] sm:$0xf]
  %v43 = vld [vmem:[%s0 + $0x70] sm:$0xf]
  %v44 = vld [vmem:[%s0 + $0x74] sm:$0xf]
  %v45 = vld [vmem:[%s0 + $0x78] sm:$0xf]
  %v46 = vld [vmem:[%s0 + $0x7c] sm:$0xf]
  %v47 = vld [vmem:[%s0 + $0x80] sm:$0xf]
  %v48 = vld [vmem:[%s0 + $0x84] sm:$0xf]
  %v49 = vld [vmem:[%s0 + $0x88] sm:$0xf]
  %v50 = vld [vmem:[%s0 + $0x8c] sm:$0xf]
  %v51 = vld [vmem:[%s0 + $0x90] sm:$0xf]
  %v52 = vld [vmem:[%s0 + $0x94] sm:$0xf]
  %v53 = vld [vmem:[%s0 + $0x98] sm:$0xf]
  %v54 = vld [vmem:[%s0 + $0x9c] sm:$0xf]
  %v55 = vld [vmem:[%s0 + $0xa0] sm:$0xf]
  %v56 = vld [vmem:[%s0 + $0xa4] sm:$0xf]
  %v57 = vld [vmem:[%s0 + $0xa8] sm:$0xf]
  %v58 = vld [vmem:[%s0 + $0xac] sm:$0xf]
  %v59 = vld [vmem:[%s0 + $0xb0] sm:$0xf]
  %v60 = vld [vmem:[%s0 + $0xb4] sm:$0xf]
  %v61 = vld [vmem:[%s0 + $0xb8] sm:$0xf]
  %v62 = vld [vmem:[%s0 + $0xbc] sm:$0xf]
  %v63 = vld [vmem:[%s0 + $0xc0] sm:$0xf]
  %v64 = vld [vmem:[%s0 + $0xc4] sm:$0xf]
  %v65 = vld [vmem:[%s0 + $0xc8] sm:$0xf]
  %v66 = vld [vmem:[%s0 + $0xcc] sm:$0xf]
  %v67 = vld [vmem:[%s0 + $0xd0] sm:$0xf]
  %v68 = vld [vmem:[%s0 + $0xd4] sm:$0xf]
  %v69 = vld [vmem:[%s0 + $0xd8] sm:$0xf]
  %v70 = vld [vmem:[%s0 + $0xdc] sm:$0xf]
  %v71 = vld [vmem:[%s0 + $0xe0] sm:$0xf]
  %v72 = vld [vmem:[%s0 + $0xe4] sm:$0xf]
  %v73 = vld [vmem:[%s0 + $0xe8] sm:$0xf]
  %v74 = vld [vmem:[%s0 + $0xec] sm:$0xf]
  %v75 = vld [vmem:[%s0 + $0xf0] sm:$0xf]
  %v76 = vld [vmem:[%s0 + $0xf4] sm:$0xf]
  %v77 = vld [vmem:[%s0 + $0xf8] sm:$0xf]
  %v78 = vld [vmem:[%s0 + $0xfc] sm:$0xf]
  %v79 = vld [vmem:[%s1] sm:$0xf]
  %v80 = vld [vmem:[%s1 + $0x4] sm:$0xf]
  %v81 = vld [vmem:[%s1 + $0x8] sm:$0xf]
  %v82 = vld [vmem:[%s1 + $0xc] sm:$0x3]
  %v83 = vld [vmem:[%s2] sm:$0x1]
  %v85 = vlaneseq
  %v86 = vshrl.u32 %v85, 7
  %v87 = vsub.s32 0, %v86
  %v88 = vrot.slane %v83, %v87
  %v154 = vunpack.c.l.b16 %v15
  %v155 = vunpack.c.l.b16 %v16
  %v156 = vunpack.c.l.b16 %v17
  %v157 = vunpack.c.l.b16 %v18
  %v158 = vunpack.c.l.b16 %v19
  %v159 = vunpack.c.l.b16 %v20
  %v160 = vunpack.c.l.b16 %v21
  %v161 = vunpack.c.l.b16 %v22
  %v162 = vunpack.c.l.b16 %v23
  %v163 = vunpack.c.l.b16 %v24
  %v164 = vunpack.c.l.b16 %v25
  %v165 = vunpack.c.l.b16 %v26
  %v166 = vunpack.c.l.b16 %v27
  %v167 = vunpack.c.l.b16 %v28
  %v168 = vunpack.c.l.b16 %v29
  %v169 = vunpack.c.l.b16 %v30
  %v170 = vunpack.c.l.b16 %v31
  %v171 = vunpack.c.l.b16 %v32
  %v172 = vunpack.c.l.b16 %v33
  %v173 = vunpack.c.l.b16 %v34
  %v174 = vunpack.c.l.b16 %v35
  %v175 = vunpack.c.l.b16 %v36
  %v176 = vunpack.c.l.b16 %v37
  %v177 = vunpack.c.l.b16 %v38
  %v178 = vunpack.c.l.b16 %v39
  %v179 = vunpack.c.l.b16 %v40
  %v180 = vunpack.c.l.b16 %v41
  %v181 = vunpack.c.l.b16 %v42
  %v182 = vunpack.c.l.b16 %v43
  %v183 = vunpack.c.l.b16 %v44
  %v184 = vunpack.c.l.b16 %v45
  %v185 = vunpack.c.l.b16 %v46
  %v186 = vunpack.c.l.b16 %v47
  %v187 = vunpack.c.l.b16 %v48
  %v188 = vunpack.c.l.b16 %v49
  %v189 = vunpack.c.l.b16 %v50
  %v190 = vunpack.c.l.b16 %v51
  %v191 = vunpack.c.l.b16 %v52
  %v192 = vunpack.c.l.b16 %v53
  %v193 = vunpack.c.l.b16 %v54
  %v194 = vunpack.c.l.b16 %v55
  %v195 = vunpack.c.l.b16 %v56
  %v196 = vunpack.c.l.b16 %v57
  %v197 = vunpack.c.l.b16 %v58
  %v198 = vunpack.c.l.b16 %v59
  %v199 = vunpack.c.l.b16 %v60
  %v200 = vunpack.c.l.b16 %v61
  %v201 = vunpack.c.l.b16 %v62
  %v202 = vunpack.c.l.b16 %v63
  %v203 = vunpack.c.l.b16 %v64
  %v204 = vunpack.c.l.b16 %v65
  %v205 = vunpack.c.l.b16 %v66
  %v206 = vunpack.c.l.b16 %v67
  %v207 = vunpack.c.l.b16 %v68
  %v208 = vunpack.c.l.b16 %v69
  %v209 = vunpack.c.l.b16 %v70
  %v210 = vunpack.c.l.b16 %v71
  %v211 = vunpack.c.l.b16 %v72
  %v212 = vunpack.c.l.b16 %v73
  %v213 = vunpack.c.l.b16 %v74
  %v214 = vunpack.c.l.b16 %v75
  %v215 = vunpack.c.l.b16 %v76
  %v216 = vunpack.c.l.b16 %v77
  %v217 = vunpack.c.l.b16 %v78
  %v218 = vpack.c.b16 %v155, %v154
  %v219 = vpack.c.b16 %v157, %v156
  %v220 = vpack.c.b16 %v159, %v158
  %v221 = vpack.c.b16 %v161, %v160
  %v222 = vpack.c.b16 %v163, %v162
  %v223 = vpack.c.b16 %v165, %v164
  %v224 = vpack.c.b16 %v167, %v166
  %v225 = vpack.c.b16 %v169, %v168
  %v226 = vpack.c.b16 %v171, %v170
  %v227 = vpack.c.b16 %v173, %v172
  %v228 = vpack.c.b16 %v175, %v174
  %v229 = vpack.c.b16 %v177, %v176
  %v230 = vpack.c.b16 %v179, %v178
  %v231 = vpack.c.b16 %v181, %v180
  %v232 = vpack.c.b16 %v183, %v182
  %v233 = vpack.c.b16 %v185, %v184
  %v234 = vpack.c.b16 %v187, %v186
  %v235 = vpack.c.b16 %v189, %v188
  %v236 = vpack.c.b16 %v191, %v190
  %v237 = vpack.c.b16 %v193, %v192
  %v238 = vpack.c.b16 %v195, %v194
  %v239 = vpack.c.b16 %v197, %v196
  %v240 = vpack.c.b16 %v199, %v198
  %v241 = vpack.c.b16 %v201, %v200
  %v242 = vpack.c.b16 %v203, %v202
  %v243 = vpack.c.b16 %v205, %v204
  %v244 = vpack.c.b16 %v207, %v206
  %v245 = vpack.c.b16 %v209, %v208
  %v246 = vpack.c.b16 %v211, %v210
  %v247 = vpack.c.b16 %v213, %v212
  %v248 = vpack.c.b16 %v215, %v214
  %v249 = vpack.c.b16 %v217, %v216
  %v254 = vunpack.c.l.b16 %v79
  %v255 = vunpack.c.l.b16 %v80
  %v256 = vunpack.c.l.b16 %v81
  %v257 = vunpack.c.l.b16 %v82
  %v258 = vpack.c.b16 %v255, %v254
  %v259 = vpack.c.b16 %v257, %v256
  %vm261 = vcmask 220160
  %v263 = vsel %vm261, %v218, 0
  %v266 = vsel %vm261, %v219, 0
  %v269 = vsel %vm261, %v220, 0
  %v272 = vsel %vm261, %v221, 0
  %v275 = vsel %vm261, %v222, 0
  %v278 = vsel %vm261, %v223, 0
  %v281 = vsel %vm261, %v224, 0
  %v284 = vsel %vm261, %v225, 0
  %v287 = vsel %vm261, %v226, 0
  %v290 = vsel %vm261, %v227, 0
  %v293 = vsel %vm261, %v228, 0
  %v296 = vsel %vm261, %v229, 0
  %v299 = vsel %vm261, %v230, 0
  %v302 = vsel %vm261, %v231, 0
  %v305 = vsel %vm261, %v232, 0
  %v308 = vsel %vm261, %v233, 0
  %v311 = vsel %vm261, %v234, 0
  %v314 = vsel %vm261, %v235, 0
  %v317 = vsel %vm261, %v236, 0
  %v320 = vsel %vm261, %v237, 0
  %v323 = vsel %vm261, %v238, 0
  %v326 = vsel %vm261, %v239, 0
  %v329 = vsel %vm261, %v240, 0
  %v332 = vsel %vm261, %v241, 0
  %v335 = vsel %vm261, %v242, 0
  %v338 = vsel %vm261, %v243, 0
  %v341 = vsel %vm261, %v244, 0
  %v344 = vsel %vm261, %v245, 0
  %v347 = vsel %vm261, %v246, 0
  %v350 = vsel %vm261, %v247, 0
  %v353 = vsel %vm261, %v248, 0
  %v356 = vsel %vm261, %v249, 0
  %vm358 = vcmask 1044480
  %vm359 = vcmask 1045504
  %v360 = vsel %vm358, 4294967295, 65535
  %v361 = vsel %vm359, %v360, 0
  %v363 = vand.u32 %v259, %v361
  %365 = vmatprep.subr.bf16.mxu0 0
  %366 = vmatpush1.bf16.msra.mxu0 %v258
  %367 = vmatprep.subr.bf16.mxu0 0
  %368 = vmatpush1.bf16.msra.mxu0 %v363
  %369 = vmatprep.subr.bf16.mxu0 0
  %370 = vmatpush1.bf16.msra.mxu0 0
  %371 = vmatprep.subr.bf16.mxu0 0
  %372 = vmatpush1.bf16.msra.mxu0 0
  %373 = vmatprep.subr.bf16.mxu0 0
  %374 = vmatpush1.bf16.msra.mxu0 0
  %375 = vmatprep.subr.bf16.mxu0 0
  %376 = vmatpush1.bf16.msra.mxu0 0
  %377 = vmatprep.subr.bf16.mxu0 0
  %378 = vmatpush1.bf16.msra.mxu0 0
  %379 = vmatprep.subr.bf16.mxu0 0
  %380 = vmatpush1.bf16.msra.mxu0 0
  %381 = vmatprep.subr.bf16.mxu0 0
  %382 = vmatpush1.bf16.msra.mxu0 0
  %383 = vmatprep.subr.bf16.mxu0 0
  %384 = vmatpush1.bf16.msra.mxu0 0
  %385 = vmatprep.subr.bf16.mxu0 0
  %386 = vmatpush1.bf16.msra.mxu0 0
  %387 = vmatprep.subr.bf16.mxu0 0
  %388 = vmatpush1.bf16.msra.mxu0 0
  %389 = vmatprep.subr.bf16.mxu0 0
  %390 = vmatpush1.bf16.msra.mxu0 0
  %391 = vmatprep.subr.bf16.mxu0 0
  %392 = vmatpush1.bf16.msra.mxu0 0
  %393 = vmatprep.subr.bf16.mxu0 0
  %394 = vmatpush1.bf16.msra.mxu0 0
  %395 = vmatprep.subr.bf16.mxu0 0
  %396 = vmatpush1.bf16.msra.mxu0 0
  %397 = vmatprep.mubr.bf16.mxu0 0
  %398 = vmatmul.mubr.bf16.gmra.mrb[0].mxu0 %v263
  %v399 = vpop.f32.mrb[0].mxu0
  %v400 = vadd.f32 %v88, %v399
  %v401 = vpop.f32.mrb[0].mxu0
  %v402 = vpop.f32.mrb[0].mxu0
  %v403 = vadd.f32 %v88, %v402
  %v404 = vpop.f32.mrb[0].mxu0
  %405 = vmatprep.mubr.bf16.mxu0 0
  %406 = vmatmul.mubr.bf16.gmra.mrb[0].mxu0 %v266
  %v407 = vpop.f32.mrb[0].mxu0
  %v408 = vadd.f32 %v88, %v407
  %v409 = vpop.f32.mrb[0].mxu0
  %v410 = vpop.f32.mrb[0].mxu0
  %v411 = vadd.f32 %v88, %v410
  %v412 = vpop.f32.mrb[0].mxu0
  %413 = vmatprep.mubr.bf16.mxu0 0
  %414 = vmatmul.mubr.bf16.gmra.mrb[0].mxu0 %v269
  %v415 = vpop.f32.mrb[0].mxu0
  %v416 = vadd.f32 %v88, %v415
  %v417 = vpop.f32.mrb[0].mxu0
  %v418 = vpop.f32.mrb[0].mxu0
  %v419 = vadd.f32 %v88, %v418
  %v420 = vpop.f32.mrb[0].mxu0
  %421 = vmatprep.mubr.bf16.mxu0 0
  %422 = vmatmul.mubr.bf16.gmra.mrb[0].mxu0 %v272
  %v423 = vpop.f32.mrb[0].mxu0
  %v424 = vadd.f32 %v88, %v423
  %v425 = vpop.f32.mrb[0].mxu0
  %v426 = vpop.f32.mrb[0].mxu0
  %v427 = vadd.f32 %v88, %v426
  %v428 = vpop.f32.mrb[0].mxu0
  %429 = vmatprep.mubr.bf16.mxu0 0
  %430 = vmatmul.mubr.bf16.gmra.mrb[0].mxu0 %v275
  %v431 = vpop.f32.mrb[0].mxu0
  %v432 = vadd.f32 %v88, %v431
  %v433 = vpop.f32.mrb[0].mxu0
  %v434 = vpop.f32.mrb[0].mxu0
  %v435 = vadd.f32 %v88, %v434
  %v436 = vpop.f32.mrb[0].mxu0
  %437 = vmatprep.mubr.bf16.mxu0 0
  %438 = vmatmul.mubr.bf16.gmra.mrb[0].mxu0 %v278
  %v439 = vpop.f32.mrb[0].mxu0
  %v440 = vadd.f32 %v88, %v439
  %v441 = vpop.f32.mrb[0].mxu0
  %v442 = vpop.f32.mrb[0].mxu0
  %v443 = vadd.f32 %v88, %v442
  %v444 = vpop.f32.mrb[0].mxu0
  %445 = vmatprep.mubr.bf16.mxu0 0
  %446 = vmatmul.mubr.bf16.gmra.mrb[0].mxu0 %v281
  %v447 = vpop.f32.mrb[0].mxu0
  %v448 = vadd.f32 %v88, %v447
  %v449 = vpop.f32.mrb[0].mxu0
  %v450 = vpop.f32.mrb[0].mxu0
  %v451 = vadd.f32 %v88, %v450
  %v452 = vpop.f32.mrb[0].mxu0
  %453 = vmatprep.mubr.bf16.mxu0 0
  %454 = vmatmul.mubr.bf16.gmra.mrb[0].mxu0 %v284
  %v455 = vpop.f32.mrb[0].mxu0
  %v456 = vadd.f32 %v88, %v455
  %v457 = vpop.f32.mrb[0].mxu0
  %v458 = vpop.f32.mrb[0].mxu0
  %v459 = vadd.f32 %v88, %v458
  %v460 = vpop.f32.mrb[0].mxu0
  %461 = vmatprep.mubr.bf16.mxu0 0
  %462 = vmatmul.mubr.bf16.gmra.mrb[0].mxu0 %v287
  %v463 = vpop.f32.mrb[0].mxu0
  %v464 = vadd.f32 %v88, %v463
  %v465 = vpop.f32.mrb[0].mxu0
  %v466 = vpop.f32.mrb[0].mxu0
  %v467 = vadd.f32 %v88, %v466
  %v468 = vpop.f32.mrb[0].mxu0
  %469 = vmatprep.mubr.bf16.mxu0 0
  %470 = vmatmul.mubr.bf16.gmra.mrb[0].mxu0 %v290
  %v471 = vpop.f32.mrb[0].mxu0
  %v472 = vadd.f32 %v88, %v471
  %v473 = vpop.f32.mrb[0].mxu0
  %v474 = vpop.f32.mrb[0].mxu0
  %v475 = vadd.f32 %v88, %v474
  %v476 = vpop.f32.mrb[0].mxu0
  %477 = vmatprep.mubr.bf16.mxu0 0
  %478 = vmatmul.mubr.bf16.gmra.mrb[0].mxu0 %v293
  %v479 = vpop.f32.mrb[0].mxu0
  %v480 = vadd.f32 %v88, %v479
  %v481 = vpop.f32.mrb[0].mxu0
  %v482 = vpop.f32.mrb[0].mxu0
  %v483 = vadd.f32 %v88, %v482
  %v484 = vpop.f32.mrb[0].mxu0
  %485 = vmatprep.mubr.bf16.mxu0 0
  %486 = vmatmul.mubr.bf16.gmra.mrb[0].mxu0 %v296
  %v487 = vpop.f32.mrb[0].mxu0
  %v488 = vadd.f32 %v88, %v487
  %v489 = vpop.f32.mrb[0].mxu0
  %v490 = vpop.f32.mrb[0].mxu0
  %v491 = vadd.f32 %v88, %v490
  %v492 = vpop.f32.mrb[0].mxu0
  %493 = vmatprep.mubr.bf16.mxu0 0
  %494 = vmatmul.mubr.bf16.gmra.mrb[0].mxu0 %v299
  %v495 = vpop.f32.mrb[0].mxu0
  %v496 = vadd.f32 %v88, %v495
  %v497 = vpop.f32.mrb[0].mxu0
  %v498 = vpop.f32.mrb[0].mxu0
  %v499 = vadd.f32 %v88, %v498
  %v500 = vpop.f32.mrb[0].mxu0
  %501 = vmatprep.mubr.bf16.mxu0 0
  %502 = vmatmul.mubr.bf16.gmra.mrb[0].mxu0 %v302
  %v503 = vpop.f32.mrb[0].mxu0
  %v504 = vadd.f32 %v88, %v503
  %v505 = vpop.f32.mrb[0].mxu0
  %v506 = vpop.f32.mrb[0].mxu0
  %v507 = vadd.f32 %v88, %v506
  %v508 = vpop.f32.mrb[0].mxu0
  %509 = vmatprep.mubr.bf16.mxu0 0
  %510 = vmatmul.mubr.bf16.gmra.mrb[0].mxu0 %v305
  %v511 = vpop.f32.mrb[0].mxu0
  %v512 = vadd.f32 %v88, %v511
  %v513 = vpop.f32.mrb[0].mxu0
  %v514 = vpop.f32.mrb[0].mxu0
  %v515 = vadd.f32 %v88, %v514
  %v516 = vpop.f32.mrb[0].mxu0
  %517 = vmatprep.mubr.bf16.mxu0 0
  %518 = vmatmul.mubr.bf16.gmra.mrb[0].mxu0 %v308
  %v519 = vpop.f32.mrb[0].mxu0
  %v520 = vadd.f32 %v88, %v519
  %v521 = vpop.f32.mrb[0].mxu0
  %v522 = vpop.f32.mrb[0].mxu0
  %v523 = vadd.f32 %v88, %v522
  %v524 = vpop.f32.mrb[0].mxu0
  %525 = vmatprep.mubr.bf16.mxu0 0
  %526 = vmatmul.mubr.bf16.gmra.mrb[0].mxu0 %v311
  %v527 = vpop.f32.mrb[0].mxu0
  %v528 = vadd.f32 %v88, %v527
  %v529 = vpop.f32.mrb[0].mxu0
  %v530 = vpop.f32.mrb[0].mxu0
  %v531 = vadd.f32 %v88, %v530
  %v532 = vpop.f32.mrb[0].mxu0
  %533 = vmatprep.mubr.bf16.mxu0 0
  %534 = vmatmul.mubr.bf16.gmra.mrb[0].mxu0 %v314
  %v535 = vpop.f32.mrb[0].mxu0
  %v536 = vadd.f32 %v88, %v535
  %v537 = vpop.f32.mrb[0].mxu0
  %v538 = vpop.f32.mrb[0].mxu0
  %v539 = vadd.f32 %v88, %v538
  %v540 = vpop.f32.mrb[0].mxu0
  %541 = vmatprep.mubr.bf16.mxu0 0
  %542 = vmatmul.mubr.bf16.gmra.mrb[0].mxu0 %v317
  %v543 = vpop.f32.mrb[0].mxu0
  %v544 = vadd.f32 %v88, %v543
  %v545 = vpop.f32.mrb[0].mxu0
  %v546 = vpop.f32.mrb[0].mxu0
  %v547 = vadd.f32 %v88, %v546
  %v548 = vpop.f32.mrb[0].mxu0
  %549 = vmatprep.mubr.bf16.mxu0 0
  %550 = vmatmul.mubr.bf16.gmra.mrb[0].mxu0 %v320
  %v551 = vpop.f32.mrb[0].mxu0
  %v552 = vadd.f32 %v88, %v551
  %v553 = vpop.f32.mrb[0].mxu0
  %v554 = vpop.f32.mrb[0].mxu0
  %v555 = vadd.f32 %v88, %v554
  %v556 = vpop.f32.mrb[0].mxu0
  %557 = vmatprep.mubr.bf16.mxu0 0
  %558 = vmatmul.mubr.bf16.gmra.mrb[0].mxu0 %v323
  %v559 = vpop.f32.mrb[0].mxu0
  %v560 = vadd.f32 %v88, %v559
  %v561 = vpop.f32.mrb[0].mxu0
  %v562 = vpop.f32.mrb[0].mxu0
  %v563 = vadd.f32 %v88, %v562
  %v564 = vpop.f32.mrb[0].mxu0
  %565 = vmatprep.mubr.bf16.mxu0 0
  %566 = vmatmul.mubr.bf16.gmra.mrb[0].mxu0 %v326
  %v567 = vpop.f32.mrb[0].mxu0
  %v568 = vadd.f32 %v88, %v567
  %v569 = vpop.f32.mrb[0].mxu0
  %v570 = vpop.f32.mrb[0].mxu0
  %v571 = vadd.f32 %v88, %v570
  %v572 = vpop.f32.mrb[0].mxu0
  %573 = vmatprep.mubr.bf16.mxu0 0
  %574 = vmatmul.mubr.bf16.gmra.mrb[0].mxu0 %v329
  %v575 = vpop.f32.mrb[0].mxu0
  %v576 = vadd.f32 %v88, %v575
  %v577 = vpop.f32.mrb[0].mxu0
  %v578 = vpop.f32.mrb[0].mxu0
  %v579 = vadd.f32 %v88, %v578
  %v580 = vpop.f32.mrb[0].mxu0
  %581 = vmatprep.mubr.bf16.mxu0 0
  %582 = vmatmul.mubr.bf16.gmra.mrb[0].mxu0 %v332
  %v583 = vpop.f32.mrb[0].mxu0
  %v584 = vadd.f32 %v88, %v583
  %v585 = vpop.f32.mrb[0].mxu0
  %v586 = vpop.f32.mrb[0].mxu0
  %v587 = vadd.f32 %v88, %v586
  %v588 = vpop.f32.mrb[0].mxu0
  %589 = vmatprep.mubr.bf16.mxu0 0
  %590 = vmatmul.mubr.bf16.gmra.mrb[0].mxu0 %v335
  %v591 = vpop.f32.mrb[0].mxu0
  %v592 = vadd.f32 %v88, %v591
  %v593 = vpop.f32.mrb[0].mxu0
  %v594 = vpop.f32.mrb[0].mxu0
  %v595 = vadd.f32 %v88, %v594
  %v596 = vpop.f32.mrb[0].mxu0
  %597 = vmatprep.mubr.bf16.mxu0 0
  %598 = vmatmul.mubr.bf16.gmra.mrb[0].mxu0 %v338
  %v599 = vpop.f32.mrb[0].mxu0
  %v600 = vadd.f32 %v88, %v599
  %v601 = vpop.f32.mrb[0].mxu0
  %v602 = vpop.f32.mrb[0].mxu0
  %v603 = vadd.f32 %v88, %v602
  %v604 = vpop.f32.mrb[0].mxu0
  %605 = vmatprep.mubr.bf16.mxu0 0
  %606 = vmatmul.mubr.bf16.gmra.mrb[0].mxu0 %v341
  %v607 = vpop.f32.mrb[0].mxu0
  %v608 = vadd.f32 %v88, %v607
  %v609 = vpop.f32.mrb[0].mxu0
  %v610 = vpop.f32.mrb[0].mxu0
  %v611 = vadd.f32 %v88, %v610
  %v612 = vpop.f32.mrb[0].mxu0
  %613 = vmatprep.mubr.bf16.mxu0 0
  %614 = vmatmul.mubr.bf16.gmra.mrb[0].mxu0 %v344
  %v615 = vpop.f32.mrb[0].mxu0
  %v616 = vadd.f32 %v88, %v615
  %v617 = vpop.f32.mrb[0].mxu0
  %v618 = vpop.f32.mrb[0].mxu0
  %v619 = vadd.f32 %v88, %v618
  %v620 = vpop.f32.mrb[0].mxu0
  %621 = vmatprep.mubr.bf16.mxu0 0
  %622 = vmatmul.mubr.bf16.gmra.mrb[0].mxu0 %v347
  %v623 = vpop.f32.mrb[0].mxu0
  %v624 = vadd.f32 %v88, %v623
  %v625 = vpop.f32.mrb[0].mxu0
  %v626 = vpop.f32.mrb[0].mxu0
  %v627 = vadd.f32 %v88, %v626
  %v628 = vpop.f32.mrb[0].mxu0
  %629 = vmatprep.mubr.bf16.mxu0 0
  %630 = vmatmul.mubr.bf16.gmra.mrb[0].mxu0 %v350
  %v631 = vpop.f32.mrb[0].mxu0
  %v632 = vadd.f32 %v88, %v631
  %v633 = vpop.f32.mrb[0].mxu0
  %v634 = vpop.f32.mrb[0].mxu0
  %v635 = vadd.f32 %v88, %v634
  %v636 = vpop.f32.mrb[0].mxu0
  %637 = vmatprep.mubr.bf16.mxu0 0
  %638 = vmatmul.mubr.bf16.gmra.mrb[0].mxu0 %v353
  %v639 = vpop.f32.mrb[0].mxu0
  %v640 = vadd.f32 %v88, %v639
  %v641 = vpop.f32.mrb[0].mxu0
  %v642 = vpop.f32.mrb[0].mxu0
  %v643 = vadd.f32 %v88, %v642
  %v644 = vpop.f32.mrb[0].mxu0
  %645 = vmatprep.mubr.bf16.mxu0 0
  %646 = vmatmul.mubr.bf16.gmra.mrb[0].mxu0 %v356
  %v647 = vpop.f32.mrb[0].mxu0
  %v648 = vadd.f32 %v88, %v647
  %v649 = vpop.f32.mrb[0].mxu0
  %v650 = vpop.f32.mrb[0].mxu0
  %v651 = vadd.f32 %v88, %v650
  %v652 = vpop.f32.mrb[0].mxu0
  %653 = vdwg.mxu0
  %vm654 = vcmp.ge.f32.partialorder %v400, 0.0
  %vm655 = vcmp.ge.f32.partialorder %v403, 0.0
  %vm656 = vcmp.ge.f32.partialorder %v408, 0.0
  %vm657 = vcmp.ge.f32.partialorder %v411, 0.0
  %vm658 = vcmp.ge.f32.partialorder %v416, 0.0
  %vm659 = vcmp.ge.f32.partialorder %v419, 0.0
  %vm660 = vcmp.ge.f32.partialorder %v424, 0.0
  %vm661 = vcmp.ge.f32.partialorder %v427, 0.0
  %vm662 = vcmp.ge.f32.partialorder %v432, 0.0
  %vm663 = vcmp.ge.f32.partialorder %v435, 0.0
  %vm664 = vcmp.ge.f32.partialorder %v440, 0.0
  %vm665 = vcmp.ge.f32.partialorder %v443, 0.0
  %vm666 = vcmp.ge.f32.partialorder %v448, 0.0
  %vm667 = vcmp.ge.f32.partialorder %v451, 0.0
  %vm668 = vcmp.ge.f32.partialorder %v456, 0.0
  %vm669 = vcmp.ge.f32.partialorder %v459, 0.0
  %vm670 = vcmp.ge.f32.partialorder %v464, 0.0
  %vm671 = vcmp.ge.f32.partialorder %v467, 0.0
  %vm672 = vcmp.ge.f32.partialorder %v472, 0.0
  %vm673 = vcmp.ge.f32.partialorder %v475, 0.0
  %vm674 = vcmp.ge.f32.partialorder %v480, 0.0
  %vm675 = vcmp.ge.f32.partialorder %v483, 0.0
  %vm676 = vcmp.ge.f32.partialorder %v488, 0.0
  %vm677 = vcmp.ge.f32.partialorder %v491, 0.0
  %vm678 = vcmp.ge.f32.partialorder %v496, 0.0
  %vm679 = vcmp.ge.f32.partialorder %v499, 0.0
  %vm680 = vcmp.ge.f32.partialorder %v504, 0.0
  %vm681 = vcmp.ge.f32.partialorder %v507, 0.0
  %vm682 = vcmp.ge.f32.partialorder %v512, 0.0
  %vm683 = vcmp.ge.f32.partialorder %v515, 0.0
  %vm684 = vcmp.ge.f32.partialorder %v520, 0.0
  %vm685 = vcmp.ge.f32.partialorder %v523, 0.0
  %vm686 = vcmp.ge.f32.partialorder %v528, 0.0
  %vm687 = vcmp.ge.f32.partialorder %v531, 0.0
  %vm688 = vcmp.ge.f32.partialorder %v536, 0.0
  %vm689 = vcmp.ge.f32.partialorder %v539, 0.0
  %vm690 = vcmp.ge.f32.partialorder %v544, 0.0
  %vm691 = vcmp.ge.f32.partialorder %v547, 0.0
  %vm692 = vcmp.ge.f32.partialorder %v552, 0.0
  %vm693 = vcmp.ge.f32.partialorder %v555, 0.0
  %vm694 = vcmp.ge.f32.partialorder %v560, 0.0
  %vm695 = vcmp.ge.f32.partialorder %v563, 0.0
  %vm696 = vcmp.ge.f32.partialorder %v568, 0.0
  %vm697 = vcmp.ge.f32.partialorder %v571, 0.0
  %vm698 = vcmp.ge.f32.partialorder %v576, 0.0
  %vm699 = vcmp.ge.f32.partialorder %v579, 0.0
  %vm700 = vcmp.ge.f32.partialorder %v584, 0.0
  %vm701 = vcmp.ge.f32.partialorder %v587, 0.0
  %vm702 = vcmp.ge.f32.partialorder %v592, 0.0
  %vm703 = vcmp.ge.f32.partialorder %v595, 0.0
  %vm704 = vcmp.ge.f32.partialorder %v600, 0.0
  %vm705 = vcmp.ge.f32.partialorder %v603, 0.0
  %vm706 = vcmp.ge.f32.partialorder %v608, 0.0
  %vm707 = vcmp.ge.f32.partialorder %v611, 0.0
  %vm708 = vcmp.ge.f32.partialorder %v616, 0.0
  %vm709 = vcmp.ge.f32.partialorder %v619, 0.0
  %vm710 = vcmp.ge.f32.partialorder %v624, 0.0
  %vm711 = vcmp.ge.f32.partialorder %v627, 0.0
  %vm712 = vcmp.ge.f32.partialorder %v632, 0.0
  %vm713 = vcmp.ge.f32.partialorder %v635, 0.0
  %vm714 = vcmp.ge.f32.partialorder %v640, 0.0
  %vm715 = vcmp.ge.f32.partialorder %v643, 0.0
  %vm716 = vcmp.ge.f32.partialorder %v648, 0.0
  %vm717 = vcmp.ge.f32.partialorder %v651, 0.0
  %v718 = vmul.f32 %v400, 0.1
  %v719 = vmul.f32 %v403, 0.1
  %v720 = vmul.f32 %v408, 0.1
  %v721 = vmul.f32 %v411, 0.1
  %v722 = vmul.f32 %v416, 0.1
  %v723 = vmul.f32 %v419, 0.1
  %v724 = vmul.f32 %v424, 0.1
  %v725 = vmul.f32 %v427, 0.1
  %v726 = vmul.f32 %v432, 0.1
  %v727 = vmul.f32 %v435, 0.1
  %v728 = vmul.f32 %v440, 0.1
  %v729 = vmul.f32 %v443, 0.1
  %v730 = vmul.f32 %v448, 0.1
  %v731 = vmul.f32 %v451, 0.1
  %v732 = vmul.f32 %v456, 0.1
  %v733 = vmul.f32 %v459, 0.1
  %v734 = vmul.f32 %v464, 0.1
  %v735 = vmul.f32 %v467, 0.1
  %v736 = vmul.f32 %v472, 0.1
  %v737 = vmul.f32 %v475, 0.1
  %v738 = vmul.f32 %v480, 0.1
  %v739 = vmul.f32 %v483, 0.1
  %v740 = vmul.f32 %v488, 0.1
  %v741 = vmul.f32 %v491, 0.1
  %v742 = vmul.f32 %v496, 0.1
  %v743 = vmul.f32 %v499, 0.1
  %v744 = vmul.f32 %v504, 0.1
  %v745 = vmul.f32 %v507, 0.1
  %v746 = vmul.f32 %v512, 0.1
  %v747 = vmul.f32 %v515, 0.1
  %v748 = vmul.f32 %v520, 0.1
  %v749 = vmul.f32 %v523, 0.1
  %v750 = vmul.f32 %v528, 0.1
  %v751 = vmul.f32 %v531, 0.1
  %v752 = vmul.f32 %v536, 0.1
  %v753 = vmul.f32 %v539, 0.1
  %v754 = vmul.f32 %v544, 0.1
  %v755 = vmul.f32 %v547, 0.1
  %v756 = vmul.f32 %v552, 0.1
  %v757 = vmul.f32 %v555, 0.1
  %v758 = vmul.f32 %v560, 0.1
  %v759 = vmul.f32 %v563, 0.1
  %v760 = vmul.f32 %v568, 0.1
  %v761 = vmul.f32 %v571, 0.1
  %v762 = vmul.f32 %v576, 0.1
  %v763 = vmul.f32 %v579, 0.1
  %v764 = vmul.f32 %v584, 0.1
  %v765 = vmul.f32 %v587, 0.1
  %v766 = vmul.f32 %v592, 0.1
  %v767 = vmul.f32 %v595, 0.1
  %v768 = vmul.f32 %v600, 0.1
  %v769 = vmul.f32 %v603, 0.1
  %v770 = vmul.f32 %v608, 0.1
  %v771 = vmul.f32 %v611, 0.1
  %v772 = vmul.f32 %v616, 0.1
  %v773 = vmul.f32 %v619, 0.1
  %v774 = vmul.f32 %v624, 0.1
  %v775 = vmul.f32 %v627, 0.1
  %v776 = vmul.f32 %v632, 0.1
  %v777 = vmul.f32 %v635, 0.1
  %v778 = vmul.f32 %v640, 0.1
  %v779 = vmul.f32 %v643, 0.1
  %v780 = vmul.f32 %v648, 0.1
  %v781 = vmul.f32 %v651, 0.1
  %v782 = vsel %vm654, %v400, %v718
  %v783 = vsel %vm655, %v403, %v719
  %v784 = vsel %vm656, %v408, %v720
  %v785 = vsel %vm657, %v411, %v721
  %v786 = vsel %vm658, %v416, %v722
  %v787 = vsel %vm659, %v419, %v723
  %v788 = vsel %vm660, %v424, %v724
  %v789 = vsel %vm661, %v427, %v725
  %v790 = vsel %vm662, %v432, %v726
  %v791 = vsel %vm663, %v435, %v727
  %v792 = vsel %vm664, %v440, %v728
  %v793 = vsel %vm665, %v443, %v729
  %v794 = vsel %vm666, %v448, %v730
  %v795 = vsel %vm667, %v451, %v731
  %v796 = vsel %vm668, %v456, %v732
  %v797 = vsel %vm669, %v459, %v733
  %v798 = vsel %vm670, %v464, %v734
  %v799 = vsel %vm671, %v467, %v735
  %v800 = vsel %vm672, %v472, %v736
  %v801 = vsel %vm673, %v475, %v737
  %v802 = vsel %vm674, %v480, %v738
  %v803 = vsel %vm675, %v483, %v739
  %v804 = vsel %vm676, %v488, %v740
  %v805 = vsel %vm677, %v491, %v741
  %v806 = vsel %vm678, %v496, %v742
  %v807 = vsel %vm679, %v499, %v743
  %v808 = vsel %vm680, %v504, %v744
  %v809 = vsel %vm681, %v507, %v745
  %v810 = vsel %vm682, %v512, %v746
  %v811 = vsel %vm683, %v515, %v747
  %v812 = vsel %vm684, %v520, %v748
  %v813 = vsel %vm685, %v523, %v749
  %v814 = vsel %vm686, %v528, %v750
  %v815 = vsel %vm687, %v531, %v751
  %v816 = vsel %vm688, %v536, %v752
  %v817 = vsel %vm689, %v539, %v753
  %v818 = vsel %vm690, %v544, %v754
  %v819 = vsel %vm691, %v547, %v755
  %v820 = vsel %vm692, %v552, %v756
  %v821 = vsel %vm693, %v555, %v757
  %v822 = vsel %vm694, %v560, %v758
  %v823 = vsel %vm695, %v563, %v759
  %v824 = vsel %vm696, %v568, %v760
  %v825 = vsel %vm697, %v571, %v761
  %v826 = vsel %vm698, %v576, %v762
  %v827 = vsel %vm699, %v579, %v763
  %v828 = vsel %vm700, %v584, %v764
  %v829 = vsel %vm701, %v587, %v765
  %v830 = vsel %vm702, %v592, %v766
  %v831 = vsel %vm703, %v595, %v767
  %v832 = vsel %vm704, %v600, %v768
  %v833 = vsel %vm705, %v603, %v769
  %v834 = vsel %vm706, %v608, %v770
  %v835 = vsel %vm707, %v611, %v771
  %v836 = vsel %vm708, %v616, %v772
  %v837 = vsel %vm709, %v619, %v773
  %v838 = vsel %vm710, %v624, %v774
  %v839 = vsel %vm711, %v627, %v775
  %v840 = vsel %vm712, %v632, %v776
  %v841 = vsel %vm713, %v635, %v777
  %v842 = vsel %vm714, %v640, %v778
  %v843 = vsel %vm715, %v643, %v779
  %v844 = vsel %vm716, %v648, %v780
  %v845 = vsel %vm717, %v651, %v781
  %v846 = vmax.f32 %v782, %v798
  %v847 = vmax.f32 %v783, %v799
  %v848 = vmax.f32 %v784, %v800
  %v849 = vmax.f32 %v785, %v801
  %v850 = vmax.f32 %v786, %v802
  %v851 = vmax.f32 %v787, %v803
  %v852 = vmax.f32 %v788, %v804
  %v853 = vmax.f32 %v789, %v805
  %v854 = vmax.f32 %v790, %v806
  %v855 = vmax.f32 %v791, %v807
  %v856 = vmax.f32 %v792, %v808
  %v857 = vmax.f32 %v793, %v809
  %v858 = vmax.f32 %v794, %v810
  %v859 = vmax.f32 %v795, %v811
  %v860 = vmax.f32 %v796, %v812
  %v861 = vmax.f32 %v797, %v813
  %v862 = vmax.f32 %v814, %v830
  %v863 = vmax.f32 %v815, %v831
  %v864 = vmax.f32 %v816, %v832
  %v865 = vmax.f32 %v817, %v833
  %v866 = vmax.f32 %v818, %v834
  %v867 = vmax.f32 %v819, %v835
  %v868 = vmax.f32 %v820, %v836
  %v869 = vmax.f32 %v821, %v837
  %v870 = vmax.f32 %v822, %v838
  %v871 = vmax.f32 %v823, %v839
  %v872 = vmax.f32 %v824, %v840
  %v873 = vmax.f32 %v825, %v841
  %v874 = vmax.f32 %v826, %v842
  %v875 = vmax.f32 %v827, %v843
  %v876 = vmax.f32 %v828, %v844
  %v877 = vmax.f32 %v829, %v845
  %v878 = vmax.f32 %v846, %v862
  %v879 = vmax.f32 %v847, %v863
  %v880 = vmax.f32 %v848, %v864
  %v881 = vmax.f32 %v849, %v865
  %v882 = vmax.f32 %v850, %v866
  %v883 = vmax.f32 %v851, %v867
  %v884 = vmax.f32 %v852, %v868
  %v885 = vmax.f32 %v853, %v869
  %v886 = vmax.f32 %v854, %v870
  %v887 = vmax.f32 %v855, %v871
  %v888 = vmax.f32 %v856, %v872
  %v889 = vmax.f32 %v857, %v873
  %v890 = vmax.f32 %v858, %v874
  %v891 = vmax.f32 %v859, %v875
  %v892 = vmax.f32 %v860, %v876
  %v893 = vmax.f32 %v861, %v877
  %vm894 = vcmask 523264
  %895 = vst.msk [vmem:[%s3] sm:$0xff] %vm894, %v878
  %896 = vst.msk [vmem:[%s3 + $0x8] sm:$0xff] %vm894, %v879
  %897 = vst.msk [vmem:[%s3 + $0x10] sm:$0xff] %vm894, %v880
  %898 = vst.msk [vmem:[%s3 + $0x18] sm:$0xff] %vm894, %v881
  %899 = vst.msk [vmem:[%s3 + $0x20] sm:$0xff] %vm894, %v882
  %900 = vst.msk [vmem:[%s3 + $0x28] sm:$0xff] %vm894, %v883
  %901 = vst.msk [vmem:[%s3 + $0x30] sm:$0xff] %vm894, %v884
  %902 = vst.msk [vmem:[%s3 + $0x38] sm:$0xff] %vm894, %v885
  %903 = vst.msk [vmem:[%s3 + $0x40] sm:$0xff] %vm894, %v886
  %904 = vst.msk [vmem:[%s3 + $0x48] sm:$0xff] %vm894, %v887
  %905 = vst.msk [vmem:[%s3 + $0x50] sm:$0xff] %vm894, %v888
  %906 = vst.msk [vmem:[%s3 + $0x58] sm:$0xff] %vm894, %v889
  %907 = vst.msk [vmem:[%s3 + $0x60] sm:$0xff] %vm894, %v890
  %908 = vst.msk [vmem:[%s3 + $0x68] sm:$0xff] %vm894, %v891
  %909 = vst.msk [vmem:[%s3 + $0x70] sm:$0xff] %vm894, %v892
  %910 = vst.msk [vmem:[%s3 + $0x78] sm:$0xff] %vm894, %v893
  // Predicated region
  $region14: #{cnn_forward.5} parent=0 // pred_check
    _
  $region15: #{cnn_forward.5} parent=0 // pred_check_branch
    %912 = sbr.rel (0) target = $region17
  $region16: #{cnn_forward.5} parent=0 // pred_region
    _
  $region17: #{cnn_forward.5} parent=0 // pred_fallthru
    _
  // Predicated region
  $region18: #{cnn_forward.5} parent=0 // pred_check
    _
  $region19: #{cnn_forward.5} parent=0 // pred_check_branch
    %914 = sbr.rel (0) target = $region21
  $region20: #{cnn_forward.5} parent=0 // pred_region
    _
  $region21: #{cnn_forward.5} parent=0 // pred_fallthru
    _

// kernel: cnn_forward.6
$region0: #{cnn_forward.6}
  #allocation0 [shape = 'u32[]', space=smem, size = 0x4, offset = 0x4, fixed_abs, tag = 'smem constant byte address 0x4 - core index']
  #allocation1 [shape = 'u32[144,128]{1,0:T(1,128)}', space=vmem, size = 0x12000, scoped, tag = 'internal scratch']
  %s0 = inlined_call_operand.vmem [shape: bf16[128,576], index: 0, kind: input, shape index: {}]
  %s1 = inlined_call_operand.vmem [shape: bf16[576,128], index: 1, kind: input, shape index: {}]
  %s2 = inlined_call_operand.vmem [shape: f32[1,128], index: 2, kind: input, shape index: {}]
  %s3 = inlined_call_operand.vmem [shape: f32[32,128], index: 3, kind: output, shape index: {}]
  %s4 = sld [smem:[#allocation0]]
  $region22: #{cnn_forward.6} parent=0
    _
  %s6 = ssub.s32 1, %s4
  %s7 = scalar_select 0, %s6, %s4
  // Predicated region
  $region2: #{cnn_forward.6} parent=0 // pred_check
    _
  $region3: #{cnn_forward.6} parent=0 // pred_check_branch
    %9 = sbr.rel (0) target = $region5
  $region4: #{cnn_forward.6} parent=0 // pred_region
    _
  $region5: #{cnn_forward.6} parent=0 // pred_fallthru
    _
  // Predicated region
  $region6: #{cnn_forward.6} parent=0 // pred_check
    _
  $region7: #{cnn_forward.6} parent=0 // pred_check_branch
    %11 = sbr.rel (0) target = $region9
  $region8: #{cnn_forward.6} parent=0 // pred_region
    _
  $region9: #{cnn_forward.6} parent=0 // pred_fallthru
    _
  // Predicated region
  $region10: #{cnn_forward.6} parent=0 // pred_check
    _
  $region11: #{cnn_forward.6} parent=0 // pred_check_branch
    %13 = sbr.rel (0) target = $region13
  $region12: #{cnn_forward.6} parent=0 // pred_region
    _
  $region13: #{cnn_forward.6} parent=0 // pred_fallthru
    _
  %v15 = vld [vmem:[%s0] sm:$0xff]
  %v16 = vld [vmem:[%s0 + $0x8] sm:$0xff]
  %v17 = vld [vmem:[%s0 + $0x10] sm:$0xf]
  %v18 = vld [vmem:[%s0 + $0x14] sm:$0xff]
  %v19 = vld [vmem:[%s0 + $0x1c] sm:$0xff]
  %v20 = vld [vmem:[%s0 + $0x24] sm:$0xf]
  %v21 = vld [vmem:[%s0 + $0x28] sm:$0xff]
  %v22 = vld [vmem:[%s0 + $0x30] sm:$0xff]
  %v23 = vld [vmem:[%s0 + $0x38] sm:$0xf]
  %v24 = vld [vmem:[%s0 + $0x3c] sm:$0xff]
  %v25 = vld [vmem:[%s0 + $0x44] sm:$0xff]
  %v26 = vld [vmem:[%s0 + $0x4c] sm:$0xf]
  %v27 = vld [vmem:[%s0 + $0x50] sm:$0xff]
  %v28 = vld [vmem:[%s0 + $0x58] sm:$0xff]
  %v29 = vld [vmem:[%s0 + $0x60] sm:$0xf]
  %v30 = vld [vmem:[%s0 + $0x64] sm:$0xff]
  %v31 = vld [vmem:[%s0 + $0x6c] sm:$0xff]
  %v32 = vld [vmem:[%s0 + $0x74] sm:$0xf]
  %v33 = vld [vmem:[%s0 + $0x78] sm:$0xff]
  %v34 = vld [vmem:[%s0 + $0x80] sm:$0xff]
  %v35 = vld [vmem:[%s0 + $0x88] sm:$0xf]
  %v36 = vld [vmem:[%s0 + $0x8c] sm:$0xff]
  %v37 = vld [vmem:[%s0 + $0x94] sm:$0xff]
  %v38 = vld [vmem:[%s0 + $0x9c] sm:$0xf]
  %v39 = vld [vmem:[%s0 + $0xa0] sm:$0xff]
  %v40 = vld [vmem:[%s0 + $0xa8] sm:$0xff]
  %v41 = vld [vmem:[%s0 + $0xb0] sm:$0xf]
  %v42 = vld [vmem:[%s0 + $0xb4] sm:$0xff]
  %v43 = vld [vmem:[%s0 + $0xbc] sm:$0xff]
  %v44 = vld [vmem:[%s0 + $0xc4] sm:$0xf]
  %v45 = vld [vmem:[%s0 + $0xc8] sm:$0xff]
  %v46 = vld [vmem:[%s0 + $0xd0] sm:$0xff]
  %v47 = vld [vmem:[%s0 + $0xd8] sm:$0xf]
  %v48 = vld [vmem:[%s0 + $0xdc] sm:$0xff]
  %v49 = vld [vmem:[%s0 + $0xe4] sm:$0xff]
  %v50 = vld [vmem:[%s0 + $0xec] sm:$0xf]
  %v51 = vld [vmem:[%s0 + $0xf0] sm:$0xff]
  %v52 = vld [vmem:[%s0 + $0xf8] sm:$0xff]
  %v53 = vld [vmem:[%s0 + $0x100] sm:$0xf]
  %v54 = vld [vmem:[%s0 + $0x104] sm:$0xff]
  %v55 = vld [vmem:[%s0 + $0x10c] sm:$0xff]
  %v56 = vld [vmem:[%s0 + $0x114] sm:$0xf]
  %v57 = vld [vmem:[%s0 + $0x118] sm:$0xff]
  %v58 = vld [vmem:[%s0 + $0x120] sm:$0xff]
  %v59 = vld [vmem:[%s0 + $0x128] sm:$0xf]
  %v60 = vld [vmem:[%s0 + $0x12c] sm:$0xff]
  %v61 = vld [vmem:[%s0 + $0x134] sm:$0xff]
  %v62 = vld [vmem:[%s0 + $0x13c] sm:$0xf]
  %v63 = vld [vmem:[%s1] sm:$0xf]
  %v64 = vld [vmem:[%s1 + $0x4] sm:$0xf]
  %v65 = vld [vmem:[%s1 + $0x8] sm:$0xf]
  %v66 = vld [vmem:[%s1 + $0xc] sm:$0xf]
  %v67 = vld [vmem:[%s1 + $0x10] sm:$0xf]
  %v68 = vld [vmem:[%s1 + $0x14] sm:$0xf]
  %v69 = vld [vmem:[%s1 + $0x18] sm:$0xf]
  %v70 = vld [vmem:[%s1 + $0x1c] sm:$0xf]
  %v71 = vld [vmem:[%s1 + $0x20] sm:$0xf]
  %v72 = vld [vmem:[%s1 + $0x24] sm:$0xf]
  %v73 = vld [vmem:[%s1 + $0x28] sm:$0xf]
  %v74 = vld [vmem:[%s1 + $0x2c] sm:$0xf]
  %v75 = vld [vmem:[%s1 + $0x30] sm:$0xf]
  %v76 = vld [vmem:[%s1 + $0x34] sm:$0xf]
  %v77 = vld [vmem:[%s1 + $0x38] sm:$0xf]
  %v78 = vld [vmem:[%s1 + $0x3c] sm:$0xf]
  %v79 = vld [vmem:[%s1 + $0x40] sm:$0xf]
  %v80 = vld [vmem:[%s1 + $0x44] sm:$0xf]
  %v81 = vld [vmem:[%s1 + $0x48] sm:$0xf]
  %v82 = vld [vmem:[%s1 + $0x4c] sm:$0xf]
  %v83 = vld [vmem:[%s1 + $0x50] sm:$0xf]
  %v84 = vld [vmem:[%s1 + $0x54] sm:$0xf]
  %v85 = vld [vmem:[%s1 + $0x58] sm:$0xf]
  %v86 = vld [vmem:[%s1 + $0x5c] sm:$0xf]
  %v87 = vld [vmem:[%s1 + $0x60] sm:$0xf]
  %v88 = vld [vmem:[%s1 + $0x64] sm:$0xf]
  %v89 = vld [vmem:[%s1 + $0x68] sm:$0xf]
  %v90 = vld [vmem:[%s1 + $0x6c] sm:$0xf]
  %v91 = vld [vmem:[%s1 + $0x70] sm:$0xf]
  %v92 = vld [vmem:[%s1 + $0x74] sm:$0xf]
  %v93 = vld [vmem:[%s1 + $0x78] sm:$0xf]
  %v94 = vld [vmem:[%s1 + $0x7c] sm:$0xf]
  %v95 = vld [vmem:[%s1 + $0x80] sm:$0xf]
  %v96 = vld [vmem:[%s1 + $0x84] sm:$0xf]
  %v97 = vld [vmem:[%s1 + $0x88] sm:$0xf]
  %v98 = vld [vmem:[%s1 + $0x8c] sm:$0xf]
  %v99 = vld [vmem:[%s1 + $0x90] sm:$0xf]
  %v100 = vld [vmem:[%s1 + $0x94] sm:$0xf]
  %v101 = vld [vmem:[%s1 + $0x98] sm:$0xf]
  %v102 = vld [vmem:[%s1 + $0x9c] sm:$0xf]
  %v103 = vld [vmem:[%s1 + $0xa0] sm:$0xf]
  %v104 = vld [vmem:[%s1 + $0xa4] sm:$0xf]
  %v105 = vld [vmem:[%s1 + $0xa8] sm:$0xf]
  %v106 = vld [vmem:[%s1 + $0xac] sm:$0xf]
  %v107 = vld [vmem:[%s1 + $0xb0] sm:$0xf]
  %v108 = vld [vmem:[%s1 + $0xb4] sm:$0xf]
  %v109 = vld [vmem:[%s1 + $0xb8] sm:$0xf]
  %v110 = vld [vmem:[%s1 + $0xbc] sm:$0xf]
  %v111 = vld [vmem:[%s1 + $0xc0] sm:$0xf]
  %v112 = vld [vmem:[%s1 + $0xc4] sm:$0xf]
  %v113 = vld [vmem:[%s1 + $0xc8] sm:$0xf]
  %v114 = vld [vmem:[%s1 + $0xcc] sm:$0xf]
  %v115 = vld [vmem:[%s1 + $0xd0] sm:$0xf]
  %v116 = vld [vmem:[%s1 + $0xd4] sm:$0xf]
  %v117 = vld [vmem:[%s1 + $0xd8] sm:$0xf]
  %v118 = vld [vmem:[%s1 + $0xdc] sm:$0xf]
  %v119 = vld [vmem:[%s1 + $0xe0] sm:$0xf]
  %v120 = vld [vmem:[%s1 + $0xe4] sm:$0xf]
  %v121 = vld [vmem:[%s1 + $0xe8] sm:$0xf]
  %v122 = vld [vmem:[%s1 + $0xec] sm:$0xf]
  %v123 = vld [vmem:[%s1 + $0xf0] sm:$0xf]
  %v124 = vld [vmem:[%s1 + $0xf4] sm:$0xf]
  %v125 = vld [vmem:[%s1 + $0xf8] sm:$0xf]
  %v126 = vld [vmem:[%s1 + $0xfc] sm:$0xf]
  %v127 = vld [vmem:[%s1 + $0x100] sm:$0xf]
  %v128 = vld [vmem:[%s1 + $0x104] sm:$0xf]
  %v129 = vld [vmem:[%s1 + $0x108] sm:$0xf]
  %v130 = vld [vmem:[%s1 + $0x10c] sm:$0xf]
  %v131 = vld [vmem:[%s1 + $0x110] sm:$0xf]
  %v132 = vld [vmem:[%s1 + $0x114] sm:$0xf]
  %v133 = vld [vmem:[%s1 + $0x118] sm:$0xf]
  %v134 = vld [vmem:[%s1 + $0x11c] sm:$0xf]
  %v135 = vld [vmem:[%s2] sm:$0x1]
  %v137 = vlaneseq
  %v138 = vshrl.u32 %v137, 7
  %v139 = vsub.s32 0, %v138
  %v140 = vrot.slane %v135, %v139
  %v190 = vunpack.c.l.b16 %v15
  %v191 = vunpack.c.h.b16 %v15
  %v192 = vunpack.c.l.b16 %v16
  %v193 = vunpack.c.h.b16 %v16
  %v194 = vunpack.c.l.b16 %v17
  %v195 = vunpack.c.l.b16 %v18
  %v196 = vunpack.c.h.b16 %v18
  %v197 = vunpack.c.l.b16 %v19
  %v198 = vunpack.c.h.b16 %v19
  %v199 = vunpack.c.l.b16 %v20
  %v200 = vunpack.c.l.b16 %v21
  %v201 = vunpack.c.h.b16 %v21
  %v202 = vunpack.c.l.b16 %v22
  %v203 = vunpack.c.h.b16 %v22
  %v204 = vunpack.c.l.b16 %v23
  %v205 = vunpack.c.l.b16 %v24
  %v206 = vunpack.c.h.b16 %v24
  %v207 = vunpack.c.l.b16 %v25
  %v208 = vunpack.c.h.b16 %v25
  %v209 = vunpack.c.l.b16 %v26
  %v210 = vunpack.c.l.b16 %v27
  %v211 = vunpack.c.h.b16 %v27
  %v212 = vunpack.c.l.b16 %v28
  %v213 = vunpack.c.h.b16 %v28
  %v214 = vunpack.c.l.b16 %v29
  %v215 = vunpack.c.l.b16 %v30
  %v216 = vunpack.c.h.b16 %v30
  %v217 = vunpack.c.l.b16 %v31
  %v218 = vunpack.c.h.b16 %v31
  %v219 = vunpack.c.l.b16 %v32
  %v220 = vunpack.c.l.b16 %v33
  %v221 = vunpack.c.h.b16 %v33
  %v222 = vunpack.c.l.b16 %v34
  %v223 = vunpack.c.h.b16 %v34
  %v224 = vunpack.c.l.b16 %v35
  %v225 = vunpack.c.l.b16 %v36
  %v226 = vunpack.c.h.b16 %v36
  %v227 = vunpack.c.l.b16 %v37
  %v228 = vunpack.c.h.b16 %v37
  %v229 = vunpack.c.l.b16 %v38
  %v230 = vunpack.c.l.b16 %v39
  %v231 = vunpack.c.h.b16 %v39
  %v232 = vunpack.c.l.b16 %v40
  %v233 = vunpack.c.h.b16 %v40
  %v234 = vunpack.c.l.b16 %v41
  %v235 = vunpack.c.l.b16 %v42
  %v236 = vunpack.c.h.b16 %v42
  %v237 = vunpack.c.l.b16 %v43
  %v238 = vunpack.c.h.b16 %v43
  %v239 = vunpack.c.l.b16 %v44
  %v240 = vunpack.c.l.b16 %v45
  %v241 = vunpack.c.h.b16 %v45
  %v242 = vunpack.c.l.b16 %v46
  %v243 = vunpack.c.h.b16 %v46
  %v244 = vunpack.c.l.b16 %v47
  %v245 = vunpack.c.l.b16 %v48
  %v246 = vunpack.c.h.b16 %v48
  %v247 = vunpack.c.l.b16 %v49
  %v248 = vunpack.c.h.b16 %v49
  %v249 = vunpack.c.l.b16 %v50
  %v250 = vunpack.c.l.b16 %v51
  %v251 = vunpack.c.h.b16 %v51
  %v252 = vunpack.c.l.b16 %v52
  %v253 = vunpack.c.h.b16 %v52
  %v254 = vunpack.c.l.b16 %v53
  %v255 = vunpack.c.l.b16 %v54
  %v256 = vunpack.c.h.b16 %v54
  %v257 = vunpack.c.l.b16 %v55
  %v258 = vunpack.c.h.b16 %v55
  %v259 = vunpack.c.l.b16 %v56
  %v260 = vunpack.c.l.b16 %v57
  %v261 = vunpack.c.h.b16 %v57
  %v262 = vunpack.c.l.b16 %v58
  %v263 = vunpack.c.h.b16 %v58
  %v264 = vunpack.c.l.b16 %v59
  %v265 = vunpack.c.l.b16 %v60
  %v266 = vunpack.c.h.b16 %v60
  %v267 = vunpack.c.l.b16 %v61
  %v268 = vunpack.c.h.b16 %v61
  %v269 = vunpack.c.l.b16 %v62
  %v270 = vpack.c.b16 %v195, %v190
  %v271 = vpack.c.b16 %v196, %v191
  %v272 = vpack.c.b16 %v197, %v192
  %v273 = vpack.c.b16 %v198, %v193
  %v274 = vpack.c.b16 %v199, %v194
  %v275 = vpack.c.b16 %v205, %v200
  %v276 = vpack.c.b16 %v206, %v201
  %v277 = vpack.c.b16 %v207, %v202
  %v278 = vpack.c.b16 %v208, %v203
  %v279 = vpack.c.b16 %v209, %v204
  %v280 = vpack.c.b16 %v215, %v210
  %v281 = vpack.c.b16 %v216, %v211
  %v282 = vpack.c.b16 %v217, %v212
  %v283 = vpack.c.b16 %v218, %v213
  %v284 = vpack.c.b16 %v219, %v214
  %v285 = vpack.c.b16 %v225, %v220
  %v286 = vpack.c.b16 %v226, %v221
  %v287 = vpack.c.b16 %v227, %v222
  %v288 = vpack.c.b16 %v228, %v223
  %v289 = vpack.c.b16 %v229, %v224
  %v290 = vpack.c.b16 %v235, %v230
  %v291 = vpack.c.b16 %v236, %v231
  %v292 = vpack.c.b16 %v237, %v232
  %v293 = vpack.c.b16 %v238, %v233
  %v294 = vpack.c.b16 %v239, %v234
  %v295 = vpack.c.b16 %v245, %v240
  %v296 = vpack.c.b16 %v246, %v241
  %v297 = vpack.c.b16 %v247, %v242
  %v298 = vpack.c.b16 %v248, %v243
  %v299 = vpack.c.b16 %v249, %v244
  %v300 = vpack.c.b16 %v255, %v250
  %v301 = vpack.c.b16 %v256, %v251
  %v302 = vpack.c.b16 %v257, %v252
  %v303 = vpack.c.b16 %v258, %v253
  %v304 = vpack.c.b16 %v259, %v254
  %v305 = vpack.c.b16 %v265, %v260
  %v306 = vpack.c.b16 %v266, %v261
  %v307 = vpack.c.b16 %v267, %v262
  %v308 = vpack.c.b16 %v268, %v263
  %v309 = vpack.c.b16 %v269, %v264
  %v414 = vunpack.c.l.b16 %v63
  %v415 = vunpack.c.l.b16 %v64
  %v416 = vunpack.c.l.b16 %v65
  %v417 = vunpack.c.l.b16 %v66
  %v418 = vunpack.c.l.b16 %v67
  %v419 = vunpack.c.l.b16 %v68
  %v420 = vunpack.c.l.b16 %v69
  %v421 = vunpack.c.l.b16 %v70
  %v422 = vunpack.c.l.b16 %v71
  %v423 = vunpack.c.l.b16 %v72
  %v424 = vunpack.c.l.b16 %v73
  %v425 = vunpack.c.l.b16 %v74
  %v426 = vunpack.c.l.b16 %v75
  %v427 = vunpack.c.l.b16 %v76
  %v428 = vunpack.c.l.b16 %v77
  %v429 = vunpack.c.l.b16 %v78
  %v430 = vunpack.c.l.b16 %v79
  %v431 = vunpack.c.l.b16 %v80
  %v432 = vunpack.c.l.b16 %v81
  %v433 = vunpack.c.l.b16 %v82
  %v434 = vunpack.c.l.b16 %v83
  %v435 = vunpack.c.l.b16 %v84
  %v436 = vunpack.c.l.b16 %v85
  %v437 = vunpack.c.l.b16 %v86
  %v438 = vunpack.c.l.b16 %v87
  %v439 = vunpack.c.l.b16 %v88
  %v440 = vunpack.c.l.b16 %v89
  %v441 = vunpack.c.l.b16 %v90
  %v442 = vunpack.c.l.b16 %v91
  %v443 = vunpack.c.l.b16 %v92
  %v444 = vunpack.c.l.b16 %v93
  %v445 = vunpack.c.l.b16 %v94
  %v446 = vunpack.c.l.b16 %v95
  %v447 = vunpack.c.l.b16 %v96
  %v448 = vunpack.c.l.b16 %v97
  %v449 = vunpack.c.l.b16 %v98
  %v450 = vunpack.c.l.b16 %v99
  %v451 = vunpack.c.l.b16 %v100
  %v452 = vunpack.c.l.b16 %v101
  %v453 = vunpack.c.l.b16 %v102
  %v454 = vunpack.c.l.b16 %v103
  %v455 = vunpack.c.l.b16 %v104
  %v456 = vunpack.c.l.b16 %v105
  %v457 = vunpack.c.l.b16 %v106
  %v458 = vunpack.c.l.b16 %v107
  %v459 = vunpack.c.l.b16 %v108
  %v460 = vunpack.c.l.b16 %v109
  %v461 = vunpack.c.l.b16 %v110
  %v462 = vunpack.c.l.b16 %v111
  %v463 = vunpack.c.l.b16 %v112
  %v464 = vunpack.c.l.b16 %v113
  %v465 = vunpack.c.l.b16 %v114
  %v466 = vunpack.c.l.b16 %v115
  %v467 = vunpack.c.l.b16 %v116
  %v468 = vunpack.c.l.b16 %v117
  %v469 = vunpack.c.l.b16 %v118
  %v470 = vunpack.c.l.b16 %v119
  %v471 = vunpack.c.l.b16 %v120
  %v472 = vunpack.c.l.b16 %v121
  %v473 = vunpack.c.l.b16 %v122
  %v474 = vunpack.c.l.b16 %v123
  %v475 = vunpack.c.l.b16 %v124
  %v476 = vunpack.c.l.b16 %v125
  %v477 = vunpack.c.l.b16 %v126
  %v478 = vunpack.c.l.b16 %v127
  %v479 = vunpack.c.l.b16 %v128
  %v480 = vunpack.c.l.b16 %v129
  %v481 = vunpack.c.l.b16 %v130
  %v482 = vunpack.c.l.b16 %v131
  %v483 = vunpack.c.l.b16 %v132
  %v484 = vunpack.c.l.b16 %v133
  %v485 = vunpack.c.l.b16 %v134
  %v486 = vpack.c.b16 %v415, %v414
  %v487 = vpack.c.b16 %v417, %v416
  %v488 = vpack.c.b16 %v419, %v418
  %v489 = vpack.c.b16 %v421, %v420
  %v490 = vpack.c.b16 %v423, %v422
  %v491 = vpack.c.b16 %v425, %v424
  %v492 = vpack.c.b16 %v427, %v426
  %v493 = vpack.c.b16 %v429, %v428
  %v494 = vpack.c.b16 %v431, %v430
  %v495 = vpack.c.b16 %v433, %v432
  %v496 = vpack.c.b16 %v435, %v434
  %v497 = vpack.c.b16 %v437, %v436
  %v498 = vpack.c.b16 %v439, %v438
  %v499 = vpack.c.b16 %v441, %v440
  %v500 = vpack.c.b16 %v443, %v442
  %v501 = vpack.c.b16 %v445, %v444
  %v502 = vpack.c.b16 %v447, %v446
  %v503 = vpack.c.b16 %v449, %v448
  %v504 = vpack.c.b16 %v451, %v450
  %v505 = vpack.c.b16 %v453, %v452
  %v506 = vpack.c.b16 %v455, %v454
  %v507 = vpack.c.b16 %v457, %v456
  %v508 = vpack.c.b16 %v459, %v458
  %v509 = vpack.c.b16 %v461, %v460
  %v510 = vpack.c.b16 %v463, %v462
  %v511 = vpack.c.b16 %v465, %v464
  %v512 = vpack.c.b16 %v467, %v466
  %v513 = vpack.c.b16 %v469, %v468
  %v514 = vpack.c.b16 %v471, %v470
  %v515 = vpack.c.b16 %v473, %v472
  %v516 = vpack.c.b16 %v475, %v474
  %v517 = vpack.c.b16 %v477, %v476
  %v518 = vpack.c.b16 %v479, %v478
  %v519 = vpack.c.b16 %v481, %v480
  %v520 = vpack.c.b16 %v483, %v482
  %v521 = vpack.c.b16 %v485, %v484
  %vm558 = vcmask 523264
  %v560 = vsel %vm558, %v274, 0
  %v563 = vsel %vm558, %v279, 0
  %v566 = vsel %vm558, %v284, 0
  %v569 = vsel %vm558, %v289, 0
  %v572 = vsel %vm558, %v294, 0
  %v575 = vsel %vm558, %v299, 0
  %v578 = vsel %vm558, %v304, 0
  %v581 = vsel %vm558, %v309, 0
  %583 = vmatprep.subr.bf16.mxu0 0
  %584 = vmatpush1.bf16.msra.mxu0 %v486
  %585 = vmatprep.subr.bf16.mxu0 0
  %586 = vmatpush1.bf16.msra.mxu0 %v487
  %587 = vmatprep.subr.bf16.mxu0 0
  %588 = vmatpush1.bf16.msra.mxu0 %v488
  %589 = vmatprep.subr.bf16.mxu0 0
  %590 = vmatpush1.bf16.msra.mxu0 %v489
  %591 = vmatprep.subr.bf16.mxu0 0
  %592 = vmatpush1.bf16.msra.mxu0 %v490
  %593 = vmatprep.subr.bf16.mxu0 0
  %594 = vmatpush1.bf16.msra.mxu0 %v491
  %595 = vmatprep.subr.bf16.mxu0 0
  %596 = vmatpush1.bf16.msra.mxu0 %v492
  %597 = vmatprep.subr.bf16.mxu0 0
  %598 = vmatpush1.bf16.msra.mxu0 %v493
  %599 = vmatprep.subr.bf16.mxu0 0
  %600 = vmatpush1.bf16.msra.mxu0 %v494
  %601 = vmatprep.subr.bf16.mxu0 0
  %602 = vmatpush1.bf16.msra.mxu0 %v495
  %603 = vmatprep.subr.bf16.mxu0 0
  %604 = vmatpush1.bf16.msra.mxu0 %v496
  %605 = vmatprep.subr.bf16.mxu0 0
  %606 = vmatpush1.bf16.msra.mxu0 %v497
  %607 = vmatprep.subr.bf16.mxu0 0
  %608 = vmatpush1.bf16.msra.mxu0 %v498
  %609 = vmatprep.subr.bf16.mxu0 0
  %610 = vmatpush1.bf16.msra.mxu0 %v499
  %611 = vmatprep.subr.bf16.mxu0 0
  %612 = vmatpush1.bf16.msra.mxu0 %v500
  %613 = vmatprep.subr.bf16.mxu0 0
  %614 = vmatpush1.bf16.msra.mxu0 %v501
  %615 = vmatprep.mubr.bf16.mxu0 %v271
  %616 = vmatmul.mubr.bf16.gmra.mrb[0].mxu0 %v270
  %v617 = vpop.f32.mrb[0].mxu0
  %v618 = vadd.f32 %v140, %v617
  %v619 = vpop.f32.mrb[0].mxu0
  %v620 = vpop.f32.mrb[0].mxu0
  %v621 = vadd.f32 %v140, %v620
  %v622 = vpop.f32.mrb[0].mxu0
  %623 = vmatprep.mubr.bf16.mxu0 %v276
  %624 = vmatmul.mubr.bf16.gmra.mrb[0].mxu0 %v275
  %v625 = vpop.f32.mrb[0].mxu0
  %v626 = vadd.f32 %v140, %v625
  %v627 = vpop.f32.mrb[0].mxu0
  %v628 = vpop.f32.mrb[0].mxu0
  %v629 = vadd.f32 %v140, %v628
  %v630 = vpop.f32.mrb[0].mxu0
  %631 = vmatprep.mubr.bf16.mxu0 %v281
  %632 = vmatmul.mubr.bf16.gmra.mrb[0].mxu0 %v280
  %v633 = vpop.f32.mrb[0].mxu0
  %v634 = vadd.f32 %v140, %v633
  %v635 = vpop.f32.mrb[0].mxu0
  %v636 = vpop.f32.mrb[0].mxu0
  %v637 = vadd.f32 %v140, %v636
  %v638 = vpop.f32.mrb[0].mxu0
  %639 = vmatprep.mubr.bf16.mxu0 %v286
  %640 = vmatmul.mubr.bf16.gmra.mrb[0].mxu0 %v285
  %v641 = vpop.f32.mrb[0].mxu0
  %v642 = vadd.f32 %v140, %v641
  %v643 = vpop.f32.mrb[0].mxu0
  %v644 = vpop.f32.mrb[0].mxu0
  %v645 = vadd.f32 %v140, %v644
  %v646 = vpop.f32.mrb[0].mxu0
  %647 = vmatprep.mubr.bf16.mxu0 %v291
  %648 = vmatmul.mubr.bf16.gmra.mrb[0].mxu0 %v290
  %v649 = vpop.f32.mrb[0].mxu0
  %v650 = vadd.f32 %v140, %v649
  %v651 = vpop.f32.mrb[0].mxu0
  %v652 = vpop.f32.mrb[0].mxu0
  %v653 = vadd.f32 %v140, %v652
  %v654 = vpop.f32.mrb[0].mxu0
  %655 = vmatprep.mubr.bf16.mxu0 %v296
  %656 = vmatmul.mubr.bf16.gmra.mrb[0].mxu0 %v295
  %v657 = vpop.f32.mrb[0].mxu0
  %v658 = vadd.f32 %v140, %v657
  %v659 = vpop.f32.mrb[0].mxu0
  %v660 = vpop.f32.mrb[0].mxu0
  %v661 = vadd.f32 %v140, %v660
  %v662 = vpop.f32.mrb[0].mxu0
  %663 = vmatprep.mubr.bf16.mxu0 %v301
  %664 = vmatmul.mubr.bf16.gmra.mrb[0].mxu0 %v300
  %v665 = vpop.f32.mrb[0].mxu0
  %v666 = vadd.f32 %v140, %v665
  %v667 = vpop.f32.mrb[0].mxu0
  %v668 = vpop.f32.mrb[0].mxu0
  %v669 = vadd.f32 %v140, %v668
  %v670 = vpop.f32.mrb[0].mxu0
  %671 = vmatprep.mubr.bf16.mxu0 %v306
  %672 = vmatmul.mubr.bf16.gmra.mrb[0].mxu0 %v305
  %v673 = vpop.f32.mrb[0].mxu0
  %v674 = vadd.f32 %v140, %v673
  %v675 = vpop.f32.mrb[0].mxu0
  %v676 = vpop.f32.mrb[0].mxu0
  %v677 = vadd.f32 %v140, %v676
  %v678 = vpop.f32.mrb[0].mxu0
  %679 = vdwg.mxu0
  %680 = vmatprep.subr.bf16.mxu0 0
  %681 = vmatpush1.bf16.msra.mxu0 %v502
  %682 = vmatprep.subr.bf16.mxu0 0
  %683 = vmatpush1.bf16.msra.mxu0 %v503
  %684 = vmatprep.subr.bf16.mxu0 0
  %685 = vmatpush1.bf16.msra.mxu0 %v504
  %686 = vmatprep.subr.bf16.mxu0 0
  %687 = vmatpush1.bf16.msra.mxu0 %v505
  %688 = vmatprep.subr.bf16.mxu0 0
  %689 = vmatpush1.bf16.msra.mxu0 %v506
  %690 = vmatprep.subr.bf16.mxu0 0
  %691 = vmatpush1.bf16.msra.mxu0 %v507
  %692 = vmatprep.subr.bf16.mxu0 0
  %693 = vmatpush1.bf16.msra.mxu0 %v508
  %694 = vmatprep.subr.bf16.mxu0 0
  %695 = vmatpush1.bf16.msra.mxu0 %v509
  %696 = vmatprep.subr.bf16.mxu0 0
  %697 = vmatpush1.bf16.msra.mxu0 %v510
  %698 = vmatprep.subr.bf16.mxu0 0
  %699 = vmatpush1.bf16.msra.mxu0 %v511
  %700 = vmatprep.subr.bf16.mxu0 0
  %701 = vmatpush1.bf16.msra.mxu0 %v512
  %702 = vmatprep.subr.bf16.mxu0 0
  %703 = vmatpush1.bf16.msra.mxu0 %v513
  %704 = vmatprep.subr.bf16.mxu0 0
  %705 = vmatpush1.bf16.msra.mxu0 %v514
  %706 = vmatprep.subr.bf16.mxu0 0
  %707 = vmatpush1.bf16.msra.mxu0 %v515
  %708 = vmatprep.subr.bf16.mxu0 0
  %709 = vmatpush1.bf16.msra.mxu0 %v516
  %710 = vmatprep.subr.bf16.mxu0 0
  %711 = vmatpush1.bf16.msra.mxu0 %v517
  %712 = vmatprep.mubr.bf16.mxu0 %v273
  %713 = vmatmul.mubr.bf16.gmra.mrb[0].mxu0 %v272
  %v714 = vpop.f32.mrb[0].mxu0
  %v715 = vadd.f32 %v618, %v714
  %v716 = vpop.f32.mrb[0].mxu0
  %v717 = vpop.f32.mrb[0].mxu0
  %v718 = vadd.f32 %v621, %v717
  %v719 = vpop.f32.mrb[0].mxu0
  %720 = vmatprep.mubr.bf16.mxu0 %v278
  %721 = vmatmul.mubr.bf16.gmra.mrb[0].mxu0 %v277
  %v722 = vpop.f32.mrb[0].mxu0
  %v723 = vadd.f32 %v626, %v722
  %v724 = vpop.f32.mrb[0].mxu0
  %v725 = vpop.f32.mrb[0].mxu0
  %v726 = vadd.f32 %v629, %v725
  %v727 = vpop.f32.mrb[0].mxu0
  %728 = vmatprep.mubr.bf16.mxu0 %v283
  %729 = vmatmul.mubr.bf16.gmra.mrb[0].mxu0 %v282
  %v730 = vpop.f32.mrb[0].mxu0
  %v731 = vadd.f32 %v634, %v730
  %v732 = vpop.f32.mrb[0].mxu0
  %v733 = vpop.f32.mrb[0].mxu0
  %v734 = vadd.f32 %v637, %v733
  %v735 = vpop.f32.mrb[0].mxu0
  %736 = vmatprep.mubr.bf16.mxu0 %v288
  %737 = vmatmul.mubr.bf16.gmra.mrb[0].mxu0 %v287
  %v738 = vpop.f32.mrb[0].mxu0
  %v739 = vadd.f32 %v642, %v738
  %v740 = vpop.f32.mrb[0].mxu0
  %v741 = vpop.f32.mrb[0].mxu0
  %v742 = vadd.f32 %v645, %v741
  %v743 = vpop.f32.mrb[0].mxu0
  %744 = vmatprep.mubr.bf16.mxu0 %v293
  %745 = vmatmul.mubr.bf16.gmra.mrb[0].mxu0 %v292
  %v746 = vpop.f32.mrb[0].mxu0
  %v747 = vadd.f32 %v650, %v746
  %v748 = vpop.f32.mrb[0].mxu0
  %v749 = vpop.f32.mrb[0].mxu0
  %v750 = vadd.f32 %v653, %v749
  %v751 = vpop.f32.mrb[0].mxu0
  %752 = vmatprep.mubr.bf16.mxu0 %v298
  %753 = vmatmul.mubr.bf16.gmra.mrb[0].mxu0 %v297
  %v754 = vpop.f32.mrb[0].mxu0
  %v755 = vadd.f32 %v658, %v754
  %v756 = vpop.f32.mrb[0].mxu0
  %v757 = vpop.f32.mrb[0].mxu0
  %v758 = vadd.f32 %v661, %v757
  %v759 = vpop.f32.mrb[0].mxu0
  %760 = vmatprep.mubr.bf16.mxu0 %v303
  %761 = vmatmul.mubr.bf16.gmra.mrb[0].mxu0 %v302
  %v762 = vpop.f32.mrb[0].mxu0
  %v763 = vadd.f32 %v666, %v762
  %v764 = vpop.f32.mrb[0].mxu0
  %v765 = vpop.f32.mrb[0].mxu0
  %v766 = vadd.f32 %v669, %v765
  %v767 = vpop.f32.mrb[0].mxu0
  %768 = vmatprep.mubr.bf16.mxu0 %v308
  %769 = vmatmul.mubr.bf16.gmra.mrb[0].mxu0 %v307
  %v770 = vpop.f32.mrb[0].mxu0
  %v771 = vadd.f32 %v674, %v770
  %v772 = vpop.f32.mrb[0].mxu0
  %v773 = vpop.f32.mrb[0].mxu0
  %v774 = vadd.f32 %v677, %v773
  %v775 = vpop.f32.mrb[0].mxu0
  %776 = vdwg.mxu0
  %777 = vmatprep.subr.bf16.mxu0 0
  %778 = vmatpush1.bf16.msra.mxu0 %v518
  %779 = vmatprep.subr.bf16.mxu0 0
  %780 = vmatpush1.bf16.msra.mxu0 %v519
  %781 = vmatprep.subr.bf16.mxu0 0
  %782 = vmatpush1.bf16.msra.mxu0 %v520
  %783 = vmatprep.subr.bf16.mxu0 0
  %784 = vmatpush1.bf16.msra.mxu0 %v521
  %785 = vmatprep.subr.bf16.mxu0 0
  %786 = vmatpush1.bf16.msra.mxu0 0
  %787 = vmatprep.subr.bf16.mxu0 0
  %788 = vmatpush1.bf16.msra.mxu0 0
  %789 = vmatprep.subr.bf16.mxu0 0
  %790 = vmatpush1.bf16.msra.mxu0 0
  %791 = vmatprep.subr.bf16.mxu0 0
  %792 = vmatpush1.bf16.msra.mxu0 0
  %793 = vmatprep.subr.bf16.mxu0 0
  %794 = vmatpush1.bf16.msra.mxu0 0
  %795 = vmatprep.subr.bf16.mxu0 0
  %796 = vmatpush1.bf16.msra.mxu0 0
  %797 = vmatprep.subr.bf16.mxu0 0
  %798 = vmatpush1.bf16.msra.mxu0 0
  %799 = vmatprep.subr.bf16.mxu0 0
  %800 = vmatpush1.bf16.msra.mxu0 0
  %801 = vmatprep.subr.bf16.mxu0 0
  %802 = vmatpush1.bf16.msra.mxu0 0
  %803 = vmatprep.subr.bf16.mxu0 0
  %804 = vmatpush1.bf16.msra.mxu0 0
  %805 = vmatprep.subr.bf16.mxu0 0
  %806 = vmatpush1.bf16.msra.mxu0 0
  %807 = vmatprep.subr.bf16.mxu0 0
  %808 = vmatpush1.bf16.msra.mxu0 0
  %809 = vmatprep.mubr.bf16.mxu0 0
  %810 = vmatmul.mubr.bf16.gmra.mrb[0].mxu0 %v560
  %v811 = vpop.f32.mrb[0].mxu0
  %v812 = vadd.f32 %v715, %v811
  %v813 = vpop.f32.mrb[0].mxu0
  %v814 = vpop.f32.mrb[0].mxu0
  %v815 = vadd.f32 %v718, %v814
  %v816 = vpop.f32.mrb[0].mxu0
  %817 = vmatprep.mubr.bf16.mxu0 0
  %818 = vmatmul.mubr.bf16.gmra.mrb[0].mxu0 %v563
  %v819 = vpop.f32.mrb[0].mxu0
  %v820 = vadd.f32 %v723, %v819
  %v821 = vpop.f32.mrb[0].mxu0
  %v822 = vpop.f32.mrb[0].mxu0
  %v823 = vadd.f32 %v726, %v822
  %v824 = vpop.f32.mrb[0].mxu0
  %825 = vmatprep.mubr.bf16.mxu0 0
  %826 = vmatmul.mubr.bf16.gmra.mrb[0].mxu0 %v566
  %v827 = vpop.f32.mrb[0].mxu0
  %v828 = vadd.f32 %v731, %v827
  %v829 = vpop.f32.mrb[0].mxu0
  %v830 = vpop.f32.mrb[0].mxu0
  %v831 = vadd.f32 %v734, %v830
  %v832 = vpop.f32.mrb[0].mxu0
  %833 = vmatprep.mubr.bf16.mxu0 0
  %834 = vmatmul.mubr.bf16.gmra.mrb[0].mxu0 %v569
  %v835 = vpop.f32.mrb[0].mxu0
  %v836 = vadd.f32 %v739, %v835
  %v837 = vpop.f32.mrb[0].mxu0
  %v838 = vpop.f32.mrb[0].mxu0
  %v839 = vadd.f32 %v742, %v838
  %v840 = vpop.f32.mrb[0].mxu0
  %841 = vmatprep.mubr.bf16.mxu0 0
  %842 = vmatmul.mubr.bf16.gmra.mrb[0].mxu0 %v572
  %v843 = vpop.f32.mrb[0].mxu0
  %v844 = vadd.f32 %v747, %v843
  %v845 = vpop.f32.mrb[0].mxu0
  %v846 = vpop.f32.mrb[0].mxu0
  %v847 = vadd.f32 %v750, %v846
  %v848 = vpop.f32.mrb[0].mxu0
  %849 = vmatprep.mubr.bf16.mxu0 0
  %850 = vmatmul.mubr.bf16.gmra.mrb[0].mxu0 %v575
  %v851 = vpop.f32.mrb[0].mxu0
  %v852 = vadd.f32 %v755, %v851
  %v853 = vpop.f32.mrb[0].mxu0
  %v854 = vpop.f32.mrb[0].mxu0
  %v855 = vadd.f32 %v758, %v854
  %v856 = vpop.f32.mrb[0].mxu0
  %857 = vmatprep.mubr.bf16.mxu0 0
  %858 = vmatmul.mubr.bf16.gmra.mrb[0].mxu0 %v578
  %v859 = vpop.f32.mrb[0].mxu0
  %v860 = vadd.f32 %v763, %v859
  %v861 = vpop.f32.mrb[0].mxu0
  %v862 = vpop.f32.mrb[0].mxu0
  %v863 = vadd.f32 %v766, %v862
  %v864 = vpop.f32.mrb[0].mxu0
  %865 = vmatprep.mubr.bf16.mxu0 0
  %866 = vmatmul.mubr.bf16.gmra.mrb[0].mxu0 %v581
  %v867 = vpop.f32.mrb[0].mxu0
  %v868 = vadd.f32 %v771, %v867
  %v869 = vpop.f32.mrb[0].mxu0
  %v870 = vpop.f32.mrb[0].mxu0
  %v871 = vadd.f32 %v774, %v870
  %v872 = vpop.f32.mrb[0].mxu0
  %873 = vdwg.mxu0
  %vm874 = vcmp.ge.f32.partialorder %v812, 0.0
  %vm875 = vcmp.ge.f32.partialorder %v815, 0.0
  %vm876 = vcmp.ge.f32.partialorder %v820, 0.0
  %vm877 = vcmp.ge.f32.partialorder %v823, 0.0
  %vm878 = vcmp.ge.f32.partialorder %v828, 0.0
  %vm879 = vcmp.ge.f32.partialorder %v831, 0.0
  %vm880 = vcmp.ge.f32.partialorder %v836, 0.0
  %vm881 = vcmp.ge.f32.partialorder %v839, 0.0
  %vm882 = vcmp.ge.f32.partialorder %v844, 0.0
  %vm883 = vcmp.ge.f32.partialorder %v847, 0.0
  %vm884 = vcmp.ge.f32.partialorder %v852, 0.0
  %vm885 = vcmp.ge.f32.partialorder %v855, 0.0
  %vm886 = vcmp.ge.f32.partialorder %v860, 0.0
  %vm887 = vcmp.ge.f32.partialorder %v863, 0.0
  %vm888 = vcmp.ge.f32.partialorder %v868, 0.0
  %vm889 = vcmp.ge.f32.partialorder %v871, 0.0
  %v890 = vmul.f32 %v812, 0.1
  %v891 = vmul.f32 %v815, 0.1
  %v892 = vmul.f32 %v820, 0.1
  %v893 = vmul.f32 %v823, 0.1
  %v894 = vmul.f32 %v828, 0.1
  %v895 = vmul.f32 %v831, 0.1
  %v896 = vmul.f32 %v836, 0.1
  %v897 = vmul.f32 %v839, 0.1
  %v898 = vmul.f32 %v844, 0.1
  %v899 = vmul.f32 %v847, 0.1
  %v900 = vmul.f32 %v852, 0.1
  %v901 = vmul.f32 %v855, 0.1
  %v902 = vmul.f32 %v860, 0.1
  %v903 = vmul.f32 %v863, 0.1
  %v904 = vmul.f32 %v868, 0.1
  %v905 = vmul.f32 %v871, 0.1
  %v906 = vsel %vm874, %v812, %v890
  %v907 = vsel %vm875, %v815, %v891
  %v908 = vsel %vm876, %v820, %v892
  %v909 = vsel %vm877, %v823, %v893
  %v910 = vsel %vm878, %v828, %v894
  %v911 = vsel %vm879, %v831, %v895
  %v912 = vsel %vm880, %v836, %v896
  %v913 = vsel %vm881, %v839, %v897
  %v914 = vsel %vm882, %v844, %v898
  %v915 = vsel %vm883, %v847, %v899
  %v916 = vsel %vm884, %v852, %v900
  %v917 = vsel %vm885, %v855, %v901
  %v918 = vsel %vm886, %v860, %v902
  %v919 = vsel %vm887, %v863, %v903
  %v920 = vsel %vm888, %v868, %v904
  %v921 = vsel %vm889, %v871, %v905
  %v922 = vmax.f32 %v906, %v910
  %v923 = vmax.f32 %v907, %v911
  %v924 = vmax.f32 %v908, %v912
  %v925 = vmax.f32 %v909, %v913
  %v926 = vmax.f32 %v914, %v918
  %v927 = vmax.f32 %v915, %v919
  %v928 = vmax.f32 %v916, %v920
  %v929 = vmax.f32 %v917, %v921
  %v930 = vmax.f32 %v922, %v926
  %v931 = vmax.f32 %v923, %v927
  %v932 = vmax.f32 %v924, %v928
  %v933 = vmax.f32 %v925, %v929
  %934 = vst [vmem:[%s3] sm:$0xff] %v930
  %935 = vst [vmem:[%s3 + $0x8] sm:$0xff] %v931
  %936 = vst [vmem:[%s3 + $0x10] sm:$0xff] %v932
  %937 = vst [vmem:[%s3 + $0x18] sm:$0xff] %v933
  // Predicated region
  $region14: #{cnn_forward.6} parent=0 // pred_check
    _
  $region15: #{cnn_forward.6} parent=0 // pred_check_branch
    %939 = sbr.rel (0) target = $region17
  $region16: #{cnn_forward.6} parent=0 // pred_region
    _
  $region17: #{cnn_forward.6} parent=0 // pred_fallthru
    _
  // Predicated region
  $region18: #{cnn_forward.6} parent=0 // pred_check
    _
  $region19: #{cnn_forward.6} parent=0 // pred_check_branch
    %941 = sbr.rel (0) target = $region21
  $region20: #{cnn_forward.6} parent=0 // pred_region
    _
  $region21: #{cnn_forward.6} parent=0 // pred_fallthru
    _

// kernel: cnn_forward.7
$region0: #{cnn_forward.7}
  #allocation0 [shape = 'u32[]', space=smem, size = 0x4, offset = 0x4, fixed_abs, tag = 'smem constant byte address 0x4 - core index']
  #allocation1 [shape = 'u32[144,128]{1,0:T(1,128)}', space=vmem, size = 0x12000, scoped, tag = 'internal scratch']
  %s0 = inlined_call_operand.vmem [shape: bf16[32,1152], index: 0, kind: input, shape index: {}]
  %s1 = inlined_call_operand.vmem [shape: bf16[1152,256], index: 1, kind: input, shape index: {}]
  %s2 = inlined_call_operand.vmem [shape: f32[1,256], index: 2, kind: input, shape index: {}]
  %s3 = inlined_call_operand.vmem [shape: f32[8,256], index: 3, kind: output, shape index: {}]
  %s4 = sld [smem:[#allocation0]]
  $region86: #{cnn_forward.7} parent=0
    _
  %s6 = ssub.s32 1, %s4
  %s7 = scalar_select 0, %s6, %s4
  $region1: #{cnn_forward.7} parent=0
    #allocation2 [shape = 'u8[589824]{0}', space=vmem, size = 0x90000, scoped, tag = 'input window, operand 1']
    loop: start=0, step=1, limit=4
    $region2: #{cnn_forward.7} parent=1 // loop_pre_header
      _
    $region3: #{cnn_forward.7} parent=1 // loop_header
      %s9 = sphi 0, %s13
      %p10 = scmp.ge.s32.totalorder %s9, 4
      %s17 = sphi 0, %s17
      %s19 = sphi 0, %s17
      %s20 = sphi 0, %s19
      %s34 = sphi 0, %s20
      %s40 = sphi 0, %s42
      %s43 = sphi 0, %s40
      %s44 = sphi 0, %s43
      %s60 = sphi 0, %s44
      %s66 = sphi 0, %s68
      %s69 = sphi 0, %s66
      %s70 = sphi 0, %s69
      %s86 = sphi 0, %s70
      %s92 = sphi 0, %s94
      %s95 = sphi 0, %s92
      %s96 = sphi 0, %s95
      %s112 = sphi 0, %s96
    $region4: #{cnn_forward.7} parent=1 // loop_header_branch
      %12 = sbr.rel (%p10) target = $region8
    $region5: #{cnn_forward.7} parent=1 // loop_body
      %s14 = ssub.s32 %s9, 1
      %s15 = ssub.s32 %s9, 2
      %s16 = sadd.s32 %s9, 1
      %s18 = sadd.s32 %s17, 1
      %p21 = scmp.eq.s32.totalorder %s9, 1
      %p22 = scmp.ne.s32.totalorder %s17, %s19
      %p23 = scmp.eq.s32.totalorder %s9, 0
      %p24 = por %p22, %p23
      %p25 = scmp.ne.s32.totalorder %s17, %s19
      %p26 = scmp.eq.s32.totalorder %s14, 1
      %p27 = por %p25, %p26
      %p28 = scmp.ne.s32.totalorder %s19, %s20
      %p29 = scmp.eq.s32.totalorder %s14, 0
      %p30 = por %p28, %p29
      %p31 = scmp.ne.s32.totalorder %s19, %s20
      %p32 = scmp.eq.s32.totalorder %s15, 1
      %p33 = por %p31, %p32
      %p35 = scmp.ne.s32.totalorder %s20, %s34
      %p36 = scmp.eq.s32.totalorder %s15, 0
      %p37 = por %p35, %p36
      %s38 = ssub.s32 %s9, %s16
      %p39 = scmp.eq.s32.totalorder %s38, 0
      %s41 = sadd.s32 %s40, 1
      %s42 = scalar_select %p39, %s40, %s41
      %p45 = pneg %p39
      %p46 = scmp.eq.s32.totalorder %s9, 1
      %p47 = por %p45, %p46
      %p48 = scmp.ne.s32.totalorder %s40, %s43
      %p49 = scmp.eq.s32.totalorder %s9, 0
      %p50 = por %p48, %p49
      %p51 = scmp.ne.s32.totalorder %s40, %s43
      %p52 = scmp.eq.s32.totalorder %s14, 1
      %p53 = por %p51, %p52
      %p54 = scmp.ne.s32.totalorder %s43, %s44
      %p55 = scmp.eq.s32.totalorder %s14, 0
      %p56 = por %p54, %p55
      %p57 = scmp.ne.s32.totalorder %s43, %s44
      %p58 = scmp.eq.s32.totalorder %s15, 1
      %p59 = por %p57, %p58
      %p61 = scmp.ne.s32.totalorder %s44, %s60
      %p62 = scmp.eq.s32.totalorder %s15, 0
      %p63 = por %p61, %p62
      %s64 = ssub.s32 %s9, %s16
      %p65 = scmp.eq.s32.totalorder %s64, 0
      %s67 = sadd.s32 %s66, 1
      %s68 = scalar_select %p65, %s66, %s67
      %p71 = pneg %p65
      %p72 = scmp.eq.s32.totalorder %s9, 1
      %p73 = por %p71, %p72
      %p74 = scmp.ne.s32.totalorder %s66, %s69
      %p75 = scmp.eq.s32.totalorder %s9, 0
      %p76 = por %p74, %p75
      %p77 = scmp.ne.s32.totalorder %s66, %s69
      %p78 = scmp.eq.s32.totalorder %s14, 1
      %p79 = por %p77, %p78
      %p80 = scmp.ne.s32.totalorder %s69, %s70
      %p81 = scmp.eq.s32.totalorder %s14, 0
      %p82 = por %p80, %p81
      %p83 = scmp.ne.s32.totalorder %s69, %s70
      %p84 = scmp.eq.s32.totalorder %s15, 1
      %p85 = por %p83, %p84
      %p87 = scmp.ne.s32.totalorder %s70, %s86
      %p88 = scmp.eq.s32.totalorder %s15, 0
      %p89 = por %p87, %p88
      %s90 = ssub.s32 %s9, %s16
      %p91 = scmp.eq.s32.totalorder %s90, 0
      %s93 = sadd.s32 %s92, 1
      %s94 = scalar_select %p91, %s92, %s93
      %p97 = pneg %p91
      %p98 = scmp.eq.s32.totalorder %s9, 1
      %p99 = por %p97, %p98
      %p100 = scmp.ne.s32.totalorder %s92, %s95
      %p101 = scmp.eq.s32.totalorder %s9, 0
      %p102 = por %p100, %p101
      %p103 = scmp.ne.s32.totalorder %s92, %s95
      %p104 = scmp.eq.s32.totalorder %s14, 1
      %p105 = por %p103, %p104
      %p106 = scmp.ne.s32.totalorder %s95, %s96
      %p107 = scmp.eq.s32.totalorder %s14, 0
      %p108 = por %p106, %p107
      %p109 = scmp.ne.s32.totalorder %s95, %s96
      %p110 = scmp.eq.s32.totalorder %s15, 1
      %p111 = por %p109, %p110
      %p113 = scmp.ne.s32.totalorder %s96, %s112
      %p114 = scmp.eq.s32.totalorder %s15, 0
      %p115 = por %p113, %p114
      %p116 = scmp.le.s32.totalorder 1, %s9
      %p117 = scmp.lt.s32.totalorder %s9, 3
      %p118 = pnand %p116, %p117
      %p119 = pneg %p118
      // Predicated region
      $region9: #{cnn_forward.7} parent=5 // pred_check
        _
      $region10: #{cnn_forward.7} parent=5 // pred_check_branch
        %121 = sbr.rel (%p118) target = $region12
      $region11: #{cnn_forward.7} parent=5 // pred_region
        %s122 = ssub.s32 %s9, 1
        // Predicated region
        $region13: #{cnn_forward.7} parent=11 // pred_check
          %p123 = pneg %p30
        $region14: #{cnn_forward.7} parent=11 // pred_check_branch
          %125 = sbr.rel (%p123) target = $region16
        $region15: #{cnn_forward.7} parent=11 // pred_region
          _
        $region16: #{cnn_forward.7} parent=11 // pred_fallthru
          _
      $region12: #{cnn_forward.7} parent=5 // pred_fallthru
        _
      %p126 = scmp.lt.s32.totalorder %s9, 2
      // Predicated region
      $region17: #{cnn_forward.7} parent=5 // pred_check
        %p127 = pneg %p126
      $region18: #{cnn_forward.7} parent=5 // pred_check_branch
        %129 = sbr.rel (%p127) target = $region20
      $region19: #{cnn_forward.7} parent=5 // pred_region
        // Predicated region
        $region21: #{cnn_forward.7} parent=19 // pred_check
          %p130 = pneg %p50
        $region22: #{cnn_forward.7} parent=19 // pred_check_branch
          %132 = sbr.rel (%p130) target = $region24
        $region23: #{cnn_forward.7} parent=19 // pred_region
          %s133 = sand.u32 %s40, 1
          %s134 = sand.u32 %s40, 1
          %s135 = smul.addr %s134, 576
          %s136 = scalar_lea.vmem [#allocation2], %s135
          %s137 = smul.addr %s9, 4
          %s138 = scalar_lea.vmem %s1, %s137
          // Predicated region
          $region25: #{cnn_forward.7} parent=23 // pred_check
            _
          $region26: #{cnn_forward.7} parent=23 // pred_check_branch
            %140 = sbr.rel (0) target = $region28
          $region27: #{cnn_forward.7} parent=23 // pred_region
            // Predicated region
            $region29: #{cnn_forward.7} parent=27 // pred_check
              _
            $region30: #{cnn_forward.7} parent=27 // pred_check_branch
              %142 = sbr.rel target = $region32
            $region31: #{cnn_forward.7} parent=27 // pred_region
              // Predicated region
              $region44: #{cnn_forward.7} parent=31 // pred_check
                _
              $region45: #{cnn_forward.7} parent=31 // pred_check_branch
                %443 = sbr.rel (0) target = $region47
              $region46: #{cnn_forward.7} parent=31 // pred_region
                loop: start=0, step=1, limit=1
                $region48: #{cnn_forward.7} parent=46 // loop_pre_header
                  _
                $region49: #{cnn_forward.7} parent=46 // loop_header
                  %s445 = sphi 0, %s449
                  %p446 = scmp.ge.s32.totalorder %s445, 1
                  %s450 = sphi %s138, %s138
                  %s451 = sphi %s136, %s136
                $region50: #{cnn_forward.7} parent=46 // loop_header_branch
                  %448 = sbr.rel (%p446) target = $region54
                $region51: #{cnn_forward.7} parent=46 // loop_body
                  _
                $region52: #{cnn_forward.7} parent=46 // loop_footer
                  %s449 = sadd.s32 1, %s445
                $region53: #{cnn_forward.7} parent=46 // loop_footer_branch
                  %444 = sbr.rel target = $region49
                $region54: #{cnn_forward.7} parent=46 // loop_exit
                  _
                loop: start=0, step=1, limit=1
                $region55: #{cnn_forward.7} parent=46 // loop_pre_header
                  _
                $region56: #{cnn_forward.7} parent=46 // loop_header
                  %s454 = sphi 0, %s458
                  %p455 = scmp.ge.s32.totalorder %s454, 1
                  %s459 = sphi %s138, %s138
                  %s460 = sphi %s136, %s136
                $region57: #{cnn_forward.7} parent=46 // loop_header_branch
                  %457 = sbr.rel (%p455) target = $region61
                $region58: #{cnn_forward.7} parent=46 // loop_body
                  %v461 = vld [vmem:[%s459] sm:$0xf]
                  %462 = vst [vmem:[%s460] sm:$0xf] %v461
                  %v463 = vld [vmem:[%s459 + $0x8] sm:$0xf]
                  %464 = vst [vmem:[%s460 + $0x4] sm:$0xf] %v463
                  %v465 = vld [vmem:[%s459 + $0x10] sm:$0xf]
                  %466 = vst [vmem:[%s460 + $0x8] sm:$0xf] %v465
                  %v467 = vld [vmem:[%s459 + $0x18] sm:$0xf]
                  %468 = vst [vmem:[%s460 + $0xc] sm:$0xf] %v467
                  %v469 = vld [vmem:[%s459 + $0x20] sm:$0xf]
                  %470 = vst [vmem:[%s460 + $0x10] sm:$0xf] %v469
                  %v471 = vld [vmem:[%s459 + $0x28] sm:$0xf]
                  %472 = vst [vmem:[%s460 + $0x14] sm:$0xf] %v471
                  %v473 = vld [vmem:[%s459 + $0x30] sm:$0xf]
                  %474 = vst [vmem:[%s460 + $0x18] sm:$0xf] %v473
                  %v475 = vld [vmem:[%s459 + $0x38] sm:$0xf]
                  %476 = vst [vmem:[%s460 + $0x1c] sm:$0xf] %v475
                  %v477 = vld [vmem:[%s459 + $0x40] sm:$0xf]
                  %478 = vst [vmem:[%s460 + $0x20] sm:$0xf] %v477
                  %v479 = vld [vmem:[%s459 + $0x48] sm:$0xf]
                  %480 = vst [vmem:[%s460 + $0x24] sm:$0xf] %v479
                  %v481 = vld [vmem:[%s459 + $0x50] sm:$0xf]
                  %482 = vst [vmem:[%s460 + $0x28] sm:$0xf] %v481
                  %v483 = vld [vmem:[%s459 + $0x58] sm:$0xf]
                  %484 = vst [vmem:[%s460 + $0x2c] sm:$0xf] %v483
                  %v485 = vld [vmem:[%s459 + $0x60] sm:$0xf]
                  %486 = vst [vmem:[%s460 + $0x30] sm:$0xf] %v485
                  %v487 = vld [vmem:[%s459 + $0x68] sm:$0xf]
                  %488 = vst [vmem:[%s460 + $0x34] sm:$0xf] %v487
                  %v489 = vld [vmem:[%s459 + $0x70] sm:$0xf]
                  %490 = vst [vmem:[%s460 + $0x38] sm:$0xf] %v489
                  %v491 = vld [vmem:[%s459 + $0x78] sm:$0xf]
                  %492 = vst [vmem:[%s460 + $0x3c] sm:$0xf] %v491
                  %v493 = vld [vmem:[%s459 + $0x80] sm:$0xf]
                  %494 = vst [vmem:[%s460 + $0x40] sm:$0xf] %v493
                  %v495 = vld [vmem:[%s459 + $0x88] sm:$0xf]
                  %496 = vst [vmem:[%s460 + $0x44] sm:$0xf] %v495
                  %v497 = vld [vmem:[%s459 + $0x90] sm:$0xf]
                  %498 = vst [vmem:[%s460 + $0x48] sm:$0xf] %v497
                  %v499 = vld [vmem:[%s459 + $0x98] sm:$0xf]
                  %500 = vst [vmem:[%s460 + $0x4c] sm:$0xf] %v499
                  %v501 = vld [vmem:[%s459 + $0xa0] sm:$0xf]
                  %502 = vst [vmem:[%s460 + $0x50] sm:$0xf] %v501
                  %v503 = vld [vmem:[%s459 + $0xa8] sm:$0xf]
                  %504 = vst [vmem:[%s460 + $0x54] sm:$0xf] %v503
                  %v505 = vld [vmem:[%s459 + $0xb0] sm:$0xf]
                  %506 = vst [vmem:[%s460 + $0x58] sm:$0xf] %v505
                  %v507 = vld [vmem:[%s459 + $0xb8] sm:$0xf]
                  %508 = vst [vmem:[%s460 + $0x5c] sm:$0xf] %v507
                  %v509 = vld [vmem:[%s459 + $0xc0] sm:$0xf]
                  %510 = vst [vmem:[%s460 + $0x60] sm:$0xf] %v509
                  %v511 = vld [vmem:[%s459 + $0xc8] sm:$0xf]
                  %512 = vst [vmem:[%s460 + $0x64] sm:$0xf] %v511
                  %v513 = vld [vmem:[%s459 + $0xd0] sm:$0xf]
                  %514 = vst [vmem:[%s460 + $0x68] sm:$0xf] %v513
                  %v515 = vld [vmem:[%s459 + $0xd8] sm:$0xf]
                  %516 = vst [vmem:[%s460 + $0x6c] sm:$0xf] %v515
                  %v517 = vld [vmem:[%s459 + $0xe0] sm:$0xf]
                  %518 = vst [vmem:[%s460 + $0x70] sm:$0xf] %v517
                  %v519 = vld [vmem:[%s459 + $0xe8] sm:$0xf]
                  %520 = vst [vmem:[%s460 + $0x74] sm:$0xf] %v519
                  %v521 = vld [vmem:[%s459 + $0xf0] sm:$0xf]
                  %522 = vst [vmem:[%s460 + $0x78] sm:$0xf] %v521
                  %v523 = vld [vmem:[%s459 + $0xf8] sm:$0xf]
                  %524 = vst [vmem:[%s460 + $0x7c] sm:$0xf] %v523
                  %v525 = vld [vmem:[%s459 + $0x100] sm:$0xf]
                  %526 = vst [vmem:[%s460 + $0x80] sm:$0xf] %v525
                  %v527 = vld [vmem:[%s459 + $0x108] sm:$0xf]
                  %528 = vst [vmem:[%s460 + $0x84] sm:$0xf] %v527
                  %v529 = vld [vmem:[%s459 + $0x110] sm:$0xf]
                  %530 = vst [vmem:[%s460 + $0x88] sm:$0xf] %v529
                  %v531 = vld [vmem:[%s459 + $0x118] sm:$0xf]
                  %532 = vst [vmem:[%s460 + $0x8c] sm:$0xf] %v531
                  %v533 = vld [vmem:[%s459 + $0x120] sm:$0xf]
                  %534 = vst [vmem:[%s460 + $0x90] sm:$0xf] %v533
                  %v535 = vld [vmem:[%s459 + $0x128] sm:$0xf]
                  %536 = vst [vmem:[%s460 + $0x94] sm:$0xf] %v535
                  %v537 = vld [vmem:[%s459 + $0x130] sm:$0xf]
                  %538 = vst [vmem:[%s460 + $0x98] sm:$0xf] %v537
                  %v539 = vld [vmem:[%s459 + $0x138] sm:$0xf]
                  %540 = vst [vmem:[%s460 + $0x9c] sm:$0xf] %v539
                  %v541 = vld [vmem:[%s459 + $0x140] sm:$0xf]
                  %542 = vst [vmem:[%s460 + $0xa0] sm:$0xf] %v541
                  %v543 = vld [vmem:[%s459 + $0x148] sm:$0xf]
                  %544 = vst [vmem:[%s460 + $0xa4] sm:$0xf] %v543
                  %v545 = vld [vmem:[%s459 + $0x150] sm:$0xf]
                  %546 = vst [vmem:[%s460 + $0xa8] sm:$0xf] %v545
                  %v547 = vld [vmem:[%s459 + $0x158] sm:$0xf]
                  %548 = vst [vmem:[%s460 + $0xac] sm:$0xf] %v547
                  %v549 = vld [vmem:[%s459 + $0x160] sm:$0xf]
                  %550 = vst [vmem:[%s460 + $0xb0] sm:$0xf] %v549
                  %v551 = vld [vmem:[%s459 + $0x168] sm:$0xf]
                  %552 = vst [vmem:[%s460 + $0xb4] sm:$0xf] %v551
                  %v553 = vld [vmem:[%s459 + $0x170] sm:$0xf]
                  %554 = vst [vmem:[%s460 + $0xb8] sm:$0xf] %v553
                  %v555 = vld [vmem:[%s459 + $0x178] sm:$0xf]
                  %556 = vst [vmem:[%s460 + $0xbc] sm:$0xf] %v555
                  %v557 = vld [vmem:[%s459 + $0x180] sm:$0xf]
                  %558 = vst [vmem:[%s460 + $0xc0] sm:$0xf] %v557
                  %v559 = vld [vmem:[%s459 + $0x188] sm:$0xf]
                  %560 = vst [vmem:[%s460 + $0xc4] sm:$0xf] %v559
                  %v561 = vld [vmem:[%s459 + $0x190] sm:$0xf]
                  %562 = vst [vmem:[%s460 + $0xc8] sm:$0xf] %v561
                  %v563 = vld [vmem:[%s459 + $0x198] sm:$0xf]
                  %564 = vst [vmem:[%s460 + $0xcc] sm:$0xf] %v563
                  %v565 = vld [vmem:[%s459 + $0x1a0] sm:$0xf]
                  %566 = vst [vmem:[%s460 + $0xd0] sm:$0xf] %v565
                  %v567 = vld [vmem:[%s459 + $0x1a8] sm:$0xf]
                  %568 = vst [vmem:[%s460 + $0xd4] sm:$0xf] %v567
                  %v569 = vld [vmem:[%s459 + $0x1b0] sm:$0xf]
                  %570 = vst [vmem:[%s460 + $0xd8] sm:$0xf] %v569
                  %v571 = vld [vmem:[%s459 + $0x1b8] sm:$0xf]
                  %572 = vst [vmem:[%s460 + $0xdc] sm:$0xf] %v571
                  %v573 = vld [vmem:[%s459 + $0x1c0] sm:$0xf]
                  %574 = vst [vmem:[%s460 + $0xe0] sm:$0xf] %v573
                  %v575 = vld [vmem:[%s459 + $0x1c8] sm:$0xf]
                  %576 = vst [vmem:[%s460 + $0xe4] sm:$0xf] %v575
                  %v577 = vld [vmem:[%s459 + $0x1d0] sm:$0xf]
                  %578 = vst [vmem:[%s460 + $0xe8] sm:$0xf] %v577
                  %v579 = vld [vmem:[%s459 + $0x1d8] sm:$0xf]
                  %580 = vst [vmem:[%s460 + $0xec] sm:$0xf] %v579
                  %v581 = vld [vmem:[%s459 + $0x1e0] sm:$0xf]
                  %582 = vst [vmem:[%s460 + $0xf0] sm:$0xf] %v581
                  %v583 = vld [vmem:[%s459 + $0x1e8] sm:$0xf]
                  %584 = vst [vmem:[%s460 + $0xf4] sm:$0xf] %v583
                  %v585 = vld [vmem:[%s459 + $0x1f0] sm:$0xf]
                  %586 = vst [vmem:[%s460 + $0xf8] sm:$0xf] %v585
                  %v587 = vld [vmem:[%s459 + $0x1f8] sm:$0xf]
                  %588 = vst [vmem:[%s460 + $0xfc] sm:$0xf] %v587
                  %v589 = vld [vmem:[%s459 + $0x200] sm:$0xf]
                  %590 = vst [vmem:[%s460 + $0x100] sm:$0xf] %v589
                  %v591 = vld [vmem:[%s459 + $0x208] sm:$0xf]
                  %592 = vst [vmem:[%s460 + $0x104] sm:$0xf] %v591
                  %v593 = vld [vmem:[%s459 + $0x210] sm:$0xf]
                  %594 = vst [vmem:[%s460 + $0x108] sm:$0xf] %v593
                  %v595 = vld [vmem:[%s459 + $0x218] sm:$0xf]
                  %596 = vst [vmem:[%s460 + $0x10c] sm:$0xf] %v595
                  %v597 = vld [vmem:[%s459 + $0x220] sm:$0xf]
                  %598 = vst [vmem:[%s460 + $0x110] sm:$0xf] %v597
                  %v599 = vld [vmem:[%s459 + $0x228] sm:$0xf]
                  %600 = vst [vmem:[%s460 + $0x114] sm:$0xf] %v599
                  %v601 = vld [vmem:[%s459 + $0x230] sm:$0xf]
                  %602 = vst [vmem:[%s460 + $0x118] sm:$0xf] %v601
                  %v603 = vld [vmem:[%s459 + $0x238] sm:$0xf]
                  %604 = vst [vmem:[%s460 + $0x11c] sm:$0xf] %v603
                  %v605 = vld [vmem:[%s459 + $0x240] sm:$0xf]
                  %606 = vst [vmem:[%s460 + $0x120] sm:$0xf] %v605
                  %v607 = vld [vmem:[%s459 + $0x248] sm:$0xf]
                  %608 = vst [vmem:[%s460 + $0x124] sm:$0xf] %v607
                  %v609 = vld [vmem:[%s459 + $0x250] sm:$0xf]
                  %610 = vst [vmem:[%s460 + $0x128] sm:$0xf] %v609
                  %v611 = vld [vmem:[%s459 + $0x258] sm:$0xf]
                  %612 = vst [vmem:[%s460 + $0x12c] sm:$0xf] %v611
                  %v613 = vld [vmem:[%s459 + $0x260] sm:$0xf]
                  %614 = vst [vmem:[%s460 + $0x130] sm:$0xf] %v613
                  %v615 = vld [vmem:[%s459 + $0x268] sm:$0xf]
                  %616 = vst [vmem:[%s460 + $0x134] sm:$0xf] %v615
                  %v617 = vld [vmem:[%s459 + $0x270] sm:$0xf]
                  %618 = vst [vmem:[%s460 + $0x138] sm:$0xf] %v617
                  %v619 = vld [vmem:[%s459 + $0x278] sm:$0xf]
                  %620 = vst [vmem:[%s460 + $0x13c] sm:$0xf] %v619
                  %v621 = vld [vmem:[%s459 + $0x280] sm:$0xf]
                  %622 = vst [vmem:[%s460 + $0x140] sm:$0xf] %v621
                  %v623 = vld [vmem:[%s459 + $0x288] sm:$0xf]
                  %624 = vst [vmem:[%s460 + $0x144] sm:$0xf] %v623
                  %v625 = vld [vmem:[%s459 + $0x290] sm:$0xf]
                  %626 = vst [vmem:[%s460 + $0x148] sm:$0xf] %v625
                  %v627 = vld [vmem:[%s459 + $0x298] sm:$0xf]
                  %628 = vst [vmem:[%s460 + $0x14c] sm:$0xf] %v627
                  %v629 = vld [vmem:[%s459 + $0x2a0] sm:$0xf]
                  %630 = vst [vmem:[%s460 + $0x150] sm:$0xf] %v629
                  %v631 = vld [vmem:[%s459 + $0x2a8] sm:$0xf]
                  %632 = vst [vmem:[%s460 + $0x154] sm:$0xf] %v631
                  %v633 = vld [vmem:[%s459 + $0x2b0] sm:$0xf]
                  %634 = vst [vmem:[%s460 + $0x158] sm:$0xf] %v633
                  %v635 = vld [vmem:[%s459 + $0x2b8] sm:$0xf]
                  %636 = vst [vmem:[%s460 + $0x15c] sm:$0xf] %v635
                  %v637 = vld [vmem:[%s459 + $0x2c0] sm:$0xf]
                  %638 = vst [vmem:[%s460 + $0x160] sm:$0xf] %v637
                  %v639 = vld [vmem:[%s459 + $0x2c8] sm:$0xf]
                  %640 = vst [vmem:[%s460 + $0x164] sm:$0xf] %v639
                  %v641 = vld [vmem:[%s459 + $0x2d0] sm:$0xf]
                  %642 = vst [vmem:[%s460 + $0x168] sm:$0xf] %v641
                  %v643 = vld [vmem:[%s459 + $0x2d8] sm:$0xf]
                  %644 = vst [vmem:[%s460 + $0x16c] sm:$0xf] %v643
                  %v645 = vld [vmem:[%s459 + $0x2e0] sm:$0xf]
                  %646 = vst [vmem:[%s460 + $0x170] sm:$0xf] %v645
                  %v647 = vld [vmem:[%s459 + $0x2e8] sm:$0xf]
                  %648 = vst [vmem:[%s460 + $0x174] sm:$0xf] %v647
                  %v649 = vld [vmem:[%s459 + $0x2f0] sm:$0xf]
                  %650 = vst [vmem:[%s460 + $0x178] sm:$0xf] %v649
                  %v651 = vld [vmem:[%s459 + $0x2f8] sm:$0xf]
                  %652 = vst [vmem:[%s460 + $0x17c] sm:$0xf] %v651
                  %v653 = vld [vmem:[%s459 + $0x300] sm:$0xf]
                  %654 = vst [vmem:[%s460 + $0x180] sm:$0xf] %v653
                  %v655 = vld [vmem:[%s459 + $0x308] sm:$0xf]
                  %656 = vst [vmem:[%s460 + $0x184] sm:$0xf] %v655
                  %v657 = vld [vmem:[%s459 + $0x310] sm:$0xf]
                  %658 = vst [vmem:[%s460 + $0x188] sm:$0xf] %v657
                  %v659 = vld [vmem:[%s459 + $0x318] sm:$0xf]
                  %660 = vst [vmem:[%s460 + $0x18c] sm:$0xf] %v659
                  %v661 = vld [vmem:[%s459 + $0x320] sm:$0xf]
                  %662 = vst [vmem:[%s460 + $0x190] sm:$0xf] %v661
                  %v663 = vld [vmem:[%s459 + $0x328] sm:$0xf]
                  %664 = vst [vmem:[%s460 + $0x194] sm:$0xf] %v663
                  %v665 = vld [vmem:[%s459 + $0x330] sm:$0xf]
                  %666 = vst [vmem:[%s460 + $0x198] sm:$0xf] %v665
                  %v667 = vld [vmem:[%s459 + $0x338] sm:$0xf]
                  %668 = vst [vmem:[%s460 + $0x19c] sm:$0xf] %v667
                  %v669 = vld [vmem:[%s459 + $0x340] sm:$0xf]
                  %670 = vst [vmem:[%s460 + $0x1a0] sm:$0xf] %v669
                  %v671 = vld [vmem:[%s459 + $0x348] sm:$0xf]
                  %672 = vst [vmem:[%s460 + $0x1a4] sm:$0xf] %v671
                  %v673 = vld [vmem:[%s459 + $0x350] sm:$0xf]
                  %674 = vst [vmem:[%s460 + $0x1a8] sm:$0xf] %v673
                  %v675 = vld [vmem:[%s459 + $0x358] sm:$0xf]
                  %676 = vst [vmem:[%s460 + $0x1ac] sm:$0xf] %v675
                  %v677 = vld [vmem:[%s459 + $0x360] sm:$0xf]
                  %678 = vst [vmem:[%s460 + $0x1b0] sm:$0xf] %v677
                  %v679 = vld [vmem:[%s459 + $0x368] sm:$0xf]
                  %680 = vst [vmem:[%s460 + $0x1b4] sm:$0xf] %v679
                  %v681 = vld [vmem:[%s459 + $0x370] sm:$0xf]
                  %682 = vst [vmem:[%s460 + $0x1b8] sm:$0xf] %v681
                  %v683 = vld [vmem:[%s459 + $0x378] sm:$0xf]
                  %684 = vst [vmem:[%s460 + $0x1bc] sm:$0xf] %v683
                  %v685 = vld [vmem:[%s459 + $0x380] sm:$0xf]
                  %686 = vst [vmem:[%s460 + $0x1c0] sm:$0xf] %v685
                  %v687 = vld [vmem:[%s459 + $0x388] sm:$0xf]
                  %688 = vst [vmem:[%s460 + $0x1c4] sm:$0xf] %v687
                  %v689 = vld [vmem:[%s459 + $0x390] sm:$0xf]
                  %690 = vst [vmem:[%s460 + $0x1c8] sm:$0xf] %v689
                  %v691 = vld [vmem:[%s459 + $0x398] sm:$0xf]
                  %692 = vst [vmem:[%s460 + $0x1cc] sm:$0xf] %v691
                  %v693 = vld [vmem:[%s459 + $0x3a0] sm:$0xf]
                  %694 = vst [vmem:[%s460 + $0x1d0] sm:$0xf] %v693
                  %v695 = vld [vmem:[%s459 + $0x3a8] sm:$0xf]
                  %696 = vst [vmem:[%s460 + $0x1d4] sm:$0xf] %v695
                  %v697 = vld [vmem:[%s459 + $0x3b0] sm:$0xf]
                  %698 = vst [vmem:[%s460 + $0x1d8] sm:$0xf] %v697
                  %v699 = vld [vmem:[%s459 + $0x3b8] sm:$0xf]
                  %700 = vst [vmem:[%s460 + $0x1dc] sm:$0xf] %v699
                  %v701 = vld [vmem:[%s459 + $0x3c0] sm:$0xf]
                  %702 = vst [vmem:[%s460 + $0x1e0] sm:$0xf] %v701
                  %v703 = vld [vmem:[%s459 + $0x3c8] sm:$0xf]
                  %704 = vst [vmem:[%s460 + $0x1e4] sm:$0xf] %v703
                  %v705 = vld [vmem:[%s459 + $0x3d0] sm:$0xf]
                  %706 = vst [vmem:[%s460 + $0x1e8] sm:$0xf] %v705
                  %v707 = vld [vmem:[%s459 + $0x3d8] sm:$0xf]
                  %708 = vst [vmem:[%s460 + $0x1ec] sm:$0xf] %v707
                  %v709 = vld [vmem:[%s459 + $0x3e0] sm:$0xf]
                  %710 = vst [vmem:[%s460 + $0x1f0] sm:$0xf] %v709
                  %v711 = vld [vmem:[%s459 + $0x3e8] sm:$0xf]
                  %712 = vst [vmem:[%s460 + $0x1f4] sm:$0xf] %v711
                  %v713 = vld [vmem:[%s459 + $0x3f0] sm:$0xf]
                  %714 = vst [vmem:[%s460 + $0x1f8] sm:$0xf] %v713
                  %v715 = vld [vmem:[%s459 + $0x3f8] sm:$0xf]
                  %716 = vst [vmem:[%s460 + $0x1fc] sm:$0xf] %v715
                  %v717 = vld [vmem:[%s459 + $0x400] sm:$0xf]
                  %718 = vst [vmem:[%s460 + $0x200] sm:$0xf] %v717
                  %v719 = vld [vmem:[%s459 + $0x408] sm:$0xf]
                  %720 = vst [vmem:[%s460 + $0x204] sm:$0xf] %v719
                  %v721 = vld [vmem:[%s459 + $0x410] sm:$0xf]
                  %722 = vst [vmem:[%s460 + $0x208] sm:$0xf] %v721
                  %v723 = vld [vmem:[%s459 + $0x418] sm:$0xf]
                  %724 = vst [vmem:[%s460 + $0x20c] sm:$0xf] %v723
                  %v725 = vld [vmem:[%s459 + $0x420] sm:$0xf]
                  %726 = vst [vmem:[%s460 + $0x210] sm:$0xf] %v725
                  %v727 = vld [vmem:[%s459 + $0x428] sm:$0xf]
                  %728 = vst [vmem:[%s460 + $0x214] sm:$0xf] %v727
                  %v729 = vld [vmem:[%s459 + $0x430] sm:$0xf]
                  %730 = vst [vmem:[%s460 + $0x218] sm:$0xf] %v729
                  %v731 = vld [vmem:[%s459 + $0x438] sm:$0xf]
                  %732 = vst [vmem:[%s460 + $0x21c] sm:$0xf] %v731
                  %v733 = vld [vmem:[%s459 + $0x440] sm:$0xf]
                  %734 = vst [vmem:[%s460 + $0x220] sm:$0xf] %v733
                  %v735 = vld [vmem:[%s459 + $0x448] sm:$0xf]
                  %736 = vst [vmem:[%s460 + $0x224] sm:$0xf] %v735
                  %v737 = vld [vmem:[%s459 + $0x450] sm:$0xf]
                  %738 = vst [vmem:[%s460 + $0x228] sm:$0xf] %v737
                  %v739 = vld [vmem:[%s459 + $0x458] sm:$0xf]
                  %740 = vst [vmem:[%s460 + $0x22c] sm:$0xf] %v739
                  %v741 = vld [vmem:[%s459 + $0x460] sm:$0xf]
                  %742 = vst [vmem:[%s460 + $0x230] sm:$0xf] %v741
                  %v743 = vld [vmem:[%s459 + $0x468] sm:$0xf]
                  %744 = vst [vmem:[%s460 + $0x234] sm:$0xf] %v743
                  %v745 = vld [vmem:[%s459 + $0x470] sm:$0xf]
                  %746 = vst [vmem:[%s460 + $0x238] sm:$0xf] %v745
                  %v747 = vld [vmem:[%s459 + $0x478] sm:$0xf]
                  %748 = vst [vmem:[%s460 + $0x23c] sm:$0xf] %v747
                $region59: #{cnn_forward.7} parent=46 // loop_footer
                  %s458 = sadd.s32 1, %s454
                $region60: #{cnn_forward.7} parent=46 // loop_footer_branch
                  %453 = sbr.rel target = $region56
                $region61: #{cnn_forward.7} parent=46 // loop_exit
                  _
              $region47: #{cnn_forward.7} parent=31 // pred_fallthru
                _
            $region32: #{cnn_forward.7} parent=27 // pred_fallthru
              _
            // Predicated region
            $region33: #{cnn_forward.7} parent=27 // pred_check
              _
            $region34: #{cnn_forward.7} parent=27 // pred_check_branch
              %144 = sbr.rel (0) target = $region36
            $region35: #{cnn_forward.7} parent=27 // pred_region
              loop: start=0, step=1, limit=1
              $region37: #{cnn_forward.7} parent=35 // loop_pre_header
                _
              $region38: #{cnn_forward.7} parent=35 // loop_header
                %s147 = sphi 0, %s151
                %p148 = scmp.ge.s32.totalorder %s147, 1
                %s152 = sphi %s138, %s138
                %s153 = sphi %s136, %s136
              $region39: #{cnn_forward.7} parent=35 // loop_header_branch
                %150 = sbr.rel (%p148) target = $region43
              $region40: #{cnn_forward.7} parent=35 // loop_body
                %v154 = vld [vmem:[%s152] sm:$0xf]
                %155 = vst [vmem:[%s153] sm:$0xf] %v154
                %v156 = vld [vmem:[%s152 + $0x8] sm:$0xf]
                %157 = vst [vmem:[%s153 + $0x4] sm:$0xf] %v156
                %v158 = vld [vmem:[%s152 + $0x10] sm:$0xf]
                %159 = vst [vmem:[%s153 + $0x8] sm:$0xf] %v158
                %v160 = vld [vmem:[%s152 + $0x18] sm:$0xf]
                %161 = vst [vmem:[%s153 + $0xc] sm:$0xf] %v160
                %v162 = vld [vmem:[%s152 + $0x20] sm:$0xf]
                %163 = vst [vmem:[%s153 + $0x10] sm:$0xf] %v162
                %v164 = vld [vmem:[%s152 + $0x28] sm:$0xf]
                %165 = vst [vmem:[%s153 + $0x14] sm:$0xf] %v164
                %v166 = vld [vmem:[%s152 + $0x30] sm:$0xf]
                %167 = vst [vmem:[%s153 + $0x18] sm:$0xf] %v166
                %v168 = vld [vmem:[%s152 + $0x38] sm:$0xf]
                %169 = vst [vmem:[%s153 + $0x1c] sm:$0xf] %v168
                %v170 = vld [vmem:[%s152 + $0x40] sm:$0xf]
                %171 = vst [vmem:[%s153 + $0x20] sm:$0xf] %v170
                %v172 = vld [vmem:[%s152 + $0x48] sm:$0xf]
                %173 = vst [vmem:[%s153 + $0x24] sm:$0xf] %v172
                %v174 = vld [vmem:[%s152 + $0x50] sm:$0xf]
                %175 = vst [vmem:[%s153 + $0x28] sm:$0xf] %v174
                %v176 = vld [vmem:[%s152 + $0x58] sm:$0xf]
                %177 = vst [vmem:[%s153 + $0x2c] sm:$0xf] %v176
                %v178 = vld [vmem:[%s152 + $0x60] sm:$0xf]
                %179 = vst [vmem:[%s153 + $0x30] sm:$0xf] %v178
                %v180 = vld [vmem:[%s152 + $0x68] sm:$0xf]
                %181 = vst [vmem:[%s153 + $0x34] sm:$0xf] %v180
                %v182 = vld [vmem:[%s152 + $0x70] sm:$0xf]
                %183 = vst [vmem:[%s153 + $0x38] sm:$0xf] %v182
                %v184 = vld [vmem:[%s152 + $0x78] sm:$0xf]
                %185 = vst [vmem:[%s153 + $0x3c] sm:$0xf] %v184
                %v186 = vld [vmem:[%s152 + $0x80] sm:$0xf]
                %187 = vst [vmem:[%s153 + $0x40] sm:$0xf] %v186
                %v188 = vld [vmem:[%s152 + $0x88] sm:$0xf]
                %189 = vst [vmem:[%s153 + $0x44] sm:$0xf] %v188
                %v190 = vld [vmem:[%s152 + $0x90] sm:$0xf]
                %191 = vst [vmem:[%s153 + $0x48] sm:$0xf] %v190
                %v192 = vld [vmem:[%s152 + $0x98] sm:$0xf]
                %193 = vst [vmem:[%s153 + $0x4c] sm:$0xf] %v192
                %v194 = vld [vmem:[%s152 + $0xa0] sm:$0xf]
                %195 = vst [vmem:[%s153 + $0x50] sm:$0xf] %v194
                %v196 = vld [vmem:[%s152 + $0xa8] sm:$0xf]
                %197 = vst [vmem:[%s153 + $0x54] sm:$0xf] %v196
                %v198 = vld [vmem:[%s152 + $0xb0] sm:$0xf]
                %199 = vst [vmem:[%s153 + $0x58] sm:$0xf] %v198
                %v200 = vld [vmem:[%s152 + $0xb8] sm:$0xf]
                %201 = vst [vmem:[%s153 + $0x5c] sm:$0xf] %v200
                %v202 = vld [vmem:[%s152 + $0xc0] sm:$0xf]
                %203 = vst [vmem:[%s153 + $0x60] sm:$0xf] %v202
                %v204 = vld [vmem:[%s152 + $0xc8] sm:$0xf]
                %205 = vst [vmem:[%s153 + $0x64] sm:$0xf] %v204
                %v206 = vld [vmem:[%s152 + $0xd0] sm:$0xf]
                %207 = vst [vmem:[%s153 + $0x68] sm:$0xf] %v206
                %v208 = vld [vmem:[%s152 + $0xd8] sm:$0xf]
                %209 = vst [vmem:[%s153 + $0x6c] sm:$0xf] %v208
                %v210 = vld [vmem:[%s152 + $0xe0] sm:$0xf]
                %211 = vst [vmem:[%s153 + $0x70] sm:$0xf] %v210
                %v212 = vld [vmem:[%s152 + $0xe8] sm:$0xf]
                %213 = vst [vmem:[%s153 + $0x74] sm:$0xf] %v212
                %v214 = vld [vmem:[%s152 + $0xf0] sm:$0xf]
                %215 = vst [vmem:[%s153 + $0x78] sm:$0xf] %v214
                %v216 = vld [vmem:[%s152 + $0xf8] sm:$0xf]
                %217 = vst [vmem:[%s153 + $0x7c] sm:$0xf] %v216
                %v218 = vld [vmem:[%s152 + $0x100] sm:$0xf]
                %219 = vst [vmem:[%s153 + $0x80] sm:$0xf] %v218
                %v220 = vld [vmem:[%s152 + $0x108] sm:$0xf]
                %221 = vst [vmem:[%s153 + $0x84] sm:$0xf] %v220
                %v222 = vld [vmem:[%s152 + $0x110] sm:$0xf]
                %223 = vst [vmem:[%s153 + $0x88] sm:$0xf] %v222
                %v224 = vld [vmem:[%s152 + $0x118] sm:$0xf]
                %225 = vst [vmem:[%s153 + $0x8c] sm:$0xf] %v224
                %v226 = vld [vmem:[%s152 + $0x120] sm:$0xf]
                %227 = vst [vmem:[%s153 + $0x90] sm:$0xf] %v226
                %v228 = vld [vmem:[%s152 + $0x128] sm:$0xf]
                %229 = vst [vmem:[%s153 + $0x94] sm:$0xf] %v228
                %v230 = vld [vmem:[%s152 + $0x130] sm:$0xf]
                %231 = vst [vmem:[%s153 + $0x98] sm:$0xf] %v230
                %v232 = vld [vmem:[%s152 + $0x138] sm:$0xf]
                %233 = vst [vmem:[%s153 + $0x9c] sm:$0xf] %v232
                %v234 = vld [vmem:[%s152 + $0x140] sm:$0xf]
                %235 = vst [vmem:[%s153 + $0xa0] sm:$0xf] %v234
                %v236 = vld [vmem:[%s152 + $0x148] sm:$0xf]
                %237 = vst [vmem:[%s153 + $0xa4] sm:$0xf] %v236
                %v238 = vld [vmem:[%s152 + $0x150] sm:$0xf]
                %239 = vst [vmem:[%s153 + $0xa8] sm:$0xf] %v238
                %v240 = vld [vmem:[%s152 + $0x158] sm:$0xf]
                %241 = vst [vmem:[%s153 + $0xac] sm:$0xf] %v240
                %v242 = vld [vmem:[%s152 + $0x160] sm:$0xf]
                %243 = vst [vmem:[%s153 + $0xb0] sm:$0xf] %v242
                %v244 = vld [vmem:[%s152 + $0x168] sm:$0xf]
                %245 = vst [vmem:[%s153 + $0xb4] sm:$0xf] %v244
                %v246 = vld [vmem:[%s152 + $0x170] sm:$0xf]
                %247 = vst [vmem:[%s153 + $0xb8] sm:$0xf] %v246
                %v248 = vld [vmem:[%s152 + $0x178] sm:$0xf]
                %249 = vst [vmem:[%s153 + $0xbc] sm:$0xf] %v248
                %v250 = vld [vmem:[%s152 + $0x180] sm:$0xf]
                %251 = vst [vmem:[%s153 + $0xc0] sm:$0xf] %v250
                %v252 = vld [vmem:[%s152 + $0x188] sm:$0xf]
                %253 = vst [vmem:[%s153 + $0xc4] sm:$0xf] %v252
                %v254 = vld [vmem:[%s152 + $0x190] sm:$0xf]
                %255 = vst [vmem:[%s153 + $0xc8] sm:$0xf] %v254
                %v256 = vld [vmem:[%s152 + $0x198] sm:$0xf]
                %257 = vst [vmem:[%s153 + $0xcc] sm:$0xf] %v256
                %v258 = vld [vmem:[%s152 + $0x1a0] sm:$0xf]
                %259 = vst [vmem:[%s153 + $0xd0] sm:$0xf] %v258
                %v260 = vld [vmem:[%s152 + $0x1a8] sm:$0xf]
                %261 = vst [vmem:[%s153 + $0xd4] sm:$0xf] %v260
                %v262 = vld [vmem:[%s152 + $0x1b0] sm:$0xf]
                %263 = vst [vmem:[%s153 + $0xd8] sm:$0xf] %v262
                %v264 = vld [vmem:[%s152 + $0x1b8] sm:$0xf]
                %265 = vst [vmem:[%s153 + $0xdc] sm:$0xf] %v264
                %v266 = vld [vmem:[%s152 + $0x1c0] sm:$0xf]
                %267 = vst [vmem:[%s153 + $0xe0] sm:$0xf] %v266
                %v268 = vld [vmem:[%s152 + $0x1c8] sm:$0xf]
                %269 = vst [vmem:[%s153 + $0xe4] sm:$0xf] %v268
                %v270 = vld [vmem:[%s152 + $0x1d0] sm:$0xf]
                %271 = vst [vmem:[%s153 + $0xe8] sm:$0xf] %v270
                %v272 = vld [vmem:[%s152 + $0x1d8] sm:$0xf]
                %273 = vst [vmem:[%s153 + $0xec] sm:$0xf] %v272
                %v274 = vld [vmem:[%s152 + $0x1e0] sm:$0xf]
                %275 = vst [vmem:[%s153 + $0xf0] sm:$0xf] %v274
                %v276 = vld [vmem:[%s152 + $0x1e8] sm:$0xf]
                %277 = vst [vmem:[%s153 + $0xf4] sm:$0xf] %v276
                %v278 = vld [vmem:[%s152 + $0x1f0] sm:$0xf]
                %279 = vst [vmem:[%s153 + $0xf8] sm:$0xf] %v278
                %v280 = vld [vmem:[%s152 + $0x1f8] sm:$0xf]
                %281 = vst [vmem:[%s153 + $0xfc] sm:$0xf] %v280
                %v282 = vld [vmem:[%s152 + $0x200] sm:$0xf]
                %283 = vst [vmem:[%s153 + $0x100] sm:$0xf] %v282
                %v284 = vld [vmem:[%s152 + $0x208] sm:$0xf]
                %285 = vst [vmem:[%s153 + $0x104] sm:$0xf] %v284
                %v286 = vld [vmem:[%s152 + $0x210] sm:$0xf]
                %287 = vst [vmem:[%s153 + $0x108] sm:$0xf] %v286
                %v288 = vld [vmem:[%s152 + $0x218] sm:$0xf]
                %289 = vst [vmem:[%s153 + $0x10c] sm:$0xf] %v288
                %v290 = vld [vmem:[%s152 + $0x220] sm:$0xf]
                %291 = vst [vmem:[%s153 + $0x110] sm:$0xf] %v290
                %v292 = vld [vmem:[%s152 + $0x228] sm:$0xf]
                %293 = vst [vmem:[%s153 + $0x114] sm:$0xf] %v292
                %v294 = vld [vmem:[%s152 + $0x230] sm:$0xf]
                %295 = vst [vmem:[%s153 + $0x118] sm:$0xf] %v294
                %v296 = vld [vmem:[%s152 + $0x238] sm:$0xf]
                %297 = vst [vmem:[%s153 + $0x11c] sm:$0xf] %v296
                %v298 = vld [vmem:[%s152 + $0x240] sm:$0xf]
                %299 = vst [vmem:[%s153 + $0x120] sm:$0xf] %v298
                %v300 = vld [vmem:[%s152 + $0x248] sm:$0xf]
                %301 = vst [vmem:[%s153 + $0x124] sm:$0xf] %v300
                %v302 = vld [vmem:[%s152 + $0x250] sm:$0xf]
                %303 = vst [vmem:[%s153 + $0x128] sm:$0xf] %v302
                %v304 = vld [vmem:[%s152 + $0x258] sm:$0xf]
                %305 = vst [vmem:[%s153 + $0x12c] sm:$0xf] %v304
                %v306 = vld [vmem:[%s152 + $0x260] sm:$0xf]
                %307 = vst [vmem:[%s153 + $0x130] sm:$0xf] %v306
                %v308 = vld [vmem:[%s152 + $0x268] sm:$0xf]
                %309 = vst [vmem:[%s153 + $0x134] sm:$0xf] %v308
                %v310 = vld [vmem:[%s152 + $0x270] sm:$0xf]
                %311 = vst [vmem:[%s153 + $0x138] sm:$0xf] %v310
                %v312 = vld [vmem:[%s152 + $0x278] sm:$0xf]
                %313 = vst [vmem:[%s153 + $0x13c] sm:$0xf] %v312
                %v314 = vld [vmem:[%s152 + $0x280] sm:$0xf]
                %315 = vst [vmem:[%s153 + $0x140] sm:$0xf] %v314
                %v316 = vld [vmem:[%s152 + $0x288] sm:$0xf]
                %317 = vst [vmem:[%s153 + $0x144] sm:$0xf] %v316
                %v318 = vld [vmem:[%s152 + $0x290] sm:$0xf]
                %319 = vst [vmem:[%s153 + $0x148] sm:$0xf] %v318
                %v320 = vld [vmem:[%s152 + $0x298] sm:$0xf]
                %321 = vst [vmem:[%s153 + $0x14c] sm:$0xf] %v320
                %v322 = vld [vmem:[%s152 + $0x2a0] sm:$0xf]
                %323 = vst [vmem:[%s153 + $0x150] sm:$0xf] %v322
                %v324 = vld [vmem:[%s152 + $0x2a8] sm:$0xf]
                %325 = vst [vmem:[%s153 + $0x154] sm:$0xf] %v324
                %v326 = vld [vmem:[%s152 + $0x2b0] sm:$0xf]
                %327 = vst [vmem:[%s153 + $0x158] sm:$0xf] %v326
                %v328 = vld [vmem:[%s152 + $0x2b8] sm:$0xf]
                %329 = vst [vmem:[%s153 + $0x15c] sm:$0xf] %v328
                %v330 = vld [vmem:[%s152 + $0x2c0] sm:$0xf]
                %331 = vst [vmem:[%s153 + $0x160] sm:$0xf] %v330
                %v332 = vld [vmem:[%s152 + $0x2c8] sm:$0xf]
                %333 = vst [vmem:[%s153 + $0x164] sm:$0xf] %v332
                %v334 = vld [vmem:[%s152 + $0x2d0] sm:$0xf]
                %335 = vst [vmem:[%s153 + $0x168] sm:$0xf] %v334
                %v336 = vld [vmem:[%s152 + $0x2d8] sm:$0xf]
                %337 = vst [vmem:[%s153 + $0x16c] sm:$0xf] %v336
                %v338 = vld [vmem:[%s152 + $0x2e0] sm:$0xf]
                %339 = vst [vmem:[%s153 + $0x170] sm:$0xf] %v338
                %v340 = vld [vmem:[%s152 + $0x2e8] sm:$0xf]
                %341 = vst [vmem:[%s153 + $0x174] sm:$0xf] %v340
                %v342 = vld [vmem:[%s152 + $0x2f0] sm:$0xf]
                %343 = vst [vmem:[%s153 + $0x178] sm:$0xf] %v342
                %v344 = vld [vmem:[%s152 + $0x2f8] sm:$0xf]
                %345 = vst [vmem:[%s153 + $0x17c] sm:$0xf] %v344
                %v346 = vld [vmem:[%s152 + $0x300] sm:$0xf]
                %347 = vst [vmem:[%s153 + $0x180] sm:$0xf] %v346
                %v348 = vld [vmem:[%s152 + $0x308] sm:$0xf]
                %349 = vst [vmem:[%s153 + $0x184] sm:$0xf] %v348
                %v350 = vld [vmem:[%s152 + $0x310] sm:$0xf]
                %351 = vst [vmem:[%s153 + $0x188] sm:$0xf] %v350
                %v352 = vld [vmem:[%s152 + $0x318] sm:$0xf]
                %353 = vst [vmem:[%s153 + $0x18c] sm:$0xf] %v352
                %v354 = vld [vmem:[%s152 + $0x320] sm:$0xf]
                %355 = vst [vmem:[%s153 + $0x190] sm:$0xf] %v354
                %v356 = vld [vmem:[%s152 + $0x328] sm:$0xf]
                %357 = vst [vmem:[%s153 + $0x194] sm:$0xf] %v356
                %v358 = vld [vmem:[%s152 + $0x330] sm:$0xf]
                %359 = vst [vmem:[%s153 + $0x198] sm:$0xf] %v358
                %v360 = vld [vmem:[%s152 + $0x338] sm:$0xf]
                %361 = vst [vmem:[%s153 + $0x19c] sm:$0xf] %v360
                %v362 = vld [vmem:[%s152 + $0x340] sm:$0xf]
                %363 = vst [vmem:[%s153 + $0x1a0] sm:$0xf] %v362
                %v364 = vld [vmem:[%s152 + $0x348] sm:$0xf]
                %365 = vst [vmem:[%s153 + $0x1a4] sm:$0xf] %v364
                %v366 = vld [vmem:[%s152 + $0x350] sm:$0xf]
                %367 = vst [vmem:[%s153 + $0x1a8] sm:$0xf] %v366
                %v368 = vld [vmem:[%s152 + $0x358] sm:$0xf]
                %369 = vst [vmem:[%s153 + $0x1ac] sm:$0xf] %v368
                %v370 = vld [vmem:[%s152 + $0x360] sm:$0xf]
                %371 = vst [vmem:[%s153 + $0x1b0] sm:$0xf] %v370
                %v372 = vld [vmem:[%s152 + $0x368] sm:$0xf]
                %373 = vst [vmem:[%s153 + $0x1b4] sm:$0xf] %v372
                %v374 = vld [vmem:[%s152 + $0x370] sm:$0xf]
                %375 = vst [vmem:[%s153 + $0x1b8] sm:$0xf] %v374
                %v376 = vld [vmem:[%s152 + $0x378] sm:$0xf]
                %377 = vst [vmem:[%s153 + $0x1bc] sm:$0xf] %v376
                %v378 = vld [vmem:[%s152 + $0x380] sm:$0xf]
                %379 = vst [vmem:[%s153 + $0x1c0] sm:$0xf] %v378
                %v380 = vld [vmem:[%s152 + $0x388] sm:$0xf]
                %381 = vst [vmem:[%s153 + $0x1c4] sm:$0xf] %v380
                %v382 = vld [vmem:[%s152 + $0x390] sm:$0xf]
                %383 = vst [vmem:[%s153 + $0x1c8] sm:$0xf] %v382
                %v384 = vld [vmem:[%s152 + $0x398] sm:$0xf]
                %385 = vst [vmem:[%s153 + $0x1cc] sm:$0xf] %v384
                %v386 = vld [vmem:[%s152 + $0x3a0] sm:$0xf]
                %387 = vst [vmem:[%s153 + $0x1d0] sm:$0xf] %v386
                %v388 = vld [vmem:[%s152 + $0x3a8] sm:$0xf]
                %389 = vst [vmem:[%s153 + $0x1d4] sm:$0xf] %v388
                %v390 = vld [vmem:[%s152 + $0x3b0] sm:$0xf]
                %391 = vst [vmem:[%s153 + $0x1d8] sm:$0xf] %v390
                %v392 = vld [vmem:[%s152 + $0x3b8] sm:$0xf]
                %393 = vst [vmem:[%s153 + $0x1dc] sm:$0xf] %v392
                %v394 = vld [vmem:[%s152 + $0x3c0] sm:$0xf]
                %395 = vst [vmem:[%s153 + $0x1e0] sm:$0xf] %v394
                %v396 = vld [vmem:[%s152 + $0x3c8] sm:$0xf]
                %397 = vst [vmem:[%s153 + $0x1e4] sm:$0xf] %v396
                %v398 = vld [vmem:[%s152 + $0x3d0] sm:$0xf]
                %399 = vst [vmem:[%s153 + $0x1e8] sm:$0xf] %v398
                %v400 = vld [vmem:[%s152 + $0x3d8] sm:$0xf]
                %401 = vst [vmem:[%s153 + $0x1ec] sm:$0xf] %v400
                %v402 = vld [vmem:[%s152 + $0x3e0] sm:$0xf]
                %403 = vst [vmem:[%s153 + $0x1f0] sm:$0xf] %v402
                %v404 = vld [vmem:[%s152 + $0x3e8] sm:$0xf]
                %405 = vst [vmem:[%s153 + $0x1f4] sm:$0xf] %v404
                %v406 = vld [vmem:[%s152 + $0x3f0] sm:$0xf]
                %407 = vst [vmem:[%s153 + $0x1f8] sm:$0xf] %v406
                %v408 = vld [vmem:[%s152 + $0x3f8] sm:$0xf]
                %409 = vst [vmem:[%s153 + $0x1fc] sm:$0xf] %v408
                %v410 = vld [vmem:[%s152 + $0x400] sm:$0xf]
                %411 = vst [vmem:[%s153 + $0x200] sm:$0xf] %v410
                %v412 = vld [vmem:[%s152 + $0x408] sm:$0xf]
                %413 = vst [vmem:[%s153 + $0x204] sm:$0xf] %v412
                %v414 = vld [vmem:[%s152 + $0x410] sm:$0xf]
                %415 = vst [vmem:[%s153 + $0x208] sm:$0xf] %v414
                %v416 = vld [vmem:[%s152 + $0x418] sm:$0xf]
                %417 = vst [vmem:[%s153 + $0x20c] sm:$0xf] %v416
                %v418 = vld [vmem:[%s152 + $0x420] sm:$0xf]
                %419 = vst [vmem:[%s153 + $0x210] sm:$0xf] %v418
                %v420 = vld [vmem:[%s152 + $0x428] sm:$0xf]
                %421 = vst [vmem:[%s153 + $0x214] sm:$0xf] %v420
                %v422 = vld [vmem:[%s152 + $0x430] sm:$0xf]
                %423 = vst [vmem:[%s153 + $0x218] sm:$0xf] %v422
                %v424 = vld [vmem:[%s152 + $0x438] sm:$0xf]
                %425 = vst [vmem:[%s153 + $0x21c] sm:$0xf] %v424
                %v426 = vld [vmem:[%s152 + $0x440] sm:$0xf]
                %427 = vst [vmem:[%s153 + $0x220] sm:$0xf] %v426
                %v428 = vld [vmem:[%s152 + $0x448] sm:$0xf]
                %429 = vst [vmem:[%s153 + $0x224] sm:$0xf] %v428
                %v430 = vld [vmem:[%s152 + $0x450] sm:$0xf]
                %431 = vst [vmem:[%s153 + $0x228] sm:$0xf] %v430
                %v432 = vld [vmem:[%s152 + $0x458] sm:$0xf]
                %433 = vst [vmem:[%s153 + $0x22c] sm:$0xf] %v432
                %v434 = vld [vmem:[%s152 + $0x460] sm:$0xf]
                %435 = vst [vmem:[%s153 + $0x230] sm:$0xf] %v434
                %v436 = vld [vmem:[%s152 + $0x468] sm:$0xf]
                %437 = vst [vmem:[%s153 + $0x234] sm:$0xf] %v436
                %v438 = vld [vmem:[%s152 + $0x470] sm:$0xf]
                %439 = vst [vmem:[%s153 + $0x238] sm:$0xf] %v438
                %v440 = vld [vmem:[%s152 + $0x478] sm:$0xf]
                %441 = vst [vmem:[%s153 + $0x23c] sm:$0xf] %v440
              $region41: #{cnn_forward.7} parent=35 // loop_footer
                %s151 = sadd.s32 1, %s147
              $region42: #{cnn_forward.7} parent=35 // loop_footer_branch
                %146 = sbr.rel target = $region38
              $region43: #{cnn_forward.7} parent=35 // loop_exit
                _
            $region36: #{cnn_forward.7} parent=27 // pred_fallthru
              _
          $region28: #{cnn_forward.7} parent=23 // pred_fallthru
            _
          %749 = vnop
        $region24: #{cnn_forward.7} parent=19 // pred_fallthru
          _
        // Predicated region
        $region62: #{cnn_forward.7} parent=19 // pred_check
          %p750 = pneg %p76
        $region63: #{cnn_forward.7} parent=19 // pred_check_branch
          %752 = sbr.rel (%p750) target = $region65
        $region64: #{cnn_forward.7} parent=19 // pred_region
          %p753 = scmp.lt.s32.totalorder %s9, 1
          %s754 = scalar_select %p753, %s9, 1
          %s755 = scalar_lea.vmem %s2, %s754
        $region65: #{cnn_forward.7} parent=19 // pred_fallthru
          _
      $region20: #{cnn_forward.7} parent=5 // pred_fallthru
        _
      %p756 = scmp.le.s32.totalorder 1, %s9
      %p757 = scmp.lt.s32.totalorder %s9, 3
      %p758 = pnand %p756, %p757
      %p759 = pneg %p758
      // Predicated region
      $region66: #{cnn_forward.7} parent=5 // pred_check
        _
      $region67: #{cnn_forward.7} parent=5 // pred_check_branch
        %761 = sbr.rel (%p758) target = $region69
      $region68: #{cnn_forward.7} parent=5 // pred_region
        %s762 = ssub.s32 %s9, 1
        %s763 = sand.u32 %s43, 1
        %s764 = sand.u32 %s43, 1
        %s765 = smul.addr %s764, 576
        %s766 = scalar_lea.vmem [#allocation2], %s765
        // Predicated region
        $region70: #{cnn_forward.7} parent=68 // pred_check
          %p767 = pneg %p56
        $region71: #{cnn_forward.7} parent=68 // pred_check_branch
          %769 = sbr.rel (%p767) target = $region73
        $region72: #{cnn_forward.7} parent=68 // pred_region
          _
        $region73: #{cnn_forward.7} parent=68 // pred_fallthru
          _
        %p770 = pneg %p30
        %p771 = pneg %p27
        %s772 = sand.u32 %s43, 1
        %s773 = sand.u32 %s43, 1
        %s774 = smul.addr %s773, 576
        %s775 = scalar_lea.vmem [#allocation2], %s774
        %p776 = pneg %p56
        %p777 = pneg %p53
        %p778 = scmp.lt.s32.totalorder %s14, 1
        %s779 = scalar_select %p778, %s14, 1
        %s780 = scalar_lea.vmem %s2, %s779
        %p781 = pneg %p82
        %p782 = pneg %p79
        %p783 = pneg %p108
        %p784 = pneg %p105
        %p785 = scmp.lt.s32.totalorder %s14, 1
        %s786 = scalar_select %p785, %s14, 1
        %s787 = smul.addr %s786, 8
        %s788 = scalar_lea.vmem %s3, %s787
        %p789 = scmp.lt.s32.totalorder %s14, 1
        %s790 = scalar_select %p789, %s14, 1
        %s791 = scalar_lea.vmem %s2, %s790
        %p792 = scmp.lt.s32.totalorder %s14, 1
        %s793 = scalar_select %p792, %s14, 1
        %s794 = smul.addr %s793, 8
        %s795 = scalar_lea.vmem %s3, %s794
        %v797 = vld [vmem:[%s0] sm:$0xff]
        %v798 = vld [vmem:[%s0 + $0x8] sm:$0xff]
        %v799 = vld [vmem:[%s0 + $0x10] sm:$0xff]
        %v800 = vld [vmem:[%s0 + $0x18] sm:$0xff]
        %v801 = vld [vmem:[%s0 + $0x20] sm:$0xf]
        %v802 = vld [vmem:[%s0 + $0x24] sm:$0xff]
        %v803 = vld [vmem:[%s0 + $0x2c] sm:$0xff]
        %v804 = vld [vmem:[%s0 + $0x34] sm:$0xff]
        %v805 = vld [vmem:[%s0 + $0x3c] sm:$0xff]
        %v806 = vld [vmem:[%s0 + $0x44] sm:$0xf]
        %v807 = vld [vmem:[%s0 + $0x48] sm:$0xff]
        %v808 = vld [vmem:[%s0 + $0x50] sm:$0xff]
        %v809 = vld [vmem:[%s0 + $0x58] sm:$0xff]
        %v810 = vld [vmem:[%s0 + $0x60] sm:$0xff]
        %v811 = vld [vmem:[%s0 + $0x68] sm:$0xf]
        %v812 = vld [vmem:[%s0 + $0x6c] sm:$0xff]
        %v813 = vld [vmem:[%s0 + $0x74] sm:$0xff]
        %v814 = vld [vmem:[%s0 + $0x7c] sm:$0xff]
        %v815 = vld [vmem:[%s0 + $0x84] sm:$0xff]
        %v816 = vld [vmem:[%s0 + $0x8c] sm:$0xf]
        %v817 = vld [vmem:[%s766] sm:$0xf]
        %v818 = vld [vmem:[%s766 + $0x4] sm:$0xf]
        %v819 = vld [vmem:[%s766 + $0x8] sm:$0xf]
        %v820 = vld [vmem:[%s766 + $0xc] sm:$0xf]
        %v821 = vld [vmem:[%s766 + $0x10] sm:$0xf]
        %v822 = vld [vmem:[%s766 + $0x14] sm:$0xf]
        %v823 = vld [vmem:[%s766 + $0x18] sm:$0xf]
        %v824 = vld [vmem:[%s766 + $0x1c] sm:$0xf]
        %v825 = vld [vmem:[%s766 + $0x20] sm:$0xf]
        %v826 = vld [vmem:[%s766 + $0x24] sm:$0xf]
        %v827 = vld [vmem:[%s766 + $0x28] sm:$0xf]
        %v828 = vld [vmem:[%s766 + $0x2c] sm:$0xf]
        %v829 = vld [vmem:[%s766 + $0x30] sm:$0xf]
        %v830 = vld [vmem:[%s766 + $0x34] sm:$0xf]
        %v831 = vld [vmem:[%s766 + $0x38] sm:$0xf]
        %v832 = vld [vmem:[%s766 + $0x3c] sm:$0xf]
        %v833 = vld [vmem:[%s766 + $0x40] sm:$0xf]
        %v834 = vld [vmem:[%s766 + $0x44] sm:$0xf]
        %v835 = vld [vmem:[%s766 + $0x48] sm:$0xf]
        %v836 = vld [vmem:[%s766 + $0x4c] sm:$0xf]
        %v837 = vld [vmem:[%s766 + $0x50] sm:$0xf]
        %v838 = vld [vmem:[%s766 + $0x54] sm:$0xf]
        %v839 = vld [vmem:[%s766 + $0x58] sm:$0xf]
        %v840 = vld [vmem:[%s766 + $0x5c] sm:$0xf]
        %v841 = vld [vmem:[%s766 + $0x60] sm:$0xf]
        %v842 = vld [vmem:[%s766 + $0x64] sm:$0xf]
        %v843 = vld [vmem:[%s766 + $0x68] sm:$0xf]
        %v844 = vld [vmem:[%s766 + $0x6c] sm:$0xf]
        %v845 = vld [vmem:[%s766 + $0x70] sm:$0xf]
        %v846 = vld [vmem:[%s766 + $0x74] sm:$0xf]
        %v847 = vld [vmem:[%s766 + $0x78] sm:$0xf]
        %v848 = vld [vmem:[%s766 + $0x7c] sm:$0xf]
        %v849 = vld [vmem:[%s766 + $0x80] sm:$0xf]
        %v850 = vld [vmem:[%s766 + $0x84] sm:$0xf]
        %v851 = vld [vmem:[%s766 + $0x88] sm:$0xf]
        %v852 = vld [vmem:[%s766 + $0x8c] sm:$0xf]
        %v853 = vld [vmem:[%s766 + $0x90] sm:$0xf]
        %v854 = vld [vmem:[%s766 + $0x94] sm:$0xf]
        %v855 = vld [vmem:[%s766 + $0x98] sm:$0xf]
        %v856 = vld [vmem:[%s766 + $0x9c] sm:$0xf]
        %v857 = vld [vmem:[%s766 + $0xa0] sm:$0xf]
        %v858 = vld [vmem:[%s766 + $0xa4] sm:$0xf]
        %v859 = vld [vmem:[%s766 + $0xa8] sm:$0xf]
        %v860 = vld [vmem:[%s766 + $0xac] sm:$0xf]
        %v861 = vld [vmem:[%s766 + $0xb0] sm:$0xf]
        %v862 = vld [vmem:[%s766 + $0xb4] sm:$0xf]
        %v863 = vld [vmem:[%s766 + $0xb8] sm:$0xf]
        %v864 = vld [vmem:[%s766 + $0xbc] sm:$0xf]
        %v865 = vld [vmem:[%s766 + $0xc0] sm:$0xf]
        %v866 = vld [vmem:[%s766 + $0xc4] sm:$0xf]
        %v867 = vld [vmem:[%s766 + $0xc8] sm:$0xf]
        %v868 = vld [vmem:[%s766 + $0xcc] sm:$0xf]
        %v869 = vld [vmem:[%s766 + $0xd0] sm:$0xf]
        %v870 = vld [vmem:[%s766 + $0xd4] sm:$0xf]
        %v871 = vld [vmem:[%s766 + $0xd8] sm:$0xf]
        %v872 = vld [vmem:[%s766 + $0xdc] sm:$0xf]
        %v873 = vld [vmem:[%s766 + $0xe0] sm:$0xf]
        %v874 = vld [vmem:[%s766 + $0xe4] sm:$0xf]
        %v875 = vld [vmem:[%s766 + $0xe8] sm:$0xf]
        %v876 = vld [vmem:[%s766 + $0xec] sm:$0xf]
        %v877 = vld [vmem:[%s766 + $0xf0] sm:$0xf]
        %v878 = vld [vmem:[%s766 + $0xf4] sm:$0xf]
        %v879 = vld [vmem:[%s766 + $0xf8] sm:$0xf]
        %v880 = vld [vmem:[%s766 + $0xfc] sm:$0xf]
        %v881 = vld [vmem:[%s766 + $0x100] sm:$0xf]
        %v882 = vld [vmem:[%s766 + $0x104] sm:$0xf]
        %v883 = vld [vmem:[%s766 + $0x108] sm:$0xf]
        %v884 = vld [vmem:[%s766 + $0x10c] sm:$0xf]
        %v885 = vld [vmem:[%s766 + $0x110] sm:$0xf]
        %v886 = vld [vmem:[%s766 + $0x114] sm:$0xf]
        %v887 = vld [vmem:[%s766 + $0x118] sm:$0xf]
        %v888 = vld [vmem:[%s766 + $0x11c] sm:$0xf]
        %v889 = vld [vmem:[%s766 + $0x120] sm:$0xf]
        %v890 = vld [vmem:[%s766 + $0x124] sm:$0xf]
        %v891 = vld [vmem:[%s766 + $0x128] sm:$0xf]
        %v892 = vld [vmem:[%s766 + $0x12c] sm:$0xf]
        %v893 = vld [vmem:[%s766 + $0x130] sm:$0xf]
        %v894 = vld [vmem:[%s766 + $0x134] sm:$0xf]
        %v895 = vld [vmem:[%s766 + $0x138] sm:$0xf]
        %v896 = vld [vmem:[%s766 + $0x13c] sm:$0xf]
        %v897 = vld [vmem:[%s766 + $0x140] sm:$0xf]
        %v898 = vld [vmem:[%s766 + $0x144] sm:$0xf]
        %v899 = vld [vmem:[%s766 + $0x148] sm:$0xf]
        %v900 = vld [vmem:[%s766 + $0x14c] sm:$0xf]
        %v901 = vld [vmem:[%s766 + $0x150] sm:$0xf]
        %v902 = vld [vmem:[%s766 + $0x154] sm:$0xf]
        %v903 = vld [vmem:[%s766 + $0x158] sm:$0xf]
        %v904 = vld [vmem:[%s766 + $0x15c] sm:$0xf]
        %v905 = vld [vmem:[%s766 + $0x160] sm:$0xf]
        %v906 = vld [vmem:[%s766 + $0x164] sm:$0xf]
        %v907 = vld [vmem:[%s766 + $0x168] sm:$0xf]
        %v908 = vld [vmem:[%s766 + $0x16c] sm:$0xf]
        %v909 = vld [vmem:[%s766 + $0x170] sm:$0xf]
        %v910 = vld [vmem:[%s766 + $0x174] sm:$0xf]
        %v911 = vld [vmem:[%s766 + $0x178] sm:$0xf]
        %v912 = vld [vmem:[%s766 + $0x17c] sm:$0xf]
        %v913 = vld [vmem:[%s766 + $0x180] sm:$0xf]
        %v914 = vld [vmem:[%s766 + $0x184] sm:$0xf]
        %v915 = vld [vmem:[%s766 + $0x188] sm:$0xf]
        %v916 = vld [vmem:[%s766 + $0x18c] sm:$0xf]
        %v917 = vld [vmem:[%s766 + $0x190] sm:$0xf]
        %v918 = vld [vmem:[%s766 + $0x194] sm:$0xf]
        %v919 = vld [vmem:[%s766 + $0x198] sm:$0xf]
        %v920 = vld [vmem:[%s766 + $0x19c] sm:$0xf]
        %v921 = vld [vmem:[%s766 + $0x1a0] sm:$0xf]
        %v922 = vld [vmem:[%s766 + $0x1a4] sm:$0xf]
        %v923 = vld [vmem:[%s766 + $0x1a8] sm:$0xf]
        %v924 = vld [vmem:[%s766 + $0x1ac] sm:$0xf]
        %v925 = vld [vmem:[%s766 + $0x1b0] sm:$0xf]
        %v926 = vld [vmem:[%s766 + $0x1b4] sm:$0xf]
        %v927 = vld [vmem:[%s766 + $0x1b8] sm:$0xf]
        %v928 = vld [vmem:[%s766 + $0x1bc] sm:$0xf]
        %v929 = vld [vmem:[%s766 + $0x1c0] sm:$0xf]
        %v930 = vld [vmem:[%s766 + $0x1c4] sm:$0xf]
        %v931 = vld [vmem:[%s766 + $0x1c8] sm:$0xf]
        %v932 = vld [vmem:[%s766 + $0x1cc] sm:$0xf]
        %v933 = vld [vmem:[%s766 + $0x1d0] sm:$0xf]
        %v934 = vld [vmem:[%s766 + $0x1d4] sm:$0xf]
        %v935 = vld [vmem:[%s766 + $0x1d8] sm:$0xf]
        %v936 = vld [vmem:[%s766 + $0x1dc] sm:$0xf]
        %v937 = vld [vmem:[%s766 + $0x1e0] sm:$0xf]
        %v938 = vld [vmem:[%s766 + $0x1e4] sm:$0xf]
        %v939 = vld [vmem:[%s766 + $0x1e8] sm:$0xf]
        %v940 = vld [vmem:[%s766 + $0x1ec] sm:$0xf]
        %v941 = vld [vmem:[%s766 + $0x1f0] sm:$0xf]
        %v942 = vld [vmem:[%s766 + $0x1f4] sm:$0xf]
        %v943 = vld [vmem:[%s766 + $0x1f8] sm:$0xf]
        %v944 = vld [vmem:[%s766 + $0x1fc] sm:$0xf]
        %v945 = vld [vmem:[%s766 + $0x200] sm:$0xf]
        %v946 = vld [vmem:[%s766 + $0x204] sm:$0xf]
        %v947 = vld [vmem:[%s766 + $0x208] sm:$0xf]
        %v948 = vld [vmem:[%s766 + $0x20c] sm:$0xf]
        %v949 = vld [vmem:[%s766 + $0x210] sm:$0xf]
        %v950 = vld [vmem:[%s766 + $0x214] sm:$0xf]
        %v951 = vld [vmem:[%s766 + $0x218] sm:$0xf]
        %v952 = vld [vmem:[%s766 + $0x21c] sm:$0xf]
        %v953 = vld [vmem:[%s766 + $0x220] sm:$0xf]
        %v954 = vld [vmem:[%s766 + $0x224] sm:$0xf]
        %v955 = vld [vmem:[%s766 + $0x228] sm:$0xf]
        %v956 = vld [vmem:[%s766 + $0x22c] sm:$0xf]
        %v957 = vld [vmem:[%s766 + $0x230] sm:$0xf]
        %v958 = vld [vmem:[%s766 + $0x234] sm:$0xf]
        %v959 = vld [vmem:[%s766 + $0x238] sm:$0xf]
        %v960 = vld [vmem:[%s766 + $0x23c] sm:$0xf]
        %v961 = vld [vmem:[%s791] sm:$0x1]
        %v963 = vlaneseq
        %v964 = vshrl.u32 %v963, 7
        %v965 = vsub.s32 0, %v964
        %v966 = vrot.slane %v961, %v965
        %v988 = vunpack.c.l.b16 %v797
        %v989 = vunpack.c.h.b16 %v797
        %v990 = vunpack.c.l.b16 %v798
        %v991 = vunpack.c.h.b16 %v798
        %v992 = vunpack.c.l.b16 %v799
        %v993 = vunpack.c.h.b16 %v799
        %v994 = vunpack.c.l.b16 %v800
        %v995 = vunpack.c.h.b16 %v800
        %v996 = vunpack.c.l.b16 %v801
        %v997 = vunpack.c.l.b16 %v802
        %v998 = vunpack.c.h.b16 %v802
        %v999 = vunpack.c.l.b16 %v803
        %v1000 = vunpack.c.h.b16 %v803
        %v1001 = vunpack.c.l.b16 %v804
        %v1002 = vunpack.c.h.b16 %v804
        %v1003 = vunpack.c.l.b16 %v805
        %v1004 = vunpack.c.h.b16 %v805
        %v1005 = vunpack.c.l.b16 %v806
        %v1006 = vunpack.c.l.b16 %v807
        %v1007 = vunpack.c.h.b16 %v807
        %v1008 = vunpack.c.l.b16 %v808
        %v1009 = vunpack.c.h.b16 %v808
        %v1010 = vunpack.c.l.b16 %v809
        %v1011 = vunpack.c.h.b16 %v809
        %v1012 = vunpack.c.l.b16 %v810
        %v1013 = vunpack.c.h.b16 %v810
        %v1014 = vunpack.c.l.b16 %v811
        %v1015 = vunpack.c.l.b16 %v812
        %v1016 = vunpack.c.h.b16 %v812
        %v1017 = vunpack.c.l.b16 %v813
        %v1018 = vunpack.c.h.b16 %v813
        %v1019 = vunpack.c.l.b16 %v814
        %v1020 = vunpack.c.h.b16 %v814
        %v1021 = vunpack.c.l.b16 %v815
        %v1022 = vunpack.c.h.b16 %v815
        %v1023 = vunpack.c.l.b16 %v816
        %v1024 = vpack.c.b16 %v997, %v988
        %v1025 = vpack.c.b16 %v998, %v989
        %v1026 = vpack.c.b16 %v999, %v990
        %v1027 = vpack.c.b16 %v1000, %v991
        %v1028 = vpack.c.b16 %v1001, %v992
        %v1029 = vpack.c.b16 %v1002, %v993
        %v1030 = vpack.c.b16 %v1003, %v994
        %v1031 = vpack.c.b16 %v1004, %v995
        %v1032 = vpack.c.b16 %v1005, %v996
        %v1033 = vpack.c.b16 %v1015, %v1006
        %v1034 = vpack.c.b16 %v1016, %v1007
        %v1035 = vpack.c.b16 %v1017, %v1008
        %v1036 = vpack.c.b16 %v1018, %v1009
        %v1037 = vpack.c.b16 %v1019, %v1010
        %v1038 = vpack.c.b16 %v1020, %v1011
        %v1039 = vpack.c.b16 %v1021, %v1012
        %v1040 = vpack.c.b16 %v1022, %v1013
        %v1041 = vpack.c.b16 %v1023, %v1014
        %v1204 = vunpack.c.l.b16 %v817
        %v1205 = vunpack.c.l.b16 %v818
        %v1206 = vunpack.c.l.b16 %v819
        %v1207 = vunpack.c.l.b16 %v820
        %v1208 = vunpack.c.l.b16 %v821
        %v1209 = vunpack.c.l.b16 %v822
        %v1210 = vunpack.c.l.b16 %v823
        %v1211 = vunpack.c.l.b16 %v824
        %v1212 = vunpack.c.l.b16 %v825
        %v1213 = vunpack.c.l.b16 %v826
        %v1214 = vunpack.c.l.b16 %v827
        %v1215 = vunpack.c.l.b16 %v828
        %v1216 = vunpack.c.l.b16 %v829
        %v1217 = vunpack.c.l.b16 %v830
        %v1218 = vunpack.c.l.b16 %v831
        %v1219 = vunpack.c.l.b16 %v832
        %v1220 = vunpack.c.l.b16 %v833
        %v1221 = vunpack.c.l.b16 %v834
        %v1222 = vunpack.c.l.b16 %v835
        %v1223 = vunpack.c.l.b16 %v836
        %v1224 = vunpack.c.l.b16 %v837
        %v1225 = vunpack.c.l.b16 %v838
        %v1226 = vunpack.c.l.b16 %v839
        %v1227 = vunpack.c.l.b16 %v840
        %v1228 = vunpack.c.l.b16 %v841
        %v1229 = vunpack.c.l.b16 %v842
        %v1230 = vunpack.c.l.b16 %v843
        %v1231 = vunpack.c.l.b16 %v844
        %v1232 = vunpack.c.l.b16 %v845
        %v1233 = vunpack.c.l.b16 %v846
        %v1234 = vunpack.c.l.b16 %v847
        %v1235 = vunpack.c.l.b16 %v848
        %v1236 = vunpack.c.l.b16 %v849
        %v1237 = vunpack.c.l.b16 %v850
        %v1238 = vunpack.c.l.b16 %v851
        %v1239 = vunpack.c.l.b16 %v852
        %v1240 = vunpack.c.l.b16 %v853
        %v1241 = vunpack.c.l.b16 %v854
        %v1242 = vunpack.c.l.b16 %v855
        %v1243 = vunpack.c.l.b16 %v856
        %v1244 = vunpack.c.l.b16 %v857
        %v1245 = vunpack.c.l.b16 %v858
        %v1246 = vunpack.c.l.b16 %v859
        %v1247 = vunpack.c.l.b16 %v860
        %v1248 = vunpack.c.l.b16 %v861
        %v1249 = vunpack.c.l.b16 %v862
        %v1250 = vunpack.c.l.b16 %v863
        %v1251 = vunpack.c.l.b16 %v864
        %v1252 = vunpack.c.l.b16 %v865
        %v1253 = vunpack.c.l.b16 %v866
        %v1254 = vunpack.c.l.b16 %v867
        %v1255 = vunpack.c.l.b16 %v868
        %v1256 = vunpack.c.l.b16 %v869
        %v1257 = vunpack.c.l.b16 %v870
        %v1258 = vunpack.c.l.b16 %v871
        %v1259 = vunpack.c.l.b16 %v872
        %v1260 = vunpack.c.l.b16 %v873
        %v1261 = vunpack.c.l.b16 %v874
        %v1262 = vunpack.c.l.b16 %v875
        %v1263 = vunpack.c.l.b16 %v876
        %v1264 = vunpack.c.l.b16 %v877
        %v1265 = vunpack.c.l.b16 %v878
        %v1266 = vunpack.c.l.b16 %v879
        %v1267 = vunpack.c.l.b16 %v880
        %v1268 = vunpack.c.l.b16 %v881
        %v1269 = vunpack.c.l.b16 %v882
        %v1270 = vunpack.c.l.b16 %v883
        %v1271 = vunpack.c.l.b16 %v884
        %v1272 = vunpack.c.l.b16 %v885
        %v1273 = vunpack.c.l.b16 %v886
        %v1274 = vunpack.c.l.b16 %v887
        %v1275 = vunpack.c.l.b16 %v888
        %v1276 = vunpack.c.l.b16 %v889
        %v1277 = vunpack.c.l.b16 %v890
        %v1278 = vunpack.c.l.b16 %v891
        %v1279 = vunpack.c.l.b16 %v892
        %v1280 = vunpack.c.l.b16 %v893
        %v1281 = vunpack.c.l.b16 %v894
        %v1282 = vunpack.c.l.b16 %v895
        %v1283 = vunpack.c.l.b16 %v896
        %v1284 = vunpack.c.l.b16 %v897
        %v1285 = vunpack.c.l.b16 %v898
        %v1286 = vunpack.c.l.b16 %v899
        %v1287 = vunpack.c.l.b16 %v900
        %v1288 = vunpack.c.l.b16 %v901
        %v1289 = vunpack.c.l.b16 %v902
        %v1290 = vunpack.c.l.b16 %v903
        %v1291 = vunpack.c.l.b16 %v904
        %v1292 = vunpack.c.l.b16 %v905
        %v1293 = vunpack.c.l.b16 %v906
        %v1294 = vunpack.c.l.b16 %v907
        %v1295 = vunpack.c.l.b16 %v908
        %v1296 = vunpack.c.l.b16 %v909
        %v1297 = vunpack.c.l.b16 %v910
        %v1298 = vunpack.c.l.b16 %v911
        %v1299 = vunpack.c.l.b16 %v912
        %v1300 = vunpack.c.l.b16 %v913
        %v1301 = vunpack.c.l.b16 %v914
        %v1302 = vunpack.c.l.b16 %v915
        %v1303 = vunpack.c.l.b16 %v916
        %v1304 = vunpack.c.l.b16 %v917
        %v1305 = vunpack.c.l.b16 %v918
        %v1306 = vunpack.c.l.b16 %v919
        %v1307 = vunpack.c.l.b16 %v920
        %v1308 = vunpack.c.l.b16 %v921
        %v1309 = vunpack.c.l.b16 %v922
        %v1310 = vunpack.c.l.b16 %v923
        %v1311 = vunpack.c.l.b16 %v924
        %v1312 = vunpack.c.l.b16 %v925
        %v1313 = vunpack.c.l.b16 %v926
        %v1314 = vunpack.c.l.b16 %v927
        %v1315 = vunpack.c.l.b16 %v928
        %v1316 = vunpack.c.l.b16 %v929
        %v1317 = vunpack.c.l.b16 %v930
        %v1318 = vunpack.c.l.b16 %v931
        %v1319 = vunpack.c.l.b16 %v932
        %v1320 = vunpack.c.l.b16 %v933
        %v1321 = vunpack.c.l.b16 %v934
        %v1322 = vunpack.c.l.b16 %v935
        %v1323 = vunpack.c.l.b16 %v936
        %v1324 = vunpack.c.l.b16 %v937
        %v1325 = vunpack.c.l.b16 %v938
        %v1326 = vunpack.c.l.b16 %v939
        %v1327 = vunpack.c.l.b16 %v940
        %v1328 = vunpack.c.l.b16 %v941
        %v1329 = vunpack.c.l.b16 %v942
        %v1330 = vunpack.c.l.b16 %v943
        %v1331 = vunpack.c.l.b16 %v944
        %v1332 = vunpack.c.l.b16 %v945
        %v1333 = vunpack.c.l.b16 %v946
        %v1334 = vunpack.c.l.b16 %v947
        %v1335 = vunpack.c.l.b16 %v948
        %v1336 = vunpack.c.l.b16 %v949
        %v1337 = vunpack.c.l.b16 %v950
        %v1338 = vunpack.c.l.b16 %v951
        %v1339 = vunpack.c.l.b16 %v952
        %v1340 = vunpack.c.l.b16 %v953
        %v1341 = vunpack.c.l.b16 %v954
        %v1342 = vunpack.c.l.b16 %v955
        %v1343 = vunpack.c.l.b16 %v956
        %v1344 = vunpack.c.l.b16 %v957
        %v1345 = vunpack.c.l.b16 %v958
        %v1346 = vunpack.c.l.b16 %v959
        %v1347 = vunpack.c.l.b16 %v960
        %v1348 = vpack.c.b16 %v1205, %v1204
        %v1349 = vpack.c.b16 %v1207, %v1206
        %v1350 = vpack.c.b16 %v1209, %v1208
        %v1351 = vpack.c.b16 %v1211, %v1210
        %v1352 = vpack.c.b16 %v1213, %v1212
        %v1353 = vpack.c.b16 %v1215, %v1214
        %v1354 = vpack.c.b16 %v1217, %v1216
        %v1355 = vpack.c.b16 %v1219, %v1218
        %v1356 = vpack.c.b16 %v1221, %v1220
        %v1357 = vpack.c.b16 %v1223, %v1222
        %v1358 = vpack.c.b16 %v1225, %v1224
        %v1359 = vpack.c.b16 %v1227, %v1226
        %v1360 = vpack.c.b16 %v1229, %v1228
        %v1361 = vpack.c.b16 %v1231, %v1230
        %v1362 = vpack.c.b16 %v1233, %v1232
        %v1363 = vpack.c.b16 %v1235, %v1234
        %v1364 = vpack.c.b16 %v1237, %v1236
        %v1365 = vpack.c.b16 %v1239, %v1238
        %v1366 = vpack.c.b16 %v1241, %v1240
        %v1367 = vpack.c.b16 %v1243, %v1242
        %v1368 = vpack.c.b16 %v1245, %v1244
        %v1369 = vpack.c.b16 %v1247, %v1246
        %v1370 = vpack.c.b16 %v1249, %v1248
        %v1371 = vpack.c.b16 %v1251, %v1250
        %v1372 = vpack.c.b16 %v1253, %v1252
        %v1373 = vpack.c.b16 %v1255, %v1254
        %v1374 = vpack.c.b16 %v1257, %v1256
        %v1375 = vpack.c.b16 %v1259, %v1258
        %v1376 = vpack.c.b16 %v1261, %v1260
        %v1377 = vpack.c.b16 %v1263, %v1262
        %v1378 = vpack.c.b16 %v1265, %v1264
        %v1379 = vpack.c.b16 %v1267, %v1266
        %v1380 = vpack.c.b16 %v1269, %v1268
        %v1381 = vpack.c.b16 %v1271, %v1270
        %v1382 = vpack.c.b16 %v1273, %v1272
        %v1383 = vpack.c.b16 %v1275, %v1274
        %v1384 = vpack.c.b16 %v1277, %v1276
        %v1385 = vpack.c.b16 %v1279, %v1278
        %v1386 = vpack.c.b16 %v1281, %v1280
        %v1387 = vpack.c.b16 %v1283, %v1282
        %v1388 = vpack.c.b16 %v1285, %v1284
        %v1389 = vpack.c.b16 %v1287, %v1286
        %v1390 = vpack.c.b16 %v1289, %v1288
        %v1391 = vpack.c.b16 %v1291, %v1290
        %v1392 = vpack.c.b16 %v1293, %v1292
        %v1393 = vpack.c.b16 %v1295, %v1294
        %v1394 = vpack.c.b16 %v1297, %v1296
        %v1395 = vpack.c.b16 %v1299, %v1298
        %v1396 = vpack.c.b16 %v1301, %v1300
        %v1397 = vpack.c.b16 %v1303, %v1302
        %v1398 = vpack.c.b16 %v1305, %v1304
        %v1399 = vpack.c.b16 %v1307, %v1306
        %v1400 = vpack.c.b16 %v1309, %v1308
        %v1401 = vpack.c.b16 %v1311, %v1310
        %v1402 = vpack.c.b16 %v1313, %v1312
        %v1403 = vpack.c.b16 %v1315, %v1314
        %v1404 = vpack.c.b16 %v1317, %v1316
        %v1405 = vpack.c.b16 %v1319, %v1318
        %v1406 = vpack.c.b16 %v1321, %v1320
        %v1407 = vpack.c.b16 %v1323, %v1322
        %v1408 = vpack.c.b16 %v1325, %v1324
        %v1409 = vpack.c.b16 %v1327, %v1326
        %v1410 = vpack.c.b16 %v1329, %v1328
        %v1411 = vpack.c.b16 %v1331, %v1330
        %v1412 = vpack.c.b16 %v1333, %v1332
        %v1413 = vpack.c.b16 %v1335, %v1334
        %v1414 = vpack.c.b16 %v1337, %v1336
        %v1415 = vpack.c.b16 %v1339, %v1338
        %v1416 = vpack.c.b16 %v1341, %v1340
        %v1417 = vpack.c.b16 %v1343, %v1342
        %v1418 = vpack.c.b16 %v1345, %v1344
        %v1419 = vpack.c.b16 %v1347, %v1346
        %1492 = vmatprep.subr.bf16.mxu0 0
        %1493 = vmatpush1.bf16.msra.mxu0 %v1348
        %1494 = vmatprep.subr.bf16.mxu0 0
        %1495 = vmatpush1.bf16.msra.mxu0 %v1349
        %1496 = vmatprep.subr.bf16.mxu0 0
        %1497 = vmatpush1.bf16.msra.mxu0 %v1350
        %1498 = vmatprep.subr.bf16.mxu0 0
        %1499 = vmatpush1.bf16.msra.mxu0 %v1351
        %1500 = vmatprep.subr.bf16.mxu0 0
        %1501 = vmatpush1.bf16.msra.mxu0 %v1352
        %1502 = vmatprep.subr.bf16.mxu0 0
        %1503 = vmatpush1.bf16.msra.mxu0 %v1353
        %1504 = vmatprep.subr.bf16.mxu0 0
        %1505 = vmatpush1.bf16.msra.mxu0 %v1354
        %1506 = vmatprep.subr.bf16.mxu0 0
        %1507 = vmatpush1.bf16.msra.mxu0 %v1355
        %1508 = vmatprep.subr.bf16.mxu0 0
        %1509 = vmatpush1.bf16.msra.mxu0 %v1356
        %1510 = vmatprep.subr.bf16.mxu0 0
        %1511 = vmatpush1.bf16.msra.mxu0 %v1357
        %1512 = vmatprep.subr.bf16.mxu0 0
        %1513 = vmatpush1.bf16.msra.mxu0 %v1358
        %1514 = vmatprep.subr.bf16.mxu0 0
        %1515 = vmatpush1.bf16.msra.mxu0 %v1359
        %1516 = vmatprep.subr.bf16.mxu0 0
        %1517 = vmatpush1.bf16.msra.mxu0 %v1360
        %1518 = vmatprep.subr.bf16.mxu0 0
        %1519 = vmatpush1.bf16.msra.mxu0 %v1361
        %1520 = vmatprep.subr.bf16.mxu0 0
        %1521 = vmatpush1.bf16.msra.mxu0 %v1362
        %1522 = vmatprep.subr.bf16.mxu0 0
        %1523 = vmatpush1.bf16.msra.mxu0 %v1363
        %1524 = vmatprep.mubr.bf16.mxu0 %v1025
        %1525 = vmatmul.mubr.bf16.gmra.mrb[0].mxu0 %v1024
        %v1526 = vpop.f32.mrb[0].mxu0
        %v1527 = vadd.f32 %v966, %v1526
        %v1528 = vpop.f32.mrb[0].mxu0
        %v1529 = vpop.f32.mrb[0].mxu0
        %v1530 = vadd.f32 %v966, %v1529
        %v1531 = vpop.f32.mrb[0].mxu0
        %1532 = vmatprep.mubr.bf16.mxu0 %v1034
        %1533 = vmatmul.mubr.bf16.gmra.mrb[0].mxu0 %v1033
        %v1534 = vpop.f32.mrb[0].mxu0
        %v1535 = vadd.f32 %v966, %v1534
        %v1536 = vpop.f32.mrb[0].mxu0
        %v1537 = vpop.f32.mrb[0].mxu0
        %v1538 = vadd.f32 %v966, %v1537
        %v1539 = vpop.f32.mrb[0].mxu0
        %1540 = vdwg.mxu0
        %1541 = vmatprep.subr.bf16.mxu0 0
        %1542 = vmatpush1.bf16.msra.mxu0 %v1364
        %1543 = vmatprep.subr.bf16.mxu0 0
        %1544 = vmatpush1.bf16.msra.mxu0 %v1365
        %1545 = vmatprep.subr.bf16.mxu0 0
        %1546 = vmatpush1.bf16.msra.mxu0 %v1366
        %1547 = vmatprep.subr.bf16.mxu0 0
        %1548 = vmatpush1.bf16.msra.mxu0 %v1367
        %1549 = vmatprep.subr.bf16.mxu0 0
        %1550 = vmatpush1.bf16.msra.mxu0 %v1368
        %1551 = vmatprep.subr.bf16.mxu0 0
        %1552 = vmatpush1.bf16.msra.mxu0 %v1369
        %1553 = vmatprep.subr.bf16.mxu0 0
        %1554 = vmatpush1.bf16.msra.mxu0 %v1370
        %1555 = vmatprep.subr.bf16.mxu0 0
        %1556 = vmatpush1.bf16.msra.mxu0 %v1371
        %1557 = vmatprep.subr.bf16.mxu0 0
        %1558 = vmatpush1.bf16.msra.mxu0 %v1372
        %1559 = vmatprep.subr.bf16.mxu0 0
        %1560 = vmatpush1.bf16.msra.mxu0 %v1373
        %1561 = vmatprep.subr.bf16.mxu0 0
        %1562 = vmatpush1.bf16.msra.mxu0 %v1374
        %1563 = vmatprep.subr.bf16.mxu0 0
        %1564 = vmatpush1.bf16.msra.mxu0 %v1375
        %1565 = vmatprep.subr.bf16.mxu0 0
        %1566 = vmatpush1.bf16.msra.mxu0 %v1376
        %1567 = vmatprep.subr.bf16.mxu0 0
        %1568 = vmatpush1.bf16.msra.mxu0 %v1377
        %1569 = vmatprep.subr.bf16.mxu0 0
        %1570 = vmatpush1.bf16.msra.mxu0 %v1378
        %1571 = vmatprep.subr.bf16.mxu0 0
        %1572 = vmatpush1.bf16.msra.mxu0 %v1379
        %1573 = vmatprep.mubr.bf16.mxu0 %v1027
        %1574 = vmatmul.mubr.bf16.gmra.mrb[0].mxu0 %v1026
        %v1575 = vpop.f32.mrb[0].mxu0
        %v1576 = vadd.f32 %v1527, %v1575
        %v1577 = vpop.f32.mrb[0].mxu0
        %v1578 = vpop.f32.mrb[0].mxu0
        %v1579 = vadd.f32 %v1530, %v1578
        %v1580 = vpop.f32.mrb[0].mxu0
        %1581 = vmatprep.mubr.bf16.mxu0 %v1036
        %1582 = vmatmul.mubr.bf16.gmra.mrb[0].mxu0 %v1035
        %v1583 = vpop.f32.mrb[0].mxu0
        %v1584 = vadd.f32 %v1535, %v1583
        %v1585 = vpop.f32.mrb[0].mxu0
        %v1586 = vpop.f32.mrb[0].mxu0
        %v1587 = vadd.f32 %v1538, %v1586
        %v1588 = vpop.f32.mrb[0].mxu0
        %1589 = vdwg.mxu0
        %1590 = vmatprep.subr.bf16.mxu0 0
        %1591 = vmatpush1.bf16.msra.mxu0 %v1380
        %1592 = vmatprep.subr.bf16.mxu0 0
        %1593 = vmatpush1.bf16.msra.mxu0 %v1381
        %1594 = vmatprep.subr.bf16.mxu0 0
        %1595 = vmatpush1.bf16.msra.mxu0 %v1382
        %1596 = vmatprep.subr.bf16.mxu0 0
        %1597 = vmatpush1.bf16.msra.mxu0 %v1383
        %1598 = vmatprep.subr.bf16.mxu0 0
        %1599 = vmatpush1.bf16.msra.mxu0 %v1384
        %1600 = vmatprep.subr.bf16.mxu0 0
        %1601 = vmatpush1.bf16.msra.mxu0 %v1385
        %1602 = vmatprep.subr.bf16.mxu0 0
        %1603 = vmatpush1.bf16.msra.mxu0 %v1386
        %1604 = vmatprep.subr.bf16.mxu0 0
        %1605 = vmatpush1.bf16.msra.mxu0 %v1387
        %1606 = vmatprep.subr.bf16.mxu0 0
        %1607 = vmatpush1.bf16.msra.mxu0 %v1388
        %1608 = vmatprep.subr.bf16.mxu0 0
        %1609 = vmatpush1.bf16.msra.mxu0 %v1389
        %1610 = vmatprep.subr.bf16.mxu0 0
        %1611 = vmatpush1.bf16.msra.mxu0 %v1390
        %1612 = vmatprep.subr.bf16.mxu0 0
        %1613 = vmatpush1.bf16.msra.mxu0 %v1391
        %1614 = vmatprep.subr.bf16.mxu0 0
        %1615 = vmatpush1.bf16.msra.mxu0 %v1392
        %1616 = vmatprep.subr.bf16.mxu0 0
        %1617 = vmatpush1.bf16.msra.mxu0 %v1393
        %1618 = vmatprep.subr.bf16.mxu0 0
        %1619 = vmatpush1.bf16.msra.mxu0 %v1394
        %1620 = vmatprep.subr.bf16.mxu0 0
        %1621 = vmatpush1.bf16.msra.mxu0 %v1395
        %1622 = vmatprep.mubr.bf16.mxu0 %v1029
        %1623 = vmatmul.mubr.bf16.gmra.mrb[0].mxu0 %v1028
        %v1624 = vpop.f32.mrb[0].mxu0
        %v1625 = vadd.f32 %v1576, %v1624
        %v1626 = vpop.f32.mrb[0].mxu0
        %v1627 = vpop.f32.mrb[0].mxu0
        %v1628 = vadd.f32 %v1579, %v1627
        %v1629 = vpop.f32.mrb[0].mxu0
        %1630 = vmatprep.mubr.bf16.mxu0 %v1038
        %1631 = vmatmul.mubr.bf16.gmra.mrb[0].mxu0 %v1037
        %v1632 = vpop.f32.mrb[0].mxu0
        %v1633 = vadd.f32 %v1584, %v1632
        %v1634 = vpop.f32.mrb[0].mxu0
        %v1635 = vpop.f32.mrb[0].mxu0
        %v1636 = vadd.f32 %v1587, %v1635
        %v1637 = vpop.f32.mrb[0].mxu0
        %1638 = vdwg.mxu0
        %1639 = vmatprep.subr.bf16.mxu0 0
        %1640 = vmatpush1.bf16.msra.mxu0 %v1396
        %1641 = vmatprep.subr.bf16.mxu0 0
        %1642 = vmatpush1.bf16.msra.mxu0 %v1397
        %1643 = vmatprep.subr.bf16.mxu0 0
        %1644 = vmatpush1.bf16.msra.mxu0 %v1398
        %1645 = vmatprep.subr.bf16.mxu0 0
        %1646 = vmatpush1.bf16.msra.mxu0 %v1399
        %1647 = vmatprep.subr.bf16.mxu0 0
        %1648 = vmatpush1.bf16.msra.mxu0 %v1400
        %1649 = vmatprep.subr.bf16.mxu0 0
        %1650 = vmatpush1.bf16.msra.mxu0 %v1401
        %1651 = vmatprep.subr.bf16.mxu0 0
        %1652 = vmatpush1.bf16.msra.mxu0 %v1402
        %1653 = vmatprep.subr.bf16.mxu0 0
        %1654 = vmatpush1.bf16.msra.mxu0 %v1403
        %1655 = vmatprep.subr.bf16.mxu0 0
        %1656 = vmatpush1.bf16.msra.mxu0 %v1404
        %1657 = vmatprep.subr.bf16.mxu0 0
        %1658 = vmatpush1.bf16.msra.mxu0 %v1405
        %1659 = vmatprep.subr.bf16.mxu0 0
        %1660 = vmatpush1.bf16.msra.mxu0 %v1406
        %1661 = vmatprep.subr.bf16.mxu0 0
        %1662 = vmatpush1.bf16.msra.mxu0 %v1407
        %1663 = vmatprep.subr.bf16.mxu0 0
        %1664 = vmatpush1.bf16.msra.mxu0 %v1408
        %1665 = vmatprep.subr.bf16.mxu0 0
        %1666 = vmatpush1.bf16.msra.mxu0 %v1409
        %1667 = vmatprep.subr.bf16.mxu0 0
        %1668 = vmatpush1.bf16.msra.mxu0 %v1410
        %1669 = vmatprep.subr.bf16.mxu0 0
        %1670 = vmatpush1.bf16.msra.mxu0 %v1411
        %1671 = vmatprep.mubr.bf16.mxu0 %v1031
        %1672 = vmatmul.mubr.bf16.gmra.mrb[0].mxu0 %v1030
        %v1673 = vpop.f32.mrb[0].mxu0
        %v1674 = vadd.f32 %v1625, %v1673
        %v1675 = vpop.f32.mrb[0].mxu0
        %v1676 = vpop.f32.mrb[0].mxu0
        %v1677 = vadd.f32 %v1628, %v1676
        %v1678 = vpop.f32.mrb[0].mxu0
        %1679 = vmatprep.mubr.bf16.mxu0 %v1040
        %1680 = vmatmul.mubr.bf16.gmra.mrb[0].mxu0 %v1039
        %v1681 = vpop.f32.mrb[0].mxu0
        %v1682 = vadd.f32 %v1633, %v1681
        %v1683 = vpop.f32.mrb[0].mxu0
        %v1684 = vpop.f32.mrb[0].mxu0
        %v1685 = vadd.f32 %v1636, %v1684
        %v1686 = vpop.f32.mrb[0].mxu0
        %1687 = vdwg.mxu0
        %1688 = vmatprep.subr.bf16.mxu0 0
        %1689 = vmatpush1.bf16.msra.mxu0 %v1412
        %1690 = vmatprep.subr.bf16.mxu0 0
        %1691 = vmatpush1.bf16.msra.mxu0 %v1413
        %1692 = vmatprep.subr.bf16.mxu0 0
        %1693 = vmatpush1.bf16.msra.mxu0 %v1414
        %1694 = vmatprep.subr.bf16.mxu0 0
        %1695 = vmatpush1.bf16.msra.mxu0 %v1415
        %1696 = vmatprep.subr.bf16.mxu0 0
        %1697 = vmatpush1.bf16.msra.mxu0 %v1416
        %1698 = vmatprep.subr.bf16.mxu0 0
        %1699 = vmatpush1.bf16.msra.mxu0 %v1417
        %1700 = vmatprep.subr.bf16.mxu0 0
        %1701 = vmatpush1.bf16.msra.mxu0 %v1418
        %1702 = vmatprep.subr.bf16.mxu0 0
        %1703 = vmatpush1.bf16.msra.mxu0 %v1419
        %1704 = vmatprep.subr.bf16.mxu0 0
        %1705 = vmatpush1.bf16.msra.mxu0 0
        %1706 = vmatprep.subr.bf16.mxu0 0
        %1707 = vmatpush1.bf16.msra.mxu0 0
        %1708 = vmatprep.subr.bf16.mxu0 0
        %1709 = vmatpush1.bf16.msra.mxu0 0
        %1710 = vmatprep.subr.bf16.mxu0 0
        %1711 = vmatpush1.bf16.msra.mxu0 0
        %1712 = vmatprep.subr.bf16.mxu0 0
        %1713 = vmatpush1.bf16.msra.mxu0 0
        %1714 = vmatprep.subr.bf16.mxu0 0
        %1715 = vmatpush1.bf16.msra.mxu0 0
        %1716 = vmatprep.subr.bf16.mxu0 0
        %1717 = vmatpush1.bf16.msra.mxu0 0
        %1718 = vmatprep.subr.bf16.mxu0 0
        %1719 = vmatpush1.bf16.msra.mxu0 0
        %1720 = vmatprep.mubr.bf16.mxu0 0
        %1721 = vmatmul.mubr.bf16.gmra.mrb[0].mxu0 %v1032
        %v1722 = vpop.f32.mrb[0].mxu0
        %v1723 = vadd.f32 %v1674, %v1722
        %v1724 = vpop.f32.mrb[0].mxu0
        %v1725 = vpop.f32.mrb[0].mxu0
        %v1726 = vadd.f32 %v1677, %v1725
        %v1727 = vpop.f32.mrb[0].mxu0
        %1728 = vmatprep.mubr.bf16.mxu0 0
        %1729 = vmatmul.mubr.bf16.gmra.mrb[0].mxu0 %v1041
        %v1730 = vpop.f32.mrb[0].mxu0
        %v1731 = vadd.f32 %v1682, %v1730
        %v1732 = vpop.f32.mrb[0].mxu0
        %v1733 = vpop.f32.mrb[0].mxu0
        %v1734 = vadd.f32 %v1685, %v1733
        %v1735 = vpop.f32.mrb[0].mxu0
        %1736 = vdwg.mxu0
        %vm1737 = vcmp.ge.f32.partialorder %v1723, 0.0
        %vm1738 = vcmp.ge.f32.partialorder %v1726, 0.0
        %vm1739 = vcmp.ge.f32.partialorder %v1731, 0.0
        %vm1740 = vcmp.ge.f32.partialorder %v1734, 0.0
        %v1741 = vmul.f32 %v1723, 0.1
        %v1742 = vmul.f32 %v1726, 0.1
        %v1743 = vmul.f32 %v1731, 0.1
        %v1744 = vmul.f32 %v1734, 0.1
        %v1745 = vsel %vm1737, %v1723, %v1741
        %v1746 = vsel %vm1738, %v1726, %v1742
        %v1747 = vsel %vm1739, %v1731, %v1743
        %v1748 = vsel %vm1740, %v1734, %v1744
        %v1749 = vmax.f32 %v1745, %v1746
        %v1750 = vmax.f32 %v1747, %v1748
        %v1751 = vmax.f32 %v1749, %v1750
        %1752 = vst [vmem:[%s795] sm:$0xff] %v1751
        %p1753 = scmp.lt.s32.totalorder %s14, 1
        %s1754 = scalar_select %p1753, %s14, 1
        %s1755 = smul.addr %s1754, 8
        %s1756 = scalar_lea.vmem %s3, %s1755
        // Predicated region
        $region74: #{cnn_forward.7} parent=68 // pred_check
          %p1757 = pneg %p105
        $region75: #{cnn_forward.7} parent=68 // pred_check_branch
          %1759 = sbr.rel (%p1757) target = $region77
        $region76: #{cnn_forward.7} parent=68 // pred_region
          _
        $region77: #{cnn_forward.7} parent=68 // pred_fallthru
          _
      $region69: #{cnn_forward.7} parent=5 // pred_fallthru
        _
      %p1760 = scmp.le.s32.totalorder 2, %s9
      // Predicated region
      $region78: #{cnn_forward.7} parent=5 // pred_check
        %p1761 = pneg %p1760
      $region79: #{cnn_forward.7} parent=5 // pred_check_branch
        %1763 = sbr.rel (%p1761) target = $region81
      $region80: #{cnn_forward.7} parent=5 // pred_region
        %s1764 = ssub.s32 %s9, 2
        // Predicated region
        $region82: #{cnn_forward.7} parent=80 // pred_check
          %p1765 = pneg %p111
        $region83: #{cnn_forward.7} parent=80 // pred_check_branch
          %1767 = sbr.rel (%p1765) target = $region85
        $region84: #{cnn_forward.7} parent=80 // pred_region
          %p1768 = scmp.lt.s32.totalorder %s15, 1
          %s1769 = scalar_select %p1768, %s15, 1
          %s1770 = smul.addr %s1769, 8
          %s1771 = scalar_lea.vmem %s3, %s1770
        $region85: #{cnn_forward.7} parent=80 // pred_fallthru
          _
      $region81: #{cnn_forward.7} parent=5 // pred_fallthru
        _
    $region6: #{cnn_forward.7} parent=1 // loop_footer
      %s13 = sadd.s32 1, %s9
    $region7: #{cnn_forward.7} parent=1 // loop_footer_branch
      %8 = sbr.rel target = $region3
    $region8: #{cnn_forward.7} parent=1 // loop_exit
      _

// kernel: cnn_forward.9
$region0: #{cnn_forward.9}
  #allocation0 [shape = 'u32[]', space=smem, size = 0x4, offset = 0x4, fixed_abs, tag = 'smem constant byte address 0x4 - core index']
  #allocation1 [shape = 'u32[144,128]{1,0:T(1,128)}', space=vmem, size = 0x12000, scoped, tag = 'internal scratch']
  %s0 = inlined_call_operand.vmem [shape: bf16[2,512], index: 0, kind: input, shape index: {}]
  %s1 = inlined_call_operand.vmem [shape: bf16[512,256], index: 1, kind: input, shape index: {}]
  %s2 = inlined_call_operand.vmem [shape: f32[1,256], index: 2, kind: input, shape index: {}]
  %s3 = inlined_call_operand.vmem [shape: bf16[256,10], index: 3, kind: input, shape index: {}]
  %s4 = inlined_call_operand.vmem [shape: f32[1,10], index: 4, kind: input, shape index: {}]
  %s5 = inlined_call_operand.hbm [shape: f32[2,10], index: 5, kind: output, shape index: {}]
  %s6 = sld [smem:[#allocation0]]
  $region30: #{cnn_forward.9} parent=0
    _
  %s8 = ssub.s32 1, %s6
  %s9 = scalar_select 0, %s8, %s6
  $region1: #{cnn_forward.9} parent=0
    #allocation2 [shape = 'u8[1024]{0}', space=vmem, size = 0x400, scoped, tag = 'output window, operand 0, single buffered']
    #allocation3 [shape = 's32[1]{0}', space=sflag, size = 0x4, scoped, tag = 'scoped memory for cnn_forward.9']
    %10 = vsyncpa [#allocation3], 0
    // Predicated region
    $region2: #{cnn_forward.9} parent=1 // pred_check
      _
    $region3: #{cnn_forward.9} parent=1 // pred_check_branch
      %12 = sbr.rel (0) target = $region5
    $region4: #{cnn_forward.9} parent=1 // pred_region
      _
    $region5: #{cnn_forward.9} parent=1 // pred_fallthru
      _
    // Predicated region
    $region6: #{cnn_forward.9} parent=1 // pred_check
      _
    $region7: #{cnn_forward.9} parent=1 // pred_check_branch
      %14 = sbr.rel (0) target = $region9
    $region8: #{cnn_forward.9} parent=1 // pred_region
      _
    $region9: #{cnn_forward.9} parent=1 // pred_fallthru
      _
    // Predicated region
    $region10: #{cnn_forward.9} parent=1 // pred_check
      _
    $region11: #{cnn_forward.9} parent=1 // pred_check_branch
      %16 = sbr.rel (0) target = $region13
    $region12: #{cnn_forward.9} parent=1 // pred_region
      _
    $region13: #{cnn_forward.9} parent=1 // pred_fallthru
      _
    // Predicated region
    $region14: #{cnn_forward.9} parent=1 // pred_check
      _
    $region15: #{cnn_forward.9} parent=1 // pred_check_branch
      %18 = sbr.rel (0) target = $region17
    $region16: #{cnn_forward.9} parent=1 // pred_region
      _
    $region17: #{cnn_forward.9} parent=1 // pred_fallthru
      _
    // Predicated region
    $region18: #{cnn_forward.9} parent=1 // pred_check
      _
    $region19: #{cnn_forward.9} parent=1 // pred_check_branch
      %20 = sbr.rel (0) target = $region21
    $region20: #{cnn_forward.9} parent=1 // pred_region
      _
    $region21: #{cnn_forward.9} parent=1 // pred_fallthru
      _
    %v22 = vld [vmem:[%s0] sm:$0xf]
    %v23 = vld [vmem:[%s1] sm:$0xff]
    %v24 = vld [vmem:[%s1 + $0x8] sm:$0xff]
    %v25 = vld [vmem:[%s1 + $0x10] sm:$0xff]
    %v26 = vld [vmem:[%s1 + $0x18] sm:$0xff]
    %v27 = vld [vmem:[%s1 + $0x20] sm:$0xff]
    %v28 = vld [vmem:[%s1 + $0x28] sm:$0xff]
    %v29 = vld [vmem:[%s1 + $0x30] sm:$0xff]
    %v30 = vld [vmem:[%s1 + $0x38] sm:$0xff]
    %v31 = vld [vmem:[%s1 + $0x40] sm:$0xff]
    %v32 = vld [vmem:[%s1 + $0x48] sm:$0xff]
    %v33 = vld [vmem:[%s1 + $0x50] sm:$0xff]
    %v34 = vld [vmem:[%s1 + $0x58] sm:$0xff]
    %v35 = vld [vmem:[%s1 + $0x60] sm:$0xff]
    %v36 = vld [vmem:[%s1 + $0x68] sm:$0xff]
    %v37 = vld [vmem:[%s1 + $0x70] sm:$0xff]
    %v38 = vld [vmem:[%s1 + $0x78] sm:$0xff]
    %v39 = vld [vmem:[%s1 + $0x80] sm:$0xff]
    %v40 = vld [vmem:[%s1 + $0x88] sm:$0xff]
    %v41 = vld [vmem:[%s1 + $0x90] sm:$0xff]
    %v42 = vld [vmem:[%s1 + $0x98] sm:$0xff]
    %v43 = vld [vmem:[%s1 + $0xa0] sm:$0xff]
    %v44 = vld [vmem:[%s1 + $0xa8] sm:$0xff]
    %v45 = vld [vmem:[%s1 + $0xb0] sm:$0xff]
    %v46 = vld [vmem:[%s1 + $0xb8] sm:$0xff]
    %v47 = vld [vmem:[%s1 + $0xc0] sm:$0xff]
    %v48 = vld [vmem:[%s1 + $0xc8] sm:$0xff]
    %v49 = vld [vmem:[%s1 + $0xd0] sm:$0xff]
    %v50 = vld [vmem:[%s1 + $0xd8] sm:$0xff]
    %v51 = vld [vmem:[%s1 + $0xe0] sm:$0xff]
    %v52 = vld [vmem:[%s1 + $0xe8] sm:$0xff]
    %v53 = vld [vmem:[%s1 + $0xf0] sm:$0xff]
    %v54 = vld [vmem:[%s1 + $0xf8] sm:$0xff]
    %v55 = vld [vmem:[%s1 + $0x100] sm:$0xff]
    %v56 = vld [vmem:[%s1 + $0x108] sm:$0xff]
    %v57 = vld [vmem:[%s1 + $0x110] sm:$0xff]
    %v58 = vld [vmem:[%s1 + $0x118] sm:$0xff]
    %v59 = vld [vmem:[%s1 + $0x120] sm:$0xff]
    %v60 = vld [vmem:[%s1 + $0x128] sm:$0xff]
    %v61 = vld [vmem:[%s1 + $0x130] sm:$0xff]
    %v62 = vld [vmem:[%s1 + $0x138] sm:$0xff]
    %v63 = vld [vmem:[%s1 + $0x140] sm:$0xff]
    %v64 = vld [vmem:[%s1 + $0x148] sm:$0xff]
    %v65 = vld [vmem:[%s1 + $0x150] sm:$0xff]
    %v66 = vld [vmem:[%s1 + $0x158] sm:$0xff]
    %v67 = vld [vmem:[%s1 + $0x160] sm:$0xff]
    %v68 = vld [vmem:[%s1 + $0x168] sm:$0xff]
    %v69 = vld [vmem:[%s1 + $0x170] sm:$0xff]
    %v70 = vld [vmem:[%s1 + $0x178] sm:$0xff]
    %v71 = vld [vmem:[%s1 + $0x180] sm:$0xff]
    %v72 = vld [vmem:[%s1 + $0x188] sm:$0xff]
    %v73 = vld [vmem:[%s1 + $0x190] sm:$0xff]
    %v74 = vld [vmem:[%s1 + $0x198] sm:$0xff]
    %v75 = vld [vmem:[%s1 + $0x1a0] sm:$0xff]
    %v76 = vld [vmem:[%s1 + $0x1a8] sm:$0xff]
    %v77 = vld [vmem:[%s1 + $0x1b0] sm:$0xff]
    %v78 = vld [vmem:[%s1 + $0x1b8] sm:$0xff]
    %v79 = vld [vmem:[%s1 + $0x1c0] sm:$0xff]
    %v80 = vld [vmem:[%s1 + $0x1c8] sm:$0xff]
    %v81 = vld [vmem:[%s1 + $0x1d0] sm:$0xff]
    %v82 = vld [vmem:[%s1 + $0x1d8] sm:$0xff]
    %v83 = vld [vmem:[%s1 + $0x1e0] sm:$0xff]
    %v84 = vld [vmem:[%s1 + $0x1e8] sm:$0xff]
    %v85 = vld [vmem:[%s1 + $0x1f0] sm:$0xff]
    %v86 = vld [vmem:[%s1 + $0x1f8] sm:$0xff]
    %v87 = vld [vmem:[%s2] sm:$0x3]
    %v89 = vlaneseq
    %v90 = vshrl.u32 %v89, 7
    %v91 = vsub.s32 0, %v90
    %v92 = vrot.slane %v87, %v91
    %v93 = vlaneseq
    %v94 = vshrl.u32 %v93, 7
    %v95 = vsub.s32 1, %v94
    %v96 = vrot.slane %v87, %v95
    %v101 = vunpack.c.l.s4 1966171168
    %v102 = vunpack.c.0.s8 %v101
    %v103 = vlaneseq
    %v104 = vshrl.u32 %v103, 7
    %v105 = vsub.s32 %v102, %v104
    %v106 = vrot.slane %v22, %v105
    %v107 = vcombine.high %v106, %v106
    %v109 = vunpack.c.l.s4 1966171168
    %v110 = vunpack.c.0.s8 %v109
    %v111 = vlaneseq
    %v112 = vshrl.u32 %v111, 7
    %v113 = vsub.s32 %v110, %v112
    %v114 = vrot.slane %v106, %v113
    %v116 = vunpack.c.l.s4 1966171168
    %v117 = vunpack.c.0.s8 %v116
    %v118 = vlaneseq
    %v119 = vshrl.u32 %v118, 7
    %v120 = vsub.s32 %v117, %v119
    %v121 = vrot.slane %v107, %v120
    %v122 = vcombine.high %v114, %v114
    %v123 = vcombine.high %v121, %v121
    %v192 = vunpack.c.l.b16 %v23
    %v193 = vunpack.c.h.b16 %v23
    %v194 = vunpack.c.l.b16 %v24
    %v195 = vunpack.c.h.b16 %v24
    %v196 = vunpack.c.l.b16 %v25
    %v197 = vunpack.c.h.b16 %v25
    %v198 = vunpack.c.l.b16 %v26
    %v199 = vunpack.c.h.b16 %v26
    %v200 = vunpack.c.l.b16 %v27
    %v201 = vunpack.c.h.b16 %v27
    %v202 = vunpack.c.l.b16 %v28
    %v203 = vunpack.c.h.b16 %v28
    %v204 = vunpack.c.l.b16 %v29
    %v205 = vunpack.c.h.b16 %v29
    %v206 = vunpack.c.l.b16 %v30
    %v207 = vunpack.c.h.b16 %v30
    %v208 = vunpack.c.l.b16 %v31
    %v209 = vunpack.c.h.b16 %v31
    %v210 = vunpack.c.l.b16 %v32
    %v211 = vunpack.c.h.b16 %v32
    %v212 = vunpack.c.l.b16 %v33
    %v213 = vunpack.c.h.b16 %v33
    %v214 = vunpack.c.l.b16 %v34
    %v215 = vunpack.c.h.b16 %v34
    %v216 = vunpack.c.l.b16 %v35
    %v217 = vunpack.c.h.b16 %v35
    %v218 = vunpack.c.l.b16 %v36
    %v219 = vunpack.c.h.b16 %v36
    %v220 = vunpack.c.l.b16 %v37
    %v221 = vunpack.c.h.b16 %v37
    %v222 = vunpack.c.l.b16 %v38
    %v223 = vunpack.c.h.b16 %v38
    %v224 = vunpack.c.l.b16 %v39
    %v225 = vunpack.c.h.b16 %v39
    %v226 = vunpack.c.l.b16 %v40
    %v227 = vunpack.c.h.b16 %v40
    %v228 = vunpack.c.l.b16 %v41
    %v229 = vunpack.c.h.b16 %v41
    %v230 = vunpack.c.l.b16 %v42
    %v231 = vunpack.c.h.b16 %v42
    %v232 = vunpack.c.l.b16 %v43
    %v233 = vunpack.c.h.b16 %v43
    %v234 = vunpack.c.l.b16 %v44
    %v235 = vunpack.c.h.b16 %v44
    %v236 = vunpack.c.l.b16 %v45
    %v237 = vunpack.c.h.b16 %v45
    %v238 = vunpack.c.l.b16 %v46
    %v239 = vunpack.c.h.b16 %v46
    %v240 = vunpack.c.l.b16 %v47
    %v241 = vunpack.c.h.b16 %v47
    %v242 = vunpack.c.l.b16 %v48
    %v243 = vunpack.c.h.b16 %v48
    %v244 = vunpack.c.l.b16 %v49
    %v245 = vunpack.c.h.b16 %v49
    %v246 = vunpack.c.l.b16 %v50
    %v247 = vunpack.c.h.b16 %v50
    %v248 = vunpack.c.l.b16 %v51
    %v249 = vunpack.c.h.b16 %v51
    %v250 = vunpack.c.l.b16 %v52
    %v251 = vunpack.c.h.b16 %v52
    %v252 = vunpack.c.l.b16 %v53
    %v253 = vunpack.c.h.b16 %v53
    %v254 = vunpack.c.l.b16 %v54
    %v255 = vunpack.c.h.b16 %v54
    %v256 = vunpack.c.l.b16 %v55
    %v257 = vunpack.c.h.b16 %v55
    %v258 = vunpack.c.l.b16 %v56
    %v259 = vunpack.c.h.b16 %v56
    %v260 = vunpack.c.l.b16 %v57
    %v261 = vunpack.c.h.b16 %v57
    %v262 = vunpack.c.l.b16 %v58
    %v263 = vunpack.c.h.b16 %v58
    %v264 = vunpack.c.l.b16 %v59
    %v265 = vunpack.c.h.b16 %v59
    %v266 = vunpack.c.l.b16 %v60
    %v267 = vunpack.c.h.b16 %v60
    %v268 = vunpack.c.l.b16 %v61
    %v269 = vunpack.c.h.b16 %v61
    %v270 = vunpack.c.l.b16 %v62
    %v271 = vunpack.c.h.b16 %v62
    %v272 = vunpack.c.l.b16 %v63
    %v273 = vunpack.c.h.b16 %v63
    %v274 = vunpack.c.l.b16 %v64
    %v275 = vunpack.c.h.b16 %v64
    %v276 = vunpack.c.l.b16 %v65
    %v277 = vunpack.c.h.b16 %v65
    %v278 = vunpack.c.l.b16 %v66
    %v279 = vunpack.c.h.b16 %v66
    %v280 = vunpack.c.l.b16 %v67
    %v281 = vunpack.c.h.b16 %v67
    %v282 = vunpack.c.l.b16 %v68
    %v283 = vunpack.c.h.b16 %v68
    %v284 = vunpack.c.l.b16 %v69
    %v285 = vunpack.c.h.b16 %v69
    %v286 = vunpack.c.l.b16 %v70
    %v287 = vunpack.c.h.b16 %v70
    %v288 = vunpack.c.l.b16 %v71
    %v289 = vunpack.c.h.b16 %v71
    %v290 = vunpack.c.l.b16 %v72
    %v291 = vunpack.c.h.b16 %v72
    %v292 = vunpack.c.l.b16 %v73
    %v293 = vunpack.c.h.b16 %v73
    %v294 = vunpack.c.l.b16 %v74
    %v295 = vunpack.c.h.b16 %v74
    %v296 = vunpack.c.l.b16 %v75
    %v297 = vunpack.c.h.b16 %v75
    %v298 = vunpack.c.l.b16 %v76
    %v299 = vunpack.c.h.b16 %v76
    %v300 = vunpack.c.l.b16 %v77
    %v301 = vunpack.c.h.b16 %v77
    %v302 = vunpack.c.l.b16 %v78
    %v303 = vunpack.c.h.b16 %v78
    %v304 = vunpack.c.l.b16 %v79
    %v305 = vunpack.c.h.b16 %v79
    %v306 = vunpack.c.l.b16 %v80
    %v307 = vunpack.c.h.b16 %v80
    %v308 = vunpack.c.l.b16 %v81
    %v309 = vunpack.c.h.b16 %v81
    %v310 = vunpack.c.l.b16 %v82
    %v311 = vunpack.c.h.b16 %v82
    %v312 = vunpack.c.l.b16 %v83
    %v313 = vunpack.c.h.b16 %v83
    %v314 = vunpack.c.l.b16 %v84
    %v315 = vunpack.c.h.b16 %v84
    %v316 = vunpack.c.l.b16 %v85
    %v317 = vunpack.c.h.b16 %v85
    %v318 = vunpack.c.l.b16 %v86
    %v319 = vunpack.c.h.b16 %v86
    %v320 = vpack.c.b16 %v194, %v192
    %v321 = vpack.c.b16 %v195, %v193
    %v322 = vpack.c.b16 %v198, %v196
    %v323 = vpack.c.b16 %v199, %v197
    %v324 = vpack.c.b16 %v202, %v200
    %v325 = vpack.c.b16 %v203, %v201
    %v326 = vpack.c.b16 %v206, %v204
    %v327 = vpack.c.b16 %v207, %v205
    %v328 = vpack.c.b16 %v210, %v208
    %v329 = vpack.c.b16 %v211, %v209
    %v330 = vpack.c.b16 %v214, %v212
    %v331 = vpack.c.b16 %v215, %v213
    %v332 = vpack.c.b16 %v218, %v216
    %v333 = vpack.c.b16 %v219, %v217
    %v334 = vpack.c.b16 %v222, %v220
    %v335 = vpack.c.b16 %v223, %v221
    %v336 = vpack.c.b16 %v226, %v224
    %v337 = vpack.c.b16 %v227, %v225
    %v338 = vpack.c.b16 %v230, %v228
    %v339 = vpack.c.b16 %v231, %v229
    %v340 = vpack.c.b16 %v234, %v232
    %v341 = vpack.c.b16 %v235, %v233
    %v342 = vpack.c.b16 %v238, %v236
    %v343 = vpack.c.b16 %v239, %v237
    %v344 = vpack.c.b16 %v242, %v240
    %v345 = vpack.c.b16 %v243, %v241
    %v346 = vpack.c.b16 %v246, %v244
    %v347 = vpack.c.b16 %v247, %v245
    %v348 = vpack.c.b16 %v250, %v248
    %v349 = vpack.c.b16 %v251, %v249
    %v350 = vpack.c.b16 %v254, %v252
    %v351 = vpack.c.b16 %v255, %v253
    %v352 = vpack.c.b16 %v258, %v256
    %v353 = vpack.c.b16 %v259, %v257
    %v354 = vpack.c.b16 %v262, %v260
    %v355 = vpack.c.b16 %v263, %v261
    %v356 = vpack.c.b16 %v266, %v264
    %v357 = vpack.c.b16 %v267, %v265
    %v358 = vpack.c.b16 %v270, %v268
    %v359 = vpack.c.b16 %v271, %v269
    %v360 = vpack.c.b16 %v274, %v272
    %v361 = vpack.c.b16 %v275, %v273
    %v362 = vpack.c.b16 %v278, %v276
    %v363 = vpack.c.b16 %v279, %v277
    %v364 = vpack.c.b16 %v282, %v280
    %v365 = vpack.c.b16 %v283, %v281
    %v366 = vpack.c.b16 %v286, %v284
    %v367 = vpack.c.b16 %v287, %v285
    %v368 = vpack.c.b16 %v290, %v288
    %v369 = vpack.c.b16 %v291, %v289
    %v370 = vpack.c.b16 %v294, %v292
    %v371 = vpack.c.b16 %v295, %v293
    %v372 = vpack.c.b16 %v298, %v296
    %v373 = vpack.c.b16 %v299, %v297
    %v374 = vpack.c.b16 %v302, %v300
    %v375 = vpack.c.b16 %v303, %v301
    %v376 = vpack.c.b16 %v306, %v304
    %v377 = vpack.c.b16 %v307, %v305
    %v378 = vpack.c.b16 %v310, %v308
    %v379 = vpack.c.b16 %v311, %v309
    %v380 = vpack.c.b16 %v314, %v312
    %v381 = vpack.c.b16 %v315, %v313
    %v382 = vpack.c.b16 %v318, %v316
    %v383 = vpack.c.b16 %v319, %v317
    %448 = vmatprep.subr.bf16.mxu0 %v321
    %449 = vmatpush1.bf16.msra.mxu0 %v320
    %450 = vmatprep.subr.bf16.mxu0 %v323
    %451 = vmatpush1.bf16.msra.mxu0 %v322
    %452 = vmatprep.subr.bf16.mxu0 %v325
    %453 = vmatpush1.bf16.msra.mxu0 %v324
    %454 = vmatprep.subr.bf16.mxu0 %v327
    %455 = vmatpush1.bf16.msra.mxu0 %v326
    %456 = vmatprep.subr.bf16.mxu0 %v329
    %457 = vmatpush1.bf16.msra.mxu0 %v328
    %458 = vmatprep.subr.bf16.mxu0 %v331
    %459 = vmatpush1.bf16.msra.mxu0 %v330
    %460 = vmatprep.subr.bf16.mxu0 %v333
    %461 = vmatpush1.bf16.msra.mxu0 %v332
    %462 = vmatprep.subr.bf16.mxu0 %v335
    %463 = vmatpush1.bf16.msra.mxu0 %v334
    %464 = vmatprep.subr.bf16.mxu0 %v337
    %465 = vmatpush1.bf16.msra.mxu0 %v336
    %466 = vmatprep.subr.bf16.mxu0 %v339
    %467 = vmatpush1.bf16.msra.mxu0 %v338
    %468 = vmatprep.subr.bf16.mxu0 %v341
    %469 = vmatpush1.bf16.msra.mxu0 %v340
    %470 = vmatprep.subr.bf16.mxu0 %v343
    %471 = vmatpush1.bf16.msra.mxu0 %v342
    %472 = vmatprep.subr.bf16.mxu0 %v345
    %473 = vmatpush1.bf16.msra.mxu0 %v344
    %474 = vmatprep.subr.bf16.mxu0 %v347
    %475 = vmatpush1.bf16.msra.mxu0 %v346
    %476 = vmatprep.subr.bf16.mxu0 %v349
    %477 = vmatpush1.bf16.msra.mxu0 %v348
    %478 = vmatprep.subr.bf16.mxu0 %v351
    %479 = vmatpush1.bf16.msra.mxu0 %v350
    %480 = vmatprep.mubr.bf16.mxu0 %v121
    %481 = vmatmul.mubr.bf16.gmra.mrb[0].mxu0 %v114
    %v482 = vpop.f32.mrb[0].mxu0
    %v483 = vadd.f32 %v92, %v482
    %v484 = vpop.f32.mrb[0].mxu0
    %v485 = vadd.f32 %v96, %v484
    %v486 = vpop.f32.mrb[0].mxu0
    %v487 = vpop.f32.mrb[0].mxu0
    %488 = vdwg.mxu0
    %489 = vmatprep.subr.bf16.mxu0 %v353
    %490 = vmatpush1.bf16.msra.mxu0 %v352
    %491 = vmatprep.subr.bf16.mxu0 %v355
    %492 = vmatpush1.bf16.msra.mxu0 %v354
    %493 = vmatprep.subr.bf16.mxu0 %v357
    %494 = vmatpush1.bf16.msra.mxu0 %v356
    %495 = vmatprep.subr.bf16.mxu0 %v359
    %496 = vmatpush1.bf16.msra.mxu0 %v358
    %497 = vmatprep.subr.bf16.mxu0 %v361
    %498 = vmatpush1.bf16.msra.mxu0 %v360
    %499 = vmatprep.subr.bf16.mxu0 %v363
    %500 = vmatpush1.bf16.msra.mxu0 %v362
    %501 = vmatprep.subr.bf16.mxu0 %v365
    %502 = vmatpush1.bf16.msra.mxu0 %v364
    %503 = vmatprep.subr.bf16.mxu0 %v367
    %504 = vmatpush1.bf16.msra.mxu0 %v366
    %505 = vmatprep.subr.bf16.mxu0 %v369
    %506 = vmatpush1.bf16.msra.mxu0 %v368
    %507 = vmatprep.subr.bf16.mxu0 %v371
    %508 = vmatpush1.bf16.msra.mxu0 %v370
    %509 = vmatprep.subr.bf16.mxu0 %v373
    %510 = vmatpush1.bf16.msra.mxu0 %v372
    %511 = vmatprep.subr.bf16.mxu0 %v375
    %512 = vmatpush1.bf16.msra.mxu0 %v374
    %513 = vmatprep.subr.bf16.mxu0 %v377
    %514 = vmatpush1.bf16.msra.mxu0 %v376
    %515 = vmatprep.subr.bf16.mxu0 %v379
    %516 = vmatpush1.bf16.msra.mxu0 %v378
    %517 = vmatprep.subr.bf16.mxu0 %v381
    %518 = vmatpush1.bf16.msra.mxu0 %v380
    %519 = vmatprep.subr.bf16.mxu0 %v383
    %520 = vmatpush1.bf16.msra.mxu0 %v382
    %521 = vmatprep.mubr.bf16.mxu0 %v123
    %522 = vmatmul.mubr.bf16.gmra.mrb[0].mxu0 %v122
    %v523 = vpop.f32.mrb[0].mxu0
    %v524 = vadd.f32 %v483, %v523
    %v525 = vpop.f32.mrb[0].mxu0
    %v526 = vadd.f32 %v485, %v525
    %v527 = vpop.f32.mrb[0].mxu0
    %v528 = vpop.f32.mrb[0].mxu0
    %529 = vdwg.mxu0
    %v530 = vpack.c.bf16 %v524, %v524
    %v531 = vpack.c.bf16 %v526, %v526
    %v532 = vld [vmem:[%s3] sm:$0xf]
    %v533 = vld [vmem:[%s3 + $0x4] sm:$0xf]
    %v534 = vld [vmem:[%s3 + $0x8] sm:$0xf]
    %v535 = vld [vmem:[%s3 + $0xc] sm:$0xf]
    %v536 = vld [vmem:[%s3 + $0x10] sm:$0xf]
    %v537 = vld [vmem:[%s3 + $0x14] sm:$0xf]
    %v538 = vld [vmem:[%s3 + $0x18] sm:$0xf]
    %v539 = vld [vmem:[%s3 + $0x1c] sm:$0xf]
    %v540 = vld [vmem:[%s3 + $0x20] sm:$0xf]
    %v541 = vld [vmem:[%s3 + $0x24] sm:$0xf]
    %v542 = vld [vmem:[%s3 + $0x28] sm:$0xf]
    %v543 = vld [vmem:[%s3 + $0x2c] sm:$0xf]
    %v544 = vld [vmem:[%s3 + $0x30] sm:$0xf]
    %v545 = vld [vmem:[%s3 + $0x34] sm:$0xf]
    %v546 = vld [vmem:[%s3 + $0x38] sm:$0xf]
    %v547 = vld [vmem:[%s3 + $0x3c] sm:$0xf]
    %v548 = vld [vmem:[%s3 + $0x40] sm:$0xf]
    %v549 = vld [vmem:[%s3 + $0x44] sm:$0xf]
    %v550 = vld [vmem:[%s3 + $0x48] sm:$0xf]
    %v551 = vld [vmem:[%s3 + $0x4c] sm:$0xf]
    %v552 = vld [vmem:[%s3 + $0x50] sm:$0xf]
    %v553 = vld [vmem:[%s3 + $0x54] sm:$0xf]
    %v554 = vld [vmem:[%s3 + $0x58] sm:$0xf]
    %v555 = vld [vmem:[%s3 + $0x5c] sm:$0xf]
    %v556 = vld [vmem:[%s3 + $0x60] sm:$0xf]
    %v557 = vld [vmem:[%s3 + $0x64] sm:$0xf]
    %v558 = vld [vmem:[%s3 + $0x68] sm:$0xf]
    %v559 = vld [vmem:[%s3 + $0x6c] sm:$0xf]
    %v560 = vld [vmem:[%s3 + $0x70] sm:$0xf]
    %v561 = vld [vmem:[%s3 + $0x74] sm:$0xf]
    %v562 = vld [vmem:[%s3 + $0x78] sm:$0xf]
    %v563 = vld [vmem:[%s3 + $0x7c] sm:$0xf]
    %v564 = vld [vmem:[%s4] sm:$0x1]
    %v566 = vlaneseq
    %v567 = vshrl.u32 %v566, 7
    %v568 = vsub.s32 0, %v567
    %v569 = vrot.slane %v564, %v568
    %v603 = vunpack.c.l.b16 %v532
    %v604 = vunpack.c.l.b16 %v533
    %v605 = vunpack.c.l.b16 %v534
    %v606 = vunpack.c.l.b16 %v535
    %v607 = vunpack.c.l.b16 %v536
    %v608 = vunpack.c.l.b16 %v537
    %v609 = vunpack.c.l.b16 %v538
    %v610 = vunpack.c.l.b16 %v539
    %v611 = vunpack.c.l.b16 %v540
    %v612 = vunpack.c.l.b16 %v541
    %v613 = vunpack.c.l.b16 %v542
    %v614 = vunpack.c.l.b16 %v543
    %v615 = vunpack.c.l.b16 %v544
    %v616 = vunpack.c.l.b16 %v545
    %v617 = vunpack.c.l.b16 %v546
    %v618 = vunpack.c.l.b16 %v547
    %v619 = vunpack.c.l.b16 %v548
    %v620 = vunpack.c.l.b16 %v549
    %v621 = vunpack.c.l.b16 %v550
    %v622 = vunpack.c.l.b16 %v551
    %v623 = vunpack.c.l.b16 %v552
    %v624 = vunpack.c.l.b16 %v553
    %v625 = vunpack.c.l.b16 %v554
    %v626 = vunpack.c.l.b16 %v555
    %v627 = vunpack.c.l.b16 %v556
    %v628 = vunpack.c.l.b16 %v557
    %v629 = vunpack.c.l.b16 %v558
    %v630 = vunpack.c.l.b16 %v559
    %v631 = vunpack.c.l.b16 %v560
    %v632 = vunpack.c.l.b16 %v561
    %v633 = vunpack.c.l.b16 %v562
    %v634 = vunpack.c.l.b16 %v563
    %v635 = vpack.c.b16 %v604, %v603
    %v636 = vpack.c.b16 %v606, %v605
    %v637 = vpack.c.b16 %v608, %v607
    %v638 = vpack.c.b16 %v610, %v609
    %v639 = vpack.c.b16 %v612, %v611
    %v640 = vpack.c.b16 %v614, %v613
    %v641 = vpack.c.b16 %v616, %v615
    %v642 = vpack.c.b16 %v618, %v617
    %v643 = vpack.c.b16 %v620, %v619
    %v644 = vpack.c.b16 %v622, %v621
    %v645 = vpack.c.b16 %v624, %v623
    %v646 = vpack.c.b16 %v626, %v625
    %v647 = vpack.c.b16 %v628, %v627
    %v648 = vpack.c.b16 %v630, %v629
    %v649 = vpack.c.b16 %v632, %v631
    %v650 = vpack.c.b16 %v634, %v633
    %667 = vmatprep.subr.bf16.mxu0 0
    %668 = vmatpush1.bf16.msra.mxu0 %v635
    %669 = vmatprep.subr.bf16.mxu0 0
    %670 = vmatpush1.bf16.msra.mxu0 %v636
    %671 = vmatprep.subr.bf16.mxu0 0
    %672 = vmatpush1.bf16.msra.mxu0 %v637
    %673 = vmatprep.subr.bf16.mxu0 0
    %674 = vmatpush1.bf16.msra.mxu0 %v638
    %675 = vmatprep.subr.bf16.mxu0 0
    %676 = vmatpush1.bf16.msra.mxu0 %v639
    %677 = vmatprep.subr.bf16.mxu0 0
    %678 = vmatpush1.bf16.msra.mxu0 %v640
    %679 = vmatprep.subr.bf16.mxu0 0
    %680 = vmatpush1.bf16.msra.mxu0 %v641
    %681 = vmatprep.subr.bf16.mxu0 0
    %682 = vmatpush1.bf16.msra.mxu0 %v642
    %683 = vmatprep.subr.bf16.mxu0 0
    %684 = vmatpush1.bf16.msra.mxu0 %v643
    %685 = vmatprep.subr.bf16.mxu0 0
    %686 = vmatpush1.bf16.msra.mxu0 %v644
    %687 = vmatprep.subr.bf16.mxu0 0
    %688 = vmatpush1.bf16.msra.mxu0 %v645
    %689 = vmatprep.subr.bf16.mxu0 0
    %690 = vmatpush1.bf16.msra.mxu0 %v646
    %691 = vmatprep.subr.bf16.mxu0 0
    %692 = vmatpush1.bf16.msra.mxu0 %v647
    %693 = vmatprep.subr.bf16.mxu0 0
    %694 = vmatpush1.bf16.msra.mxu0 %v648
    %695 = vmatprep.subr.bf16.mxu0 0
    %696 = vmatpush1.bf16.msra.mxu0 %v649
    %697 = vmatprep.subr.bf16.mxu0 0
    %698 = vmatpush1.bf16.msra.mxu0 %v650
    %699 = vmatprep.mubr.bf16.mxu0 %v531
    %700 = vmatmul.mubr.bf16.gmra.mrb[0].mxu0 %v530
    %v701 = vpop.f32.mrb[0].mxu0
    %v702 = vadd.f32 %v569, %v701
    %v703 = vpop.f32.mrb[0].mxu0
    %v704 = vpop.f32.mrb[0].mxu0
    %v705 = vpop.f32.mrb[0].mxu0
    %706 = vdwg.mxu0
    %vm707 = vcmask 74752
    %708 = vst.msk [vmem:[#allocation2] sm:$0x3] %vm707, %v702
    // Predicated region
    $region22: #{cnn_forward.9} parent=1 // pred_check
      _
    $region23: #{cnn_forward.9} parent=1 // pred_check_branch
      %710 = sbr.rel (0) target = $region25
    $region24: #{cnn_forward.9} parent=1 // pred_region
      %s712 = ssub.s32 32, 32
      %713 = vsyncadd [#allocation3], %s712
      %s715 = sshll.u32 [#allocation2], 4
      %s716 = int_to_ptr.vmem [resolvable:$true] %s715
      %718 = dma.vmem_to_hbm [thread:$0]  %s716, 32, %s5, [#allocation3]
    $region25: #{cnn_forward.9} parent=1 // pred_fallthru
      _
    // Predicated region
    $region26: #{cnn_forward.9} parent=1 // pred_check
      _
    $region27: #{cnn_forward.9} parent=1 // pred_check_branch
      %720 = sbr.rel (0) target = $region29
    $region28: #{cnn_forward.9} parent=1 // pred_region
      %721 = dma.done [#allocation3], 32
    $region29: #{cnn_forward.9} parent=1 // pred_fallthru
      _
    %722 = vsyncpa [#allocation3], 1

// kernel: cnn_forward.8
$region0: #{cnn_forward.8}
  #allocation0 [shape = 'u32[]', space=smem, size = 0x4, offset = 0x4, fixed_abs, tag = 'smem constant byte address 0x4 - core index']
  #allocation1 [shape = 'u32[144,128]{1,0:T(1,128)}', space=vmem, size = 0x12000, scoped, tag = 'internal scratch']
  %s0 = inlined_call_operand.vmem [shape: bf16[32,2304], index: 0, kind: input, shape index: {}]
  %s1 = inlined_call_operand.vmem [shape: bf16[2304,512], index: 1, kind: input, shape index: {}]
  %s2 = inlined_call_operand.vmem [shape: f32[1,512], index: 2, kind: input, shape index: {}]
  %s3 = inlined_call_operand.vmem [shape: f32[8,512], index: 3, kind: output, shape index: {}]
  %s4 = sld [smem:[#allocation0]]
  $region83: #{cnn_forward.8} parent=0
    _
  %s6 = ssub.s32 1, %s4
  %s7 = scalar_select 0, %s6, %s4
  $region1: #{cnn_forward.8} parent=0
    #allocation2 [shape = 'u8[2359296]{0}', space=vmem, size = 0x240000, scoped, tag = 'input window, operand 1']
    loop: start=0, step=1, limit=4
    $region2: #{cnn_forward.8} parent=1 // loop_pre_header
      _
    $region3: #{cnn_forward.8} parent=1 // loop_header
      %s9 = sphi 0, %s13
      %p10 = scmp.ge.s32.totalorder %s9, 4
      %s17 = sphi 0, %s17
      %s19 = sphi 0, %s17
      %s20 = sphi 0, %s19
      %s34 = sphi 0, %s20
      %s40 = sphi 0, %s42
      %s43 = sphi 0, %s40
      %s44 = sphi 0, %s43
      %s60 = sphi 0, %s44
      %s66 = sphi 0, %s68
      %s69 = sphi 0, %s66
      %s70 = sphi 0, %s69
      %s86 = sphi 0, %s70
      %s92 = sphi 0, %s94
      %s95 = sphi 0, %s92
      %s96 = sphi 0, %s95
      %s112 = sphi 0, %s96
    $region4: #{cnn_forward.8} parent=1 // loop_header_branch
      %12 = sbr.rel (%p10) target = $region8
    $region5: #{cnn_forward.8} parent=1 // loop_body
      %s14 = ssub.s32 %s9, 1
      %s15 = ssub.s32 %s9, 2
      %s16 = sadd.s32 %s9, 1
      %s18 = sadd.s32 %s17, 1
      %p21 = scmp.eq.s32.totalorder %s9, 1
      %p22 = scmp.ne.s32.totalorder %s17, %s19
      %p23 = scmp.eq.s32.totalorder %s9, 0
      %p24 = por %p22, %p23
      %p25 = scmp.ne.s32.totalorder %s17, %s19
      %p26 = scmp.eq.s32.totalorder %s14, 1
      %p27 = por %p25, %p26
      %p28 = scmp.ne.s32.totalorder %s19, %s20
      %p29 = scmp.eq.s32.totalorder %s14, 0
      %p30 = por %p28, %p29
      %p31 = scmp.ne.s32.totalorder %s19, %s20
      %p32 = scmp.eq.s32.totalorder %s15, 1
      %p33 = por %p31, %p32
      %p35 = scmp.ne.s32.totalorder %s20, %s34
      %p36 = scmp.eq.s32.totalorder %s15, 0
      %p37 = por %p35, %p36
      %s38 = ssub.s32 %s9, %s16
      %p39 = scmp.eq.s32.totalorder %s38, 0
      %s41 = sadd.s32 %s40, 1
      %s42 = scalar_select %p39, %s40, %s41
      %p45 = pneg %p39
      %p46 = scmp.eq.s32.totalorder %s9, 1
      %p47 = por %p45, %p46
      %p48 = scmp.ne.s32.totalorder %s40, %s43
      %p49 = scmp.eq.s32.totalorder %s9, 0
      %p50 = por %p48, %p49
      %p51 = scmp.ne.s32.totalorder %s40, %s43
      %p52 = scmp.eq.s32.totalorder %s14, 1
      %p53 = por %p51, %p52
      %p54 = scmp.ne.s32.totalorder %s43, %s44
      %p55 = scmp.eq.s32.totalorder %s14, 0
      %p56 = por %p54, %p55
      %p57 = scmp.ne.s32.totalorder %s43, %s44
      %p58 = scmp.eq.s32.totalorder %s15, 1
      %p59 = por %p57, %p58
      %p61 = scmp.ne.s32.totalorder %s44, %s60
      %p62 = scmp.eq.s32.totalorder %s15, 0
      %p63 = por %p61, %p62
      %s64 = ssub.s32 %s9, %s16
      %p65 = scmp.eq.s32.totalorder %s64, 0
      %s67 = sadd.s32 %s66, 1
      %s68 = scalar_select %p65, %s66, %s67
      %p71 = pneg %p65
      %p72 = scmp.eq.s32.totalorder %s9, 1
      %p73 = por %p71, %p72
      %p74 = scmp.ne.s32.totalorder %s66, %s69
      %p75 = scmp.eq.s32.totalorder %s9, 0
      %p76 = por %p74, %p75
      %p77 = scmp.ne.s32.totalorder %s66, %s69
      %p78 = scmp.eq.s32.totalorder %s14, 1
      %p79 = por %p77, %p78
      %p80 = scmp.ne.s32.totalorder %s69, %s70
      %p81 = scmp.eq.s32.totalorder %s14, 0
      %p82 = por %p80, %p81
      %p83 = scmp.ne.s32.totalorder %s69, %s70
      %p84 = scmp.eq.s32.totalorder %s15, 1
      %p85 = por %p83, %p84
      %p87 = scmp.ne.s32.totalorder %s70, %s86
      %p88 = scmp.eq.s32.totalorder %s15, 0
      %p89 = por %p87, %p88
      %s90 = ssub.s32 %s9, %s16
      %p91 = scmp.eq.s32.totalorder %s90, 0
      %s93 = sadd.s32 %s92, 1
      %s94 = scalar_select %p91, %s92, %s93
      %p97 = pneg %p91
      %p98 = scmp.eq.s32.totalorder %s9, 1
      %p99 = por %p97, %p98
      %p100 = scmp.ne.s32.totalorder %s92, %s95
      %p101 = scmp.eq.s32.totalorder %s9, 0
      %p102 = por %p100, %p101
      %p103 = scmp.ne.s32.totalorder %s92, %s95
      %p104 = scmp.eq.s32.totalorder %s14, 1
      %p105 = por %p103, %p104
      %p106 = scmp.ne.s32.totalorder %s95, %s96
      %p107 = scmp.eq.s32.totalorder %s14, 0
      %p108 = por %p106, %p107
      %p109 = scmp.ne.s32.totalorder %s95, %s96
      %p110 = scmp.eq.s32.totalorder %s15, 1
      %p111 = por %p109, %p110
      %p113 = scmp.ne.s32.totalorder %s96, %s112
      %p114 = scmp.eq.s32.totalorder %s15, 0
      %p115 = por %p113, %p114
      %p116 = scmp.le.s32.totalorder 1, %s9
      %p117 = scmp.lt.s32.totalorder %s9, 3
      %p118 = pnand %p116, %p117
      %p119 = pneg %p118
      // Predicated region
      $region9: #{cnn_forward.8} parent=5 // pred_check
        _
      $region10: #{cnn_forward.8} parent=5 // pred_check_branch
        %121 = sbr.rel (%p118) target = $region12
      $region11: #{cnn_forward.8} parent=5 // pred_region
        %s122 = ssub.s32 %s9, 1
        // Predicated region
        $region13: #{cnn_forward.8} parent=11 // pred_check
          %p123 = pneg %p30
        $region14: #{cnn_forward.8} parent=11 // pred_check_branch
          %125 = sbr.rel (%p123) target = $region16
        $region15: #{cnn_forward.8} parent=11 // pred_region
          _
        $region16: #{cnn_forward.8} parent=11 // pred_fallthru
          _
      $region12: #{cnn_forward.8} parent=5 // pred_fallthru
        _
      %p126 = scmp.lt.s32.totalorder %s9, 2
      // Predicated region
      $region17: #{cnn_forward.8} parent=5 // pred_check
        %p127 = pneg %p126
      $region18: #{cnn_forward.8} parent=5 // pred_check_branch
        %129 = sbr.rel (%p127) target = $region20
      $region19: #{cnn_forward.8} parent=5 // pred_region
        // Predicated region
        $region21: #{cnn_forward.8} parent=19 // pred_check
          %p130 = pneg %p50
        $region22: #{cnn_forward.8} parent=19 // pred_check_branch
          %132 = sbr.rel (%p130) target = $region24
        $region23: #{cnn_forward.8} parent=19 // pred_region
          %s133 = sand.u32 %s40, 1
          %s134 = sand.u32 %s40, 1
          %s135 = smul.addr %s134, 2304
          %s136 = scalar_lea.vmem [#allocation2], %s135
          %s137 = smul.u32 2, %s9
          %s138 = smul.addr %s137, 4
          %s139 = scalar_lea.vmem %s1, %s138
          // Predicated region
          $region25: #{cnn_forward.8} parent=23 // pred_check
            _
          $region26: #{cnn_forward.8} parent=23 // pred_check_branch
            %141 = sbr.rel (0) target = $region28
          $region27: #{cnn_forward.8} parent=23 // pred_region
            // Predicated region
            $region29: #{cnn_forward.8} parent=27 // pred_check
              _
            $region30: #{cnn_forward.8} parent=27 // pred_check_branch
              %143 = sbr.rel (0) target = $region32
            $region31: #{cnn_forward.8} parent=27 // pred_region
              // Predicated region
              $region44: #{cnn_forward.8} parent=31 // pred_check
                _
              $region45: #{cnn_forward.8} parent=31 // pred_check_branch
                %732 = sbr.rel (0) target = $region47
              $region46: #{cnn_forward.8} parent=31 // pred_region
                loop: start=0, step=1, limit=1
                $region48: #{cnn_forward.8} parent=46 // loop_pre_header
                  _
                $region49: #{cnn_forward.8} parent=46 // loop_header
                  %s734 = sphi 0, %s738
                  %p735 = scmp.ge.s32.totalorder %s734, 1
                  %s739 = sphi %s139, %s139
                  %s740 = sphi %s136, %s136
                $region50: #{cnn_forward.8} parent=46 // loop_header_branch
                  %737 = sbr.rel (%p735) target = $region54
                $region51: #{cnn_forward.8} parent=46 // loop_body
                  %v741 = vld [vmem:[%s739] sm:$0xff]
                  %742 = vst [vmem:[%s740] sm:$0xff] %v741
                  %v743 = vld [vmem:[%s739 + $0x10] sm:$0xff]
                  %744 = vst [vmem:[%s740 + $0x8] sm:$0xff] %v743
                  %v745 = vld [vmem:[%s739 + $0x20] sm:$0xff]
                  %746 = vst [vmem:[%s740 + $0x10] sm:$0xff] %v745
                  %v747 = vld [vmem:[%s739 + $0x30] sm:$0xff]
                  %748 = vst [vmem:[%s740 + $0x18] sm:$0xff] %v747
                  %v749 = vld [vmem:[%s739 + $0x40] sm:$0xff]
                  %750 = vst [vmem:[%s740 + $0x20] sm:$0xff] %v749
                  %v751 = vld [vmem:[%s739 + $0x50] sm:$0xff]
                  %752 = vst [vmem:[%s740 + $0x28] sm:$0xff] %v751
                  %v753 = vld [vmem:[%s739 + $0x60] sm:$0xff]
                  %754 = vst [vmem:[%s740 + $0x30] sm:$0xff] %v753
                  %v755 = vld [vmem:[%s739 + $0x70] sm:$0xff]
                  %756 = vst [vmem:[%s740 + $0x38] sm:$0xff] %v755
                  %v757 = vld [vmem:[%s739 + $0x80] sm:$0xff]
                  %758 = vst [vmem:[%s740 + $0x40] sm:$0xff] %v757
                  %v759 = vld [vmem:[%s739 + $0x90] sm:$0xff]
                  %760 = vst [vmem:[%s740 + $0x48] sm:$0xff] %v759
                  %v761 = vld [vmem:[%s739 + $0xa0] sm:$0xff]
                  %762 = vst [vmem:[%s740 + $0x50] sm:$0xff] %v761
                  %v763 = vld [vmem:[%s739 + $0xb0] sm:$0xff]
                  %764 = vst [vmem:[%s740 + $0x58] sm:$0xff] %v763
                  %v765 = vld [vmem:[%s739 + $0xc0] sm:$0xff]
                  %766 = vst [vmem:[%s740 + $0x60] sm:$0xff] %v765
                  %v767 = vld [vmem:[%s739 + $0xd0] sm:$0xff]
                  %768 = vst [vmem:[%s740 + $0x68] sm:$0xff] %v767
                  %v769 = vld [vmem:[%s739 + $0xe0] sm:$0xff]
                  %770 = vst [vmem:[%s740 + $0x70] sm:$0xff] %v769
                  %v771 = vld [vmem:[%s739 + $0xf0] sm:$0xff]
                  %772 = vst [vmem:[%s740 + $0x78] sm:$0xff] %v771
                  %v773 = vld [vmem:[%s739 + $0x100] sm:$0xff]
                  %774 = vst [vmem:[%s740 + $0x80] sm:$0xff] %v773
                  %v775 = vld [vmem:[%s739 + $0x110] sm:$0xff]
                  %776 = vst [vmem:[%s740 + $0x88] sm:$0xff] %v775
                  %v777 = vld [vmem:[%s739 + $0x120] sm:$0xff]
                  %778 = vst [vmem:[%s740 + $0x90] sm:$0xff] %v777
                  %v779 = vld [vmem:[%s739 + $0x130] sm:$0xff]
                  %780 = vst [vmem:[%s740 + $0x98] sm:$0xff] %v779
                  %v781 = vld [vmem:[%s739 + $0x140] sm:$0xff]
                  %782 = vst [vmem:[%s740 + $0xa0] sm:$0xff] %v781
                  %v783 = vld [vmem:[%s739 + $0x150] sm:$0xff]
                  %784 = vst [vmem:[%s740 + $0xa8] sm:$0xff] %v783
                  %v785 = vld [vmem:[%s739 + $0x160] sm:$0xff]
                  %786 = vst [vmem:[%s740 + $0xb0] sm:$0xff] %v785
                  %v787 = vld [vmem:[%s739 + $0x170] sm:$0xff]
                  %788 = vst [vmem:[%s740 + $0xb8] sm:$0xff] %v787
                  %v789 = vld [vmem:[%s739 + $0x180] sm:$0xff]
                  %790 = vst [vmem:[%s740 + $0xc0] sm:$0xff] %v789
                  %v791 = vld [vmem:[%s739 + $0x190] sm:$0xff]
                  %792 = vst [vmem:[%s740 + $0xc8] sm:$0xff] %v791
                  %v793 = vld [vmem:[%s739 + $0x1a0] sm:$0xff]
                  %794 = vst [vmem:[%s740 + $0xd0] sm:$0xff] %v793
                  %v795 = vld [vmem:[%s739 + $0x1b0] sm:$0xff]
                  %796 = vst [vmem:[%s740 + $0xd8] sm:$0xff] %v795
                  %v797 = vld [vmem:[%s739 + $0x1c0] sm:$0xff]
                  %798 = vst [vmem:[%s740 + $0xe0] sm:$0xff] %v797
                  %v799 = vld [vmem:[%s739 + $0x1d0] sm:$0xff]
                  %800 = vst [vmem:[%s740 + $0xe8] sm:$0xff] %v799
                  %v801 = vld [vmem:[%s739 + $0x1e0] sm:$0xff]
                  %802 = vst [vmem:[%s740 + $0xf0] sm:$0xff] %v801
                  %v803 = vld [vmem:[%s739 + $0x1f0] sm:$0xff]
                  %804 = vst [vmem:[%s740 + $0xf8] sm:$0xff] %v803
                  %v805 = vld [vmem:[%s739 + $0x200] sm:$0xff]
                  %806 = vst [vmem:[%s740 + $0x100] sm:$0xff] %v805
                  %v807 = vld [vmem:[%s739 + $0x210] sm:$0xff]
                  %808 = vst [vmem:[%s740 + $0x108] sm:$0xff] %v807
                  %v809 = vld [vmem:[%s739 + $0x220] sm:$0xff]
                  %810 = vst [vmem:[%s740 + $0x110] sm:$0xff] %v809
                  %v811 = vld [vmem:[%s739 + $0x230] sm:$0xff]
                  %812 = vst [vmem:[%s740 + $0x118] sm:$0xff] %v811
                  %v813 = vld [vmem:[%s739 + $0x240] sm:$0xff]
                  %814 = vst [vmem:[%s740 + $0x120] sm:$0xff] %v813
                  %v815 = vld [vmem:[%s739 + $0x250] sm:$0xff]
                  %816 = vst [vmem:[%s740 + $0x128] sm:$0xff] %v815
                  %v817 = vld [vmem:[%s739 + $0x260] sm:$0xff]
                  %818 = vst [vmem:[%s740 + $0x130] sm:$0xff] %v817
                  %v819 = vld [vmem:[%s739 + $0x270] sm:$0xff]
                  %820 = vst [vmem:[%s740 + $0x138] sm:$0xff] %v819
                  %v821 = vld [vmem:[%s739 + $0x280] sm:$0xff]
                  %822 = vst [vmem:[%s740 + $0x140] sm:$0xff] %v821
                  %v823 = vld [vmem:[%s739 + $0x290] sm:$0xff]
                  %824 = vst [vmem:[%s740 + $0x148] sm:$0xff] %v823
                  %v825 = vld [vmem:[%s739 + $0x2a0] sm:$0xff]
                  %826 = vst [vmem:[%s740 + $0x150] sm:$0xff] %v825
                  %v827 = vld [vmem:[%s739 + $0x2b0] sm:$0xff]
                  %828 = vst [vmem:[%s740 + $0x158] sm:$0xff] %v827
                  %v829 = vld [vmem:[%s739 + $0x2c0] sm:$0xff]
                  %830 = vst [vmem:[%s740 + $0x160] sm:$0xff] %v829
                  %v831 = vld [vmem:[%s739 + $0x2d0] sm:$0xff]
                  %832 = vst [vmem:[%s740 + $0x168] sm:$0xff] %v831
                  %v833 = vld [vmem:[%s739 + $0x2e0] sm:$0xff]
                  %834 = vst [vmem:[%s740 + $0x170] sm:$0xff] %v833
                  %v835 = vld [vmem:[%s739 + $0x2f0] sm:$0xff]
                  %836 = vst [vmem:[%s740 + $0x178] sm:$0xff] %v835
                  %v837 = vld [vmem:[%s739 + $0x300] sm:$0xff]
                  %838 = vst [vmem:[%s740 + $0x180] sm:$0xff] %v837
                  %v839 = vld [vmem:[%s739 + $0x310] sm:$0xff]
                  %840 = vst [vmem:[%s740 + $0x188] sm:$0xff] %v839
                  %v841 = vld [vmem:[%s739 + $0x320] sm:$0xff]
                  %842 = vst [vmem:[%s740 + $0x190] sm:$0xff] %v841
                  %v843 = vld [vmem:[%s739 + $0x330] sm:$0xff]
                  %844 = vst [vmem:[%s740 + $0x198] sm:$0xff] %v843
                  %v845 = vld [vmem:[%s739 + $0x340] sm:$0xff]
                  %846 = vst [vmem:[%s740 + $0x1a0] sm:$0xff] %v845
                  %v847 = vld [vmem:[%s739 + $0x350] sm:$0xff]
                  %848 = vst [vmem:[%s740 + $0x1a8] sm:$0xff] %v847
                  %v849 = vld [vmem:[%s739 + $0x360] sm:$0xff]
                  %850 = vst [vmem:[%s740 + $0x1b0] sm:$0xff] %v849
                  %v851 = vld [vmem:[%s739 + $0x370] sm:$0xff]
                  %852 = vst [vmem:[%s740 + $0x1b8] sm:$0xff] %v851
                  %v853 = vld [vmem:[%s739 + $0x380] sm:$0xff]
                  %854 = vst [vmem:[%s740 + $0x1c0] sm:$0xff] %v853
                  %v855 = vld [vmem:[%s739 + $0x390] sm:$0xff]
                  %856 = vst [vmem:[%s740 + $0x1c8] sm:$0xff] %v855
                  %v857 = vld [vmem:[%s739 + $0x3a0] sm:$0xff]
                  %858 = vst [vmem:[%s740 + $0x1d0] sm:$0xff] %v857
                  %v859 = vld [vmem:[%s739 + $0x3b0] sm:$0xff]
                  %860 = vst [vmem:[%s740 + $0x1d8] sm:$0xff] %v859
                  %v861 = vld [vmem:[%s739 + $0x3c0] sm:$0xff]
                  %862 = vst [vmem:[%s740 + $0x1e0] sm:$0xff] %v861
                  %v863 = vld [vmem:[%s739 + $0x3d0] sm:$0xff]
                  %864 = vst [vmem:[%s740 + $0x1e8] sm:$0xff] %v863
                  %v865 = vld [vmem:[%s739 + $0x3e0] sm:$0xff]
                  %866 = vst [vmem:[%s740 + $0x1f0] sm:$0xff] %v865
                  %v867 = vld [vmem:[%s739 + $0x3f0] sm:$0xff]
                  %868 = vst [vmem:[%s740 + $0x1f8] sm:$0xff] %v867
                  %v869 = vld [vmem:[%s739 + $0x400] sm:$0xff]
                  %870 = vst [vmem:[%s740 + $0x200] sm:$0xff] %v869
                  %v871 = vld [vmem:[%s739 + $0x410] sm:$0xff]
                  %872 = vst [vmem:[%s740 + $0x208] sm:$0xff] %v871
                  %v873 = vld [vmem:[%s739 + $0x420] sm:$0xff]
                  %874 = vst [vmem:[%s740 + $0x210] sm:$0xff] %v873
                  %v875 = vld [vmem:[%s739 + $0x430] sm:$0xff]
                  %876 = vst [vmem:[%s740 + $0x218] sm:$0xff] %v875
                  %v877 = vld [vmem:[%s739 + $0x440] sm:$0xff]
                  %878 = vst [vmem:[%s740 + $0x220] sm:$0xff] %v877
                  %v879 = vld [vmem:[%s739 + $0x450] sm:$0xff]
                  %880 = vst [vmem:[%s740 + $0x228] sm:$0xff] %v879
                  %v881 = vld [vmem:[%s739 + $0x460] sm:$0xff]
                  %882 = vst [vmem:[%s740 + $0x230] sm:$0xff] %v881
                  %v883 = vld [vmem:[%s739 + $0x470] sm:$0xff]
                  %884 = vst [vmem:[%s740 + $0x238] sm:$0xff] %v883
                  %v885 = vld [vmem:[%s739 + $0x480] sm:$0xff]
                  %886 = vst [vmem:[%s740 + $0x240] sm:$0xff] %v885
                  %v887 = vld [vmem:[%s739 + $0x490] sm:$0xff]
                  %888 = vst [vmem:[%s740 + $0x248] sm:$0xff] %v887
                  %v889 = vld [vmem:[%s739 + $0x4a0] sm:$0xff]
                  %890 = vst [vmem:[%s740 + $0x250] sm:$0xff] %v889
                  %v891 = vld [vmem:[%s739 + $0x4b0] sm:$0xff]
                  %892 = vst [vmem:[%s740 + $0x258] sm:$0xff] %v891
                  %v893 = vld [vmem:[%s739 + $0x4c0] sm:$0xff]
                  %894 = vst [vmem:[%s740 + $0x260] sm:$0xff] %v893
                  %v895 = vld [vmem:[%s739 + $0x4d0] sm:$0xff]
                  %896 = vst [vmem:[%s740 + $0x268] sm:$0xff] %v895
                  %v897 = vld [vmem:[%s739 + $0x4e0] sm:$0xff]
                  %898 = vst [vmem:[%s740 + $0x270] sm:$0xff] %v897
                  %v899 = vld [vmem:[%s739 + $0x4f0] sm:$0xff]
                  %900 = vst [vmem:[%s740 + $0x278] sm:$0xff] %v899
                  %v901 = vld [vmem:[%s739 + $0x500] sm:$0xff]
                  %902 = vst [vmem:[%s740 + $0x280] sm:$0xff] %v901
                  %v903 = vld [vmem:[%s739 + $0x510] sm:$0xff]
                  %904 = vst [vmem:[%s740 + $0x288] sm:$0xff] %v903
                  %v905 = vld [vmem:[%s739 + $0x520] sm:$0xff]
                  %906 = vst [vmem:[%s740 + $0x290] sm:$0xff] %v905
                  %v907 = vld [vmem:[%s739 + $0x530] sm:$0xff]
                  %908 = vst [vmem:[%s740 + $0x298] sm:$0xff] %v907
                  %v909 = vld [vmem:[%s739 + $0x540] sm:$0xff]
                  %910 = vst [vmem:[%s740 + $0x2a0] sm:$0xff] %v909
                  %v911 = vld [vmem:[%s739 + $0x550] sm:$0xff]
                  %912 = vst [vmem:[%s740 + $0x2a8] sm:$0xff] %v911
                  %v913 = vld [vmem:[%s739 + $0x560] sm:$0xff]
                  %914 = vst [vmem:[%s740 + $0x2b0] sm:$0xff] %v913
                  %v915 = vld [vmem:[%s739 + $0x570] sm:$0xff]
                  %916 = vst [vmem:[%s740 + $0x2b8] sm:$0xff] %v915
                  %v917 = vld [vmem:[%s739 + $0x580] sm:$0xff]
                  %918 = vst [vmem:[%s740 + $0x2c0] sm:$0xff] %v917
                  %v919 = vld [vmem:[%s739 + $0x590] sm:$0xff]
                  %920 = vst [vmem:[%s740 + $0x2c8] sm:$0xff] %v919
                  %v921 = vld [vmem:[%s739 + $0x5a0] sm:$0xff]
                  %922 = vst [vmem:[%s740 + $0x2d0] sm:$0xff] %v921
                  %v923 = vld [vmem:[%s739 + $0x5b0] sm:$0xff]
                  %924 = vst [vmem:[%s740 + $0x2d8] sm:$0xff] %v923
                  %v925 = vld [vmem:[%s739 + $0x5c0] sm:$0xff]
                  %926 = vst [vmem:[%s740 + $0x2e0] sm:$0xff] %v925
                  %v927 = vld [vmem:[%s739 + $0x5d0] sm:$0xff]
                  %928 = vst [vmem:[%s740 + $0x2e8] sm:$0xff] %v927
                  %v929 = vld [vmem:[%s739 + $0x5e0] sm:$0xff]
                  %930 = vst [vmem:[%s740 + $0x2f0] sm:$0xff] %v929
                  %v931 = vld [vmem:[%s739 + $0x5f0] sm:$0xff]
                  %932 = vst [vmem:[%s740 + $0x2f8] sm:$0xff] %v931
                  %v933 = vld [vmem:[%s739 + $0x600] sm:$0xff]
                  %934 = vst [vmem:[%s740 + $0x300] sm:$0xff] %v933
                  %v935 = vld [vmem:[%s739 + $0x610] sm:$0xff]
                  %936 = vst [vmem:[%s740 + $0x308] sm:$0xff] %v935
                  %v937 = vld [vmem:[%s739 + $0x620] sm:$0xff]
                  %938 = vst [vmem:[%s740 + $0x310] sm:$0xff] %v937
                  %v939 = vld [vmem:[%s739 + $0x630] sm:$0xff]
                  %940 = vst [vmem:[%s740 + $0x318] sm:$0xff] %v939
                  %v941 = vld [vmem:[%s739 + $0x640] sm:$0xff]
                  %942 = vst [vmem:[%s740 + $0x320] sm:$0xff] %v941
                  %v943 = vld [vmem:[%s739 + $0x650] sm:$0xff]
                  %944 = vst [vmem:[%s740 + $0x328] sm:$0xff] %v943
                  %v945 = vld [vmem:[%s739 + $0x660] sm:$0xff]
                  %946 = vst [vmem:[%s740 + $0x330] sm:$0xff] %v945
                  %v947 = vld [vmem:[%s739 + $0x670] sm:$0xff]
                  %948 = vst [vmem:[%s740 + $0x338] sm:$0xff] %v947
                  %v949 = vld [vmem:[%s739 + $0x680] sm:$0xff]
                  %950 = vst [vmem:[%s740 + $0x340] sm:$0xff] %v949
                  %v951 = vld [vmem:[%s739 + $0x690] sm:$0xff]
                  %952 = vst [vmem:[%s740 + $0x348] sm:$0xff] %v951
                  %v953 = vld [vmem:[%s739 + $0x6a0] sm:$0xff]
                  %954 = vst [vmem:[%s740 + $0x350] sm:$0xff] %v953
                  %v955 = vld [vmem:[%s739 + $0x6b0] sm:$0xff]
                  %956 = vst [vmem:[%s740 + $0x358] sm:$0xff] %v955
                  %v957 = vld [vmem:[%s739 + $0x6c0] sm:$0xff]
                  %958 = vst [vmem:[%s740 + $0x360] sm:$0xff] %v957
                  %v959 = vld [vmem:[%s739 + $0x6d0] sm:$0xff]
                  %960 = vst [vmem:[%s740 + $0x368] sm:$0xff] %v959
                  %v961 = vld [vmem:[%s739 + $0x6e0] sm:$0xff]
                  %962 = vst [vmem:[%s740 + $0x370] sm:$0xff] %v961
                  %v963 = vld [vmem:[%s739 + $0x6f0] sm:$0xff]
                  %964 = vst [vmem:[%s740 + $0x378] sm:$0xff] %v963
                  %v965 = vld [vmem:[%s739 + $0x700] sm:$0xff]
                  %966 = vst [vmem:[%s740 + $0x380] sm:$0xff] %v965
                  %v967 = vld [vmem:[%s739 + $0x710] sm:$0xff]
                  %968 = vst [vmem:[%s740 + $0x388] sm:$0xff] %v967
                  %v969 = vld [vmem:[%s739 + $0x720] sm:$0xff]
                  %970 = vst [vmem:[%s740 + $0x390] sm:$0xff] %v969
                  %v971 = vld [vmem:[%s739 + $0x730] sm:$0xff]
                  %972 = vst [vmem:[%s740 + $0x398] sm:$0xff] %v971
                  %v973 = vld [vmem:[%s739 + $0x740] sm:$0xff]
                  %974 = vst [vmem:[%s740 + $0x3a0] sm:$0xff] %v973
                  %v975 = vld [vmem:[%s739 + $0x750] sm:$0xff]
                  %976 = vst [vmem:[%s740 + $0x3a8] sm:$0xff] %v975
                  %v977 = vld [vmem:[%s739 + $0x760] sm:$0xff]
                  %978 = vst [vmem:[%s740 + $0x3b0] sm:$0xff] %v977
                  %v979 = vld [vmem:[%s739 + $0x770] sm:$0xff]
                  %980 = vst [vmem:[%s740 + $0x3b8] sm:$0xff] %v979
                  %v981 = vld [vmem:[%s739 + $0x780] sm:$0xff]
                  %982 = vst [vmem:[%s740 + $0x3c0] sm:$0xff] %v981
                  %v983 = vld [vmem:[%s739 + $0x790] sm:$0xff]
                  %984 = vst [vmem:[%s740 + $0x3c8] sm:$0xff] %v983
                  %v985 = vld [vmem:[%s739 + $0x7a0] sm:$0xff]
                  %986 = vst [vmem:[%s740 + $0x3d0] sm:$0xff] %v985
                  %v987 = vld [vmem:[%s739 + $0x7b0] sm:$0xff]
                  %988 = vst [vmem:[%s740 + $0x3d8] sm:$0xff] %v987
                  %v989 = vld [vmem:[%s739 + $0x7c0] sm:$0xff]
                  %990 = vst [vmem:[%s740 + $0x3e0] sm:$0xff] %v989
                  %v991 = vld [vmem:[%s739 + $0x7d0] sm:$0xff]
                  %992 = vst [vmem:[%s740 + $0x3e8] sm:$0xff] %v991
                  %v993 = vld [vmem:[%s739 + $0x7e0] sm:$0xff]
                  %994 = vst [vmem:[%s740 + $0x3f0] sm:$0xff] %v993
                  %v995 = vld [vmem:[%s739 + $0x7f0] sm:$0xff]
                  %996 = vst [vmem:[%s740 + $0x3f8] sm:$0xff] %v995
                  %v997 = vld [vmem:[%s739 + $0x800] sm:$0xff]
                  %998 = vst [vmem:[%s740 + $0x400] sm:$0xff] %v997
                  %v999 = vld [vmem:[%s739 + $0x810] sm:$0xff]
                  %1000 = vst [vmem:[%s740 + $0x408] sm:$0xff] %v999
                  %v1001 = vld [vmem:[%s739 + $0x820] sm:$0xff]
                  %1002 = vst [vmem:[%s740 + $0x410] sm:$0xff] %v1001
                  %v1003 = vld [vmem:[%s739 + $0x830] sm:$0xff]
                  %1004 = vst [vmem:[%s740 + $0x418] sm:$0xff] %v1003
                  %v1005 = vld [vmem:[%s739 + $0x840] sm:$0xff]
                  %1006 = vst [vmem:[%s740 + $0x420] sm:$0xff] %v1005
                  %v1007 = vld [vmem:[%s739 + $0x850] sm:$0xff]
                  %1008 = vst [vmem:[%s740 + $0x428] sm:$0xff] %v1007
                  %v1009 = vld [vmem:[%s739 + $0x860] sm:$0xff]
                  %1010 = vst [vmem:[%s740 + $0x430] sm:$0xff] %v1009
                  %v1011 = vld [vmem:[%s739 + $0x870] sm:$0xff]
                  %1012 = vst [vmem:[%s740 + $0x438] sm:$0xff] %v1011
                  %v1013 = vld [vmem:[%s739 + $0x880] sm:$0xff]
                  %1014 = vst [vmem:[%s740 + $0x440] sm:$0xff] %v1013
                  %v1015 = vld [vmem:[%s739 + $0x890] sm:$0xff]
                  %1016 = vst [vmem:[%s740 + $0x448] sm:$0xff] %v1015
                  %v1017 = vld [vmem:[%s739 + $0x8a0] sm:$0xff]
                  %1018 = vst [vmem:[%s740 + $0x450] sm:$0xff] %v1017
                  %v1019 = vld [vmem:[%s739 + $0x8b0] sm:$0xff]
                  %1020 = vst [vmem:[%s740 + $0x458] sm:$0xff] %v1019
                  %v1021 = vld [vmem:[%s739 + $0x8c0] sm:$0xff]
                  %1022 = vst [vmem:[%s740 + $0x460] sm:$0xff] %v1021
                  %v1023 = vld [vmem:[%s739 + $0x8d0] sm:$0xff]
                  %1024 = vst [vmem:[%s740 + $0x468] sm:$0xff] %v1023
                  %v1025 = vld [vmem:[%s739 + $0x8e0] sm:$0xff]
                  %1026 = vst [vmem:[%s740 + $0x470] sm:$0xff] %v1025
                  %v1027 = vld [vmem:[%s739 + $0x8f0] sm:$0xff]
                  %1028 = vst [vmem:[%s740 + $0x478] sm:$0xff] %v1027
                  %v1029 = vld [vmem:[%s739 + $0x900] sm:$0xff]
                  %1030 = vst [vmem:[%s740 + $0x480] sm:$0xff] %v1029
                  %v1031 = vld [vmem:[%s739 + $0x910] sm:$0xff]
                  %1032 = vst [vmem:[%s740 + $0x488] sm:$0xff] %v1031
                  %v1033 = vld [vmem:[%s739 + $0x920] sm:$0xff]
                  %1034 = vst [vmem:[%s740 + $0x490] sm:$0xff] %v1033
                  %v1035 = vld [vmem:[%s739 + $0x930] sm:$0xff]
                  %1036 = vst [vmem:[%s740 + $0x498] sm:$0xff] %v1035
                  %v1037 = vld [vmem:[%s739 + $0x940] sm:$0xff]
                  %1038 = vst [vmem:[%s740 + $0x4a0] sm:$0xff] %v1037
                  %v1039 = vld [vmem:[%s739 + $0x950] sm:$0xff]
                  %1040 = vst [vmem:[%s740 + $0x4a8] sm:$0xff] %v1039
                  %v1041 = vld [vmem:[%s739 + $0x960] sm:$0xff]
                  %1042 = vst [vmem:[%s740 + $0x4b0] sm:$0xff] %v1041
                  %v1043 = vld [vmem:[%s739 + $0x970] sm:$0xff]
                  %1044 = vst [vmem:[%s740 + $0x4b8] sm:$0xff] %v1043
                  %v1045 = vld [vmem:[%s739 + $0x980] sm:$0xff]
                  %1046 = vst [vmem:[%s740 + $0x4c0] sm:$0xff] %v1045
                  %v1047 = vld [vmem:[%s739 + $0x990] sm:$0xff]
                  %1048 = vst [vmem:[%s740 + $0x4c8] sm:$0xff] %v1047
                  %v1049 = vld [vmem:[%s739 + $0x9a0] sm:$0xff]
                  %1050 = vst [vmem:[%s740 + $0x4d0] sm:$0xff] %v1049
                  %v1051 = vld [vmem:[%s739 + $0x9b0] sm:$0xff]
                  %1052 = vst [vmem:[%s740 + $0x4d8] sm:$0xff] %v1051
                  %v1053 = vld [vmem:[%s739 + $0x9c0] sm:$0xff]
                  %1054 = vst [vmem:[%s740 + $0x4e0] sm:$0xff] %v1053
                  %v1055 = vld [vmem:[%s739 + $0x9d0] sm:$0xff]
                  %1056 = vst [vmem:[%s740 + $0x4e8] sm:$0xff] %v1055
                  %v1057 = vld [vmem:[%s739 + $0x9e0] sm:$0xff]
                  %1058 = vst [vmem:[%s740 + $0x4f0] sm:$0xff] %v1057
                  %v1059 = vld [vmem:[%s739 + $0x9f0] sm:$0xff]
                  %1060 = vst [vmem:[%s740 + $0x4f8] sm:$0xff] %v1059
                  %v1061 = vld [vmem:[%s739 + $0xa00] sm:$0xff]
                  %1062 = vst [vmem:[%s740 + $0x500] sm:$0xff] %v1061
                  %v1063 = vld [vmem:[%s739 + $0xa10] sm:$0xff]
                  %1064 = vst [vmem:[%s740 + $0x508] sm:$0xff] %v1063
                  %v1065 = vld [vmem:[%s739 + $0xa20] sm:$0xff]
                  %1066 = vst [vmem:[%s740 + $0x510] sm:$0xff] %v1065
                  %v1067 = vld [vmem:[%s739 + $0xa30] sm:$0xff]
                  %1068 = vst [vmem:[%s740 + $0x518] sm:$0xff] %v1067
                  %v1069 = vld [vmem:[%s739 + $0xa40] sm:$0xff]
                  %1070 = vst [vmem:[%s740 + $0x520] sm:$0xff] %v1069
                  %v1071 = vld [vmem:[%s739 + $0xa50] sm:$0xff]
                  %1072 = vst [vmem:[%s740 + $0x528] sm:$0xff] %v1071
                  %v1073 = vld [vmem:[%s739 + $0xa60] sm:$0xff]
                  %1074 = vst [vmem:[%s740 + $0x530] sm:$0xff] %v1073
                  %v1075 = vld [vmem:[%s739 + $0xa70] sm:$0xff]
                  %1076 = vst [vmem:[%s740 + $0x538] sm:$0xff] %v1075
                  %v1077 = vld [vmem:[%s739 + $0xa80] sm:$0xff]
                  %1078 = vst [vmem:[%s740 + $0x540] sm:$0xff] %v1077
                  %v1079 = vld [vmem:[%s739 + $0xa90] sm:$0xff]
                  %1080 = vst [vmem:[%s740 + $0x548] sm:$0xff] %v1079
                  %v1081 = vld [vmem:[%s739 + $0xaa0] sm:$0xff]
                  %1082 = vst [vmem:[%s740 + $0x550] sm:$0xff] %v1081
                  %v1083 = vld [vmem:[%s739 + $0xab0] sm:$0xff]
                  %1084 = vst [vmem:[%s740 + $0x558] sm:$0xff] %v1083
                  %v1085 = vld [vmem:[%s739 + $0xac0] sm:$0xff]
                  %1086 = vst [vmem:[%s740 + $0x560] sm:$0xff] %v1085
                  %v1087 = vld [vmem:[%s739 + $0xad0] sm:$0xff]
                  %1088 = vst [vmem:[%s740 + $0x568] sm:$0xff] %v1087
                  %v1089 = vld [vmem:[%s739 + $0xae0] sm:$0xff]
                  %1090 = vst [vmem:[%s740 + $0x570] sm:$0xff] %v1089
                  %v1091 = vld [vmem:[%s739 + $0xaf0] sm:$0xff]
                  %1092 = vst [vmem:[%s740 + $0x578] sm:$0xff] %v1091
                  %v1093 = vld [vmem:[%s739 + $0xb00] sm:$0xff]
                  %1094 = vst [vmem:[%s740 + $0x580] sm:$0xff] %v1093
                  %v1095 = vld [vmem:[%s739 + $0xb10] sm:$0xff]
                  %1096 = vst [vmem:[%s740 + $0x588] sm:$0xff] %v1095
                  %v1097 = vld [vmem:[%s739 + $0xb20] sm:$0xff]
                  %1098 = vst [vmem:[%s740 + $0x590] sm:$0xff] %v1097
                  %v1099 = vld [vmem:[%s739 + $0xb30] sm:$0xff]
                  %1100 = vst [vmem:[%s740 + $0x598] sm:$0xff] %v1099
                  %v1101 = vld [vmem:[%s739 + $0xb40] sm:$0xff]
                  %1102 = vst [vmem:[%s740 + $0x5a0] sm:$0xff] %v1101
                  %v1103 = vld [vmem:[%s739 + $0xb50] sm:$0xff]
                  %1104 = vst [vmem:[%s740 + $0x5a8] sm:$0xff] %v1103
                  %v1105 = vld [vmem:[%s739 + $0xb60] sm:$0xff]
                  %1106 = vst [vmem:[%s740 + $0x5b0] sm:$0xff] %v1105
                  %v1107 = vld [vmem:[%s739 + $0xb70] sm:$0xff]
                  %1108 = vst [vmem:[%s740 + $0x5b8] sm:$0xff] %v1107
                  %v1109 = vld [vmem:[%s739 + $0xb80] sm:$0xff]
                  %1110 = vst [vmem:[%s740 + $0x5c0] sm:$0xff] %v1109
                  %v1111 = vld [vmem:[%s739 + $0xb90] sm:$0xff]
                  %1112 = vst [vmem:[%s740 + $0x5c8] sm:$0xff] %v1111
                  %v1113 = vld [vmem:[%s739 + $0xba0] sm:$0xff]
                  %1114 = vst [vmem:[%s740 + $0x5d0] sm:$0xff] %v1113
                  %v1115 = vld [vmem:[%s739 + $0xbb0] sm:$0xff]
                  %1116 = vst [vmem:[%s740 + $0x5d8] sm:$0xff] %v1115
                  %v1117 = vld [vmem:[%s739 + $0xbc0] sm:$0xff]
                  %1118 = vst [vmem:[%s740 + $0x5e0] sm:$0xff] %v1117
                  %v1119 = vld [vmem:[%s739 + $0xbd0] sm:$0xff]
                  %1120 = vst [vmem:[%s740 + $0x5e8] sm:$0xff] %v1119
                  %v1121 = vld [vmem:[%s739 + $0xbe0] sm:$0xff]
                  %1122 = vst [vmem:[%s740 + $0x5f0] sm:$0xff] %v1121
                  %v1123 = vld [vmem:[%s739 + $0xbf0] sm:$0xff]
                  %1124 = vst [vmem:[%s740 + $0x5f8] sm:$0xff] %v1123
                  %v1125 = vld [vmem:[%s739 + $0xc00] sm:$0xff]
                  %1126 = vst [vmem:[%s740 + $0x600] sm:$0xff] %v1125
                  %v1127 = vld [vmem:[%s739 + $0xc10] sm:$0xff]
                  %1128 = vst [vmem:[%s740 + $0x608] sm:$0xff] %v1127
                  %v1129 = vld [vmem:[%s739 + $0xc20] sm:$0xff]
                  %1130 = vst [vmem:[%s740 + $0x610] sm:$0xff] %v1129
                  %v1131 = vld [vmem:[%s739 + $0xc30] sm:$0xff]
                  %1132 = vst [vmem:[%s740 + $0x618] sm:$0xff] %v1131
                  %v1133 = vld [vmem:[%s739 + $0xc40] sm:$0xff]
                  %1134 = vst [vmem:[%s740 + $0x620] sm:$0xff] %v1133
                  %v1135 = vld [vmem:[%s739 + $0xc50] sm:$0xff]
                  %1136 = vst [vmem:[%s740 + $0x628] sm:$0xff] %v1135
                  %v1137 = vld [vmem:[%s739 + $0xc60] sm:$0xff]
                  %1138 = vst [vmem:[%s740 + $0x630] sm:$0xff] %v1137
                  %v1139 = vld [vmem:[%s739 + $0xc70] sm:$0xff]
                  %1140 = vst [vmem:[%s740 + $0x638] sm:$0xff] %v1139
                  %v1141 = vld [vmem:[%s739 + $0xc80] sm:$0xff]
                  %1142 = vst [vmem:[%s740 + $0x640] sm:$0xff] %v1141
                  %v1143 = vld [vmem:[%s739 + $0xc90] sm:$0xff]
                  %1144 = vst [vmem:[%s740 + $0x648] sm:$0xff] %v1143
                  %v1145 = vld [vmem:[%s739 + $0xca0] sm:$0xff]
                  %1146 = vst [vmem:[%s740 + $0x650] sm:$0xff] %v1145
                  %v1147 = vld [vmem:[%s739 + $0xcb0] sm:$0xff]
                  %1148 = vst [vmem:[%s740 + $0x658] sm:$0xff] %v1147
                  %v1149 = vld [vmem:[%s739 + $0xcc0] sm:$0xff]
                  %1150 = vst [vmem:[%s740 + $0x660] sm:$0xff] %v1149
                  %v1151 = vld [vmem:[%s739 + $0xcd0] sm:$0xff]
                  %1152 = vst [vmem:[%s740 + $0x668] sm:$0xff] %v1151
                  %v1153 = vld [vmem:[%s739 + $0xce0] sm:$0xff]
                  %1154 = vst [vmem:[%s740 + $0x670] sm:$0xff] %v1153
                  %v1155 = vld [vmem:[%s739 + $0xcf0] sm:$0xff]
                  %1156 = vst [vmem:[%s740 + $0x678] sm:$0xff] %v1155
                  %v1157 = vld [vmem:[%s739 + $0xd00] sm:$0xff]
                  %1158 = vst [vmem:[%s740 + $0x680] sm:$0xff] %v1157
                  %v1159 = vld [vmem:[%s739 + $0xd10] sm:$0xff]
                  %1160 = vst [vmem:[%s740 + $0x688] sm:$0xff] %v1159
                  %v1161 = vld [vmem:[%s739 + $0xd20] sm:$0xff]
                  %1162 = vst [vmem:[%s740 + $0x690] sm:$0xff] %v1161
                  %v1163 = vld [vmem:[%s739 + $0xd30] sm:$0xff]
                  %1164 = vst [vmem:[%s740 + $0x698] sm:$0xff] %v1163
                  %v1165 = vld [vmem:[%s739 + $0xd40] sm:$0xff]
                  %1166 = vst [vmem:[%s740 + $0x6a0] sm:$0xff] %v1165
                  %v1167 = vld [vmem:[%s739 + $0xd50] sm:$0xff]
                  %1168 = vst [vmem:[%s740 + $0x6a8] sm:$0xff] %v1167
                  %v1169 = vld [vmem:[%s739 + $0xd60] sm:$0xff]
                  %1170 = vst [vmem:[%s740 + $0x6b0] sm:$0xff] %v1169
                  %v1171 = vld [vmem:[%s739 + $0xd70] sm:$0xff]
                  %1172 = vst [vmem:[%s740 + $0x6b8] sm:$0xff] %v1171
                  %v1173 = vld [vmem:[%s739 + $0xd80] sm:$0xff]
                  %1174 = vst [vmem:[%s740 + $0x6c0] sm:$0xff] %v1173
                  %v1175 = vld [vmem:[%s739 + $0xd90] sm:$0xff]
                  %1176 = vst [vmem:[%s740 + $0x6c8] sm:$0xff] %v1175
                  %v1177 = vld [vmem:[%s739 + $0xda0] sm:$0xff]
                  %1178 = vst [vmem:[%s740 + $0x6d0] sm:$0xff] %v1177
                  %v1179 = vld [vmem:[%s739 + $0xdb0] sm:$0xff]
                  %1180 = vst [vmem:[%s740 + $0x6d8] sm:$0xff] %v1179
                  %v1181 = vld [vmem:[%s739 + $0xdc0] sm:$0xff]
                  %1182 = vst [vmem:[%s740 + $0x6e0] sm:$0xff] %v1181
                  %v1183 = vld [vmem:[%s739 + $0xdd0] sm:$0xff]
                  %1184 = vst [vmem:[%s740 + $0x6e8] sm:$0xff] %v1183
                  %v1185 = vld [vmem:[%s739 + $0xde0] sm:$0xff]
                  %1186 = vst [vmem:[%s740 + $0x6f0] sm:$0xff] %v1185
                  %v1187 = vld [vmem:[%s739 + $0xdf0] sm:$0xff]
                  %1188 = vst [vmem:[%s740 + $0x6f8] sm:$0xff] %v1187
                  %v1189 = vld [vmem:[%s739 + $0xe00] sm:$0xff]
                  %1190 = vst [vmem:[%s740 + $0x700] sm:$0xff] %v1189
                  %v1191 = vld [vmem:[%s739 + $0xe10] sm:$0xff]
                  %1192 = vst [vmem:[%s740 + $0x708] sm:$0xff] %v1191
                  %v1193 = vld [vmem:[%s739 + $0xe20] sm:$0xff]
                  %1194 = vst [vmem:[%s740 + $0x710] sm:$0xff] %v1193
                  %v1195 = vld [vmem:[%s739 + $0xe30] sm:$0xff]
                  %1196 = vst [vmem:[%s740 + $0x718] sm:$0xff] %v1195
                  %v1197 = vld [vmem:[%s739 + $0xe40] sm:$0xff]
                  %1198 = vst [vmem:[%s740 + $0x720] sm:$0xff] %v1197
                  %v1199 = vld [vmem:[%s739 + $0xe50] sm:$0xff]
                  %1200 = vst [vmem:[%s740 + $0x728] sm:$0xff] %v1199
                  %v1201 = vld [vmem:[%s739 + $0xe60] sm:$0xff]
                  %1202 = vst [vmem:[%s740 + $0x730] sm:$0xff] %v1201
                  %v1203 = vld [vmem:[%s739 + $0xe70] sm:$0xff]
                  %1204 = vst [vmem:[%s740 + $0x738] sm:$0xff] %v1203
                  %v1205 = vld [vmem:[%s739 + $0xe80] sm:$0xff]
                  %1206 = vst [vmem:[%s740 + $0x740] sm:$0xff] %v1205
                  %v1207 = vld [vmem:[%s739 + $0xe90] sm:$0xff]
                  %1208 = vst [vmem:[%s740 + $0x748] sm:$0xff] %v1207
                  %v1209 = vld [vmem:[%s739 + $0xea0] sm:$0xff]
                  %1210 = vst [vmem:[%s740 + $0x750] sm:$0xff] %v1209
                  %v1211 = vld [vmem:[%s739 + $0xeb0] sm:$0xff]
                  %1212 = vst [vmem:[%s740 + $0x758] sm:$0xff] %v1211
                  %v1213 = vld [vmem:[%s739 + $0xec0] sm:$0xff]
                  %1214 = vst [vmem:[%s740 + $0x760] sm:$0xff] %v1213
                  %v1215 = vld [vmem:[%s739 + $0xed0] sm:$0xff]
                  %1216 = vst [vmem:[%s740 + $0x768] sm:$0xff] %v1215
                  %v1217 = vld [vmem:[%s739 + $0xee0] sm:$0xff]
                  %1218 = vst [vmem:[%s740 + $0x770] sm:$0xff] %v1217
                  %v1219 = vld [vmem:[%s739 + $0xef0] sm:$0xff]
                  %1220 = vst [vmem:[%s740 + $0x778] sm:$0xff] %v1219
                  %v1221 = vld [vmem:[%s739 + $0xf00] sm:$0xff]
                  %1222 = vst [vmem:[%s740 + $0x780] sm:$0xff] %v1221
                  %v1223 = vld [vmem:[%s739 + $0xf10] sm:$0xff]
                  %1224 = vst [vmem:[%s740 + $0x788] sm:$0xff] %v1223
                  %v1225 = vld [vmem:[%s739 + $0xf20] sm:$0xff]
                  %1226 = vst [vmem:[%s740 + $0x790] sm:$0xff] %v1225
                  %v1227 = vld [vmem:[%s739 + $0xf30] sm:$0xff]
                  %1228 = vst [vmem:[%s740 + $0x798] sm:$0xff] %v1227
                  %v1229 = vld [vmem:[%s739 + $0xf40] sm:$0xff]
                  %1230 = vst [vmem:[%s740 + $0x7a0] sm:$0xff] %v1229
                  %v1231 = vld [vmem:[%s739 + $0xf50] sm:$0xff]
                  %1232 = vst [vmem:[%s740 + $0x7a8] sm:$0xff] %v1231
                  %v1233 = vld [vmem:[%s739 + $0xf60] sm:$0xff]
                  %1234 = vst [vmem:[%s740 + $0x7b0] sm:$0xff] %v1233
                  %v1235 = vld [vmem:[%s739 + $0xf70] sm:$0xff]
                  %1236 = vst [vmem:[%s740 + $0x7b8] sm:$0xff] %v1235
                  %v1237 = vld [vmem:[%s739 + $0xf80] sm:$0xff]
                  %1238 = vst [vmem:[%s740 + $0x7c0] sm:$0xff] %v1237
                  %v1239 = vld [vmem:[%s739 + $0xf90] sm:$0xff]
                  %1240 = vst [vmem:[%s740 + $0x7c8] sm:$0xff] %v1239
                  %v1241 = vld [vmem:[%s739 + $0xfa0] sm:$0xff]
                  %1242 = vst [vmem:[%s740 + $0x7d0] sm:$0xff] %v1241
                  %v1243 = vld [vmem:[%s739 + $0xfb0] sm:$0xff]
                  %1244 = vst [vmem:[%s740 + $0x7d8] sm:$0xff] %v1243
                  %v1245 = vld [vmem:[%s739 + $0xfc0] sm:$0xff]
                  %1246 = vst [vmem:[%s740 + $0x7e0] sm:$0xff] %v1245
                  %v1247 = vld [vmem:[%s739 + $0xfd0] sm:$0xff]
                  %1248 = vst [vmem:[%s740 + $0x7e8] sm:$0xff] %v1247
                  %v1249 = vld [vmem:[%s739 + $0xfe0] sm:$0xff]
                  %1250 = vst [vmem:[%s740 + $0x7f0] sm:$0xff] %v1249
                  %v1251 = vld [vmem:[%s739 + $0xff0] sm:$0xff]
                  %1252 = vst [vmem:[%s740 + $0x7f8] sm:$0xff] %v1251
                  %v1253 = vld [vmem:[%s739 + $0x1000] sm:$0xff]
                  %1254 = vst [vmem:[%s740 + $0x800] sm:$0xff] %v1253
                  %v1255 = vld [vmem:[%s739 + $0x1010] sm:$0xff]
                  %1256 = vst [vmem:[%s740 + $0x808] sm:$0xff] %v1255
                  %v1257 = vld [vmem:[%s739 + $0x1020] sm:$0xff]
                  %1258 = vst [vmem:[%s740 + $0x810] sm:$0xff] %v1257
                  %v1259 = vld [vmem:[%s739 + $0x1030] sm:$0xff]
                  %1260 = vst [vmem:[%s740 + $0x818] sm:$0xff] %v1259
                  %v1261 = vld [vmem:[%s739 + $0x1040] sm:$0xff]
                  %1262 = vst [vmem:[%s740 + $0x820] sm:$0xff] %v1261
                  %v1263 = vld [vmem:[%s739 + $0x1050] sm:$0xff]
                  %1264 = vst [vmem:[%s740 + $0x828] sm:$0xff] %v1263
                  %v1265 = vld [vmem:[%s739 + $0x1060] sm:$0xff]
                  %1266 = vst [vmem:[%s740 + $0x830] sm:$0xff] %v1265
                  %v1267 = vld [vmem:[%s739 + $0x1070] sm:$0xff]
                  %1268 = vst [vmem:[%s740 + $0x838] sm:$0xff] %v1267
                  %v1269 = vld [vmem:[%s739 + $0x1080] sm:$0xff]
                  %1270 = vst [vmem:[%s740 + $0x840] sm:$0xff] %v1269
                  %v1271 = vld [vmem:[%s739 + $0x1090] sm:$0xff]
                  %1272 = vst [vmem:[%s740 + $0x848] sm:$0xff] %v1271
                  %v1273 = vld [vmem:[%s739 + $0x10a0] sm:$0xff]
                  %1274 = vst [vmem:[%s740 + $0x850] sm:$0xff] %v1273
                  %v1275 = vld [vmem:[%s739 + $0x10b0] sm:$0xff]
                  %1276 = vst [vmem:[%s740 + $0x858] sm:$0xff] %v1275
                  %v1277 = vld [vmem:[%s739 + $0x10c0] sm:$0xff]
                  %1278 = vst [vmem:[%s740 + $0x860] sm:$0xff] %v1277
                  %v1279 = vld [vmem:[%s739 + $0x10d0] sm:$0xff]
                  %1280 = vst [vmem:[%s740 + $0x868] sm:$0xff] %v1279
                  %v1281 = vld [vmem:[%s739 + $0x10e0] sm:$0xff]
                  %1282 = vst [vmem:[%s740 + $0x870] sm:$0xff] %v1281
                  %v1283 = vld [vmem:[%s739 + $0x10f0] sm:$0xff]
                  %1284 = vst [vmem:[%s740 + $0x878] sm:$0xff] %v1283
                  %v1285 = vld [vmem:[%s739 + $0x1100] sm:$0xff]
                  %1286 = vst [vmem:[%s740 + $0x880] sm:$0xff] %v1285
                  %v1287 = vld [vmem:[%s739 + $0x1110] sm:$0xff]
                  %1288 = vst [vmem:[%s740 + $0x888] sm:$0xff] %v1287
                  %v1289 = vld [vmem:[%s739 + $0x1120] sm:$0xff]
                  %1290 = vst [vmem:[%s740 + $0x890] sm:$0xff] %v1289
                  %v1291 = vld [vmem:[%s739 + $0x1130] sm:$0xff]
                  %1292 = vst [vmem:[%s740 + $0x898] sm:$0xff] %v1291
                  %v1293 = vld [vmem:[%s739 + $0x1140] sm:$0xff]
                  %1294 = vst [vmem:[%s740 + $0x8a0] sm:$0xff] %v1293
                  %v1295 = vld [vmem:[%s739 + $0x1150] sm:$0xff]
                  %1296 = vst [vmem:[%s740 + $0x8a8] sm:$0xff] %v1295
                  %v1297 = vld [vmem:[%s739 + $0x1160] sm:$0xff]
                  %1298 = vst [vmem:[%s740 + $0x8b0] sm:$0xff] %v1297
                  %v1299 = vld [vmem:[%s739 + $0x1170] sm:$0xff]
                  %1300 = vst [vmem:[%s740 + $0x8b8] sm:$0xff] %v1299
                  %v1301 = vld [vmem:[%s739 + $0x1180] sm:$0xff]
                  %1302 = vst [vmem:[%s740 + $0x8c0] sm:$0xff] %v1301
                  %v1303 = vld [vmem:[%s739 + $0x1190] sm:$0xff]
                  %1304 = vst [vmem:[%s740 + $0x8c8] sm:$0xff] %v1303
                  %v1305 = vld [vmem:[%s739 + $0x11a0] sm:$0xff]
                  %1306 = vst [vmem:[%s740 + $0x8d0] sm:$0xff] %v1305
                  %v1307 = vld [vmem:[%s739 + $0x11b0] sm:$0xff]
                  %1308 = vst [vmem:[%s740 + $0x8d8] sm:$0xff] %v1307
                  %v1309 = vld [vmem:[%s739 + $0x11c0] sm:$0xff]
                  %1310 = vst [vmem:[%s740 + $0x8e0] sm:$0xff] %v1309
                  %v1311 = vld [vmem:[%s739 + $0x11d0] sm:$0xff]
                  %1312 = vst [vmem:[%s740 + $0x8e8] sm:$0xff] %v1311
                  %v1313 = vld [vmem:[%s739 + $0x11e0] sm:$0xff]
                  %1314 = vst [vmem:[%s740 + $0x8f0] sm:$0xff] %v1313
                  %v1315 = vld [vmem:[%s739 + $0x11f0] sm:$0xff]
                  %1316 = vst [vmem:[%s740 + $0x8f8] sm:$0xff] %v1315
                $region52: #{cnn_forward.8} parent=46 // loop_footer
                  %s738 = sadd.s32 1, %s734
                $region53: #{cnn_forward.8} parent=46 // loop_footer_branch
                  %733 = sbr.rel target = $region49
                $region54: #{cnn_forward.8} parent=46 // loop_exit
                  _
              $region47: #{cnn_forward.8} parent=31 // pred_fallthru
                _
              // Predicated region
              $region55: #{cnn_forward.8} parent=31 // pred_check
                _
              $region56: #{cnn_forward.8} parent=31 // pred_check_branch
                %1318 = sbr.rel target = $region58
              $region57: #{cnn_forward.8} parent=31 // pred_region
                _
              $region58: #{cnn_forward.8} parent=31 // pred_fallthru
                _
            $region32: #{cnn_forward.8} parent=27 // pred_fallthru
              _
            // Predicated region
            $region33: #{cnn_forward.8} parent=27 // pred_check
              _
            $region34: #{cnn_forward.8} parent=27 // pred_check_branch
              %145 = sbr.rel target = $region36
            $region35: #{cnn_forward.8} parent=27 // pred_region
              loop: start=0, step=1, limit=1
              $region37: #{cnn_forward.8} parent=35 // loop_pre_header
                _
              $region38: #{cnn_forward.8} parent=35 // loop_header
                %s148 = sphi 0, %s152
                %p149 = scmp.ge.s32.totalorder %s148, 1
                %s153 = sphi %s139, %s139
                %s154 = sphi %s136, %s136
              $region39: #{cnn_forward.8} parent=35 // loop_header_branch
                %151 = sbr.rel (%p149) target = $region43
              $region40: #{cnn_forward.8} parent=35 // loop_body
                %v155 = vld [vmem:[%s153] sm:$0xff]
                %156 = vst [vmem:[%s154] sm:$0xff] %v155
                %v157 = vld [vmem:[%s153 + $0x10] sm:$0xff]
                %158 = vst [vmem:[%s154 + $0x8] sm:$0xff] %v157
                %v159 = vld [vmem:[%s153 + $0x20] sm:$0xff]
                %160 = vst [vmem:[%s154 + $0x10] sm:$0xff] %v159
                %v161 = vld [vmem:[%s153 + $0x30] sm:$0xff]
                %162 = vst [vmem:[%s154 + $0x18] sm:$0xff] %v161
                %v163 = vld [vmem:[%s153 + $0x40] sm:$0xff]
                %164 = vst [vmem:[%s154 + $0x20] sm:$0xff] %v163
                %v165 = vld [vmem:[%s153 + $0x50] sm:$0xff]
                %166 = vst [vmem:[%s154 + $0x28] sm:$0xff] %v165
                %v167 = vld [vmem:[%s153 + $0x60] sm:$0xff]
                %168 = vst [vmem:[%s154 + $0x30] sm:$0xff] %v167
                %v169 = vld [vmem:[%s153 + $0x70] sm:$0xff]
                %170 = vst [vmem:[%s154 + $0x38] sm:$0xff] %v169
                %v171 = vld [vmem:[%s153 + $0x80] sm:$0xff]
                %172 = vst [vmem:[%s154 + $0x40] sm:$0xff] %v171
                %v173 = vld [vmem:[%s153 + $0x90] sm:$0xff]
                %174 = vst [vmem:[%s154 + $0x48] sm:$0xff] %v173
                %v175 = vld [vmem:[%s153 + $0xa0] sm:$0xff]
                %176 = vst [vmem:[%s154 + $0x50] sm:$0xff] %v175
                %v177 = vld [vmem:[%s153 + $0xb0] sm:$0xff]
                %178 = vst [vmem:[%s154 + $0x58] sm:$0xff] %v177
                %v179 = vld [vmem:[%s153 + $0xc0] sm:$0xff]
                %180 = vst [vmem:[%s154 + $0x60] sm:$0xff] %v179
                %v181 = vld [vmem:[%s153 + $0xd0] sm:$0xff]
                %182 = vst [vmem:[%s154 + $0x68] sm:$0xff] %v181
                %v183 = vld [vmem:[%s153 + $0xe0] sm:$0xff]
                %184 = vst [vmem:[%s154 + $0x70] sm:$0xff] %v183
                %v185 = vld [vmem:[%s153 + $0xf0] sm:$0xff]
                %186 = vst [vmem:[%s154 + $0x78] sm:$0xff] %v185
                %v187 = vld [vmem:[%s153 + $0x100] sm:$0xff]
                %188 = vst [vmem:[%s154 + $0x80] sm:$0xff] %v187
                %v189 = vld [vmem:[%s153 + $0x110] sm:$0xff]
                %190 = vst [vmem:[%s154 + $0x88] sm:$0xff] %v189
                %v191 = vld [vmem:[%s153 + $0x120] sm:$0xff]
                %192 = vst [vmem:[%s154 + $0x90] sm:$0xff] %v191
                %v193 = vld [vmem:[%s153 + $0x130] sm:$0xff]
                %194 = vst [vmem:[%s154 + $0x98] sm:$0xff] %v193
                %v195 = vld [vmem:[%s153 + $0x140] sm:$0xff]
                %196 = vst [vmem:[%s154 + $0xa0] sm:$0xff] %v195
                %v197 = vld [vmem:[%s153 + $0x150] sm:$0xff]
                %198 = vst [vmem:[%s154 + $0xa8] sm:$0xff] %v197
                %v199 = vld [vmem:[%s153 + $0x160] sm:$0xff]
                %200 = vst [vmem:[%s154 + $0xb0] sm:$0xff] %v199
                %v201 = vld [vmem:[%s153 + $0x170] sm:$0xff]
                %202 = vst [vmem:[%s154 + $0xb8] sm:$0xff] %v201
                %v203 = vld [vmem:[%s153 + $0x180] sm:$0xff]
                %204 = vst [vmem:[%s154 + $0xc0] sm:$0xff] %v203
                %v205 = vld [vmem:[%s153 + $0x190] sm:$0xff]
                %206 = vst [vmem:[%s154 + $0xc8] sm:$0xff] %v205
                %v207 = vld [vmem:[%s153 + $0x1a0] sm:$0xff]
                %208 = vst [vmem:[%s154 + $0xd0] sm:$0xff] %v207
                %v209 = vld [vmem:[%s153 + $0x1b0] sm:$0xff]
                %210 = vst [vmem:[%s154 + $0xd8] sm:$0xff] %v209
                %v211 = vld [vmem:[%s153 + $0x1c0] sm:$0xff]
                %212 = vst [vmem:[%s154 + $0xe0] sm:$0xff] %v211
                %v213 = vld [vmem:[%s153 + $0x1d0] sm:$0xff]
                %214 = vst [vmem:[%s154 + $0xe8] sm:$0xff] %v213
                %v215 = vld [vmem:[%s153 + $0x1e0] sm:$0xff]
                %216 = vst [vmem:[%s154 + $0xf0] sm:$0xff] %v215
                %v217 = vld [vmem:[%s153 + $0x1f0] sm:$0xff]
                %218 = vst [vmem:[%s154 + $0xf8] sm:$0xff] %v217
                %v219 = vld [vmem:[%s153 + $0x200] sm:$0xff]
                %220 = vst [vmem:[%s154 + $0x100] sm:$0xff] %v219
                %v221 = vld [vmem:[%s153 + $0x210] sm:$0xff]
                %222 = vst [vmem:[%s154 + $0x108] sm:$0xff] %v221
                %v223 = vld [vmem:[%s153 + $0x220] sm:$0xff]
                %224 = vst [vmem:[%s154 + $0x110] sm:$0xff] %v223
                %v225 = vld [vmem:[%s153 + $0x230] sm:$0xff]
                %226 = vst [vmem:[%s154 + $0x118] sm:$0xff] %v225
                %v227 = vld [vmem:[%s153 + $0x240] sm:$0xff]
                %228 = vst [vmem:[%s154 + $0x120] sm:$0xff] %v227
                %v229 = vld [vmem:[%s153 + $0x250] sm:$0xff]
                %230 = vst [vmem:[%s154 + $0x128] sm:$0xff] %v229
                %v231 = vld [vmem:[%s153 + $0x260] sm:$0xff]
                %232 = vst [vmem:[%s154 + $0x130] sm:$0xff] %v231
                %v233 = vld [vmem:[%s153 + $0x270] sm:$0xff]
                %234 = vst [vmem:[%s154 + $0x138] sm:$0xff] %v233
                %v235 = vld [vmem:[%s153 + $0x280] sm:$0xff]
                %236 = vst [vmem:[%s154 + $0x140] sm:$0xff] %v235
                %v237 = vld [vmem:[%s153 + $0x290] sm:$0xff]
                %238 = vst [vmem:[%s154 + $0x148] sm:$0xff] %v237
                %v239 = vld [vmem:[%s153 + $0x2a0] sm:$0xff]
                %240 = vst [vmem:[%s154 + $0x150] sm:$0xff] %v239
                %v241 = vld [vmem:[%s153 + $0x2b0] sm:$0xff]
                %242 = vst [vmem:[%s154 + $0x158] sm:$0xff] %v241
                %v243 = vld [vmem:[%s153 + $0x2c0] sm:$0xff]
                %244 = vst [vmem:[%s154 + $0x160] sm:$0xff] %v243
                %v245 = vld [vmem:[%s153 + $0x2d0] sm:$0xff]
                %246 = vst [vmem:[%s154 + $0x168] sm:$0xff] %v245
                %v247 = vld [vmem:[%s153 + $0x2e0] sm:$0xff]
                %248 = vst [vmem:[%s154 + $0x170] sm:$0xff] %v247
                %v249 = vld [vmem:[%s153 + $0x2f0] sm:$0xff]
                %250 = vst [vmem:[%s154 + $0x178] sm:$0xff] %v249
                %v251 = vld [vmem:[%s153 + $0x300] sm:$0xff]
                %252 = vst [vmem:[%s154 + $0x180] sm:$0xff] %v251
                %v253 = vld [vmem:[%s153 + $0x310] sm:$0xff]
                %254 = vst [vmem:[%s154 + $0x188] sm:$0xff] %v253
                %v255 = vld [vmem:[%s153 + $0x320] sm:$0xff]
                %256 = vst [vmem:[%s154 + $0x190] sm:$0xff] %v255
                %v257 = vld [vmem:[%s153 + $0x330] sm:$0xff]
                %258 = vst [vmem:[%s154 + $0x198] sm:$0xff] %v257
                %v259 = vld [vmem:[%s153 + $0x340] sm:$0xff]
                %260 = vst [vmem:[%s154 + $0x1a0] sm:$0xff] %v259
                %v261 = vld [vmem:[%s153 + $0x350] sm:$0xff]
                %262 = vst [vmem:[%s154 + $0x1a8] sm:$0xff] %v261
                %v263 = vld [vmem:[%s153 + $0x360] sm:$0xff]
                %264 = vst [vmem:[%s154 + $0x1b0] sm:$0xff] %v263
                %v265 = vld [vmem:[%s153 + $0x370] sm:$0xff]
                %266 = vst [vmem:[%s154 + $0x1b8] sm:$0xff] %v265
                %v267 = vld [vmem:[%s153 + $0x380] sm:$0xff]
                %268 = vst [vmem:[%s154 + $0x1c0] sm:$0xff] %v267
                %v269 = vld [vmem:[%s153 + $0x390] sm:$0xff]
                %270 = vst [vmem:[%s154 + $0x1c8] sm:$0xff] %v269
                %v271 = vld [vmem:[%s153 + $0x3a0] sm:$0xff]
                %272 = vst [vmem:[%s154 + $0x1d0] sm:$0xff] %v271
                %v273 = vld [vmem:[%s153 + $0x3b0] sm:$0xff]
                %274 = vst [vmem:[%s154 + $0x1d8] sm:$0xff] %v273
                %v275 = vld [vmem:[%s153 + $0x3c0] sm:$0xff]
                %276 = vst [vmem:[%s154 + $0x1e0] sm:$0xff] %v275
                %v277 = vld [vmem:[%s153 + $0x3d0] sm:$0xff]
                %278 = vst [vmem:[%s154 + $0x1e8] sm:$0xff] %v277
                %v279 = vld [vmem:[%s153 + $0x3e0] sm:$0xff]
                %280 = vst [vmem:[%s154 + $0x1f0] sm:$0xff] %v279
                %v281 = vld [vmem:[%s153 + $0x3f0] sm:$0xff]
                %282 = vst [vmem:[%s154 + $0x1f8] sm:$0xff] %v281
                %v283 = vld [vmem:[%s153 + $0x400] sm:$0xff]
                %284 = vst [vmem:[%s154 + $0x200] sm:$0xff] %v283
                %v285 = vld [vmem:[%s153 + $0x410] sm:$0xff]
                %286 = vst [vmem:[%s154 + $0x208] sm:$0xff] %v285
                %v287 = vld [vmem:[%s153 + $0x420] sm:$0xff]
                %288 = vst [vmem:[%s154 + $0x210] sm:$0xff] %v287
                %v289 = vld [vmem:[%s153 + $0x430] sm:$0xff]
                %290 = vst [vmem:[%s154 + $0x218] sm:$0xff] %v289
                %v291 = vld [vmem:[%s153 + $0x440] sm:$0xff]
                %292 = vst [vmem:[%s154 + $0x220] sm:$0xff] %v291
                %v293 = vld [vmem:[%s153 + $0x450] sm:$0xff]
                %294 = vst [vmem:[%s154 + $0x228] sm:$0xff] %v293
                %v295 = vld [vmem:[%s153 + $0x460] sm:$0xff]
                %296 = vst [vmem:[%s154 + $0x230] sm:$0xff] %v295
                %v297 = vld [vmem:[%s153 + $0x470] sm:$0xff]
                %298 = vst [vmem:[%s154 + $0x238] sm:$0xff] %v297
                %v299 = vld [vmem:[%s153 + $0x480] sm:$0xff]
                %300 = vst [vmem:[%s154 + $0x240] sm:$0xff] %v299
                %v301 = vld [vmem:[%s153 + $0x490] sm:$0xff]
                %302 = vst [vmem:[%s154 + $0x248] sm:$0xff] %v301
                %v303 = vld [vmem:[%s153 + $0x4a0] sm:$0xff]
                %304 = vst [vmem:[%s154 + $0x250] sm:$0xff] %v303
                %v305 = vld [vmem:[%s153 + $0x4b0] sm:$0xff]
                %306 = vst [vmem:[%s154 + $0x258] sm:$0xff] %v305
                %v307 = vld [vmem:[%s153 + $0x4c0] sm:$0xff]
                %308 = vst [vmem:[%s154 + $0x260] sm:$0xff] %v307
                %v309 = vld [vmem:[%s153 + $0x4d0] sm:$0xff]
                %310 = vst [vmem:[%s154 + $0x268] sm:$0xff] %v309
                %v311 = vld [vmem:[%s153 + $0x4e0] sm:$0xff]
                %312 = vst [vmem:[%s154 + $0x270] sm:$0xff] %v311
                %v313 = vld [vmem:[%s153 + $0x4f0] sm:$0xff]
                %314 = vst [vmem:[%s154 + $0x278] sm:$0xff] %v313
                %v315 = vld [vmem:[%s153 + $0x500] sm:$0xff]
                %316 = vst [vmem:[%s154 + $0x280] sm:$0xff] %v315
                %v317 = vld [vmem:[%s153 + $0x510] sm:$0xff]
                %318 = vst [vmem:[%s154 + $0x288] sm:$0xff] %v317
                %v319 = vld [vmem:[%s153 + $0x520] sm:$0xff]
                %320 = vst [vmem:[%s154 + $0x290] sm:$0xff] %v319
                %v321 = vld [vmem:[%s153 + $0x530] sm:$0xff]
                %322 = vst [vmem:[%s154 + $0x298] sm:$0xff] %v321
                %v323 = vld [vmem:[%s153 + $0x540] sm:$0xff]
                %324 = vst [vmem:[%s154 + $0x2a0] sm:$0xff] %v323
                %v325 = vld [vmem:[%s153 + $0x550] sm:$0xff]
                %326 = vst [vmem:[%s154 + $0x2a8] sm:$0xff] %v325
                %v327 = vld [vmem:[%s153 + $0x560] sm:$0xff]
                %328 = vst [vmem:[%s154 + $0x2b0] sm:$0xff] %v327
                %v329 = vld [vmem:[%s153 + $0x570] sm:$0xff]
                %330 = vst [vmem:[%s154 + $0x2b8] sm:$0xff] %v329
                %v331 = vld [vmem:[%s153 + $0x580] sm:$0xff]
                %332 = vst [vmem:[%s154 + $0x2c0] sm:$0xff] %v331
                %v333 = vld [vmem:[%s153 + $0x590] sm:$0xff]
                %334 = vst [vmem:[%s154 + $0x2c8] sm:$0xff] %v333
                %v335 = vld [vmem:[%s153 + $0x5a0] sm:$0xff]
                %336 = vst [vmem:[%s154 + $0x2d0] sm:$0xff] %v335
                %v337 = vld [vmem:[%s153 + $0x5b0] sm:$0xff]
                %338 = vst [vmem:[%s154 + $0x2d8] sm:$0xff] %v337
                %v339 = vld [vmem:[%s153 + $0x5c0] sm:$0xff]
                %340 = vst [vmem:[%s154 + $0x2e0] sm:$0xff] %v339
                %v341 = vld [vmem:[%s153 + $0x5d0] sm:$0xff]
                %342 = vst [vmem:[%s154 + $0x2e8] sm:$0xff] %v341
                %v343 = vld [vmem:[%s153 + $0x5e0] sm:$0xff]
                %344 = vst [vmem:[%s154 + $0x2f0] sm:$0xff] %v343
                %v345 = vld [vmem:[%s153 + $0x5f0] sm:$0xff]
                %346 = vst [vmem:[%s154 + $0x2f8] sm:$0xff] %v345
                %v347 = vld [vmem:[%s153 + $0x600] sm:$0xff]
                %348 = vst [vmem:[%s154 + $0x300] sm:$0xff] %v347
                %v349 = vld [vmem:[%s153 + $0x610] sm:$0xff]
                %350 = vst [vmem:[%s154 + $0x308] sm:$0xff] %v349
                %v351 = vld [vmem:[%s153 + $0x620] sm:$0xff]
                %352 = vst [vmem:[%s154 + $0x310] sm:$0xff] %v351
                %v353 = vld [vmem:[%s153 + $0x630] sm:$0xff]
                %354 = vst [vmem:[%s154 + $0x318] sm:$0xff] %v353
                %v355 = vld [vmem:[%s153 + $0x640] sm:$0xff]
                %356 = vst [vmem:[%s154 + $0x320] sm:$0xff] %v355
                %v357 = vld [vmem:[%s153 + $0x650] sm:$0xff]
                %358 = vst [vmem:[%s154 + $0x328] sm:$0xff] %v357
                %v359 = vld [vmem:[%s153 + $0x660] sm:$0xff]
                %360 = vst [vmem:[%s154 + $0x330] sm:$0xff] %v359
                %v361 = vld [vmem:[%s153 + $0x670] sm:$0xff]
                %362 = vst [vmem:[%s154 + $0x338] sm:$0xff] %v361
                %v363 = vld [vmem:[%s153 + $0x680] sm:$0xff]
                %364 = vst [vmem:[%s154 + $0x340] sm:$0xff] %v363
                %v365 = vld [vmem:[%s153 + $0x690] sm:$0xff]
                %366 = vst [vmem:[%s154 + $0x348] sm:$0xff] %v365
                %v367 = vld [vmem:[%s153 + $0x6a0] sm:$0xff]
                %368 = vst [vmem:[%s154 + $0x350] sm:$0xff] %v367
                %v369 = vld [vmem:[%s153 + $0x6b0] sm:$0xff]
                %370 = vst [vmem:[%s154 + $0x358] sm:$0xff] %v369
                %v371 = vld [vmem:[%s153 + $0x6c0] sm:$0xff]
                %372 = vst [vmem:[%s154 + $0x360] sm:$0xff] %v371
                %v373 = vld [vmem:[%s153 + $0x6d0] sm:$0xff]
                %374 = vst [vmem:[%s154 + $0x368] sm:$0xff] %v373
                %v375 = vld [vmem:[%s153 + $0x6e0] sm:$0xff]
                %376 = vst [vmem:[%s154 + $0x370] sm:$0xff] %v375
                %v377 = vld [vmem:[%s153 + $0x6f0] sm:$0xff]
                %378 = vst [vmem:[%s154 + $0x378] sm:$0xff] %v377
                %v379 = vld [vmem:[%s153 + $0x700] sm:$0xff]
                %380 = vst [vmem:[%s154 + $0x380] sm:$0xff] %v379
                %v381 = vld [vmem:[%s153 + $0x710] sm:$0xff]
                %382 = vst [vmem:[%s154 + $0x388] sm:$0xff] %v381
                %v383 = vld [vmem:[%s153 + $0x720] sm:$0xff]
                %384 = vst [vmem:[%s154 + $0x390] sm:$0xff] %v383
                %v385 = vld [vmem:[%s153 + $0x730] sm:$0xff]
                %386 = vst [vmem:[%s154 + $0x398] sm:$0xff] %v385
                %v387 = vld [vmem:[%s153 + $0x740] sm:$0xff]
                %388 = vst [vmem:[%s154 + $0x3a0] sm:$0xff] %v387
                %v389 = vld [vmem:[%s153 + $0x750] sm:$0xff]
                %390 = vst [vmem:[%s154 + $0x3a8] sm:$0xff] %v389
                %v391 = vld [vmem:[%s153 + $0x760] sm:$0xff]
                %392 = vst [vmem:[%s154 + $0x3b0] sm:$0xff] %v391
                %v393 = vld [vmem:[%s153 + $0x770] sm:$0xff]
                %394 = vst [vmem:[%s154 + $0x3b8] sm:$0xff] %v393
                %v395 = vld [vmem:[%s153 + $0x780] sm:$0xff]
                %396 = vst [vmem:[%s154 + $0x3c0] sm:$0xff] %v395
                %v397 = vld [vmem:[%s153 + $0x790] sm:$0xff]
                %398 = vst [vmem:[%s154 + $0x3c8] sm:$0xff] %v397
                %v399 = vld [vmem:[%s153 + $0x7a0] sm:$0xff]
                %400 = vst [vmem:[%s154 + $0x3d0] sm:$0xff] %v399
                %v401 = vld [vmem:[%s153 + $0x7b0] sm:$0xff]
                %402 = vst [vmem:[%s154 + $0x3d8] sm:$0xff] %v401
                %v403 = vld [vmem:[%s153 + $0x7c0] sm:$0xff]
                %404 = vst [vmem:[%s154 + $0x3e0] sm:$0xff] %v403
                %v405 = vld [vmem:[%s153 + $0x7d0] sm:$0xff]
                %406 = vst [vmem:[%s154 + $0x3e8] sm:$0xff] %v405
                %v407 = vld [vmem:[%s153 + $0x7e0] sm:$0xff]
                %408 = vst [vmem:[%s154 + $0x3f0] sm:$0xff] %v407
                %v409 = vld [vmem:[%s153 + $0x7f0] sm:$0xff]
                %410 = vst [vmem:[%s154 + $0x3f8] sm:$0xff] %v409
                %v411 = vld [vmem:[%s153 + $0x800] sm:$0xff]
                %412 = vst [vmem:[%s154 + $0x400] sm:$0xff] %v411
                %v413 = vld [vmem:[%s153 + $0x810] sm:$0xff]
                %414 = vst [vmem:[%s154 + $0x408] sm:$0xff] %v413
                %v415 = vld [vmem:[%s153 + $0x820] sm:$0xff]
                %416 = vst [vmem:[%s154 + $0x410] sm:$0xff] %v415
                %v417 = vld [vmem:[%s153 + $0x830] sm:$0xff]
                %418 = vst [vmem:[%s154 + $0x418] sm:$0xff] %v417
                %v419 = vld [vmem:[%s153 + $0x840] sm:$0xff]
                %420 = vst [vmem:[%s154 + $0x420] sm:$0xff] %v419
                %v421 = vld [vmem:[%s153 + $0x850] sm:$0xff]
                %422 = vst [vmem:[%s154 + $0x428] sm:$0xff] %v421
                %v423 = vld [vmem:[%s153 + $0x860] sm:$0xff]
                %424 = vst [vmem:[%s154 + $0x430] sm:$0xff] %v423
                %v425 = vld [vmem:[%s153 + $0x870] sm:$0xff]
                %426 = vst [vmem:[%s154 + $0x438] sm:$0xff] %v425
                %v427 = vld [vmem:[%s153 + $0x880] sm:$0xff]
                %428 = vst [vmem:[%s154 + $0x440] sm:$0xff] %v427
                %v429 = vld [vmem:[%s153 + $0x890] sm:$0xff]
                %430 = vst [vmem:[%s154 + $0x448] sm:$0xff] %v429
                %v431 = vld [vmem:[%s153 + $0x8a0] sm:$0xff]
                %432 = vst [vmem:[%s154 + $0x450] sm:$0xff] %v431
                %v433 = vld [vmem:[%s153 + $0x8b0] sm:$0xff]
                %434 = vst [vmem:[%s154 + $0x458] sm:$0xff] %v433
                %v435 = vld [vmem:[%s153 + $0x8c0] sm:$0xff]
                %436 = vst [vmem:[%s154 + $0x460] sm:$0xff] %v435
                %v437 = vld [vmem:[%s153 + $0x8d0] sm:$0xff]
                %438 = vst [vmem:[%s154 + $0x468] sm:$0xff] %v437
                %v439 = vld [vmem:[%s153 + $0x8e0] sm:$0xff]
                %440 = vst [vmem:[%s154 + $0x470] sm:$0xff] %v439
                %v441 = vld [vmem:[%s153 + $0x8f0] sm:$0xff]
                %442 = vst [vmem:[%s154 + $0x478] sm:$0xff] %v441
                %v443 = vld [vmem:[%s153 + $0x900] sm:$0xff]
                %444 = vst [vmem:[%s154 + $0x480] sm:$0xff] %v443
                %v445 = vld [vmem:[%s153 + $0x910] sm:$0xff]
                %446 = vst [vmem:[%s154 + $0x488] sm:$0xff] %v445
                %v447 = vld [vmem:[%s153 + $0x920] sm:$0xff]
                %448 = vst [vmem:[%s154 + $0x490] sm:$0xff] %v447
                %v449 = vld [vmem:[%s153 + $0x930] sm:$0xff]
                %450 = vst [vmem:[%s154 + $0x498] sm:$0xff] %v449
                %v451 = vld [vmem:[%s153 + $0x940] sm:$0xff]
                %452 = vst [vmem:[%s154 + $0x4a0] sm:$0xff] %v451
                %v453 = vld [vmem:[%s153 + $0x950] sm:$0xff]
                %454 = vst [vmem:[%s154 + $0x4a8] sm:$0xff] %v453
                %v455 = vld [vmem:[%s153 + $0x960] sm:$0xff]
                %456 = vst [vmem:[%s154 + $0x4b0] sm:$0xff] %v455
                %v457 = vld [vmem:[%s153 + $0x970] sm:$0xff]
                %458 = vst [vmem:[%s154 + $0x4b8] sm:$0xff] %v457
                %v459 = vld [vmem:[%s153 + $0x980] sm:$0xff]
                %460 = vst [vmem:[%s154 + $0x4c0] sm:$0xff] %v459
                %v461 = vld [vmem:[%s153 + $0x990] sm:$0xff]
                %462 = vst [vmem:[%s154 + $0x4c8] sm:$0xff] %v461
                %v463 = vld [vmem:[%s153 + $0x9a0] sm:$0xff]
                %464 = vst [vmem:[%s154 + $0x4d0] sm:$0xff] %v463
                %v465 = vld [vmem:[%s153 + $0x9b0] sm:$0xff]
                %466 = vst [vmem:[%s154 + $0x4d8] sm:$0xff] %v465
                %v467 = vld [vmem:[%s153 + $0x9c0] sm:$0xff]
                %468 = vst [vmem:[%s154 + $0x4e0] sm:$0xff] %v467
                %v469 = vld [vmem:[%s153 + $0x9d0] sm:$0xff]
                %470 = vst [vmem:[%s154 + $0x4e8] sm:$0xff] %v469
                %v471 = vld [vmem:[%s153 + $0x9e0] sm:$0xff]
                %472 = vst [vmem:[%s154 + $0x4f0] sm:$0xff] %v471
                %v473 = vld [vmem:[%s153 + $0x9f0] sm:$0xff]
                %474 = vst [vmem:[%s154 + $0x4f8] sm:$0xff] %v473
                %v475 = vld [vmem:[%s153 + $0xa00] sm:$0xff]
                %476 = vst [vmem:[%s154 + $0x500] sm:$0xff] %v475
                %v477 = vld [vmem:[%s153 + $0xa10] sm:$0xff]
                %478 = vst [vmem:[%s154 + $0x508] sm:$0xff] %v477
                %v479 = vld [vmem:[%s153 + $0xa20] sm:$0xff]
                %480 = vst [vmem:[%s154 + $0x510] sm:$0xff] %v479
                %v481 = vld [vmem:[%s153 + $0xa30] sm:$0xff]
                %482 = vst [vmem:[%s154 + $0x518] sm:$0xff] %v481
                %v483 = vld [vmem:[%s153 + $0xa40] sm:$0xff]
                %484 = vst [vmem:[%s154 + $0x520] sm:$0xff] %v483
                %v485 = vld [vmem:[%s153 + $0xa50] sm:$0xff]
                %486 = vst [vmem:[%s154 + $0x528] sm:$0xff] %v485
                %v487 = vld [vmem:[%s153 + $0xa60] sm:$0xff]
                %488 = vst [vmem:[%s154 + $0x530] sm:$0xff] %v487
                %v489 = vld [vmem:[%s153 + $0xa70] sm:$0xff]
                %490 = vst [vmem:[%s154 + $0x538] sm:$0xff] %v489
                %v491 = vld [vmem:[%s153 + $0xa80] sm:$0xff]
                %492 = vst [vmem:[%s154 + $0x540] sm:$0xff] %v491
                %v493 = vld [vmem:[%s153 + $0xa90] sm:$0xff]
                %494 = vst [vmem:[%s154 + $0x548] sm:$0xff] %v493
                %v495 = vld [vmem:[%s153 + $0xaa0] sm:$0xff]
                %496 = vst [vmem:[%s154 + $0x550] sm:$0xff] %v495
                %v497 = vld [vmem:[%s153 + $0xab0] sm:$0xff]
                %498 = vst [vmem:[%s154 + $0x558] sm:$0xff] %v497
                %v499 = vld [vmem:[%s153 + $0xac0] sm:$0xff]
                %500 = vst [vmem:[%s154 + $0x560] sm:$0xff] %v499
                %v501 = vld [vmem:[%s153 + $0xad0] sm:$0xff]
                %502 = vst [vmem:[%s154 + $0x568] sm:$0xff] %v501
                %v503 = vld [vmem:[%s153 + $0xae0] sm:$0xff]
                %504 = vst [vmem:[%s154 + $0x570] sm:$0xff] %v503
                %v505 = vld [vmem:[%s153 + $0xaf0] sm:$0xff]
                %506 = vst [vmem:[%s154 + $0x578] sm:$0xff] %v505
                %v507 = vld [vmem:[%s153 + $0xb00] sm:$0xff]
                %508 = vst [vmem:[%s154 + $0x580] sm:$0xff] %v507
                %v509 = vld [vmem:[%s153 + $0xb10] sm:$0xff]
                %510 = vst [vmem:[%s154 + $0x588] sm:$0xff] %v509
                %v511 = vld [vmem:[%s153 + $0xb20] sm:$0xff]
                %512 = vst [vmem:[%s154 + $0x590] sm:$0xff] %v511
                %v513 = vld [vmem:[%s153 + $0xb30] sm:$0xff]
                %514 = vst [vmem:[%s154 + $0x598] sm:$0xff] %v513
                %v515 = vld [vmem:[%s153 + $0xb40] sm:$0xff]
                %516 = vst [vmem:[%s154 + $0x5a0] sm:$0xff] %v515
                %v517 = vld [vmem:[%s153 + $0xb50] sm:$0xff]
                %518 = vst [vmem:[%s154 + $0x5a8] sm:$0xff] %v517
                %v519 = vld [vmem:[%s153 + $0xb60] sm:$0xff]
                %520 = vst [vmem:[%s154 + $0x5b0] sm:$0xff] %v519
                %v521 = vld [vmem:[%s153 + $0xb70] sm:$0xff]
                %522 = vst [vmem:[%s154 + $0x5b8] sm:$0xff] %v521
                %v523 = vld [vmem:[%s153 + $0xb80] sm:$0xff]
                %524 = vst [vmem:[%s154 + $0x5c0] sm:$0xff] %v523
                %v525 = vld [vmem:[%s153 + $0xb90] sm:$0xff]
                %526 = vst [vmem:[%s154 + $0x5c8] sm:$0xff] %v525
                %v527 = vld [vmem:[%s153 + $0xba0] sm:$0xff]
                %528 = vst [vmem:[%s154 + $0x5d0] sm:$0xff] %v527
                %v529 = vld [vmem:[%s153 + $0xbb0] sm:$0xff]
                %530 = vst [vmem:[%s154 + $0x5d8] sm:$0xff] %v529
                %v531 = vld [vmem:[%s153 + $0xbc0] sm:$0xff]
                %532 = vst [vmem:[%s154 + $0x5e0] sm:$0xff] %v531
                %v533 = vld [vmem:[%s153 + $0xbd0] sm:$0xff]
                %534 = vst [vmem:[%s154 + $0x5e8] sm:$0xff] %v533
                %v535 = vld [vmem:[%s153 + $0xbe0] sm:$0xff]
                %536 = vst [vmem:[%s154 + $0x5f0] sm:$0xff] %v535
                %v537 = vld [vmem:[%s153 + $0xbf0] sm:$0xff]
                %538 = vst [vmem:[%s154 + $0x5f8] sm:$0xff] %v537
                %v539 = vld [vmem:[%s153 + $0xc00] sm:$0xff]
                %540 = vst [vmem:[%s154 + $0x600] sm:$0xff] %v539
                %v541 = vld [vmem:[%s153 + $0xc10] sm:$0xff]
                %542 = vst [vmem:[%s154 + $0x608] sm:$0xff] %v541
                %v543 = vld [vmem:[%s153 + $0xc20] sm:$0xff]
                %544 = vst [vmem:[%s154 + $0x610] sm:$0xff] %v543
                %v545 = vld [vmem:[%s153 + $0xc30] sm:$0xff]
                %546 = vst [vmem:[%s154 + $0x618] sm:$0xff] %v545
                %v547 = vld [vmem:[%s153 + $0xc40] sm:$0xff]
                %548 = vst [vmem:[%s154 + $0x620] sm:$0xff] %v547
                %v549 = vld [vmem:[%s153 + $0xc50] sm:$0xff]
                %550 = vst [vmem:[%s154 + $0x628] sm:$0xff] %v549
                %v551 = vld [vmem:[%s153 + $0xc60] sm:$0xff]
                %552 = vst [vmem:[%s154 + $0x630] sm:$0xff] %v551
                %v553 = vld [vmem:[%s153 + $0xc70] sm:$0xff]
                %554 = vst [vmem:[%s154 + $0x638] sm:$0xff] %v553
                %v555 = vld [vmem:[%s153 + $0xc80] sm:$0xff]
                %556 = vst [vmem:[%s154 + $0x640] sm:$0xff] %v555
                %v557 = vld [vmem:[%s153 + $0xc90] sm:$0xff]
                %558 = vst [vmem:[%s154 + $0x648] sm:$0xff] %v557
                %v559 = vld [vmem:[%s153 + $0xca0] sm:$0xff]
                %560 = vst [vmem:[%s154 + $0x650] sm:$0xff] %v559
                %v561 = vld [vmem:[%s153 + $0xcb0] sm:$0xff]
                %562 = vst [vmem:[%s154 + $0x658] sm:$0xff] %v561
                %v563 = vld [vmem:[%s153 + $0xcc0] sm:$0xff]
                %564 = vst [vmem:[%s154 + $0x660] sm:$0xff] %v563
                %v565 = vld [vmem:[%s153 + $0xcd0] sm:$0xff]
                %566 = vst [vmem:[%s154 + $0x668] sm:$0xff] %v565
                %v567 = vld [vmem:[%s153 + $0xce0] sm:$0xff]
                %568 = vst [vmem:[%s154 + $0x670] sm:$0xff] %v567
                %v569 = vld [vmem:[%s153 + $0xcf0] sm:$0xff]
                %570 = vst [vmem:[%s154 + $0x678] sm:$0xff] %v569
                %v571 = vld [vmem:[%s153 + $0xd00] sm:$0xff]
                %572 = vst [vmem:[%s154 + $0x680] sm:$0xff] %v571
                %v573 = vld [vmem:[%s153 + $0xd10] sm:$0xff]
                %574 = vst [vmem:[%s154 + $0x688] sm:$0xff] %v573
                %v575 = vld [vmem:[%s153 + $0xd20] sm:$0xff]
                %576 = vst [vmem:[%s154 + $0x690] sm:$0xff] %v575
                %v577 = vld [vmem:[%s153 + $0xd30] sm:$0xff]
                %578 = vst [vmem:[%s154 + $0x698] sm:$0xff] %v577
                %v579 = vld [vmem:[%s153 + $0xd40] sm:$0xff]
                %580 = vst [vmem:[%s154 + $0x6a0] sm:$0xff] %v579
                %v581 = vld [vmem:[%s153 + $0xd50] sm:$0xff]
                %582 = vst [vmem:[%s154 + $0x6a8] sm:$0xff] %v581
                %v583 = vld [vmem:[%s153 + $0xd60] sm:$0xff]
                %584 = vst [vmem:[%s154 + $0x6b0] sm:$0xff] %v583
                %v585 = vld [vmem:[%s153 + $0xd70] sm:$0xff]
                %586 = vst [vmem:[%s154 + $0x6b8] sm:$0xff] %v585
                %v587 = vld [vmem:[%s153 + $0xd80] sm:$0xff]
                %588 = vst [vmem:[%s154 + $0x6c0] sm:$0xff] %v587
                %v589 = vld [vmem:[%s153 + $0xd90] sm:$0xff]
                %590 = vst [vmem:[%s154 + $0x6c8] sm:$0xff] %v589
                %v591 = vld [vmem:[%s153 + $0xda0] sm:$0xff]
                %592 = vst [vmem:[%s154 + $0x6d0] sm:$0xff] %v591
                %v593 = vld [vmem:[%s153 + $0xdb0] sm:$0xff]
                %594 = vst [vmem:[%s154 + $0x6d8] sm:$0xff] %v593
                %v595 = vld [vmem:[%s153 + $0xdc0] sm:$0xff]
                %596 = vst [vmem:[%s154 + $0x6e0] sm:$0xff] %v595
                %v597 = vld [vmem:[%s153 + $0xdd0] sm:$0xff]
                %598 = vst [vmem:[%s154 + $0x6e8] sm:$0xff] %v597
                %v599 = vld [vmem:[%s153 + $0xde0] sm:$0xff]
                %600 = vst [vmem:[%s154 + $0x6f0] sm:$0xff] %v599
                %v601 = vld [vmem:[%s153 + $0xdf0] sm:$0xff]
                %602 = vst [vmem:[%s154 + $0x6f8] sm:$0xff] %v601
                %v603 = vld [vmem:[%s153 + $0xe00] sm:$0xff]
                %604 = vst [vmem:[%s154 + $0x700] sm:$0xff] %v603
                %v605 = vld [vmem:[%s153 + $0xe10] sm:$0xff]
                %606 = vst [vmem:[%s154 + $0x708] sm:$0xff] %v605
                %v607 = vld [vmem:[%s153 + $0xe20] sm:$0xff]
                %608 = vst [vmem:[%s154 + $0x710] sm:$0xff] %v607
                %v609 = vld [vmem:[%s153 + $0xe30] sm:$0xff]
                %610 = vst [vmem:[%s154 + $0x718] sm:$0xff] %v609
                %v611 = vld [vmem:[%s153 + $0xe40] sm:$0xff]
                %612 = vst [vmem:[%s154 + $0x720] sm:$0xff] %v611
                %v613 = vld [vmem:[%s153 + $0xe50] sm:$0xff]
                %614 = vst [vmem:[%s154 + $0x728] sm:$0xff] %v613
                %v615 = vld [vmem:[%s153 + $0xe60] sm:$0xff]
                %616 = vst [vmem:[%s154 + $0x730] sm:$0xff] %v615
                %v617 = vld [vmem:[%s153 + $0xe70] sm:$0xff]
                %618 = vst [vmem:[%s154 + $0x738] sm:$0xff] %v617
                %v619 = vld [vmem:[%s153 + $0xe80] sm:$0xff]
                %620 = vst [vmem:[%s154 + $0x740] sm:$0xff] %v619
                %v621 = vld [vmem:[%s153 + $0xe90] sm:$0xff]
                %622 = vst [vmem:[%s154 + $0x748] sm:$0xff] %v621
                %v623 = vld [vmem:[%s153 + $0xea0] sm:$0xff]
                %624 = vst [vmem:[%s154 + $0x750] sm:$0xff] %v623
                %v625 = vld [vmem:[%s153 + $0xeb0] sm:$0xff]
                %626 = vst [vmem:[%s154 + $0x758] sm:$0xff] %v625
                %v627 = vld [vmem:[%s153 + $0xec0] sm:$0xff]
                %628 = vst [vmem:[%s154 + $0x760] sm:$0xff] %v627
                %v629 = vld [vmem:[%s153 + $0xed0] sm:$0xff]
                %630 = vst [vmem:[%s154 + $0x768] sm:$0xff] %v629
                %v631 = vld [vmem:[%s153 + $0xee0] sm:$0xff]
                %632 = vst [vmem:[%s154 + $0x770] sm:$0xff] %v631
                %v633 = vld [vmem:[%s153 + $0xef0] sm:$0xff]
                %634 = vst [vmem:[%s154 + $0x778] sm:$0xff] %v633
                %v635 = vld [vmem:[%s153 + $0xf00] sm:$0xff]
                %636 = vst [vmem:[%s154 + $0x780] sm:$0xff] %v635
                %v637 = vld [vmem:[%s153 + $0xf10] sm:$0xff]
                %638 = vst [vmem:[%s154 + $0x788] sm:$0xff] %v637
                %v639 = vld [vmem:[%s153 + $0xf20] sm:$0xff]
                %640 = vst [vmem:[%s154 + $0x790] sm:$0xff] %v639
                %v641 = vld [vmem:[%s153 + $0xf30] sm:$0xff]
                %642 = vst [vmem:[%s154 + $0x798] sm:$0xff] %v641
                %v643 = vld [vmem:[%s153 + $0xf40] sm:$0xff]
                %644 = vst [vmem:[%s154 + $0x7a0] sm:$0xff] %v643
                %v645 = vld [vmem:[%s153 + $0xf50] sm:$0xff]
                %646 = vst [vmem:[%s154 + $0x7a8] sm:$0xff] %v645
                %v647 = vld [vmem:[%s153 + $0xf60] sm:$0xff]
                %648 = vst [vmem:[%s154 + $0x7b0] sm:$0xff] %v647
                %v649 = vld [vmem:[%s153 + $0xf70] sm:$0xff]
                %650 = vst [vmem:[%s154 + $0x7b8] sm:$0xff] %v649
                %v651 = vld [vmem:[%s153 + $0xf80] sm:$0xff]
                %652 = vst [vmem:[%s154 + $0x7c0] sm:$0xff] %v651
                %v653 = vld [vmem:[%s153 + $0xf90] sm:$0xff]
                %654 = vst [vmem:[%s154 + $0x7c8] sm:$0xff] %v653
                %v655 = vld [vmem:[%s153 + $0xfa0] sm:$0xff]
                %656 = vst [vmem:[%s154 + $0x7d0] sm:$0xff] %v655
                %v657 = vld [vmem:[%s153 + $0xfb0] sm:$0xff]
                %658 = vst [vmem:[%s154 + $0x7d8] sm:$0xff] %v657
                %v659 = vld [vmem:[%s153 + $0xfc0] sm:$0xff]
                %660 = vst [vmem:[%s154 + $0x7e0] sm:$0xff] %v659
                %v661 = vld [vmem:[%s153 + $0xfd0] sm:$0xff]
                %662 = vst [vmem:[%s154 + $0x7e8] sm:$0xff] %v661
                %v663 = vld [vmem:[%s153 + $0xfe0] sm:$0xff]
                %664 = vst [vmem:[%s154 + $0x7f0] sm:$0xff] %v663
                %v665 = vld [vmem:[%s153 + $0xff0] sm:$0xff]
                %666 = vst [vmem:[%s154 + $0x7f8] sm:$0xff] %v665
                %v667 = vld [vmem:[%s153 + $0x1000] sm:$0xff]
                %668 = vst [vmem:[%s154 + $0x800] sm:$0xff] %v667
                %v669 = vld [vmem:[%s153 + $0x1010] sm:$0xff]
                %670 = vst [vmem:[%s154 + $0x808] sm:$0xff] %v669
                %v671 = vld [vmem:[%s153 + $0x1020] sm:$0xff]
                %672 = vst [vmem:[%s154 + $0x810] sm:$0xff] %v671
                %v673 = vld [vmem:[%s153 + $0x1030] sm:$0xff]
                %674 = vst [vmem:[%s154 + $0x818] sm:$0xff] %v673
                %v675 = vld [vmem:[%s153 + $0x1040] sm:$0xff]
                %676 = vst [vmem:[%s154 + $0x820] sm:$0xff] %v675
                %v677 = vld [vmem:[%s153 + $0x1050] sm:$0xff]
                %678 = vst [vmem:[%s154 + $0x828] sm:$0xff] %v677
                %v679 = vld [vmem:[%s153 + $0x1060] sm:$0xff]
                %680 = vst [vmem:[%s154 + $0x830] sm:$0xff] %v679
                %v681 = vld [vmem:[%s153 + $0x1070] sm:$0xff]
                %682 = vst [vmem:[%s154 + $0x838] sm:$0xff] %v681
                %v683 = vld [vmem:[%s153 + $0x1080] sm:$0xff]
                %684 = vst [vmem:[%s154 + $0x840] sm:$0xff] %v683
                %v685 = vld [vmem:[%s153 + $0x1090] sm:$0xff]
                %686 = vst [vmem:[%s154 + $0x848] sm:$0xff] %v685
                %v687 = vld [vmem:[%s153 + $0x10a0] sm:$0xff]
                %688 = vst [vmem:[%s154 + $0x850] sm:$0xff] %v687
                %v689 = vld [vmem:[%s153 + $0x10b0] sm:$0xff]
                %690 = vst [vmem:[%s154 + $0x858] sm:$0xff] %v689
                %v691 = vld [vmem:[%s153 + $0x10c0] sm:$0xff]
                %692 = vst [vmem:[%s154 + $0x860] sm:$0xff] %v691
                %v693 = vld [vmem:[%s153 + $0x10d0] sm:$0xff]
                %694 = vst [vmem:[%s154 + $0x868] sm:$0xff] %v693
                %v695 = vld [vmem:[%s153 + $0x10e0] sm:$0xff]
                %696 = vst [vmem:[%s154 + $0x870] sm:$0xff] %v695
                %v697 = vld [vmem:[%s153 + $0x10f0] sm:$0xff]
                %698 = vst [vmem:[%s154 + $0x878] sm:$0xff] %v697
                %v699 = vld [vmem:[%s153 + $0x1100] sm:$0xff]
                %700 = vst [vmem:[%s154 + $0x880] sm:$0xff] %v699
                %v701 = vld [vmem:[%s153 + $0x1110] sm:$0xff]
                %702 = vst [vmem:[%s154 + $0x888] sm:$0xff] %v701
                %v703 = vld [vmem:[%s153 + $0x1120] sm:$0xff]
                %704 = vst [vmem:[%s154 + $0x890] sm:$0xff] %v703
                %v705 = vld [vmem:[%s153 + $0x1130] sm:$0xff]
                %706 = vst [vmem:[%s154 + $0x898] sm:$0xff] %v705
                %v707 = vld [vmem:[%s153 + $0x1140] sm:$0xff]
                %708 = vst [vmem:[%s154 + $0x8a0] sm:$0xff] %v707
                %v709 = vld [vmem:[%s153 + $0x1150] sm:$0xff]
                %710 = vst [vmem:[%s154 + $0x8a8] sm:$0xff] %v709
                %v711 = vld [vmem:[%s153 + $0x1160] sm:$0xff]
                %712 = vst [vmem:[%s154 + $0x8b0] sm:$0xff] %v711
                %v713 = vld [vmem:[%s153 + $0x1170] sm:$0xff]
                %714 = vst [vmem:[%s154 + $0x8b8] sm:$0xff] %v713
                %v715 = vld [vmem:[%s153 + $0x1180] sm:$0xff]
                %716 = vst [vmem:[%s154 + $0x8c0] sm:$0xff] %v715
                %v717 = vld [vmem:[%s153 + $0x1190] sm:$0xff]
                %718 = vst [vmem:[%s154 + $0x8c8] sm:$0xff] %v717
                %v719 = vld [vmem:[%s153 + $0x11a0] sm:$0xff]
                %720 = vst [vmem:[%s154 + $0x8d0] sm:$0xff] %v719
                %v721 = vld [vmem:[%s153 + $0x11b0] sm:$0xff]
                %722 = vst [vmem:[%s154 + $0x8d8] sm:$0xff] %v721
                %v723 = vld [vmem:[%s153 + $0x11c0] sm:$0xff]
                %724 = vst [vmem:[%s154 + $0x8e0] sm:$0xff] %v723
                %v725 = vld [vmem:[%s153 + $0x11d0] sm:$0xff]
                %726 = vst [vmem:[%s154 + $0x8e8] sm:$0xff] %v725
                %v727 = vld [vmem:[%s153 + $0x11e0] sm:$0xff]
                %728 = vst [vmem:[%s154 + $0x8f0] sm:$0xff] %v727
                %v729 = vld [vmem:[%s153 + $0x11f0] sm:$0xff]
                %730 = vst [vmem:[%s154 + $0x8f8] sm:$0xff] %v729
              $region41: #{cnn_forward.8} parent=35 // loop_footer
                %s152 = sadd.s32 1, %s148
              $region42: #{cnn_forward.8} parent=35 // loop_footer_branch
                %147 = sbr.rel target = $region38
              $region43: #{cnn_forward.8} parent=35 // loop_exit
                _
            $region36: #{cnn_forward.8} parent=27 // pred_fallthru
              _
          $region28: #{cnn_forward.8} parent=23 // pred_fallthru
            _
          %1319 = vnop
        $region24: #{cnn_forward.8} parent=19 // pred_fallthru
          _
        // Predicated region
        $region59: #{cnn_forward.8} parent=19 // pred_check
          %p1320 = pneg %p76
        $region60: #{cnn_forward.8} parent=19 // pred_check_branch
          %1322 = sbr.rel (%p1320) target = $region62
        $region61: #{cnn_forward.8} parent=19 // pred_region
          %s1323 = smul.u32 2, %s9
          %p1324 = scmp.lt.s32.totalorder %s1323, 3
          %s1325 = scalar_select %p1324, %s1323, 3
          %s1326 = scalar_lea.vmem %s2, %s1325
          %s1327 = smul.u32 2, %s9
        $region62: #{cnn_forward.8} parent=19 // pred_fallthru
          _
      $region20: #{cnn_forward.8} parent=5 // pred_fallthru
        _
      %p1328 = scmp.le.s32.totalorder 1, %s9
      %p1329 = scmp.lt.s32.totalorder %s9, 3
      %p1330 = pnand %p1328, %p1329
      %p1331 = pneg %p1330
      // Predicated region
      $region63: #{cnn_forward.8} parent=5 // pred_check
        _
      $region64: #{cnn_forward.8} parent=5 // pred_check_branch
        %1333 = sbr.rel (%p1330) target = $region66
      $region65: #{cnn_forward.8} parent=5 // pred_region
        %s1334 = ssub.s32 %s9, 1
        %s1335 = sand.u32 %s43, 1
        %s1336 = sand.u32 %s43, 1
        %s1337 = smul.addr %s1336, 2304
        %s1338 = scalar_lea.vmem [#allocation2], %s1337
        // Predicated region
        $region67: #{cnn_forward.8} parent=65 // pred_check
          %p1339 = pneg %p56
        $region68: #{cnn_forward.8} parent=65 // pred_check_branch
          %1341 = sbr.rel (%p1339) target = $region70
        $region69: #{cnn_forward.8} parent=65 // pred_region
          _
        $region70: #{cnn_forward.8} parent=65 // pred_fallthru
          _
        %p1342 = pneg %p30
        %p1343 = pneg %p27
        %s1344 = sand.u32 %s43, 1
        %s1345 = sand.u32 %s43, 1
        %s1346 = smul.addr %s1345, 2304
        %s1347 = scalar_lea.vmem [#allocation2], %s1346
        %p1348 = pneg %p56
        %p1349 = pneg %p53
        %s1350 = smul.u32 2, %s14
        %p1351 = scmp.lt.s32.totalorder %s1350, 3
        %s1352 = scalar_select %p1351, %s1350, 3
        %s1353 = scalar_lea.vmem %s2, %s1352
        %p1354 = pneg %p82
        %p1355 = pneg %p79
        %p1356 = pneg %p108
        %p1357 = pneg %p105
        %s1358 = smul.u32 2, %s14
        %p1359 = scmp.lt.s32.totalorder %s1358, 3
        %s1360 = scalar_select %p1359, %s1358, 3
        %s1361 = smul.addr %s1360, 8
        %s1362 = scalar_lea.vmem %s3, %s1361
        %s1363 = smul.u32 2, %s14
        %s1364 = smul.u32 2, %s14
        %p1365 = scmp.lt.s32.totalorder %s1364, 3
        %s1366 = scalar_select %p1365, %s1364, 3
        %s1367 = scalar_lea.vmem %s2, %s1366
        %s1368 = smul.u32 2, %s14
        %s1369 = smul.u32 2, %s14
        %p1370 = scmp.lt.s32.totalorder %s1369, 3
        %s1371 = scalar_select %p1370, %s1369, 3
        %s1372 = smul.addr %s1371, 8
        %s1373 = scalar_lea.vmem %s3, %s1372
        %s1374 = smul.u32 2, %s14
        %v1375 = vld [vmem:[%s0] sm:$0xff]
        %v1376 = vld [vmem:[%s0 + $0x8] sm:$0xff]
        %v1377 = vld [vmem:[%s0 + $0x10] sm:$0xff]
        %v1378 = vld [vmem:[%s0 + $0x18] sm:$0xff]
        %v1379 = vld [vmem:[%s0 + $0x20] sm:$0xff]
        %v1380 = vld [vmem:[%s0 + $0x28] sm:$0xff]
        %v1381 = vld [vmem:[%s0 + $0x30] sm:$0xff]
        %v1382 = vld [vmem:[%s0 + $0x38] sm:$0xff]
        %v1383 = vld [vmem:[%s0 + $0x40] sm:$0xff]
        %v1384 = vld [vmem:[%s0 + $0x48] sm:$0xff]
        %v1385 = vld [vmem:[%s0 + $0x50] sm:$0xff]
        %v1386 = vld [vmem:[%s0 + $0x58] sm:$0xff]
        %v1387 = vld [vmem:[%s0 + $0x60] sm:$0xff]
        %v1388 = vld [vmem:[%s0 + $0x68] sm:$0xff]
        %v1389 = vld [vmem:[%s0 + $0x70] sm:$0xff]
        %v1390 = vld [vmem:[%s0 + $0x78] sm:$0xff]
        %v1391 = vld [vmem:[%s0 + $0x80] sm:$0xff]
        %v1392 = vld [vmem:[%s0 + $0x88] sm:$0xff]
        %v1393 = vld [vmem:[%s0 + $0x90] sm:$0xff]
        %v1394 = vld [vmem:[%s0 + $0x98] sm:$0xff]
        %v1395 = vld [vmem:[%s0 + $0xa0] sm:$0xff]
        %v1396 = vld [vmem:[%s0 + $0xa8] sm:$0xff]
        %v1397 = vld [vmem:[%s0 + $0xb0] sm:$0xff]
        %v1398 = vld [vmem:[%s0 + $0xb8] sm:$0xff]
        %v1399 = vld [vmem:[%s0 + $0xc0] sm:$0xff]
        %v1400 = vld [vmem:[%s0 + $0xc8] sm:$0xff]
        %v1401 = vld [vmem:[%s0 + $0xd0] sm:$0xff]
        %v1402 = vld [vmem:[%s0 + $0xd8] sm:$0xff]
        %v1403 = vld [vmem:[%s0 + $0xe0] sm:$0xff]
        %v1404 = vld [vmem:[%s0 + $0xe8] sm:$0xff]
        %v1405 = vld [vmem:[%s0 + $0xf0] sm:$0xff]
        %v1406 = vld [vmem:[%s0 + $0xf8] sm:$0xff]
        %v1407 = vld [vmem:[%s0 + $0x100] sm:$0xff]
        %v1408 = vld [vmem:[%s0 + $0x108] sm:$0xff]
        %v1409 = vld [vmem:[%s0 + $0x110] sm:$0xff]
        %v1410 = vld [vmem:[%s0 + $0x118] sm:$0xff]
        %v1411 = vld [vmem:[%s1338] sm:$0xff]
        %v1412 = vld [vmem:[%s1338 + $0x8] sm:$0xff]
        %v1413 = vld [vmem:[%s1338 + $0x10] sm:$0xff]
        %v1414 = vld [vmem:[%s1338 + $0x18] sm:$0xff]
        %v1415 = vld [vmem:[%s1338 + $0x20] sm:$0xff]
        %v1416 = vld [vmem:[%s1338 + $0x28] sm:$0xff]
        %v1417 = vld [vmem:[%s1338 + $0x30] sm:$0xff]
        %v1418 = vld [vmem:[%s1338 + $0x38] sm:$0xff]
        %v1419 = vld [vmem:[%s1338 + $0x40] sm:$0xff]
        %v1420 = vld [vmem:[%s1338 + $0x48] sm:$0xff]
        %v1421 = vld [vmem:[%s1338 + $0x50] sm:$0xff]
        %v1422 = vld [vmem:[%s1338 + $0x58] sm:$0xff]
        %v1423 = vld [vmem:[%s1338 + $0x60] sm:$0xff]
        %v1424 = vld [vmem:[%s1338 + $0x68] sm:$0xff]
        %v1425 = vld [vmem:[%s1338 + $0x70] sm:$0xff]
        %v1426 = vld [vmem:[%s1338 + $0x78] sm:$0xff]
        %v1427 = vld [vmem:[%s1338 + $0x80] sm:$0xff]
        %v1428 = vld [vmem:[%s1338 + $0x88] sm:$0xff]
        %v1429 = vld [vmem:[%s1338 + $0x90] sm:$0xff]
        %v1430 = vld [vmem:[%s1338 + $0x98] sm:$0xff]
        %v1431 = vld [vmem:[%s1338 + $0xa0] sm:$0xff]
        %v1432 = vld [vmem:[%s1338 + $0xa8] sm:$0xff]
        %v1433 = vld [vmem:[%s1338 + $0xb0] sm:$0xff]
        %v1434 = vld [vmem:[%s1338 + $0xb8] sm:$0xff]
        %v1435 = vld [vmem:[%s1338 + $0xc0] sm:$0xff]
        %v1436 = vld [vmem:[%s1338 + $0xc8] sm:$0xff]
        %v1437 = vld [vmem:[%s1338 + $0xd0] sm:$0xff]
        %v1438 = vld [vmem:[%s1338 + $0xd8] sm:$0xff]
        %v1439 = vld [vmem:[%s1338 + $0xe0] sm:$0xff]
        %v1440 = vld [vmem:[%s1338 + $0xe8] sm:$0xff]
        %v1441 = vld [vmem:[%s1338 + $0xf0] sm:$0xff]
        %v1442 = vld [vmem:[%s1338 + $0xf8] sm:$0xff]
        %v1443 = vld [vmem:[%s1338 + $0x100] sm:$0xff]
        %v1444 = vld [vmem:[%s1338 + $0x108] sm:$0xff]
        %v1445 = vld [vmem:[%s1338 + $0x110] sm:$0xff]
        %v1446 = vld [vmem:[%s1338 + $0x118] sm:$0xff]
        %v1447 = vld [vmem:[%s1338 + $0x120] sm:$0xff]
        %v1448 = vld [vmem:[%s1338 + $0x128] sm:$0xff]
        %v1449 = vld [vmem:[%s1338 + $0x130] sm:$0xff]
        %v1450 = vld [vmem:[%s1338 + $0x138] sm:$0xff]
        %v1451 = vld [vmem:[%s1338 + $0x140] sm:$0xff]
        %v1452 = vld [vmem:[%s1338 + $0x148] sm:$0xff]
        %v1453 = vld [vmem:[%s1338 + $0x150] sm:$0xff]
        %v1454 = vld [vmem:[%s1338 + $0x158] sm:$0xff]
        %v1455 = vld [vmem:[%s1338 + $0x160] sm:$0xff]
        %v1456 = vld [vmem:[%s1338 + $0x168] sm:$0xff]
        %v1457 = vld [vmem:[%s1338 + $0x170] sm:$0xff]
        %v1458 = vld [vmem:[%s1338 + $0x178] sm:$0xff]
        %v1459 = vld [vmem:[%s1338 + $0x180] sm:$0xff]
        %v1460 = vld [vmem:[%s1338 + $0x188] sm:$0xff]
        %v1461 = vld [vmem:[%s1338 + $0x190] sm:$0xff]
        %v1462 = vld [vmem:[%s1338 + $0x198] sm:$0xff]
        %v1463 = vld [vmem:[%s1338 + $0x1a0] sm:$0xff]
        %v1464 = vld [vmem:[%s1338 + $0x1a8] sm:$0xff]
        %v1465 = vld [vmem:[%s1338 + $0x1b0] sm:$0xff]
        %v1466 = vld [vmem:[%s1338 + $0x1b8] sm:$0xff]
        %v1467 = vld [vmem:[%s1338 + $0x1c0] sm:$0xff]
        %v1468 = vld [vmem:[%s1338 + $0x1c8] sm:$0xff]
        %v1469 = vld [vmem:[%s1338 + $0x1d0] sm:$0xff]
        %v1470 = vld [vmem:[%s1338 + $0x1d8] sm:$0xff]
        %v1471 = vld [vmem:[%s1338 + $0x1e0] sm:$0xff]
        %v1472 = vld [vmem:[%s1338 + $0x1e8] sm:$0xff]
        %v1473 = vld [vmem:[%s1338 + $0x1f0] sm:$0xff]
        %v1474 = vld [vmem:[%s1338 + $0x1f8] sm:$0xff]
        %v1475 = vld [vmem:[%s1338 + $0x200] sm:$0xff]
        %v1476 = vld [vmem:[%s1338 + $0x208] sm:$0xff]
        %v1477 = vld [vmem:[%s1338 + $0x210] sm:$0xff]
        %v1478 = vld [vmem:[%s1338 + $0x218] sm:$0xff]
        %v1479 = vld [vmem:[%s1338 + $0x220] sm:$0xff]
        %v1480 = vld [vmem:[%s1338 + $0x228] sm:$0xff]
        %v1481 = vld [vmem:[%s1338 + $0x230] sm:$0xff]
        %v1482 = vld [vmem:[%s1338 + $0x238] sm:$0xff]
        %v1483 = vld [vmem:[%s1338 + $0x240] sm:$0xff]
        %v1484 = vld [vmem:[%s1338 + $0x248] sm:$0xff]
        %v1485 = vld [vmem:[%s1338 + $0x250] sm:$0xff]
        %v1486 = vld [vmem:[%s1338 + $0x258] sm:$0xff]
        %v1487 = vld [vmem:[%s1338 + $0x260] sm:$0xff]
        %v1488 = vld [vmem:[%s1338 + $0x268] sm:$0xff]
        %v1489 = vld [vmem:[%s1338 + $0x270] sm:$0xff]
        %v1490 = vld [vmem:[%s1338 + $0x278] sm:$0xff]
        %v1491 = vld [vmem:[%s1338 + $0x280] sm:$0xff]
        %v1492 = vld [vmem:[%s1338 + $0x288] sm:$0xff]
        %v1493 = vld [vmem:[%s1338 + $0x290] sm:$0xff]
        %v1494 = vld [vmem:[%s1338 + $0x298] sm:$0xff]
        %v1495 = vld [vmem:[%s1338 + $0x2a0] sm:$0xff]
        %v1496 = vld [vmem:[%s1338 + $0x2a8] sm:$0xff]
        %v1497 = vld [vmem:[%s1338 + $0x2b0] sm:$0xff]
        %v1498 = vld [vmem:[%s1338 + $0x2b8] sm:$0xff]
        %v1499 = vld [vmem:[%s1338 + $0x2c0] sm:$0xff]
        %v1500 = vld [vmem:[%s1338 + $0x2c8] sm:$0xff]
        %v1501 = vld [vmem:[%s1338 + $0x2d0] sm:$0xff]
        %v1502 = vld [vmem:[%s1338 + $0x2d8] sm:$0xff]
        %v1503 = vld [vmem:[%s1338 + $0x2e0] sm:$0xff]
        %v1504 = vld [vmem:[%s1338 + $0x2e8] sm:$0xff]
        %v1505 = vld [vmem:[%s1338 + $0x2f0] sm:$0xff]
        %v1506 = vld [vmem:[%s1338 + $0x2f8] sm:$0xff]
        %v1507 = vld [vmem:[%s1338 + $0x300] sm:$0xff]
        %v1508 = vld [vmem:[%s1338 + $0x308] sm:$0xff]
        %v1509 = vld [vmem:[%s1338 + $0x310] sm:$0xff]
        %v1510 = vld [vmem:[%s1338 + $0x318] sm:$0xff]
        %v1511 = vld [vmem:[%s1338 + $0x320] sm:$0xff]
        %v1512 = vld [vmem:[%s1338 + $0x328] sm:$0xff]
        %v1513 = vld [vmem:[%s1338 + $0x330] sm:$0xff]
        %v1514 = vld [vmem:[%s1338 + $0x338] sm:$0xff]
        %v1515 = vld [vmem:[%s1338 + $0x340] sm:$0xff]
        %v1516 = vld [vmem:[%s1338 + $0x348] sm:$0xff]
        %v1517 = vld [vmem:[%s1338 + $0x350] sm:$0xff]
        %v1518 = vld [vmem:[%s1338 + $0x358] sm:$0xff]
        %v1519 = vld [vmem:[%s1338 + $0x360] sm:$0xff]
        %v1520 = vld [vmem:[%s1338 + $0x368] sm:$0xff]
        %v1521 = vld [vmem:[%s1338 + $0x370] sm:$0xff]
        %v1522 = vld [vmem:[%s1338 + $0x378] sm:$0xff]
        %v1523 = vld [vmem:[%s1338 + $0x380] sm:$0xff]
        %v1524 = vld [vmem:[%s1338 + $0x388] sm:$0xff]
        %v1525 = vld [vmem:[%s1338 + $0x390] sm:$0xff]
        %v1526 = vld [vmem:[%s1338 + $0x398] sm:$0xff]
        %v1527 = vld [vmem:[%s1338 + $0x3a0] sm:$0xff]
        %v1528 = vld [vmem:[%s1338 + $0x3a8] sm:$0xff]
        %v1529 = vld [vmem:[%s1338 + $0x3b0] sm:$0xff]
        %v1530 = vld [vmem:[%s1338 + $0x3b8] sm:$0xff]
        %v1531 = vld [vmem:[%s1338 + $0x3c0] sm:$0xff]
        %v1532 = vld [vmem:[%s1338 + $0x3c8] sm:$0xff]
        %v1533 = vld [vmem:[%s1338 + $0x3d0] sm:$0xff]
        %v1534 = vld [vmem:[%s1338 + $0x3d8] sm:$0xff]
        %v1535 = vld [vmem:[%s1338 + $0x3e0] sm:$0xff]
        %v1536 = vld [vmem:[%s1338 + $0x3e8] sm:$0xff]
        %v1537 = vld [vmem:[%s1338 + $0x3f0] sm:$0xff]
        %v1538 = vld [vmem:[%s1338 + $0x3f8] sm:$0xff]
        %v1539 = vld [vmem:[%s1338 + $0x400] sm:$0xff]
        %v1540 = vld [vmem:[%s1338 + $0x408] sm:$0xff]
        %v1541 = vld [vmem:[%s1338 + $0x410] sm:$0xff]
        %v1542 = vld [vmem:[%s1338 + $0x418] sm:$0xff]
        %v1543 = vld [vmem:[%s1338 + $0x420] sm:$0xff]
        %v1544 = vld [vmem:[%s1338 + $0x428] sm:$0xff]
        %v1545 = vld [vmem:[%s1338 + $0x430] sm:$0xff]
        %v1546 = vld [vmem:[%s1338 + $0x438] sm:$0xff]
        %v1547 = vld [vmem:[%s1338 + $0x440] sm:$0xff]
        %v1548 = vld [vmem:[%s1338 + $0x448] sm:$0xff]
        %v1549 = vld [vmem:[%s1338 + $0x450] sm:$0xff]
        %v1550 = vld [vmem:[%s1338 + $0x458] sm:$0xff]
        %v1551 = vld [vmem:[%s1338 + $0x460] sm:$0xff]
        %v1552 = vld [vmem:[%s1338 + $0x468] sm:$0xff]
        %v1553 = vld [vmem:[%s1338 + $0x470] sm:$0xff]
        %v1554 = vld [vmem:[%s1338 + $0x478] sm:$0xff]
        %v1555 = vld [vmem:[%s1338 + $0x480] sm:$0xff]
        %v1556 = vld [vmem:[%s1338 + $0x488] sm:$0xff]
        %v1557 = vld [vmem:[%s1338 + $0x490] sm:$0xff]
        %v1558 = vld [vmem:[%s1338 + $0x498] sm:$0xff]
        %v1559 = vld [vmem:[%s1338 + $0x4a0] sm:$0xff]
        %v1560 = vld [vmem:[%s1338 + $0x4a8] sm:$0xff]
        %v1561 = vld [vmem:[%s1338 + $0x4b0] sm:$0xff]
        %v1562 = vld [vmem:[%s1338 + $0x4b8] sm:$0xff]
        %v1563 = vld [vmem:[%s1338 + $0x4c0] sm:$0xff]
        %v1564 = vld [vmem:[%s1338 + $0x4c8] sm:$0xff]
        %v1565 = vld [vmem:[%s1338 + $0x4d0] sm:$0xff]
        %v1566 = vld [vmem:[%s1338 + $0x4d8] sm:$0xff]
        %v1567 = vld [vmem:[%s1338 + $0x4e0] sm:$0xff]
        %v1568 = vld [vmem:[%s1338 + $0x4e8] sm:$0xff]
        %v1569 = vld [vmem:[%s1338 + $0x4f0] sm:$0xff]
        %v1570 = vld [vmem:[%s1338 + $0x4f8] sm:$0xff]
        %v1571 = vld [vmem:[%s1338 + $0x500] sm:$0xff]
        %v1572 = vld [vmem:[%s1338 + $0x508] sm:$0xff]
        %v1573 = vld [vmem:[%s1338 + $0x510] sm:$0xff]
        %v1574 = vld [vmem:[%s1338 + $0x518] sm:$0xff]
        %v1575 = vld [vmem:[%s1338 + $0x520] sm:$0xff]
        %v1576 = vld [vmem:[%s1338 + $0x528] sm:$0xff]
        %v1577 = vld [vmem:[%s1338 + $0x530] sm:$0xff]
        %v1578 = vld [vmem:[%s1338 + $0x538] sm:$0xff]
        %v1579 = vld [vmem:[%s1338 + $0x540] sm:$0xff]
        %v1580 = vld [vmem:[%s1338 + $0x548] sm:$0xff]
        %v1581 = vld [vmem:[%s1338 + $0x550] sm:$0xff]
        %v1582 = vld [vmem:[%s1338 + $0x558] sm:$0xff]
        %v1583 = vld [vmem:[%s1338 + $0x560] sm:$0xff]
        %v1584 = vld [vmem:[%s1338 + $0x568] sm:$0xff]
        %v1585 = vld [vmem:[%s1338 + $0x570] sm:$0xff]
        %v1586 = vld [vmem:[%s1338 + $0x578] sm:$0xff]
        %v1587 = vld [vmem:[%s1338 + $0x580] sm:$0xff]
        %v1588 = vld [vmem:[%s1338 + $0x588] sm:$0xff]
        %v1589 = vld [vmem:[%s1338 + $0x590] sm:$0xff]
        %v1590 = vld [vmem:[%s1338 + $0x598] sm:$0xff]
        %v1591 = vld [vmem:[%s1338 + $0x5a0] sm:$0xff]
        %v1592 = vld [vmem:[%s1338 + $0x5a8] sm:$0xff]
        %v1593 = vld [vmem:[%s1338 + $0x5b0] sm:$0xff]
        %v1594 = vld [vmem:[%s1338 + $0x5b8] sm:$0xff]
        %v1595 = vld [vmem:[%s1338 + $0x5c0] sm:$0xff]
        %v1596 = vld [vmem:[%s1338 + $0x5c8] sm:$0xff]
        %v1597 = vld [vmem:[%s1338 + $0x5d0] sm:$0xff]
        %v1598 = vld [vmem:[%s1338 + $0x5d8] sm:$0xff]
        %v1599 = vld [vmem:[%s1338 + $0x5e0] sm:$0xff]
        %v1600 = vld [vmem:[%s1338 + $0x5e8] sm:$0xff]
        %v1601 = vld [vmem:[%s1338 + $0x5f0] sm:$0xff]
        %v1602 = vld [vmem:[%s1338 + $0x5f8] sm:$0xff]
        %v1603 = vld [vmem:[%s1338 + $0x600] sm:$0xff]
        %v1604 = vld [vmem:[%s1338 + $0x608] sm:$0xff]
        %v1605 = vld [vmem:[%s1338 + $0x610] sm:$0xff]
        %v1606 = vld [vmem:[%s1338 + $0x618] sm:$0xff]
        %v1607 = vld [vmem:[%s1338 + $0x620] sm:$0xff]
        %v1608 = vld [vmem:[%s1338 + $0x628] sm:$0xff]
        %v1609 = vld [vmem:[%s1338 + $0x630] sm:$0xff]
        %v1610 = vld [vmem:[%s1338 + $0x638] sm:$0xff]
        %v1611 = vld [vmem:[%s1338 + $0x640] sm:$0xff]
        %v1612 = vld [vmem:[%s1338 + $0x648] sm:$0xff]
        %v1613 = vld [vmem:[%s1338 + $0x650] sm:$0xff]
        %v1614 = vld [vmem:[%s1338 + $0x658] sm:$0xff]
        %v1615 = vld [vmem:[%s1338 + $0x660] sm:$0xff]
        %v1616 = vld [vmem:[%s1338 + $0x668] sm:$0xff]
        %v1617 = vld [vmem:[%s1338 + $0x670] sm:$0xff]
        %v1618 = vld [vmem:[%s1338 + $0x678] sm:$0xff]
        %v1619 = vld [vmem:[%s1338 + $0x680] sm:$0xff]
        %v1620 = vld [vmem:[%s1338 + $0x688] sm:$0xff]
        %v1621 = vld [vmem:[%s1338 + $0x690] sm:$0xff]
        %v1622 = vld [vmem:[%s1338 + $0x698] sm:$0xff]
        %v1623 = vld [vmem:[%s1338 + $0x6a0] sm:$0xff]
        %v1624 = vld [vmem:[%s1338 + $0x6a8] sm:$0xff]
        %v1625 = vld [vmem:[%s1338 + $0x6b0] sm:$0xff]
        %v1626 = vld [vmem:[%s1338 + $0x6b8] sm:$0xff]
        %v1627 = vld [vmem:[%s1338 + $0x6c0] sm:$0xff]
        %v1628 = vld [vmem:[%s1338 + $0x6c8] sm:$0xff]
        %v1629 = vld [vmem:[%s1338 + $0x6d0] sm:$0xff]
        %v1630 = vld [vmem:[%s1338 + $0x6d8] sm:$0xff]
        %v1631 = vld [vmem:[%s1338 + $0x6e0] sm:$0xff]
        %v1632 = vld [vmem:[%s1338 + $0x6e8] sm:$0xff]
        %v1633 = vld [vmem:[%s1338 + $0x6f0] sm:$0xff]
        %v1634 = vld [vmem:[%s1338 + $0x6f8] sm:$0xff]
        %v1635 = vld [vmem:[%s1338 + $0x700] sm:$0xff]
        %v1636 = vld [vmem:[%s1338 + $0x708] sm:$0xff]
        %v1637 = vld [vmem:[%s1338 + $0x710] sm:$0xff]
        %v1638 = vld [vmem:[%s1338 + $0x718] sm:$0xff]
        %v1639 = vld [vmem:[%s1338 + $0x720] sm:$0xff]
        %v1640 = vld [vmem:[%s1338 + $0x728] sm:$0xff]
        %v1641 = vld [vmem:[%s1338 + $0x730] sm:$0xff]
        %v1642 = vld [vmem:[%s1338 + $0x738] sm:$0xff]
        %v1643 = vld [vmem:[%s1338 + $0x740] sm:$0xff]
        %v1644 = vld [vmem:[%s1338 + $0x748] sm:$0xff]
        %v1645 = vld [vmem:[%s1338 + $0x750] sm:$0xff]
        %v1646 = vld [vmem:[%s1338 + $0x758] sm:$0xff]
        %v1647 = vld [vmem:[%s1338 + $0x760] sm:$0xff]
        %v1648 = vld [vmem:[%s1338 + $0x768] sm:$0xff]
        %v1649 = vld [vmem:[%s1338 + $0x770] sm:$0xff]
        %v1650 = vld [vmem:[%s1338 + $0x778] sm:$0xff]
        %v1651 = vld [vmem:[%s1338 + $0x780] sm:$0xff]
        %v1652 = vld [vmem:[%s1338 + $0x788] sm:$0xff]
        %v1653 = vld [vmem:[%s1338 + $0x790] sm:$0xff]
        %v1654 = vld [vmem:[%s1338 + $0x798] sm:$0xff]
        %v1655 = vld [vmem:[%s1338 + $0x7a0] sm:$0xff]
        %v1656 = vld [vmem:[%s1338 + $0x7a8] sm:$0xff]
        %v1657 = vld [vmem:[%s1338 + $0x7b0] sm:$0xff]
        %v1658 = vld [vmem:[%s1338 + $0x7b8] sm:$0xff]
        %v1659 = vld [vmem:[%s1338 + $0x7c0] sm:$0xff]
        %v1660 = vld [vmem:[%s1338 + $0x7c8] sm:$0xff]
        %v1661 = vld [vmem:[%s1338 + $0x7d0] sm:$0xff]
        %v1662 = vld [vmem:[%s1338 + $0x7d8] sm:$0xff]
        %v1663 = vld [vmem:[%s1338 + $0x7e0] sm:$0xff]
        %v1664 = vld [vmem:[%s1338 + $0x7e8] sm:$0xff]
        %v1665 = vld [vmem:[%s1338 + $0x7f0] sm:$0xff]
        %v1666 = vld [vmem:[%s1338 + $0x7f8] sm:$0xff]
        %v1667 = vld [vmem:[%s1338 + $0x800] sm:$0xff]
        %v1668 = vld [vmem:[%s1338 + $0x808] sm:$0xff]
        %v1669 = vld [vmem:[%s1338 + $0x810] sm:$0xff]
        %v1670 = vld [vmem:[%s1338 + $0x818] sm:$0xff]
        %v1671 = vld [vmem:[%s1338 + $0x820] sm:$0xff]
        %v1672 = vld [vmem:[%s1338 + $0x828] sm:$0xff]
        %v1673 = vld [vmem:[%s1338 + $0x830] sm:$0xff]
        %v1674 = vld [vmem:[%s1338 + $0x838] sm:$0xff]
        %v1675 = vld [vmem:[%s1338 + $0x840] sm:$0xff]
        %v1676 = vld [vmem:[%s1338 + $0x848] sm:$0xff]
        %v1677 = vld [vmem:[%s1338 + $0x850] sm:$0xff]
        %v1678 = vld [vmem:[%s1338 + $0x858] sm:$0xff]
        %v1679 = vld [vmem:[%s1338 + $0x860] sm:$0xff]
        %v1680 = vld [vmem:[%s1338 + $0x868] sm:$0xff]
        %v1681 = vld [vmem:[%s1338 + $0x870] sm:$0xff]
        %v1682 = vld [vmem:[%s1338 + $0x878] sm:$0xff]
        %v1683 = vld [vmem:[%s1338 + $0x880] sm:$0xff]
        %v1684 = vld [vmem:[%s1338 + $0x888] sm:$0xff]
        %v1685 = vld [vmem:[%s1338 + $0x890] sm:$0xff]
        %v1686 = vld [vmem:[%s1338 + $0x898] sm:$0xff]
        %v1687 = vld [vmem:[%s1338 + $0x8a0] sm:$0xff]
        %v1688 = vld [vmem:[%s1338 + $0x8a8] sm:$0xff]
        %v1689 = vld [vmem:[%s1338 + $0x8b0] sm:$0xff]
        %v1690 = vld [vmem:[%s1338 + $0x8b8] sm:$0xff]
        %v1691 = vld [vmem:[%s1338 + $0x8c0] sm:$0xff]
        %v1692 = vld [vmem:[%s1338 + $0x8c8] sm:$0xff]
        %v1693 = vld [vmem:[%s1338 + $0x8d0] sm:$0xff]
        %v1694 = vld [vmem:[%s1338 + $0x8d8] sm:$0xff]
        %v1695 = vld [vmem:[%s1338 + $0x8e0] sm:$0xff]
        %v1696 = vld [vmem:[%s1338 + $0x8e8] sm:$0xff]
        %v1697 = vld [vmem:[%s1338 + $0x8f0] sm:$0xff]
        %v1698 = vld [vmem:[%s1338 + $0x8f8] sm:$0xff]
        %v1699 = vld [vmem:[%s1367] sm:$0x3]
        %v1701 = vlaneseq
        %v1702 = vshrl.u32 %v1701, 7
        %v1703 = vsub.s32 0, %v1702
        %v1704 = vrot.slane %v1699, %v1703
        %v1705 = vlaneseq
        %v1706 = vshrl.u32 %v1705, 7
        %v1707 = vsub.s32 1, %v1706
        %v1708 = vrot.slane %v1699, %v1707
        %v1747 = vunpack.c.l.b16 %v1375
        %v1748 = vunpack.c.h.b16 %v1375
        %v1749 = vunpack.c.l.b16 %v1376
        %v1750 = vunpack.c.h.b16 %v1376
        %v1751 = vunpack.c.l.b16 %v1377
        %v1752 = vunpack.c.h.b16 %v1377
        %v1753 = vunpack.c.l.b16 %v1378
        %v1754 = vunpack.c.h.b16 %v1378
        %v1755 = vunpack.c.l.b16 %v1379
        %v1756 = vunpack.c.h.b16 %v1379
        %v1757 = vunpack.c.l.b16 %v1380
        %v1758 = vunpack.c.h.b16 %v1380
        %v1759 = vunpack.c.l.b16 %v1381
        %v1760 = vunpack.c.h.b16 %v1381
        %v1761 = vunpack.c.l.b16 %v1382
        %v1762 = vunpack.c.h.b16 %v1382
        %v1763 = vunpack.c.l.b16 %v1383
        %v1764 = vunpack.c.h.b16 %v1383
        %v1765 = vunpack.c.l.b16 %v1384
        %v1766 = vunpack.c.h.b16 %v1384
        %v1767 = vunpack.c.l.b16 %v1385
        %v1768 = vunpack.c.h.b16 %v1385
        %v1769 = vunpack.c.l.b16 %v1386
        %v1770 = vunpack.c.h.b16 %v1386
        %v1771 = vunpack.c.l.b16 %v1387
        %v1772 = vunpack.c.h.b16 %v1387
        %v1773 = vunpack.c.l.b16 %v1388
        %v1774 = vunpack.c.h.b16 %v1388
        %v1775 = vunpack.c.l.b16 %v1389
        %v1776 = vunpack.c.h.b16 %v1389
        %v1777 = vunpack.c.l.b16 %v1390
        %v1778 = vunpack.c.h.b16 %v1390
        %v1779 = vunpack.c.l.b16 %v1391
        %v1780 = vunpack.c.h.b16 %v1391
        %v1781 = vunpack.c.l.b16 %v1392
        %v1782 = vunpack.c.h.b16 %v1392
        %v1783 = vunpack.c.l.b16 %v1393
        %v1784 = vunpack.c.h.b16 %v1393
        %v1785 = vunpack.c.l.b16 %v1394
        %v1786 = vunpack.c.h.b16 %v1394
        %v1787 = vunpack.c.l.b16 %v1395
        %v1788 = vunpack.c.h.b16 %v1395
        %v1789 = vunpack.c.l.b16 %v1396
        %v1790 = vunpack.c.h.b16 %v1396
        %v1791 = vunpack.c.l.b16 %v1397
        %v1792 = vunpack.c.h.b16 %v1397
        %v1793 = vunpack.c.l.b16 %v1398
        %v1794 = vunpack.c.h.b16 %v1398
        %v1795 = vunpack.c.l.b16 %v1399
        %v1796 = vunpack.c.h.b16 %v1399
        %v1797 = vunpack.c.l.b16 %v1400
        %v1798 = vunpack.c.h.b16 %v1400
        %v1799 = vunpack.c.l.b16 %v1401
        %v1800 = vunpack.c.h.b16 %v1401
        %v1801 = vunpack.c.l.b16 %v1402
        %v1802 = vunpack.c.h.b16 %v1402
        %v1803 = vunpack.c.l.b16 %v1403
        %v1804 = vunpack.c.h.b16 %v1403
        %v1805 = vunpack.c.l.b16 %v1404
        %v1806 = vunpack.c.h.b16 %v1404
        %v1807 = vunpack.c.l.b16 %v1405
        %v1808 = vunpack.c.h.b16 %v1405
        %v1809 = vunpack.c.l.b16 %v1406
        %v1810 = vunpack.c.h.b16 %v1406
        %v1811 = vunpack.c.l.b16 %v1407
        %v1812 = vunpack.c.h.b16 %v1407
        %v1813 = vunpack.c.l.b16 %v1408
        %v1814 = vunpack.c.h.b16 %v1408
        %v1815 = vunpack.c.l.b16 %v1409
        %v1816 = vunpack.c.h.b16 %v1409
        %v1817 = vunpack.c.l.b16 %v1410
        %v1818 = vunpack.c.h.b16 %v1410
        %v1819 = vpack.c.b16 %v1765, %v1747
        %v1820 = vpack.c.b16 %v1766, %v1748
        %v1821 = vpack.c.b16 %v1767, %v1749
        %v1822 = vpack.c.b16 %v1768, %v1750
        %v1823 = vpack.c.b16 %v1769, %v1751
        %v1824 = vpack.c.b16 %v1770, %v1752
        %v1825 = vpack.c.b16 %v1771, %v1753
        %v1826 = vpack.c.b16 %v1772, %v1754
        %v1827 = vpack.c.b16 %v1773, %v1755
        %v1828 = vpack.c.b16 %v1774, %v1756
        %v1829 = vpack.c.b16 %v1775, %v1757
        %v1830 = vpack.c.b16 %v1776, %v1758
        %v1831 = vpack.c.b16 %v1777, %v1759
        %v1832 = vpack.c.b16 %v1778, %v1760
        %v1833 = vpack.c.b16 %v1779, %v1761
        %v1834 = vpack.c.b16 %v1780, %v1762
        %v1835 = vpack.c.b16 %v1781, %v1763
        %v1836 = vpack.c.b16 %v1782, %v1764
        %v1837 = vpack.c.b16 %v1801, %v1783
        %v1838 = vpack.c.b16 %v1802, %v1784
        %v1839 = vpack.c.b16 %v1803, %v1785
        %v1840 = vpack.c.b16 %v1804, %v1786
        %v1841 = vpack.c.b16 %v1805, %v1787
        %v1842 = vpack.c.b16 %v1806, %v1788
        %v1843 = vpack.c.b16 %v1807, %v1789
        %v1844 = vpack.c.b16 %v1808, %v1790
        %v1845 = vpack.c.b16 %v1809, %v1791
        %v1846 = vpack.c.b16 %v1810, %v1792
        %v1847 = vpack.c.b16 %v1811, %v1793
        %v1848 = vpack.c.b16 %v1812, %v1794
        %v1849 = vpack.c.b16 %v1813, %v1795
        %v1850 = vpack.c.b16 %v1814, %v1796
        %v1851 = vpack.c.b16 %v1815, %v1797
        %v1852 = vpack.c.b16 %v1816, %v1798
        %v1853 = vpack.c.b16 %v1817, %v1799
        %v1854 = vpack.c.b16 %v1818, %v1800
        %v2179 = vunpack.c.l.b16 %v1411
        %v2180 = vunpack.c.h.b16 %v1411
        %v2181 = vunpack.c.l.b16 %v1412
        %v2182 = vunpack.c.h.b16 %v1412
        %v2183 = vunpack.c.l.b16 %v1413
        %v2184 = vunpack.c.h.b16 %v1413
        %v2185 = vunpack.c.l.b16 %v1414
        %v2186 = vunpack.c.h.b16 %v1414
        %v2187 = vunpack.c.l.b16 %v1415
        %v2188 = vunpack.c.h.b16 %v1415
        %v2189 = vunpack.c.l.b16 %v1416
        %v2190 = vunpack.c.h.b16 %v1416
        %v2191 = vunpack.c.l.b16 %v1417
        %v2192 = vunpack.c.h.b16 %v1417
        %v2193 = vunpack.c.l.b16 %v1418
        %v2194 = vunpack.c.h.b16 %v1418
        %v2195 = vunpack.c.l.b16 %v1419
        %v2196 = vunpack.c.h.b16 %v1419
        %v2197 = vunpack.c.l.b16 %v1420
        %v2198 = vunpack.c.h.b16 %v1420
        %v2199 = vunpack.c.l.b16 %v1421
        %v2200 = vunpack.c.h.b16 %v1421
        %v2201 = vunpack.c.l.b16 %v1422
        %v2202 = vunpack.c.h.b16 %v1422
        %v2203 = vunpack.c.l.b16 %v1423
        %v2204 = vunpack.c.h.b16 %v1423
        %v2205 = vunpack.c.l.b16 %v1424
        %v2206 = vunpack.c.h.b16 %v1424
        %v2207 = vunpack.c.l.b16 %v1425
        %v2208 = vunpack.c.h.b16 %v1425
        %v2209 = vunpack.c.l.b16 %v1426
        %v2210 = vunpack.c.h.b16 %v1426
        %v2211 = vunpack.c.l.b16 %v1427
        %v2212 = vunpack.c.h.b16 %v1427
        %v2213 = vunpack.c.l.b16 %v1428
        %v2214 = vunpack.c.h.b16 %v1428
        %v2215 = vunpack.c.l.b16 %v1429
        %v2216 = vunpack.c.h.b16 %v1429
        %v2217 = vunpack.c.l.b16 %v1430
        %v2218 = vunpack.c.h.b16 %v1430
        %v2219 = vunpack.c.l.b16 %v1431
        %v2220 = vunpack.c.h.b16 %v1431
        %v2221 = vunpack.c.l.b16 %v1432
        %v2222 = vunpack.c.h.b16 %v1432
        %v2223 = vunpack.c.l.b16 %v1433
        %v2224 = vunpack.c.h.b16 %v1433
        %v2225 = vunpack.c.l.b16 %v1434
        %v2226 = vunpack.c.h.b16 %v1434
        %v2227 = vunpack.c.l.b16 %v1435
        %v2228 = vunpack.c.h.b16 %v1435
        %v2229 = vunpack.c.l.b16 %v1436
        %v2230 = vunpack.c.h.b16 %v1436
        %v2231 = vunpack.c.l.b16 %v1437
        %v2232 = vunpack.c.h.b16 %v1437
        %v2233 = vunpack.c.l.b16 %v1438
        %v2234 = vunpack.c.h.b16 %v1438
        %v2235 = vunpack.c.l.b16 %v1439
        %v2236 = vunpack.c.h.b16 %v1439
        %v2237 = vunpack.c.l.b16 %v1440
        %v2238 = vunpack.c.h.b16 %v1440
        %v2239 = vunpack.c.l.b16 %v1441
        %v2240 = vunpack.c.h.b16 %v1441
        %v2241 = vunpack.c.l.b16 %v1442
        %v2242 = vunpack.c.h.b16 %v1442
        %v2243 = vunpack.c.l.b16 %v1443
        %v2244 = vunpack.c.h.b16 %v1443
        %v2245 = vunpack.c.l.b16 %v1444
        %v2246 = vunpack.c.h.b16 %v1444
        %v2247 = vunpack.c.l.b16 %v1445
        %v2248 = vunpack.c.h.b16 %v1445
        %v2249 = vunpack.c.l.b16 %v1446
        %v2250 = vunpack.c.h.b16 %v1446
        %v2251 = vunpack.c.l.b16 %v1447
        %v2252 = vunpack.c.h.b16 %v1447
        %v2253 = vunpack.c.l.b16 %v1448
        %v2254 = vunpack.c.h.b16 %v1448
        %v2255 = vunpack.c.l.b16 %v1449
        %v2256 = vunpack.c.h.b16 %v1449
        %v2257 = vunpack.c.l.b16 %v1450
        %v2258 = vunpack.c.h.b16 %v1450
        %v2259 = vunpack.c.l.b16 %v1451
        %v2260 = vunpack.c.h.b16 %v1451
        %v2261 = vunpack.c.l.b16 %v1452
        %v2262 = vunpack.c.h.b16 %v1452
        %v2263 = vunpack.c.l.b16 %v1453
        %v2264 = vunpack.c.h.b16 %v1453
        %v2265 = vunpack.c.l.b16 %v1454
        %v2266 = vunpack.c.h.b16 %v1454
        %v2267 = vunpack.c.l.b16 %v1455
        %v2268 = vunpack.c.h.b16 %v1455
        %v2269 = vunpack.c.l.b16 %v1456
        %v2270 = vunpack.c.h.b16 %v1456
        %v2271 = vunpack.c.l.b16 %v1457
        %v2272 = vunpack.c.h.b16 %v1457
        %v2273 = vunpack.c.l.b16 %v1458
        %v2274 = vunpack.c.h.b16 %v1458
        %v2275 = vunpack.c.l.b16 %v1459
        %v2276 = vunpack.c.h.b16 %v1459
        %v2277 = vunpack.c.l.b16 %v1460
        %v2278 = vunpack.c.h.b16 %v1460
        %v2279 = vunpack.c.l.b16 %v1461
        %v2280 = vunpack.c.h.b16 %v1461
        %v2281 = vunpack.c.l.b16 %v1462
        %v2282 = vunpack.c.h.b16 %v1462
        %v2283 = vunpack.c.l.b16 %v1463
        %v2284 = vunpack.c.h.b16 %v1463
        %v2285 = vunpack.c.l.b16 %v1464
        %v2286 = vunpack.c.h.b16 %v1464
        %v2287 = vunpack.c.l.b16 %v1465
        %v2288 = vunpack.c.h.b16 %v1465
        %v2289 = vunpack.c.l.b16 %v1466
        %v2290 = vunpack.c.h.b16 %v1466
        %v2291 = vunpack.c.l.b16 %v1467
        %v2292 = vunpack.c.h.b16 %v1467
        %v2293 = vunpack.c.l.b16 %v1468
        %v2294 = vunpack.c.h.b16 %v1468
        %v2295 = vunpack.c.l.b16 %v1469
        %v2296 = vunpack.c.h.b16 %v1469
        %v2297 = vunpack.c.l.b16 %v1470
        %v2298 = vunpack.c.h.b16 %v1470
        %v2299 = vunpack.c.l.b16 %v1471
        %v2300 = vunpack.c.h.b16 %v1471
        %v2301 = vunpack.c.l.b16 %v1472
        %v2302 = vunpack.c.h.b16 %v1472
        %v2303 = vunpack.c.l.b16 %v1473
        %v2304 = vunpack.c.h.b16 %v1473
        %v2305 = vunpack.c.l.b16 %v1474
        %v2306 = vunpack.c.h.b16 %v1474
        %v2307 = vunpack.c.l.b16 %v1475
        %v2308 = vunpack.c.h.b16 %v1475
        %v2309 = vunpack.c.l.b16 %v1476
        %v2310 = vunpack.c.h.b16 %v1476
        %v2311 = vunpack.c.l.b16 %v1477
        %v2312 = vunpack.c.h.b16 %v1477
        %v2313 = vunpack.c.l.b16 %v1478
        %v2314 = vunpack.c.h.b16 %v1478
        %v2315 = vunpack.c.l.b16 %v1479
        %v2316 = vunpack.c.h.b16 %v1479
        %v2317 = vunpack.c.l.b16 %v1480
        %v2318 = vunpack.c.h.b16 %v1480
        %v2319 = vunpack.c.l.b16 %v1481
        %v2320 = vunpack.c.h.b16 %v1481
        %v2321 = vunpack.c.l.b16 %v1482
        %v2322 = vunpack.c.h.b16 %v1482
        %v2323 = vunpack.c.l.b16 %v1483
        %v2324 = vunpack.c.h.b16 %v1483
        %v2325 = vunpack.c.l.b16 %v1484
        %v2326 = vunpack.c.h.b16 %v1484
        %v2327 = vunpack.c.l.b16 %v1485
        %v2328 = vunpack.c.h.b16 %v1485
        %v2329 = vunpack.c.l.b16 %v1486
        %v2330 = vunpack.c.h.b16 %v1486
        %v2331 = vunpack.c.l.b16 %v1487
        %v2332 = vunpack.c.h.b16 %v1487
        %v2333 = vunpack.c.l.b16 %v1488
        %v2334 = vunpack.c.h.b16 %v1488
        %v2335 = vunpack.c.l.b16 %v1489
        %v2336 = vunpack.c.h.b16 %v1489
        %v2337 = vunpack.c.l.b16 %v1490
        %v2338 = vunpack.c.h.b16 %v1490
        %v2339 = vunpack.c.l.b16 %v1491
        %v2340 = vunpack.c.h.b16 %v1491
        %v2341 = vunpack.c.l.b16 %v1492
        %v2342 = vunpack.c.h.b16 %v1492
        %v2343 = vunpack.c.l.b16 %v1493
        %v2344 = vunpack.c.h.b16 %v1493
        %v2345 = vunpack.c.l.b16 %v1494
        %v2346 = vunpack.c.h.b16 %v1494
        %v2347 = vunpack.c.l.b16 %v1495
        %v2348 = vunpack.c.h.b16 %v1495
        %v2349 = vunpack.c.l.b16 %v1496
        %v2350 = vunpack.c.h.b16 %v1496
        %v2351 = vunpack.c.l.b16 %v1497
        %v2352 = vunpack.c.h.b16 %v1497
        %v2353 = vunpack.c.l.b16 %v1498
        %v2354 = vunpack.c.h.b16 %v1498
        %v2355 = vunpack.c.l.b16 %v1499
        %v2356 = vunpack.c.h.b16 %v1499
        %v2357 = vunpack.c.l.b16 %v1500
        %v2358 = vunpack.c.h.b16 %v1500
        %v2359 = vunpack.c.l.b16 %v1501
        %v2360 = vunpack.c.h.b16 %v1501
        %v2361 = vunpack.c.l.b16 %v1502
        %v2362 = vunpack.c.h.b16 %v1502
        %v2363 = vunpack.c.l.b16 %v1503
        %v2364 = vunpack.c.h.b16 %v1503
        %v2365 = vunpack.c.l.b16 %v1504
        %v2366 = vunpack.c.h.b16 %v1504
        %v2367 = vunpack.c.l.b16 %v1505
        %v2368 = vunpack.c.h.b16 %v1505
        %v2369 = vunpack.c.l.b16 %v1506
        %v2370 = vunpack.c.h.b16 %v1506
        %v2371 = vunpack.c.l.b16 %v1507
        %v2372 = vunpack.c.h.b16 %v1507
        %v2373 = vunpack.c.l.b16 %v1508
        %v2374 = vunpack.c.h.b16 %v1508
        %v2375 = vunpack.c.l.b16 %v1509
        %v2376 = vunpack.c.h.b16 %v1509
        %v2377 = vunpack.c.l.b16 %v1510
        %v2378 = vunpack.c.h.b16 %v1510
        %v2379 = vunpack.c.l.b16 %v1511
        %v2380 = vunpack.c.h.b16 %v1511
        %v2381 = vunpack.c.l.b16 %v1512
        %v2382 = vunpack.c.h.b16 %v1512
        %v2383 = vunpack.c.l.b16 %v1513
        %v2384 = vunpack.c.h.b16 %v1513
        %v2385 = vunpack.c.l.b16 %v1514
        %v2386 = vunpack.c.h.b16 %v1514
        %v2387 = vunpack.c.l.b16 %v1515
        %v2388 = vunpack.c.h.b16 %v1515
        %v2389 = vunpack.c.l.b16 %v1516
        %v2390 = vunpack.c.h.b16 %v1516
        %v2391 = vunpack.c.l.b16 %v1517
        %v2392 = vunpack.c.h.b16 %v1517
        %v2393 = vunpack.c.l.b16 %v1518
        %v2394 = vunpack.c.h.b16 %v1518
        %v2395 = vunpack.c.l.b16 %v1519
        %v2396 = vunpack.c.h.b16 %v1519
        %v2397 = vunpack.c.l.b16 %v1520
        %v2398 = vunpack.c.h.b16 %v1520
        %v2399 = vunpack.c.l.b16 %v1521
        %v2400 = vunpack.c.h.b16 %v1521
        %v2401 = vunpack.c.l.b16 %v1522
        %v2402 = vunpack.c.h.b16 %v1522
        %v2403 = vunpack.c.l.b16 %v1523
        %v2404 = vunpack.c.h.b16 %v1523
        %v2405 = vunpack.c.l.b16 %v1524
        %v2406 = vunpack.c.h.b16 %v1524
        %v2407 = vunpack.c.l.b16 %v1525
        %v2408 = vunpack.c.h.b16 %v1525
        %v2409 = vunpack.c.l.b16 %v1526
        %v2410 = vunpack.c.h.b16 %v1526
        %v2411 = vunpack.c.l.b16 %v1527
        %v2412 = vunpack.c.h.b16 %v1527
        %v2413 = vunpack.c.l.b16 %v1528
        %v2414 = vunpack.c.h.b16 %v1528
        %v2415 = vunpack.c.l.b16 %v1529
        %v2416 = vunpack.c.h.b16 %v1529
        %v2417 = vunpack.c.l.b16 %v1530
        %v2418 = vunpack.c.h.b16 %v1530
        %v2419 = vunpack.c.l.b16 %v1531
        %v2420 = vunpack.c.h.b16 %v1531
        %v2421 = vunpack.c.l.b16 %v1532
        %v2422 = vunpack.c.h.b16 %v1532
        %v2423 = vunpack.c.l.b16 %v1533
        %v2424 = vunpack.c.h.b16 %v1533
        %v2425 = vunpack.c.l.b16 %v1534
        %v2426 = vunpack.c.h.b16 %v1534
        %v2427 = vunpack.c.l.b16 %v1535
        %v2428 = vunpack.c.h.b16 %v1535
        %v2429 = vunpack.c.l.b16 %v1536
        %v2430 = vunpack.c.h.b16 %v1536
        %v2431 = vunpack.c.l.b16 %v1537
        %v2432 = vunpack.c.h.b16 %v1537
        %v2433 = vunpack.c.l.b16 %v1538
        %v2434 = vunpack.c.h.b16 %v1538
        %v2435 = vunpack.c.l.b16 %v1539
        %v2436 = vunpack.c.h.b16 %v1539
        %v2437 = vunpack.c.l.b16 %v1540
        %v2438 = vunpack.c.h.b16 %v1540
        %v2439 = vunpack.c.l.b16 %v1541
        %v2440 = vunpack.c.h.b16 %v1541
        %v2441 = vunpack.c.l.b16 %v1542
        %v2442 = vunpack.c.h.b16 %v1542
        %v2443 = vunpack.c.l.b16 %v1543
        %v2444 = vunpack.c.h.b16 %v1543
        %v2445 = vunpack.c.l.b16 %v1544
        %v2446 = vunpack.c.h.b16 %v1544
        %v2447 = vunpack.c.l.b16 %v1545
        %v2448 = vunpack.c.h.b16 %v1545
        %v2449 = vunpack.c.l.b16 %v1546
        %v2450 = vunpack.c.h.b16 %v1546
        %v2451 = vunpack.c.l.b16 %v1547
        %v2452 = vunpack.c.h.b16 %v1547
        %v2453 = vunpack.c.l.b16 %v1548
        %v2454 = vunpack.c.h.b16 %v1548
        %v2455 = vunpack.c.l.b16 %v1549
        %v2456 = vunpack.c.h.b16 %v1549
        %v2457 = vunpack.c.l.b16 %v1550
        %v2458 = vunpack.c.h.b16 %v1550
        %v2459 = vunpack.c.l.b16 %v1551
        %v2460 = vunpack.c.h.b16 %v1551
        %v2461 = vunpack.c.l.b16 %v1552
        %v2462 = vunpack.c.h.b16 %v1552
        %v2463 = vunpack.c.l.b16 %v1553
        %v2464 = vunpack.c.h.b16 %v1553
        %v2465 = vunpack.c.l.b16 %v1554
        %v2466 = vunpack.c.h.b16 %v1554
        %v2467 = vunpack.c.l.b16 %v1555
        %v2468 = vunpack.c.h.b16 %v1555
        %v2469 = vunpack.c.l.b16 %v1556
        %v2470 = vunpack.c.h.b16 %v1556
        %v2471 = vunpack.c.l.b16 %v1557
        %v2472 = vunpack.c.h.b16 %v1557
        %v2473 = vunpack.c.l.b16 %v1558
        %v2474 = vunpack.c.h.b16 %v1558
        %v2475 = vunpack.c.l.b16 %v1559
        %v2476 = vunpack.c.h.b16 %v1559
        %v2477 = vunpack.c.l.b16 %v1560
        %v2478 = vunpack.c.h.b16 %v1560
        %v2479 = vunpack.c.l.b16 %v1561
        %v2480 = vunpack.c.h.b16 %v1561
        %v2481 = vunpack.c.l.b16 %v1562
        %v2482 = vunpack.c.h.b16 %v1562
        %v2483 = vunpack.c.l.b16 %v1563
        %v2484 = vunpack.c.h.b16 %v1563
        %v2485 = vunpack.c.l.b16 %v1564
        %v2486 = vunpack.c.h.b16 %v1564
        %v2487 = vunpack.c.l.b16 %v1565
        %v2488 = vunpack.c.h.b16 %v1565
        %v2489 = vunpack.c.l.b16 %v1566
        %v2490 = vunpack.c.h.b16 %v1566
        %v2491 = vunpack.c.l.b16 %v1567
        %v2492 = vunpack.c.h.b16 %v1567
        %v2493 = vunpack.c.l.b16 %v1568
        %v2494 = vunpack.c.h.b16 %v1568
        %v2495 = vunpack.c.l.b16 %v1569
        %v2496 = vunpack.c.h.b16 %v1569
        %v2497 = vunpack.c.l.b16 %v1570
        %v2498 = vunpack.c.h.b16 %v1570
        %v2499 = vunpack.c.l.b16 %v1571
        %v2500 = vunpack.c.h.b16 %v1571
        %v2501 = vunpack.c.l.b16 %v1572
        %v2502 = vunpack.c.h.b16 %v1572
        %v2503 = vunpack.c.l.b16 %v1573
        %v2504 = vunpack.c.h.b16 %v1573
        %v2505 = vunpack.c.l.b16 %v1574
        %v2506 = vunpack.c.h.b16 %v1574
        %v2507 = vunpack.c.l.b16 %v1575
        %v2508 = vunpack.c.h.b16 %v1575
        %v2509 = vunpack.c.l.b16 %v1576
        %v2510 = vunpack.c.h.b16 %v1576
        %v2511 = vunpack.c.l.b16 %v1577
        %v2512 = vunpack.c.h.b16 %v1577
        %v2513 = vunpack.c.l.b16 %v1578
        %v2514 = vunpack.c.h.b16 %v1578
        %v2515 = vunpack.c.l.b16 %v1579
        %v2516 = vunpack.c.h.b16 %v1579
        %v2517 = vunpack.c.l.b16 %v1580
        %v2518 = vunpack.c.h.b16 %v1580
        %v2519 = vunpack.c.l.b16 %v1581
        %v2520 = vunpack.c.h.b16 %v1581
        %v2521 = vunpack.c.l.b16 %v1582
        %v2522 = vunpack.c.h.b16 %v1582
        %v2523 = vunpack.c.l.b16 %v1583
        %v2524 = vunpack.c.h.b16 %v1583
        %v2525 = vunpack.c.l.b16 %v1584
        %v2526 = vunpack.c.h.b16 %v1584
        %v2527 = vunpack.c.l.b16 %v1585
        %v2528 = vunpack.c.h.b16 %v1585
        %v2529 = vunpack.c.l.b16 %v1586
        %v2530 = vunpack.c.h.b16 %v1586
        %v2531 = vunpack.c.l.b16 %v1587
        %v2532 = vunpack.c.h.b16 %v1587
        %v2533 = vunpack.c.l.b16 %v1588
        %v2534 = vunpack.c.h.b16 %v1588
        %v2535 = vunpack.c.l.b16 %v1589
        %v2536 = vunpack.c.h.b16 %v1589
        %v2537 = vunpack.c.l.b16 %v1590
        %v2538 = vunpack.c.h.b16 %v1590
        %v2539 = vunpack.c.l.b16 %v1591
        %v2540 = vunpack.c.h.b16 %v1591
        %v2541 = vunpack.c.l.b16 %v1592
        %v2542 = vunpack.c.h.b16 %v1592
        %v2543 = vunpack.c.l.b16 %v1593
        %v2544 = vunpack.c.h.b16 %v1593
        %v2545 = vunpack.c.l.b16 %v1594
        %v2546 = vunpack.c.h.b16 %v1594
        %v2547 = vunpack.c.l.b16 %v1595
        %v2548 = vunpack.c.h.b16 %v1595
        %v2549 = vunpack.c.l.b16 %v1596
        %v2550 = vunpack.c.h.b16 %v1596
        %v2551 = vunpack.c.l.b16 %v1597
        %v2552 = vunpack.c.h.b16 %v1597
        %v2553 = vunpack.c.l.b16 %v1598
        %v2554 = vunpack.c.h.b16 %v1598
        %v2555 = vunpack.c.l.b16 %v1599
        %v2556 = vunpack.c.h.b16 %v1599
        %v2557 = vunpack.c.l.b16 %v1600
        %v2558 = vunpack.c.h.b16 %v1600
        %v2559 = vunpack.c.l.b16 %v1601
        %v2560 = vunpack.c.h.b16 %v1601
        %v2561 = vunpack.c.l.b16 %v1602
        %v2562 = vunpack.c.h.b16 %v1602
        %v2563 = vunpack.c.l.b16 %v1603
        %v2564 = vunpack.c.h.b16 %v1603
        %v2565 = vunpack.c.l.b16 %v1604
        %v2566 = vunpack.c.h.b16 %v1604
        %v2567 = vunpack.c.l.b16 %v1605
        %v2568 = vunpack.c.h.b16 %v1605
        %v2569 = vunpack.c.l.b16 %v1606
        %v2570 = vunpack.c.h.b16 %v1606
        %v2571 = vunpack.c.l.b16 %v1607
        %v2572 = vunpack.c.h.b16 %v1607
        %v2573 = vunpack.c.l.b16 %v1608
        %v2574 = vunpack.c.h.b16 %v1608
        %v2575 = vunpack.c.l.b16 %v1609
        %v2576 = vunpack.c.h.b16 %v1609
        %v2577 = vunpack.c.l.b16 %v1610
        %v2578 = vunpack.c.h.b16 %v1610
        %v2579 = vunpack.c.l.b16 %v1611
        %v2580 = vunpack.c.h.b16 %v1611
        %v2581 = vunpack.c.l.b16 %v1612
        %v2582 = vunpack.c.h.b16 %v1612
        %v2583 = vunpack.c.l.b16 %v1613
        %v2584 = vunpack.c.h.b16 %v1613
        %v2585 = vunpack.c.l.b16 %v1614
        %v2586 = vunpack.c.h.b16 %v1614
        %v2587 = vunpack.c.l.b16 %v1615
        %v2588 = vunpack.c.h.b16 %v1615
        %v2589 = vunpack.c.l.b16 %v1616
        %v2590 = vunpack.c.h.b16 %v1616
        %v2591 = vunpack.c.l.b16 %v1617
        %v2592 = vunpack.c.h.b16 %v1617
        %v2593 = vunpack.c.l.b16 %v1618
        %v2594 = vunpack.c.h.b16 %v1618
        %v2595 = vunpack.c.l.b16 %v1619
        %v2596 = vunpack.c.h.b16 %v1619
        %v2597 = vunpack.c.l.b16 %v1620
        %v2598 = vunpack.c.h.b16 %v1620
        %v2599 = vunpack.c.l.b16 %v1621
        %v2600 = vunpack.c.h.b16 %v1621
        %v2601 = vunpack.c.l.b16 %v1622
        %v2602 = vunpack.c.h.b16 %v1622
        %v2603 = vunpack.c.l.b16 %v1623
        %v2604 = vunpack.c.h.b16 %v1623
        %v2605 = vunpack.c.l.b16 %v1624
        %v2606 = vunpack.c.h.b16 %v1624
        %v2607 = vunpack.c.l.b16 %v1625
        %v2608 = vunpack.c.h.b16 %v1625
        %v2609 = vunpack.c.l.b16 %v1626
        %v2610 = vunpack.c.h.b16 %v1626
        %v2611 = vunpack.c.l.b16 %v1627
        %v2612 = vunpack.c.h.b16 %v1627
        %v2613 = vunpack.c.l.b16 %v1628
        %v2614 = vunpack.c.h.b16 %v1628
        %v2615 = vunpack.c.l.b16 %v1629
        %v2616 = vunpack.c.h.b16 %v1629
        %v2617 = vunpack.c.l.b16 %v1630
        %v2618 = vunpack.c.h.b16 %v1630
        %v2619 = vunpack.c.l.b16 %v1631
        %v2620 = vunpack.c.h.b16 %v1631
        %v2621 = vunpack.c.l.b16 %v1632
        %v2622 = vunpack.c.h.b16 %v1632
        %v2623 = vunpack.c.l.b16 %v1633
        %v2624 = vunpack.c.h.b16 %v1633
        %v2625 = vunpack.c.l.b16 %v1634
        %v2626 = vunpack.c.h.b16 %v1634
        %v2627 = vunpack.c.l.b16 %v1635
        %v2628 = vunpack.c.h.b16 %v1635
        %v2629 = vunpack.c.l.b16 %v1636
        %v2630 = vunpack.c.h.b16 %v1636
        %v2631 = vunpack.c.l.b16 %v1637
        %v2632 = vunpack.c.h.b16 %v1637
        %v2633 = vunpack.c.l.b16 %v1638
        %v2634 = vunpack.c.h.b16 %v1638
        %v2635 = vunpack.c.l.b16 %v1639
        %v2636 = vunpack.c.h.b16 %v1639
        %v2637 = vunpack.c.l.b16 %v1640
        %v2638 = vunpack.c.h.b16 %v1640
        %v2639 = vunpack.c.l.b16 %v1641
        %v2640 = vunpack.c.h.b16 %v1641
        %v2641 = vunpack.c.l.b16 %v1642
        %v2642 = vunpack.c.h.b16 %v1642
        %v2643 = vunpack.c.l.b16 %v1643
        %v2644 = vunpack.c.h.b16 %v1643
        %v2645 = vunpack.c.l.b16 %v1644
        %v2646 = vunpack.c.h.b16 %v1644
        %v2647 = vunpack.c.l.b16 %v1645
        %v2648 = vunpack.c.h.b16 %v1645
        %v2649 = vunpack.c.l.b16 %v1646
        %v2650 = vunpack.c.h.b16 %v1646
        %v2651 = vunpack.c.l.b16 %v1647
        %v2652 = vunpack.c.h.b16 %v1647
        %v2653 = vunpack.c.l.b16 %v1648
        %v2654 = vunpack.c.h.b16 %v1648
        %v2655 = vunpack.c.l.b16 %v1649
        %v2656 = vunpack.c.h.b16 %v1649
        %v2657 = vunpack.c.l.b16 %v1650
        %v2658 = vunpack.c.h.b16 %v1650
        %v2659 = vunpack.c.l.b16 %v1651
        %v2660 = vunpack.c.h.b16 %v1651
        %v2661 = vunpack.c.l.b16 %v1652
        %v2662 = vunpack.c.h.b16 %v1652
        %v2663 = vunpack.c.l.b16 %v1653
        %v2664 = vunpack.c.h.b16 %v1653
        %v2665 = vunpack.c.l.b16 %v1654
        %v2666 = vunpack.c.h.b16 %v1654
        %v2667 = vunpack.c.l.b16 %v1655
        %v2668 = vunpack.c.h.b16 %v1655
        %v2669 = vunpack.c.l.b16 %v1656
        %v2670 = vunpack.c.h.b16 %v1656
        %v2671 = vunpack.c.l.b16 %v1657
        %v2672 = vunpack.c.h.b16 %v1657
        %v2673 = vunpack.c.l.b16 %v1658
        %v2674 = vunpack.c.h.b16 %v1658
        %v2675 = vunpack.c.l.b16 %v1659
        %v2676 = vunpack.c.h.b16 %v1659
        %v2677 = vunpack.c.l.b16 %v1660
        %v2678 = vunpack.c.h.b16 %v1660
        %v2679 = vunpack.c.l.b16 %v1661
        %v2680 = vunpack.c.h.b16 %v1661
        %v2681 = vunpack.c.l.b16 %v1662
        %v2682 = vunpack.c.h.b16 %v1662
        %v2683 = vunpack.c.l.b16 %v1663
        %v2684 = vunpack.c.h.b16 %v1663
        %v2685 = vunpack.c.l.b16 %v1664
        %v2686 = vunpack.c.h.b16 %v1664
        %v2687 = vunpack.c.l.b16 %v1665
        %v2688 = vunpack.c.h.b16 %v1665
        %v2689 = vunpack.c.l.b16 %v1666
        %v2690 = vunpack.c.h.b16 %v1666
        %v2691 = vunpack.c.l.b16 %v1667
        %v2692 = vunpack.c.h.b16 %v1667
        %v2693 = vunpack.c.l.b16 %v1668
        %v2694 = vunpack.c.h.b16 %v1668
        %v2695 = vunpack.c.l.b16 %v1669
        %v2696 = vunpack.c.h.b16 %v1669
        %v2697 = vunpack.c.l.b16 %v1670
        %v2698 = vunpack.c.h.b16 %v1670
        %v2699 = vunpack.c.l.b16 %v1671
        %v2700 = vunpack.c.h.b16 %v1671
        %v2701 = vunpack.c.l.b16 %v1672
        %v2702 = vunpack.c.h.b16 %v1672
        %v2703 = vunpack.c.l.b16 %v1673
        %v2704 = vunpack.c.h.b16 %v1673
        %v2705 = vunpack.c.l.b16 %v1674
        %v2706 = vunpack.c.h.b16 %v1674
        %v2707 = vunpack.c.l.b16 %v1675
        %v2708 = vunpack.c.h.b16 %v1675
        %v2709 = vunpack.c.l.b16 %v1676
        %v2710 = vunpack.c.h.b16 %v1676
        %v2711 = vunpack.c.l.b16 %v1677
        %v2712 = vunpack.c.h.b16 %v1677
        %v2713 = vunpack.c.l.b16 %v1678
        %v2714 = vunpack.c.h.b16 %v1678
        %v2715 = vunpack.c.l.b16 %v1679
        %v2716 = vunpack.c.h.b16 %v1679
        %v2717 = vunpack.c.l.b16 %v1680
        %v2718 = vunpack.c.h.b16 %v1680
        %v2719 = vunpack.c.l.b16 %v1681
        %v2720 = vunpack.c.h.b16 %v1681
        %v2721 = vunpack.c.l.b16 %v1682
        %v2722 = vunpack.c.h.b16 %v1682
        %v2723 = vunpack.c.l.b16 %v1683
        %v2724 = vunpack.c.h.b16 %v1683
        %v2725 = vunpack.c.l.b16 %v1684
        %v2726 = vunpack.c.h.b16 %v1684
        %v2727 = vunpack.c.l.b16 %v1685
        %v2728 = vunpack.c.h.b16 %v1685
        %v2729 = vunpack.c.l.b16 %v1686
        %v2730 = vunpack.c.h.b16 %v1686
        %v2731 = vunpack.c.l.b16 %v1687
        %v2732 = vunpack.c.h.b16 %v1687
        %v2733 = vunpack.c.l.b16 %v1688
        %v2734 = vunpack.c.h.b16 %v1688
        %v2735 = vunpack.c.l.b16 %v1689
        %v2736 = vunpack.c.h.b16 %v1689
        %v2737 = vunpack.c.l.b16 %v1690
        %v2738 = vunpack.c.h.b16 %v1690
        %v2739 = vunpack.c.l.b16 %v1691
        %v2740 = vunpack.c.h.b16 %v1691
        %v2741 = vunpack.c.l.b16 %v1692
        %v2742 = vunpack.c.h.b16 %v1692
        %v2743 = vunpack.c.l.b16 %v1693
        %v2744 = vunpack.c.h.b16 %v1693
        %v2745 = vunpack.c.l.b16 %v1694
        %v2746 = vunpack.c.h.b16 %v1694
        %v2747 = vunpack.c.l.b16 %v1695
        %v2748 = vunpack.c.h.b16 %v1695
        %v2749 = vunpack.c.l.b16 %v1696
        %v2750 = vunpack.c.h.b16 %v1696
        %v2751 = vunpack.c.l.b16 %v1697
        %v2752 = vunpack.c.h.b16 %v1697
        %v2753 = vunpack.c.l.b16 %v1698
        %v2754 = vunpack.c.h.b16 %v1698
        %v2755 = vpack.c.b16 %v2181, %v2179
        %v2756 = vpack.c.b16 %v2182, %v2180
        %v2757 = vpack.c.b16 %v2185, %v2183
        %v2758 = vpack.c.b16 %v2186, %v2184
        %v2759 = vpack.c.b16 %v2189, %v2187
        %v2760 = vpack.c.b16 %v2190, %v2188
        %v2761 = vpack.c.b16 %v2193, %v2191
        %v2762 = vpack.c.b16 %v2194, %v2192
        %v2763 = vpack.c.b16 %v2197, %v2195
        %v2764 = vpack.c.b16 %v2198, %v2196
        %v2765 = vpack.c.b16 %v2201, %v2199
        %v2766 = vpack.c.b16 %v2202, %v2200
        %v2767 = vpack.c.b16 %v2205, %v2203
        %v2768 = vpack.c.b16 %v2206, %v2204
        %v2769 = vpack.c.b16 %v2209, %v2207
        %v2770 = vpack.c.b16 %v2210, %v2208
        %v2771 = vpack.c.b16 %v2213, %v2211
        %v2772 = vpack.c.b16 %v2214, %v2212
        %v2773 = vpack.c.b16 %v2217, %v2215
        %v2774 = vpack.c.b16 %v2218, %v2216
        %v2775 = vpack.c.b16 %v2221, %v2219
        %v2776 = vpack.c.b16 %v2222, %v2220
        %v2777 = vpack.c.b16 %v2225, %v2223
        %v2778 = vpack.c.b16 %v2226, %v2224
        %v2779 = vpack.c.b16 %v2229, %v2227
        %v2780 = vpack.c.b16 %v2230, %v2228
        %v2781 = vpack.c.b16 %v2233, %v2231
        %v2782 = vpack.c.b16 %v2234, %v2232
        %v2783 = vpack.c.b16 %v2237, %v2235
        %v2784 = vpack.c.b16 %v2238, %v2236
        %v2785 = vpack.c.b16 %v2241, %v2239
        %v2786 = vpack.c.b16 %v2242, %v2240
        %v2787 = vpack.c.b16 %v2245, %v2243
        %v2788 = vpack.c.b16 %v2246, %v2244
        %v2789 = vpack.c.b16 %v2249, %v2247
        %v2790 = vpack.c.b16 %v2250, %v2248
        %v2791 = vpack.c.b16 %v2253, %v2251
        %v2792 = vpack.c.b16 %v2254, %v2252
        %v2793 = vpack.c.b16 %v2257, %v2255
        %v2794 = vpack.c.b16 %v2258, %v2256
        %v2795 = vpack.c.b16 %v2261, %v2259
        %v2796 = vpack.c.b16 %v2262, %v2260
        %v2797 = vpack.c.b16 %v2265, %v2263
        %v2798 = vpack.c.b16 %v2266, %v2264
        %v2799 = vpack.c.b16 %v2269, %v2267
        %v2800 = vpack.c.b16 %v2270, %v2268
        %v2801 = vpack.c.b16 %v2273, %v2271
        %v2802 = vpack.c.b16 %v2274, %v2272
        %v2803 = vpack.c.b16 %v2277, %v2275
        %v2804 = vpack.c.b16 %v2278, %v2276
        %v2805 = vpack.c.b16 %v2281, %v2279
        %v2806 = vpack.c.b16 %v2282, %v2280
        %v2807 = vpack.c.b16 %v2285, %v2283
        %v2808 = vpack.c.b16 %v2286, %v2284
        %v2809 = vpack.c.b16 %v2289, %v2287
        %v2810 = vpack.c.b16 %v2290, %v2288
        %v2811 = vpack.c.b16 %v2293, %v2291
        %v2812 = vpack.c.b16 %v2294, %v2292
        %v2813 = vpack.c.b16 %v2297, %v2295
        %v2814 = vpack.c.b16 %v2298, %v2296
        %v2815 = vpack.c.b16 %v2301, %v2299
        %v2816 = vpack.c.b16 %v2302, %v2300
        %v2817 = vpack.c.b16 %v2305, %v2303
        %v2818 = vpack.c.b16 %v2306, %v2304
        %v2819 = vpack.c.b16 %v2309, %v2307
        %v2820 = vpack.c.b16 %v2310, %v2308
        %v2821 = vpack.c.b16 %v2313, %v2311
        %v2822 = vpack.c.b16 %v2314, %v2312
        %v2823 = vpack.c.b16 %v2317, %v2315
        %v2824 = vpack.c.b16 %v2318, %v2316
        %v2825 = vpack.c.b16 %v2321, %v2319
        %v2826 = vpack.c.b16 %v2322, %v2320
        %v2827 = vpack.c.b16 %v2325, %v2323
        %v2828 = vpack.c.b16 %v2326, %v2324
        %v2829 = vpack.c.b16 %v2329, %v2327
        %v2830 = vpack.c.b16 %v2330, %v2328
        %v2831 = vpack.c.b16 %v2333, %v2331
        %v2832 = vpack.c.b16 %v2334, %v2332
        %v2833 = vpack.c.b16 %v2337, %v2335
        %v2834 = vpack.c.b16 %v2338, %v2336
        %v2835 = vpack.c.b16 %v2341, %v2339
        %v2836 = vpack.c.b16 %v2342, %v2340
        %v2837 = vpack.c.b16 %v2345, %v2343
        %v2838 = vpack.c.b16 %v2346, %v2344
        %v2839 = vpack.c.b16 %v2349, %v2347
        %v2840 = vpack.c.b16 %v2350, %v2348
        %v2841 = vpack.c.b16 %v2353, %v2351
        %v2842 = vpack.c.b16 %v2354, %v2352
        %v2843 = vpack.c.b16 %v2357, %v2355
        %v2844 = vpack.c.b16 %v2358, %v2356
        %v2845 = vpack.c.b16 %v2361, %v2359
        %v2846 = vpack.c.b16 %v2362, %v2360
        %v2847 = vpack.c.b16 %v2365, %v2363
        %v2848 = vpack.c.b16 %v2366, %v2364
        %v2849 = vpack.c.b16 %v2369, %v2367
        %v2850 = vpack.c.b16 %v2370, %v2368
        %v2851 = vpack.c.b16 %v2373, %v2371
        %v2852 = vpack.c.b16 %v2374, %v2372
        %v2853 = vpack.c.b16 %v2377, %v2375
        %v2854 = vpack.c.b16 %v2378, %v2376
        %v2855 = vpack.c.b16 %v2381, %v2379
        %v2856 = vpack.c.b16 %v2382, %v2380
        %v2857 = vpack.c.b16 %v2385, %v2383
        %v2858 = vpack.c.b16 %v2386, %v2384
        %v2859 = vpack.c.b16 %v2389, %v2387
        %v2860 = vpack.c.b16 %v2390, %v2388
        %v2861 = vpack.c.b16 %v2393, %v2391
        %v2862 = vpack.c.b16 %v2394, %v2392
        %v2863 = vpack.c.b16 %v2397, %v2395
        %v2864 = vpack.c.b16 %v2398, %v2396
        %v2865 = vpack.c.b16 %v2401, %v2399
        %v2866 = vpack.c.b16 %v2402, %v2400
        %v2867 = vpack.c.b16 %v2405, %v2403
        %v2868 = vpack.c.b16 %v2406, %v2404
        %v2869 = vpack.c.b16 %v2409, %v2407
        %v2870 = vpack.c.b16 %v2410, %v2408
        %v2871 = vpack.c.b16 %v2413, %v2411
        %v2872 = vpack.c.b16 %v2414, %v2412
        %v2873 = vpack.c.b16 %v2417, %v2415
        %v2874 = vpack.c.b16 %v2418, %v2416
        %v2875 = vpack.c.b16 %v2421, %v2419
        %v2876 = vpack.c.b16 %v2422, %v2420
        %v2877 = vpack.c.b16 %v2425, %v2423
        %v2878 = vpack.c.b16 %v2426, %v2424
        %v2879 = vpack.c.b16 %v2429, %v2427
        %v2880 = vpack.c.b16 %v2430, %v2428
        %v2881 = vpack.c.b16 %v2433, %v2431
        %v2882 = vpack.c.b16 %v2434, %v2432
        %v2883 = vpack.c.b16 %v2437, %v2435
        %v2884 = vpack.c.b16 %v2438, %v2436
        %v2885 = vpack.c.b16 %v2441, %v2439
        %v2886 = vpack.c.b16 %v2442, %v2440
        %v2887 = vpack.c.b16 %v2445, %v2443
        %v2888 = vpack.c.b16 %v2446, %v2444
        %v2889 = vpack.c.b16 %v2449, %v2447
        %v2890 = vpack.c.b16 %v2450, %v2448
        %v2891 = vpack.c.b16 %v2453, %v2451
        %v2892 = vpack.c.b16 %v2454, %v2452
        %v2893 = vpack.c.b16 %v2457, %v2455
        %v2894 = vpack.c.b16 %v2458, %v2456
        %v2895 = vpack.c.b16 %v2461, %v2459
        %v2896 = vpack.c.b16 %v2462, %v2460
        %v2897 = vpack.c.b16 %v2465, %v2463
        %v2898 = vpack.c.b16 %v2466, %v2464
        %v2899 = vpack.c.b16 %v2469, %v2467
        %v2900 = vpack.c.b16 %v2470, %v2468
        %v2901 = vpack.c.b16 %v2473, %v2471
        %v2902 = vpack.c.b16 %v2474, %v2472
        %v2903 = vpack.c.b16 %v2477, %v2475
        %v2904 = vpack.c.b16 %v2478, %v2476
        %v2905 = vpack.c.b16 %v2481, %v2479
        %v2906 = vpack.c.b16 %v2482, %v2480
        %v2907 = vpack.c.b16 %v2485, %v2483
        %v2908 = vpack.c.b16 %v2486, %v2484
        %v2909 = vpack.c.b16 %v2489, %v2487
        %v2910 = vpack.c.b16 %v2490, %v2488
        %v2911 = vpack.c.b16 %v2493, %v2491
        %v2912 = vpack.c.b16 %v2494, %v2492
        %v2913 = vpack.c.b16 %v2497, %v2495
        %v2914 = vpack.c.b16 %v2498, %v2496
        %v2915 = vpack.c.b16 %v2501, %v2499
        %v2916 = vpack.c.b16 %v2502, %v2500
        %v2917 = vpack.c.b16 %v2505, %v2503
        %v2918 = vpack.c.b16 %v2506, %v2504
        %v2919 = vpack.c.b16 %v2509, %v2507
        %v2920 = vpack.c.b16 %v2510, %v2508
        %v2921 = vpack.c.b16 %v2513, %v2511
        %v2922 = vpack.c.b16 %v2514, %v2512
        %v2923 = vpack.c.b16 %v2517, %v2515
        %v2924 = vpack.c.b16 %v2518, %v2516
        %v2925 = vpack.c.b16 %v2521, %v2519
        %v2926 = vpack.c.b16 %v2522, %v2520
        %v2927 = vpack.c.b16 %v2525, %v2523
        %v2928 = vpack.c.b16 %v2526, %v2524
        %v2929 = vpack.c.b16 %v2529, %v2527
        %v2930 = vpack.c.b16 %v2530, %v2528
        %v2931 = vpack.c.b16 %v2533, %v2531
        %v2932 = vpack.c.b16 %v2534, %v2532
        %v2933 = vpack.c.b16 %v2537, %v2535
        %v2934 = vpack.c.b16 %v2538, %v2536
        %v2935 = vpack.c.b16 %v2541, %v2539
        %v2936 = vpack.c.b16 %v2542, %v2540
        %v2937 = vpack.c.b16 %v2545, %v2543
        %v2938 = vpack.c.b16 %v2546, %v2544
        %v2939 = vpack.c.b16 %v2549, %v2547
        %v2940 = vpack.c.b16 %v2550, %v2548
        %v2941 = vpack.c.b16 %v2553, %v2551
        %v2942 = vpack.c.b16 %v2554, %v2552
        %v2943 = vpack.c.b16 %v2557, %v2555
        %v2944 = vpack.c.b16 %v2558, %v2556
        %v2945 = vpack.c.b16 %v2561, %v2559
        %v2946 = vpack.c.b16 %v2562, %v2560
        %v2947 = vpack.c.b16 %v2565, %v2563
        %v2948 = vpack.c.b16 %v2566, %v2564
        %v2949 = vpack.c.b16 %v2569, %v2567
        %v2950 = vpack.c.b16 %v2570, %v2568
        %v2951 = vpack.c.b16 %v2573, %v2571
        %v2952 = vpack.c.b16 %v2574, %v2572
        %v2953 = vpack.c.b16 %v2577, %v2575
        %v2954 = vpack.c.b16 %v2578, %v2576
        %v2955 = vpack.c.b16 %v2581, %v2579
        %v2956 = vpack.c.b16 %v2582, %v2580
        %v2957 = vpack.c.b16 %v2585, %v2583
        %v2958 = vpack.c.b16 %v2586, %v2584
        %v2959 = vpack.c.b16 %v2589, %v2587
        %v2960 = vpack.c.b16 %v2590, %v2588
        %v2961 = vpack.c.b16 %v2593, %v2591
        %v2962 = vpack.c.b16 %v2594, %v2592
        %v2963 = vpack.c.b16 %v2597, %v2595
        %v2964 = vpack.c.b16 %v2598, %v2596
        %v2965 = vpack.c.b16 %v2601, %v2599
        %v2966 = vpack.c.b16 %v2602, %v2600
        %v2967 = vpack.c.b16 %v2605, %v2603
        %v2968 = vpack.c.b16 %v2606, %v2604
        %v2969 = vpack.c.b16 %v2609, %v2607
        %v2970 = vpack.c.b16 %v2610, %v2608
        %v2971 = vpack.c.b16 %v2613, %v2611
        %v2972 = vpack.c.b16 %v2614, %v2612
        %v2973 = vpack.c.b16 %v2617, %v2615
        %v2974 = vpack.c.b16 %v2618, %v2616
        %v2975 = vpack.c.b16 %v2621, %v2619
        %v2976 = vpack.c.b16 %v2622, %v2620
        %v2977 = vpack.c.b16 %v2625, %v2623
        %v2978 = vpack.c.b16 %v2626, %v2624
        %v2979 = vpack.c.b16 %v2629, %v2627
        %v2980 = vpack.c.b16 %v2630, %v2628
        %v2981 = vpack.c.b16 %v2633, %v2631
        %v2982 = vpack.c.b16 %v2634, %v2632
        %v2983 = vpack.c.b16 %v2637, %v2635
        %v2984 = vpack.c.b16 %v2638, %v2636
        %v2985 = vpack.c.b16 %v2641, %v2639
        %v2986 = vpack.c.b16 %v2642, %v2640
        %v2987 = vpack.c.b16 %v2645, %v2643
        %v2988 = vpack.c.b16 %v2646, %v2644
        %v2989 = vpack.c.b16 %v2649, %v2647
        %v2990 = vpack.c.b16 %v2650, %v2648
        %v2991 = vpack.c.b16 %v2653, %v2651
        %v2992 = vpack.c.b16 %v2654, %v2652
        %v2993 = vpack.c.b16 %v2657, %v2655
        %v2994 = vpack.c.b16 %v2658, %v2656
        %v2995 = vpack.c.b16 %v2661, %v2659
        %v2996 = vpack.c.b16 %v2662, %v2660
        %v2997 = vpack.c.b16 %v2665, %v2663
        %v2998 = vpack.c.b16 %v2666, %v2664
        %v2999 = vpack.c.b16 %v2669, %v2667
        %v3000 = vpack.c.b16 %v2670, %v2668
        %v3001 = vpack.c.b16 %v2673, %v2671
        %v3002 = vpack.c.b16 %v2674, %v2672
        %v3003 = vpack.c.b16 %v2677, %v2675
        %v3004 = vpack.c.b16 %v2678, %v2676
        %v3005 = vpack.c.b16 %v2681, %v2679
        %v3006 = vpack.c.b16 %v2682, %v2680
        %v3007 = vpack.c.b16 %v2685, %v2683
        %v3008 = vpack.c.b16 %v2686, %v2684
        %v3009 = vpack.c.b16 %v2689, %v2687
        %v3010 = vpack.c.b16 %v2690, %v2688
        %v3011 = vpack.c.b16 %v2693, %v2691
        %v3012 = vpack.c.b16 %v2694, %v2692
        %v3013 = vpack.c.b16 %v2697, %v2695
        %v3014 = vpack.c.b16 %v2698, %v2696
        %v3015 = vpack.c.b16 %v2701, %v2699
        %v3016 = vpack.c.b16 %v2702, %v2700
        %v3017 = vpack.c.b16 %v2705, %v2703
        %v3018 = vpack.c.b16 %v2706, %v2704
        %v3019 = vpack.c.b16 %v2709, %v2707
        %v3020 = vpack.c.b16 %v2710, %v2708
        %v3021 = vpack.c.b16 %v2713, %v2711
        %v3022 = vpack.c.b16 %v2714, %v2712
        %v3023 = vpack.c.b16 %v2717, %v2715
        %v3024 = vpack.c.b16 %v2718, %v2716
        %v3025 = vpack.c.b16 %v2721, %v2719
        %v3026 = vpack.c.b16 %v2722, %v2720
        %v3027 = vpack.c.b16 %v2725, %v2723
        %v3028 = vpack.c.b16 %v2726, %v2724
        %v3029 = vpack.c.b16 %v2729, %v2727
        %v3030 = vpack.c.b16 %v2730, %v2728
        %v3031 = vpack.c.b16 %v2733, %v2731
        %v3032 = vpack.c.b16 %v2734, %v2732
        %v3033 = vpack.c.b16 %v2737, %v2735
        %v3034 = vpack.c.b16 %v2738, %v2736
        %v3035 = vpack.c.b16 %v2741, %v2739
        %v3036 = vpack.c.b16 %v2742, %v2740
        %v3037 = vpack.c.b16 %v2745, %v2743
        %v3038 = vpack.c.b16 %v2746, %v2744
        %v3039 = vpack.c.b16 %v2749, %v2747
        %v3040 = vpack.c.b16 %v2750, %v2748
        %v3041 = vpack.c.b16 %v2753, %v2751
        %v3042 = vpack.c.b16 %v2754, %v2752
        %3331 = vmatprep.subr.bf16.mxu0 %v2756
        %3332 = vmatpush1.bf16.msra.mxu0 %v2755
        %3333 = vmatprep.subr.bf16.mxu0 %v2758
        %3334 = vmatpush1.bf16.msra.mxu0 %v2757
        %3335 = vmatprep.subr.bf16.mxu0 %v2760
        %3336 = vmatpush1.bf16.msra.mxu0 %v2759
        %3337 = vmatprep.subr.bf16.mxu0 %v2762
        %3338 = vmatpush1.bf16.msra.mxu0 %v2761
        %3339 = vmatprep.subr.bf16.mxu0 %v2764
        %3340 = vmatpush1.bf16.msra.mxu0 %v2763
        %3341 = vmatprep.subr.bf16.mxu0 %v2766
        %3342 = vmatpush1.bf16.msra.mxu0 %v2765
        %3343 = vmatprep.subr.bf16.mxu0 %v2768
        %3344 = vmatpush1.bf16.msra.mxu0 %v2767
        %3345 = vmatprep.subr.bf16.mxu0 %v2770
        %3346 = vmatpush1.bf16.msra.mxu0 %v2769
        %3347 = vmatprep.subr.bf16.mxu0 %v2772
        %3348 = vmatpush1.bf16.msra.mxu0 %v2771
        %3349 = vmatprep.subr.bf16.mxu0 %v2774
        %3350 = vmatpush1.bf16.msra.mxu0 %v2773
        %3351 = vmatprep.subr.bf16.mxu0 %v2776
        %3352 = vmatpush1.bf16.msra.mxu0 %v2775
        %3353 = vmatprep.subr.bf16.mxu0 %v2778
        %3354 = vmatpush1.bf16.msra.mxu0 %v2777
        %3355 = vmatprep.subr.bf16.mxu0 %v2780
        %3356 = vmatpush1.bf16.msra.mxu0 %v2779
        %3357 = vmatprep.subr.bf16.mxu0 %v2782
        %3358 = vmatpush1.bf16.msra.mxu0 %v2781
        %3359 = vmatprep.subr.bf16.mxu0 %v2784
        %3360 = vmatpush1.bf16.msra.mxu0 %v2783
        %3361 = vmatprep.subr.bf16.mxu0 %v2786
        %3362 = vmatpush1.bf16.msra.mxu0 %v2785
        %3363 = vmatprep.mubr.bf16.mxu0 %v1820
        %3364 = vmatmul.mubr.bf16.gmra.mrb[0].mxu0 %v1819
        %v3365 = vpop.f32.mrb[0].mxu0
        %v3366 = vadd.f32 %v1704, %v3365
        %v3367 = vpop.f32.mrb[0].mxu0
        %v3368 = vadd.f32 %v1708, %v3367
        %v3369 = vpop.f32.mrb[0].mxu0
        %v3370 = vadd.f32 %v1704, %v3369
        %v3371 = vpop.f32.mrb[0].mxu0
        %v3372 = vadd.f32 %v1708, %v3371
        %3373 = vmatprep.mubr.bf16.mxu0 %v1838
        %3374 = vmatmul.mubr.bf16.gmra.mrb[0].mxu0 %v1837
        %v3375 = vpop.f32.mrb[0].mxu0
        %v3376 = vadd.f32 %v1704, %v3375
        %v3377 = vpop.f32.mrb[0].mxu0
        %v3378 = vadd.f32 %v1708, %v3377
        %v3379 = vpop.f32.mrb[0].mxu0
        %v3380 = vadd.f32 %v1704, %v3379
        %v3381 = vpop.f32.mrb[0].mxu0
        %v3382 = vadd.f32 %v1708, %v3381
        %3383 = vdwg.mxu0
        %3384 = vmatprep.subr.bf16.mxu0 %v2788
        %3385 = vmatpush1.bf16.msra.mxu0 %v2787
        %3386 = vmatprep.subr.bf16.mxu0 %v2790
        %3387 = vmatpush1.bf16.msra.mxu0 %v2789
        %3388 = vmatprep.subr.bf16.mxu0 %v2792
        %3389 = vmatpush1.bf16.msra.mxu0 %v2791
        %3390 = vmatprep.subr.bf16.mxu0 %v2794
        %3391 = vmatpush1.bf16.msra.mxu0 %v2793
        %3392 = vmatprep.subr.bf16.mxu0 %v2796
        %3393 = vmatpush1.bf16.msra.mxu0 %v2795
        %3394 = vmatprep.subr.bf16.mxu0 %v2798
        %3395 = vmatpush1.bf16.msra.mxu0 %v2797
        %3396 = vmatprep.subr.bf16.mxu0 %v2800
        %3397 = vmatpush1.bf16.msra.mxu0 %v2799
        %3398 = vmatprep.subr.bf16.mxu0 %v2802
        %3399 = vmatpush1.bf16.msra.mxu0 %v2801
        %3400 = vmatprep.subr.bf16.mxu0 %v2804
        %3401 = vmatpush1.bf16.msra.mxu0 %v2803
        %3402 = vmatprep.subr.bf16.mxu0 %v2806
        %3403 = vmatpush1.bf16.msra.mxu0 %v2805
        %3404 = vmatprep.subr.bf16.mxu0 %v2808
        %3405 = vmatpush1.bf16.msra.mxu0 %v2807
        %3406 = vmatprep.subr.bf16.mxu0 %v2810
        %3407 = vmatpush1.bf16.msra.mxu0 %v2809
        %3408 = vmatprep.subr.bf16.mxu0 %v2812
        %3409 = vmatpush1.bf16.msra.mxu0 %v2811
        %3410 = vmatprep.subr.bf16.mxu0 %v2814
        %3411 = vmatpush1.bf16.msra.mxu0 %v2813
        %3412 = vmatprep.subr.bf16.mxu0 %v2816
        %3413 = vmatpush1.bf16.msra.mxu0 %v2815
        %3414 = vmatprep.subr.bf16.mxu0 %v2818
        %3415 = vmatpush1.bf16.msra.mxu0 %v2817
        %3416 = vmatprep.mubr.bf16.mxu0 %v1822
        %3417 = vmatmul.mubr.bf16.gmra.mrb[0].mxu0 %v1821
        %v3418 = vpop.f32.mrb[0].mxu0
        %v3419 = vadd.f32 %v3366, %v3418
        %v3420 = vpop.f32.mrb[0].mxu0
        %v3421 = vadd.f32 %v3368, %v3420
        %v3422 = vpop.f32.mrb[0].mxu0
        %v3423 = vadd.f32 %v3370, %v3422
        %v3424 = vpop.f32.mrb[0].mxu0
        %v3425 = vadd.f32 %v3372, %v3424
        %3426 = vmatprep.mubr.bf16.mxu0 %v1840
        %3427 = vmatmul.mubr.bf16.gmra.mrb[0].mxu0 %v1839
        %v3428 = vpop.f32.mrb[0].mxu0
        %v3429 = vadd.f32 %v3376, %v3428
        %v3430 = vpop.f32.mrb[0].mxu0
        %v3431 = vadd.f32 %v3378, %v3430
        %v3432 = vpop.f32.mrb[0].mxu0
        %v3433 = vadd.f32 %v3380, %v3432
        %v3434 = vpop.f32.mrb[0].mxu0
        %v3435 = vadd.f32 %v3382, %v3434
        %3436 = vdwg.mxu0
        %3437 = vmatprep.subr.bf16.mxu0 %v2820
        %3438 = vmatpush1.bf16.msra.mxu0 %v2819
        %3439 = vmatprep.subr.bf16.mxu0 %v2822
        %3440 = vmatpush1.bf16.msra.mxu0 %v2821
        %3441 = vmatprep.subr.bf16.mxu0 %v2824
        %3442 = vmatpush1.bf16.msra.mxu0 %v2823
        %3443 = vmatprep.subr.bf16.mxu0 %v2826
        %3444 = vmatpush1.bf16.msra.mxu0 %v2825
        %3445 = vmatprep.subr.bf16.mxu0 %v2828
        %3446 = vmatpush1.bf16.msra.mxu0 %v2827
        %3447 = vmatprep.subr.bf16.mxu0 %v2830
        %3448 = vmatpush1.bf16.msra.mxu0 %v2829
        %3449 = vmatprep.subr.bf16.mxu0 %v2832
        %3450 = vmatpush1.bf16.msra.mxu0 %v2831
        %3451 = vmatprep.subr.bf16.mxu0 %v2834
        %3452 = vmatpush1.bf16.msra.mxu0 %v2833
        %3453 = vmatprep.subr.bf16.mxu0 %v2836
        %3454 = vmatpush1.bf16.msra.mxu0 %v2835
        %3455 = vmatprep.subr.bf16.mxu0 %v2838
        %3456 = vmatpush1.bf16.msra.mxu0 %v2837
        %3457 = vmatprep.subr.bf16.mxu0 %v2840
        %3458 = vmatpush1.bf16.msra.mxu0 %v2839
        %3459 = vmatprep.subr.bf16.mxu0 %v2842
        %3460 = vmatpush1.bf16.msra.mxu0 %v2841
        %3461 = vmatprep.subr.bf16.mxu0 %v2844
        %3462 = vmatpush1.bf16.msra.mxu0 %v2843
        %3463 = vmatprep.subr.bf16.mxu0 %v2846
        %3464 = vmatpush1.bf16.msra.mxu0 %v2845
        %3465 = vmatprep.subr.bf16.mxu0 %v2848
        %3466 = vmatpush1.bf16.msra.mxu0 %v2847
        %3467 = vmatprep.subr.bf16.mxu0 %v2850
        %3468 = vmatpush1.bf16.msra.mxu0 %v2849
        %3469 = vmatprep.mubr.bf16.mxu0 %v1824
        %3470 = vmatmul.mubr.bf16.gmra.mrb[0].mxu0 %v1823
        %v3471 = vpop.f32.mrb[0].mxu0
        %v3472 = vadd.f32 %v3419, %v3471
        %v3473 = vpop.f32.mrb[0].mxu0
        %v3474 = vadd.f32 %v3421, %v3473
        %v3475 = vpop.f32.mrb[0].mxu0
        %v3476 = vadd.f32 %v3423, %v3475
        %v3477 = vpop.f32.mrb[0].mxu0
        %v3478 = vadd.f32 %v3425, %v3477
        %3479 = vmatprep.mubr.bf16.mxu0 %v1842
        %3480 = vmatmul.mubr.bf16.gmra.mrb[0].mxu0 %v1841
        %v3481 = vpop.f32.mrb[0].mxu0
        %v3482 = vadd.f32 %v3429, %v3481
        %v3483 = vpop.f32.mrb[0].mxu0
        %v3484 = vadd.f32 %v3431, %v3483
        %v3485 = vpop.f32.mrb[0].mxu0
        %v3486 = vadd.f32 %v3433, %v3485
        %v3487 = vpop.f32.mrb[0].mxu0
        %v3488 = vadd.f32 %v3435, %v3487
        %3489 = vdwg.mxu0
        %3490 = vmatprep.subr.bf16.mxu0 %v2852
        %3491 = vmatpush1.bf16.msra.mxu0 %v2851
        %3492 = vmatprep.subr.bf16.mxu0 %v2854
        %3493 = vmatpush1.bf16.msra.mxu0 %v2853
        %3494 = vmatprep.subr.bf16.mxu0 %v2856
        %3495 = vmatpush1.bf16.msra.mxu0 %v2855
        %3496 = vmatprep.subr.bf16.mxu0 %v2858
        %3497 = vmatpush1.bf16.msra.mxu0 %v2857
        %3498 = vmatprep.subr.bf16.mxu0 %v2860
        %3499 = vmatpush1.bf16.msra.mxu0 %v2859
        %3500 = vmatprep.subr.bf16.mxu0 %v2862
        %3501 = vmatpush1.bf16.msra.mxu0 %v2861
        %3502 = vmatprep.subr.bf16.mxu0 %v2864
        %3503 = vmatpush1.bf16.msra.mxu0 %v2863
        %3504 = vmatprep.subr.bf16.mxu0 %v2866
        %3505 = vmatpush1.bf16.msra.mxu0 %v2865
        %3506 = vmatprep.subr.bf16.mxu0 %v2868
        %3507 = vmatpush1.bf16.msra.mxu0 %v2867
        %3508 = vmatprep.subr.bf16.mxu0 %v2870
        %3509 = vmatpush1.bf16.msra.mxu0 %v2869
        %3510 = vmatprep.subr.bf16.mxu0 %v2872
        %3511 = vmatpush1.bf16.msra.mxu0 %v2871
        %3512 = vmatprep.subr.bf16.mxu0 %v2874
        %3513 = vmatpush1.bf16.msra.mxu0 %v2873
        %3514 = vmatprep.subr.bf16.mxu0 %v2876
        %3515 = vmatpush1.bf16.msra.mxu0 %v2875
        %3516 = vmatprep.subr.bf16.mxu0 %v2878
        %3517 = vmatpush1.bf16.msra.mxu0 %v2877
        %3518 = vmatprep.subr.bf16.mxu0 %v2880
        %3519 = vmatpush1.bf16.msra.mxu0 %v2879
        %3520 = vmatprep.subr.bf16.mxu0 %v2882
        %3521 = vmatpush1.bf16.msra.mxu0 %v2881
        %3522 = vmatprep.mubr.bf16.mxu0 %v1826
        %3523 = vmatmul.mubr.bf16.gmra.mrb[0].mxu0 %v1825
        %v3524 = vpop.f32.mrb[0].mxu0
        %v3525 = vadd.f32 %v3472, %v3524
        %v3526 = vpop.f32.mrb[0].mxu0
        %v3527 = vadd.f32 %v3474, %v3526
        %v3528 = vpop.f32.mrb[0].mxu0
        %v3529 = vadd.f32 %v3476, %v3528
        %v3530 = vpop.f32.mrb[0].mxu0
        %v3531 = vadd.f32 %v3478, %v3530
        %3532 = vmatprep.mubr.bf16.mxu0 %v1844
        %3533 = vmatmul.mubr.bf16.gmra.mrb[0].mxu0 %v1843
        %v3534 = vpop.f32.mrb[0].mxu0
        %v3535 = vadd.f32 %v3482, %v3534
        %v3536 = vpop.f32.mrb[0].mxu0
        %v3537 = vadd.f32 %v3484, %v3536
        %v3538 = vpop.f32.mrb[0].mxu0
        %v3539 = vadd.f32 %v3486, %v3538
        %v3540 = vpop.f32.mrb[0].mxu0
        %v3541 = vadd.f32 %v3488, %v3540
        %3542 = vdwg.mxu0
        %3543 = vmatprep.subr.bf16.mxu0 %v2884
        %3544 = vmatpush1.bf16.msra.mxu0 %v2883
        %3545 = vmatprep.subr.bf16.mxu0 %v2886
        %3546 = vmatpush1.bf16.msra.mxu0 %v2885
        %3547 = vmatprep.subr.bf16.mxu0 %v2888
        %3548 = vmatpush1.bf16.msra.mxu0 %v2887
        %3549 = vmatprep.subr.bf16.mxu0 %v2890
        %3550 = vmatpush1.bf16.msra.mxu0 %v2889
        %3551 = vmatprep.subr.bf16.mxu0 %v2892
        %3552 = vmatpush1.bf16.msra.mxu0 %v2891
        %3553 = vmatprep.subr.bf16.mxu0 %v2894
        %3554 = vmatpush1.bf16.msra.mxu0 %v2893
        %3555 = vmatprep.subr.bf16.mxu0 %v2896
        %3556 = vmatpush1.bf16.msra.mxu0 %v2895
        %3557 = vmatprep.subr.bf16.mxu0 %v2898
        %3558 = vmatpush1.bf16.msra.mxu0 %v2897
        %3559 = vmatprep.subr.bf16.mxu0 %v2900
        %3560 = vmatpush1.bf16.msra.mxu0 %v2899
        %3561 = vmatprep.subr.bf16.mxu0 %v2902
        %3562 = vmatpush1.bf16.msra.mxu0 %v2901
        %3563 = vmatprep.subr.bf16.mxu0 %v2904
        %3564 = vmatpush1.bf16.msra.mxu0 %v2903
        %3565 = vmatprep.subr.bf16.mxu0 %v2906
        %3566 = vmatpush1.bf16.msra.mxu0 %v2905
        %3567 = vmatprep.subr.bf16.mxu0 %v2908
        %3568 = vmatpush1.bf16.msra.mxu0 %v2907
        %3569 = vmatprep.subr.bf16.mxu0 %v2910
        %3570 = vmatpush1.bf16.msra.mxu0 %v2909
        %3571 = vmatprep.subr.bf16.mxu0 %v2912
        %3572 = vmatpush1.bf16.msra.mxu0 %v2911
        %3573 = vmatprep.subr.bf16.mxu0 %v2914
        %3574 = vmatpush1.bf16.msra.mxu0 %v2913
        %3575 = vmatprep.mubr.bf16.mxu0 %v1828
        %3576 = vmatmul.mubr.bf16.gmra.mrb[0].mxu0 %v1827
        %v3577 = vpop.f32.mrb[0].mxu0
        %v3578 = vadd.f32 %v3525, %v3577
        %v3579 = vpop.f32.mrb[0].mxu0
        %v3580 = vadd.f32 %v3527, %v3579
        %v3581 = vpop.f32.mrb[0].mxu0
        %v3582 = vadd.f32 %v3529, %v3581
        %v3583 = vpop.f32.mrb[0].mxu0
        %v3584 = vadd.f32 %v3531, %v3583
        %3585 = vmatprep.mubr.bf16.mxu0 %v1846
        %3586 = vmatmul.mubr.bf16.gmra.mrb[0].mxu0 %v1845
        %v3587 = vpop.f32.mrb[0].mxu0
        %v3588 = vadd.f32 %v3535, %v3587
        %v3589 = vpop.f32.mrb[0].mxu0
        %v3590 = vadd.f32 %v3537, %v3589
        %v3591 = vpop.f32.mrb[0].mxu0
        %v3592 = vadd.f32 %v3539, %v3591
        %v3593 = vpop.f32.mrb[0].mxu0
        %v3594 = vadd.f32 %v3541, %v3593
        %3595 = vdwg.mxu0
        %3596 = vmatprep.subr.bf16.mxu0 %v2916
        %3597 = vmatpush1.bf16.msra.mxu0 %v2915
        %3598 = vmatprep.subr.bf16.mxu0 %v2918
        %3599 = vmatpush1.bf16.msra.mxu0 %v2917
        %3600 = vmatprep.subr.bf16.mxu0 %v2920
        %3601 = vmatpush1.bf16.msra.mxu0 %v2919
        %3602 = vmatprep.subr.bf16.mxu0 %v2922
        %3603 = vmatpush1.bf16.msra.mxu0 %v2921
        %3604 = vmatprep.subr.bf16.mxu0 %v2924
        %3605 = vmatpush1.bf16.msra.mxu0 %v2923
        %3606 = vmatprep.subr.bf16.mxu0 %v2926
        %3607 = vmatpush1.bf16.msra.mxu0 %v2925
        %3608 = vmatprep.subr.bf16.mxu0 %v2928
        %3609 = vmatpush1.bf16.msra.mxu0 %v2927
        %3610 = vmatprep.subr.bf16.mxu0 %v2930
        %3611 = vmatpush1.bf16.msra.mxu0 %v2929
        %3612 = vmatprep.subr.bf16.mxu0 %v2932
        %3613 = vmatpush1.bf16.msra.mxu0 %v2931
        %3614 = vmatprep.subr.bf16.mxu0 %v2934
        %3615 = vmatpush1.bf16.msra.mxu0 %v2933
        %3616 = vmatprep.subr.bf16.mxu0 %v2936
        %3617 = vmatpush1.bf16.msra.mxu0 %v2935
        %3618 = vmatprep.subr.bf16.mxu0 %v2938
        %3619 = vmatpush1.bf16.msra.mxu0 %v2937
        %3620 = vmatprep.subr.bf16.mxu0 %v2940
        %3621 = vmatpush1.bf16.msra.mxu0 %v2939
        %3622 = vmatprep.subr.bf16.mxu0 %v2942
        %3623 = vmatpush1.bf16.msra.mxu0 %v2941
        %3624 = vmatprep.subr.bf16.mxu0 %v2944
        %3625 = vmatpush1.bf16.msra.mxu0 %v2943
        %3626 = vmatprep.subr.bf16.mxu0 %v2946
        %3627 = vmatpush1.bf16.msra.mxu0 %v2945
        %3628 = vmatprep.mubr.bf16.mxu0 %v1830
        %3629 = vmatmul.mubr.bf16.gmra.mrb[0].mxu0 %v1829
        %v3630 = vpop.f32.mrb[0].mxu0
        %v3631 = vadd.f32 %v3578, %v3630
        %v3632 = vpop.f32.mrb[0].mxu0
        %v3633 = vadd.f32 %v3580, %v3632
        %v3634 = vpop.f32.mrb[0].mxu0
        %v3635 = vadd.f32 %v3582, %v3634
        %v3636 = vpop.f32.mrb[0].mxu0
        %v3637 = vadd.f32 %v3584, %v3636
        %3638 = vmatprep.mubr.bf16.mxu0 %v1848
        %3639 = vmatmul.mubr.bf16.gmra.mrb[0].mxu0 %v1847
        %v3640 = vpop.f32.mrb[0].mxu0
        %v3641 = vadd.f32 %v3588, %v3640
        %v3642 = vpop.f32.mrb[0].mxu0
        %v3643 = vadd.f32 %v3590, %v3642
        %v3644 = vpop.f32.mrb[0].mxu0
        %v3645 = vadd.f32 %v3592, %v3644
        %v3646 = vpop.f32.mrb[0].mxu0
        %v3647 = vadd.f32 %v3594, %v3646
        %3648 = vdwg.mxu0
        %3649 = vmatprep.subr.bf16.mxu0 %v2948
        %3650 = vmatpush1.bf16.msra.mxu0 %v2947
        %3651 = vmatprep.subr.bf16.mxu0 %v2950
        %3652 = vmatpush1.bf16.msra.mxu0 %v2949
        %3653 = vmatprep.subr.bf16.mxu0 %v2952
        %3654 = vmatpush1.bf16.msra.mxu0 %v2951
        %3655 = vmatprep.subr.bf16.mxu0 %v2954
        %3656 = vmatpush1.bf16.msra.mxu0 %v2953
        %3657 = vmatprep.subr.bf16.mxu0 %v2956
        %3658 = vmatpush1.bf16.msra.mxu0 %v2955
        %3659 = vmatprep.subr.bf16.mxu0 %v2958
        %3660 = vmatpush1.bf16.msra.mxu0 %v2957
        %3661 = vmatprep.subr.bf16.mxu0 %v2960
        %3662 = vmatpush1.bf16.msra.mxu0 %v2959
        %3663 = vmatprep.subr.bf16.mxu0 %v2962
        %3664 = vmatpush1.bf16.msra.mxu0 %v2961
        %3665 = vmatprep.subr.bf16.mxu0 %v2964
        %3666 = vmatpush1.bf16.msra.mxu0 %v2963
        %3667 = vmatprep.subr.bf16.mxu0 %v2966
        %3668 = vmatpush1.bf16.msra.mxu0 %v2965
        %3669 = vmatprep.subr.bf16.mxu0 %v2968
        %3670 = vmatpush1.bf16.msra.mxu0 %v2967
        %3671 = vmatprep.subr.bf16.mxu0 %v2970
        %3672 = vmatpush1.bf16.msra.mxu0 %v2969
        %3673 = vmatprep.subr.bf16.mxu0 %v2972
        %3674 = vmatpush1.bf16.msra.mxu0 %v2971
        %3675 = vmatprep.subr.bf16.mxu0 %v2974
        %3676 = vmatpush1.bf16.msra.mxu0 %v2973
        %3677 = vmatprep.subr.bf16.mxu0 %v2976
        %3678 = vmatpush1.bf16.msra.mxu0 %v2975
        %3679 = vmatprep.subr.bf16.mxu0 %v2978
        %3680 = vmatpush1.bf16.msra.mxu0 %v2977
        %3681 = vmatprep.mubr.bf16.mxu0 %v1832
        %3682 = vmatmul.mubr.bf16.gmra.mrb[0].mxu0 %v1831
        %v3683 = vpop.f32.mrb[0].mxu0
        %v3684 = vadd.f32 %v3631, %v3683
        %v3685 = vpop.f32.mrb[0].mxu0
        %v3686 = vadd.f32 %v3633, %v3685
        %v3687 = vpop.f32.mrb[0].mxu0
        %v3688 = vadd.f32 %v3635, %v3687
        %v3689 = vpop.f32.mrb[0].mxu0
        %v3690 = vadd.f32 %v3637, %v3689
        %3691 = vmatprep.mubr.bf16.mxu0 %v1850
        %3692 = vmatmul.mubr.bf16.gmra.mrb[0].mxu0 %v1849
        %v3693 = vpop.f32.mrb[0].mxu0
        %v3694 = vadd.f32 %v3641, %v3693
        %v3695 = vpop.f32.mrb[0].mxu0
        %v3696 = vadd.f32 %v3643, %v3695
        %v3697 = vpop.f32.mrb[0].mxu0
        %v3698 = vadd.f32 %v3645, %v3697
        %v3699 = vpop.f32.mrb[0].mxu0
        %v3700 = vadd.f32 %v3647, %v3699
        %3701 = vdwg.mxu0
        %3702 = vmatprep.subr.bf16.mxu0 %v2980
        %3703 = vmatpush1.bf16.msra.mxu0 %v2979
        %3704 = vmatprep.subr.bf16.mxu0 %v2982
        %3705 = vmatpush1.bf16.msra.mxu0 %v2981
        %3706 = vmatprep.subr.bf16.mxu0 %v2984
        %3707 = vmatpush1.bf16.msra.mxu0 %v2983
        %3708 = vmatprep.subr.bf16.mxu0 %v2986
        %3709 = vmatpush1.bf16.msra.mxu0 %v2985
        %3710 = vmatprep.subr.bf16.mxu0 %v2988
        %3711 = vmatpush1.bf16.msra.mxu0 %v2987
        %3712 = vmatprep.subr.bf16.mxu0 %v2990
        %3713 = vmatpush1.bf16.msra.mxu0 %v2989
        %3714 = vmatprep.subr.bf16.mxu0 %v2992
        %3715 = vmatpush1.bf16.msra.mxu0 %v2991
        %3716 = vmatprep.subr.bf16.mxu0 %v2994
        %3717 = vmatpush1.bf16.msra.mxu0 %v2993
        %3718 = vmatprep.subr.bf16.mxu0 %v2996
        %3719 = vmatpush1.bf16.msra.mxu0 %v2995
        %3720 = vmatprep.subr.bf16.mxu0 %v2998
        %3721 = vmatpush1.bf16.msra.mxu0 %v2997
        %3722 = vmatprep.subr.bf16.mxu0 %v3000
        %3723 = vmatpush1.bf16.msra.mxu0 %v2999
        %3724 = vmatprep.subr.bf16.mxu0 %v3002
        %3725 = vmatpush1.bf16.msra.mxu0 %v3001
        %3726 = vmatprep.subr.bf16.mxu0 %v3004
        %3727 = vmatpush1.bf16.msra.mxu0 %v3003
        %3728 = vmatprep.subr.bf16.mxu0 %v3006
        %3729 = vmatpush1.bf16.msra.mxu0 %v3005
        %3730 = vmatprep.subr.bf16.mxu0 %v3008
        %3731 = vmatpush1.bf16.msra.mxu0 %v3007
        %3732 = vmatprep.subr.bf16.mxu0 %v3010
        %3733 = vmatpush1.bf16.msra.mxu0 %v3009
        %3734 = vmatprep.mubr.bf16.mxu0 %v1834
        %3735 = vmatmul.mubr.bf16.gmra.mrb[0].mxu0 %v1833
        %v3736 = vpop.f32.mrb[0].mxu0
        %v3737 = vadd.f32 %v3684, %v3736
        %v3738 = vpop.f32.mrb[0].mxu0
        %v3739 = vadd.f32 %v3686, %v3738
        %v3740 = vpop.f32.mrb[0].mxu0
        %v3741 = vadd.f32 %v3688, %v3740
        %v3742 = vpop.f32.mrb[0].mxu0
        %v3743 = vadd.f32 %v3690, %v3742
        %3744 = vmatprep.mubr.bf16.mxu0 %v1852
        %3745 = vmatmul.mubr.bf16.gmra.mrb[0].mxu0 %v1851
        %v3746 = vpop.f32.mrb[0].mxu0
        %v3747 = vadd.f32 %v3694, %v3746
        %v3748 = vpop.f32.mrb[0].mxu0
        %v3749 = vadd.f32 %v3696, %v3748
        %v3750 = vpop.f32.mrb[0].mxu0
        %v3751 = vadd.f32 %v3698, %v3750
        %v3752 = vpop.f32.mrb[0].mxu0
        %v3753 = vadd.f32 %v3700, %v3752
        %3754 = vdwg.mxu0
        %3755 = vmatprep.subr.bf16.mxu0 %v3012
        %3756 = vmatpush1.bf16.msra.mxu0 %v3011
        %3757 = vmatprep.subr.bf16.mxu0 %v3014
        %3758 = vmatpush1.bf16.msra.mxu0 %v3013
        %3759 = vmatprep.subr.bf16.mxu0 %v3016
        %3760 = vmatpush1.bf16.msra.mxu0 %v3015
        %3761 = vmatprep.subr.bf16.mxu0 %v3018
        %3762 = vmatpush1.bf16.msra.mxu0 %v3017
        %3763 = vmatprep.subr.bf16.mxu0 %v3020
        %3764 = vmatpush1.bf16.msra.mxu0 %v3019
        %3765 = vmatprep.subr.bf16.mxu0 %v3022
        %3766 = vmatpush1.bf16.msra.mxu0 %v3021
        %3767 = vmatprep.subr.bf16.mxu0 %v3024
        %3768 = vmatpush1.bf16.msra.mxu0 %v3023
        %3769 = vmatprep.subr.bf16.mxu0 %v3026
        %3770 = vmatpush1.bf16.msra.mxu0 %v3025
        %3771 = vmatprep.subr.bf16.mxu0 %v3028
        %3772 = vmatpush1.bf16.msra.mxu0 %v3027
        %3773 = vmatprep.subr.bf16.mxu0 %v3030
        %3774 = vmatpush1.bf16.msra.mxu0 %v3029
        %3775 = vmatprep.subr.bf16.mxu0 %v3032
        %3776 = vmatpush1.bf16.msra.mxu0 %v3031
        %3777 = vmatprep.subr.bf16.mxu0 %v3034
        %3778 = vmatpush1.bf16.msra.mxu0 %v3033
        %3779 = vmatprep.subr.bf16.mxu0 %v3036
        %3780 = vmatpush1.bf16.msra.mxu0 %v3035
        %3781 = vmatprep.subr.bf16.mxu0 %v3038
        %3782 = vmatpush1.bf16.msra.mxu0 %v3037
        %3783 = vmatprep.subr.bf16.mxu0 %v3040
        %3784 = vmatpush1.bf16.msra.mxu0 %v3039
        %3785 = vmatprep.subr.bf16.mxu0 %v3042
        %3786 = vmatpush1.bf16.msra.mxu0 %v3041
        %3787 = vmatprep.mubr.bf16.mxu0 %v1836
        %3788 = vmatmul.mubr.bf16.gmra.mrb[0].mxu0 %v1835
        %v3789 = vpop.f32.mrb[0].mxu0
        %v3790 = vadd.f32 %v3737, %v3789
        %v3791 = vpop.f32.mrb[0].mxu0
        %v3792 = vadd.f32 %v3739, %v3791
        %v3793 = vpop.f32.mrb[0].mxu0
        %v3794 = vadd.f32 %v3741, %v3793
        %v3795 = vpop.f32.mrb[0].mxu0
        %v3796 = vadd.f32 %v3743, %v3795
        %3797 = vmatprep.mubr.bf16.mxu0 %v1854
        %3798 = vmatmul.mubr.bf16.gmra.mrb[0].mxu0 %v1853
        %v3799 = vpop.f32.mrb[0].mxu0
        %v3800 = vadd.f32 %v3747, %v3799
        %v3801 = vpop.f32.mrb[0].mxu0
        %v3802 = vadd.f32 %v3749, %v3801
        %v3803 = vpop.f32.mrb[0].mxu0
        %v3804 = vadd.f32 %v3751, %v3803
        %v3805 = vpop.f32.mrb[0].mxu0
        %v3806 = vadd.f32 %v3753, %v3805
        %3807 = vdwg.mxu0
        %vm3808 = vcmp.ge.f32.partialorder %v3790, 0.0
        %vm3809 = vcmp.ge.f32.partialorder %v3792, 0.0
        %vm3810 = vcmp.ge.f32.partialorder %v3794, 0.0
        %vm3811 = vcmp.ge.f32.partialorder %v3796, 0.0
        %vm3812 = vcmp.ge.f32.partialorder %v3800, 0.0
        %vm3813 = vcmp.ge.f32.partialorder %v3802, 0.0
        %vm3814 = vcmp.ge.f32.partialorder %v3804, 0.0
        %vm3815 = vcmp.ge.f32.partialorder %v3806, 0.0
        %v3816 = vmul.f32 %v3790, 0.1
        %v3817 = vmul.f32 %v3792, 0.1
        %v3818 = vmul.f32 %v3794, 0.1
        %v3819 = vmul.f32 %v3796, 0.1
        %v3820 = vmul.f32 %v3800, 0.1
        %v3821 = vmul.f32 %v3802, 0.1
        %v3822 = vmul.f32 %v3804, 0.1
        %v3823 = vmul.f32 %v3806, 0.1
        %v3824 = vsel %vm3808, %v3790, %v3816
        %v3825 = vsel %vm3809, %v3792, %v3817
        %v3826 = vsel %vm3810, %v3794, %v3818
        %v3827 = vsel %vm3811, %v3796, %v3819
        %v3828 = vsel %vm3812, %v3800, %v3820
        %v3829 = vsel %vm3813, %v3802, %v3821
        %v3830 = vsel %vm3814, %v3804, %v3822
        %v3831 = vsel %vm3815, %v3806, %v3823
        %v3832 = vmax.f32 %v3824, %v3826
        %v3833 = vmax.f32 %v3825, %v3827
        %v3834 = vmax.f32 %v3828, %v3830
        %v3835 = vmax.f32 %v3829, %v3831
        %v3836 = vmax.f32 %v3832, %v3834
        %v3837 = vmax.f32 %v3833, %v3835
        %3838 = vst [vmem:[%s1373] sm:$0xff] %v3836
        %3839 = vst [vmem:[%s1373 + $0x8] sm:$0xff] %v3837
        %s3840 = smul.u32 2, %s14
        %p3841 = scmp.lt.s32.totalorder %s3840, 3
        %s3842 = scalar_select %p3841, %s3840, 3
        %s3843 = smul.addr %s3842, 8
        %s3844 = scalar_lea.vmem %s3, %s3843
        // Predicated region
        $region71: #{cnn_forward.8} parent=65 // pred_check
          %p3845 = pneg %p105
        $region72: #{cnn_forward.8} parent=65 // pred_check_branch
          %3847 = sbr.rel (%p3845) target = $region74
        $region73: #{cnn_forward.8} parent=65 // pred_region
          %s3848 = smul.u32 2, %s14
        $region74: #{cnn_forward.8} parent=65 // pred_fallthru
          _
      $region66: #{cnn_forward.8} parent=5 // pred_fallthru
        _
      %p3849 = scmp.le.s32.totalorder 2, %s9
      // Predicated region
      $region75: #{cnn_forward.8} parent=5 // pred_check
        %p3850 = pneg %p3849
      $region76: #{cnn_forward.8} parent=5 // pred_check_branch
        %3852 = sbr.rel (%p3850) target = $region78
      $region77: #{cnn_forward.8} parent=5 // pred_region
        %s3853 = ssub.s32 %s9, 2
        // Predicated region
        $region79: #{cnn_forward.8} parent=77 // pred_check
          %p3854 = pneg %p111
        $region80: #{cnn_forward.8} parent=77 // pred_check_branch
          %3856 = sbr.rel (%p3854) target = $region82
        $region81: #{cnn_forward.8} parent=77 // pred_region
          %s3857 = smul.u32 2, %s15
          %p3858 = scmp.lt.s32.totalorder %s3857, 3
          %s3859 = scalar_select %p3858, %s3857, 3
          %s3860 = smul.addr %s3859, 8
          %s3861 = scalar_lea.vmem %s3, %s3860
        $region82: #{cnn_forward.8} parent=77 // pred_fallthru
          _
      $region78: #{cnn_forward.8} parent=5 // pred_fallthru
        _
    $region6: #{cnn_forward.8} parent=1 // loop_footer
      %s13 = sadd.s32 1, %s9
    $region7: #{cnn_forward.8} parent=1 // loop_footer_branch
      %8 = sbr.rel target = $region3
    $region8: #{cnn_forward.8} parent=1 // loop_exit
      _

</llo_original>
